<compile_context>
chip_gen: v6e
topology: v6e:2x2x1
jax: 0.10.0
libtpu: 0.0.40
codegen_flags: <defaults>
</compile_context>

<pallas_src>
import jax
import jax.numpy as jnp
from jax.experimental import pallas as pl
from jax.experimental.pallas import tpu as pltpu


# ---------------------------------------------------------------------------
# Generation-aware VMEM sizing
# ---------------------------------------------------------------------------
def _detect_vmem_limit():
    cap = 64 * 1024 * 1024  # conservative fallback (v7x physical per-TC VMEM)
    try:
        info = pltpu.get_tpu_info()
        cap = int(getattr(info, "vmem_capacity_bytes", cap) or cap)
    except Exception:
        pass
    # ~60% of physical, capped at 96 MiB, floored at the 32 MiB scoped default.
    return max(32 * 1024 * 1024, min(96 * 1024 * 1024, int(0.6 * cap)))


_VMEM_LIMIT = _detect_vmem_limit()
_VMEM_BUDGET = int(0.55 * _VMEM_LIMIT)  # target resident footprint per grid step


def _largest_divisor_at_most(n, cap):
    cap = int(max(1, min(n, cap)))
    for d in range(cap, 0, -1):
        if n % d == 0:
            return d
    return 1


def _compiler_params():
    return pltpu.CompilerParams(
        dimension_semantics=("parallel", "parallel"),
        vmem_limit_bytes=_VMEM_LIMIT,
    )


# ---------------------------------------------------------------------------
# Kernel 1: ConvTranspose2d(k=2, s=2) as row-tiled matmuls
# ---------------------------------------------------------------------------
def _upconv2x2_kernel(x_ref, w_ref, b_ref, o_ref):
    # x_ref: (1, TH, W, Cin)        input row tile (compute dtype)
    # w_ref: (2, Cin, 2*Cout)       w[kh, ci, kw*Cout + co] (compute dtype)
    # b_ref: (1, 2*Cout)            bias tiled over kw (f32)
    # o_ref: (1, TH, 2, W, 2*Cout)  kh explicit, (kw, co) folded into the lane dim
    _, TH, W, Cin = x_ref.shape
    two_cout = w_ref.shape[-1]
    xv = x_ref[0].reshape(TH * W, Cin)                      # leading-dim merge (free)
    for kh in range(2):
        y = jnp.dot(xv, w_ref[kh], preferred_element_type=jnp.float32) + b_ref[...]
        o_ref[0, :, kh, :, :] = y.reshape(TH, W, two_cout).astype(o_ref.dtype)


def conv_transpose2x2_pallas(x_nhwc, wt, bt, *, compute_dtype=jnp.bfloat16, row_tile=None):
    """nn.ConvTranspose2d(Cin, Cout, kernel_size=2, stride=2), NHWC in / NHWC out.
    wt: torch layout (Cin, Cout, 2, 2);  bt: (Cout,)."""
    N, H, W, Cin = x_nhwc.shape
    Cout = wt.shape[1]
    cb = jnp.dtype(compute_dtype).itemsize

    def footprint(TH):
        return (2 * TH * W * Cin * cb            # input, double buffered
                + 2 * TH * W * 4 * Cout * cb     # output, double buffered
                + 2 * TH * W * 2 * Cout * 4      # f32 matmul result temps
                + 2 * 2 * Cin * 2 * Cout * cb)   # weights

    cap = min(H, row_tile if row_tile else H, max(1, 16384 // W))
    TH = _largest_divisor_at_most(H, cap)
    while TH > 1 and footprint(TH) > _VMEM_BUDGET:
        TH = _largest_divisor_at_most(H, TH - 1)

    x_c = x_nhwc.astype(compute_dtype)
    # w_k[kh, ci, kw*Cout + co] = wt[ci, co, kh, kw]
    w_k = jnp.transpose(wt, (2, 0, 3, 1)).reshape(2, Cin, 2 * Cout).astype(compute_dtype)
    b_k = jnp.tile(bt, 2).reshape(1, 2 * Cout).astype(jnp.float32)

    out = pl.pallas_call(
        _upconv2x2_kernel,
        out_shape=jax.ShapeDtypeStruct((N, H, 2, W, 2 * Cout), compute_dtype),
        grid=(N, H // TH),
        in_specs=[
            pl.BlockSpec((1, TH, W, Cin), lambda n, t: (n, t, 0, 0)),
            pl.BlockSpec((2, Cin, 2 * Cout), lambda n, t: (0, 0, 0)),
            pl.BlockSpec((1, 2 * Cout), lambda n, t: (0, 0)),
        ],
        out_specs=pl.BlockSpec((1, TH, 2, W, 2 * Cout), lambda n, t: (n, t, 0, 0, 0)),
        compiler_params=_compiler_params(),
    )(x_c, w_k, b_k)

    # (N, H, 2, W, 2*Cout) -> (N, 2H, 2W, Cout): pure row-major reshape (free).
    return out.reshape(N, 2 * H, 2 * W, Cout)


# ---------------------------------------------------------------------------
# Kernel 2: fused multi-source Conv2d(k=3, pad=1) + bias + ReLU, row tiled
# ---------------------------------------------------------------------------
def _make_conv3x3_kernel(src_channels, TH, W, Cout):
    n_src = len(src_channels)
    V = TH * W                      # output pixels per tile (flattened rows)
    ext_rows = (TH + 2) * W + 2     # [slot | top halo | centre rows | bottom halo | slot]

    def kernel(*refs):
        src_refs = refs[: 3 * n_src]
        w_refs = refs[3 * n_src: 4 * n_src]
        b_ref = refs[4 * n_src]
        o_ref = refs[4 * n_src + 1]
        ext_refs = refs[4 * n_src + 2: 4 * n_src + 2 + n_src]

        t = pl.program_id(1)
        nt = pl.num_programs(1)
        mtop = (t > 0).astype(jnp.float32)        # 0 on first tile -> zero padding
        mbot = (t < nt - 1).astype(jnp.float32)   # 0 on last tile  -> zero padding

        # Accumulators per kw group; bias folded into the centre-column accumulator.
        acc_c = jnp.zeros((V, Cout), jnp.float32) + b_ref[...]
        acc_l = jnp.zeros((V, Cout), jnp.float32)
        acc_r = jnp.zeros((V, Cout), jnp.float32)

        for s in range(n_src):
            c_ref = src_refs[3 * s]        # (1, TH, W, C) centre rows
            u_ref = src_refs[3 * s + 1]    # (1, 1,  W, C) row above (clamped)
            d_ref = src_refs[3 * s + 2]    # (1, 1,  W, C) row below (clamped)
            w_ref = w_refs[s]              # (3, 3, C, Cout)
            ext = ext_refs[s]              # ((TH+2)*W + 2, C) persistent VMEM scratch
            C = c_ref.shape[-1]
            dt = ext.dtype

            # Fill the vertically extended tile with a few contiguous ref stores
            # (no full-window zero fill; halo rows are masked at the grid edges).
            zero_row = jnp.zeros((1, C), dt)
            ext[0:1, :] = zero_row
            ext[1:1 + W, :] = (u_ref[0, 0].astype(jnp.float32) * mtop).astype(dt)
            ext[1 + W:1 + W + V, :] = c_ref[0].reshape(V, C)
            ext[1 + W + V:1 + 2 * W + V, :] = (
                d_ref[0, 0].astype(jnp.float32) * mbot).astype(dt)
            ext[ext_rows - 1:ext_rows, :] = zero_row

            # 9 taps = 9 shifted matmuls; the (kh, kw) shift lives in the LHS load
            # offset, so results accumulate unshifted and each matmul is exactly V rows.
            for kh in range(3):
                for kw in range(3):
                    off = kh * W + kw
                    lhs = ext[off:off + V, :]
                    y = jnp.dot(lhs, w_ref[kh, kw], preferred_element_type=jnp.float32)
                    if kw == 0:
                        acc_l = acc_l + y
                    elif kw == 1:
                        acc_c = acc_c + y
                    else:
                        acc_r = acc_r + y

        # Left/right taps wrap across row boundaries in the flattened layout; masking
        # the first / last output column implements the conv's width zero-padding.
        col = jax.lax.broadcasted_iota(jnp.int32, (TH, W, 1), 1)
        lmask = (col > 0).astype(jnp.float32)
        rmask = (col < W - 1).astype(jnp.float32)
        out = (acc_c.reshape(TH, W, Cout)
               + acc_l.reshape(TH, W, Cout) * lmask
               + acc_r.reshape(TH, W, Cout) * rmask)
        o_ref[0] = jnp.maximum(out, 0.0).astype(o_ref.dtype)   # bias already folded in

    return kernel


def conv3x3_bias_relu_pallas(srcs, weights, bias, *, compute_dtype=jnp.bfloat16,
                             out_dtype=None, row_tile=None):
    """Fused Conv2d(kernel=3, padding=1) + bias + ReLU over the channel-wise
    concatenation of `srcs`, without materializing the concat or any zero-pad.

    srcs:    list of NHWC arrays (N, H, W, C_s), all sharing N, H, W.
    weights: list of (3, 3, C_s, Cout) arrays (same order as srcs).
    bias:    (Cout,)."""
    n_src = len(srcs)
    N, H, W, _ = srcs[0].shape
    Cout = weights[0].shape[-1]
    out_dtype = out_dtype if out_dtype is not None else compute_dtype
    cb = jnp.dtype(compute_dtype).itemsize
    ob = jnp.dtype(out_dtype).itemsize
    src_channels = [int(s.shape[-1]) for s in srcs]

    def footprint(TH):
        fp = 0
        for C in src_channels:
            fp += 2 * (TH + 2) * W * C * cb      # centre + halo inputs, double buffered
            fp += ((TH + 2) * W + 2) * C * cb    # ext scratch (single buffer)
            fp += 2 * 9 * C * Cout * cb          # weights, double buffered
        fp += 2 * TH * W * Cout * ob             # output, double buffered
        fp += 4 * TH * W * Cout * 4              # f32 accumulators / matmul temps
        return fp

    cap = min(H, row_tile if row_tile else H, max(1, 16384 // W))
    TH = _largest_divisor_at_most(H, cap)
    while TH > 1 and footprint(TH) > _VMEM_BUDGET:
        TH = _largest_divisor_at_most(H, TH - 1)
    # keep at least 2 grid steps so both v7x TensorCores get work when possible
    while N * (H // TH) < 2 and TH > 1:
        TH = _largest_divisor_at_most(H, TH - 1)

    center_map = lambda n, t: (n, t, 0, 0)
    top_map = lambda n, t: (n, jnp.maximum(t * TH - 1, 0), 0, 0)
    bot_map = lambda n, t: (n, jnp.minimum(t * TH + TH, H - 1), 0, 0)

    in_specs, args = [], []
    for x in srcs:
        C = x.shape[-1]
        xc = x.astype(compute_dtype)
        in_specs += [
            pl.BlockSpec((1, TH, W, C), center_map),
            pl.BlockSpec((1, 1, W, C), top_map),
            pl.BlockSpec((1, 1, W, C), bot_map),
        ]
        args += [xc, xc, xc]
    for w in weights:
        C = w.shape[2]
        in_specs.append(pl.BlockSpec((3, 3, C, Cout), lambda n, t: (0, 0, 0, 0)))
        args.append(w.astype(compute_dtype))
    in_specs.append(pl.BlockSpec((1, Cout), lambda n, t: (0, 0)))
    args.append(bias.reshape(1, Cout).astype(jnp.float32))

    scratch = [pltpu.VMEM(((TH + 2) * W + 2, C), compute_dtype) for C in src_channels]

    return pl.pallas_call(
        _make_conv3x3_kernel(src_channels, TH, W, Cout),
        out_shape=jax.ShapeDtypeStruct((N, H, W, Cout), out_dtype),
        grid=(N, H // TH),
        in_specs=in_specs,
        out_specs=pl.BlockSpec((1, TH, W, Cout), center_map),
        scratch_shapes=scratch,
        compiler_params=_compiler_params(),
    )(*args)


# ---------------------------------------------------------------------------
# UNetUpBlock forward
# ---------------------------------------------------------------------------
def unet_up_block_forward_nhwc(x, bridge, params, *, compute_dtype=jnp.bfloat16,
                               out_dtype=jnp.float32, row_tile=None):
    """NHWC forward matching UNetUpBlock(up_mode='upconv', padding=True, batch_norm=False)."""
    # 1) learned 2x upsampling (output stays in compute_dtype so conv1 reads it directly)
    up = conv_transpose2x2_pallas(x, params["up_w"], params["up_b"],
                                  compute_dtype=compute_dtype, row_tile=row_tile)
    _, uh, uw, _ = up.shape

    # 2) center-crop the bridge (static offsets; pure slice)
    dy = (bridge.shape[1] - uh) // 2
    dx = (bridge.shape[2] - uw) // 2
    crop = bridge[:, dy:dy + uh, dx:dx + uw, :]

    # 3) conv1 + ReLU, consuming [up, crop] directly (torch.cat is never materialized);
    #    conv1's weights are split along Cin to match the two sources.
    ca = up.shape[-1]
    w1 = params["conv1_w"]                                   # (Cout, ca + cb, 3, 3)
    w1a = jnp.transpose(w1[:, :ca], (2, 3, 1, 0))            # (3, 3, ca, Cout)
    w1b = jnp.transpose(w1[:, ca:], (2, 3, 1, 0))            # (3, 3, cb, Cout)
    h1 = conv3x3_bias_relu_pallas([up, crop], [w1a, w1b], params["conv1_b"],
                                  compute_dtype=compute_dtype, out_dtype=compute_dtype,
                                  row_tile=row_tile)

    # 4) conv2 + ReLU (block output in out_dtype)
    w2 = jnp.transpose(params["conv2_w"], (2, 3, 1, 0))      # (3, 3, Cout, Cout)
    return conv3x3_bias_relu_pallas([h1], [w2], params["conv2_b"],
                                    compute_dtype=compute_dtype, out_dtype=out_dtype,
                                    row_tile=row_tile)


def unet_up_block_forward(x_nchw, bridge_nchw, params, *, compute_dtype=jnp.bfloat16,
                          out_dtype=jnp.float32, row_tile=None):
    """NCHW interface matching the torch module.  In a full U-Net keep activations NHWC
    end-to-end and call unet_up_block_forward_nhwc directly."""
    x = jnp.transpose(x_nchw, (0, 2, 3, 1))
    bridge = jnp.transpose(bridge_nchw, (0, 2, 3, 1))
    out = unet_up_block_forward_nhwc(x, bridge, params, compute_dtype=compute_dtype,
                                     out_dtype=out_dtype, row_tile=row_tile)
    return jnp.transpose(out, (0, 3, 1, 2))


# ---------------------------------------------------------------------------
# Pure-JAX reference (NCHW, torch semantics) for the correctness check
# ---------------------------------------------------------------------------
def ref_forward(x, bridge, params):
    wt, bt = params["up_w"], params["up_b"]
    N, Cin, H, W = x.shape
    Cout = wt.shape[1]
    up = jnp.einsum("nchw,cokl->nohkwl", x, wt).reshape(N, Cout, 2 * H, 2 * W)
    up = up + bt[None, :, None, None]
    th, tw = up.shape[2], up.shape[3]
    dy = (bridge.shape[2] - th) // 2
    dx = (bridge.shape[3] - tw) // 2
    crop1 = bridge[:, :, dy:dy + th, dx:dx + tw]
    out = jnp.concatenate([up, crop1], axis=1)

    def conv3x3_relu(z, w, b):
        y = jax.lax.conv_general_dilated(
            z, w, window_strides=(1, 1), padding=((1, 1), (1, 1)),
            dimension_numbers=("NCHW", "OIHW", "NCHW"))
        return jnp.maximum(y + b[None, :, None, None], 0.0)

    out = conv3x3_relu(out, params["conv1_w"], params["conv1_b"])
    out = conv3x3_relu(out, params["conv2_w"], params["conv2_b"])
    return out


# ---------------------------------------------------------------------------
if __name__ == "__main__":
    key = jax.random.PRNGKey(0)
    N, in_size, out_size = 2, 8, 4       # in_size = 2 * out_size (standard U-Net)
    H = W = 8                            # low-res input to the up block
    BH = BW = 18                         # bridge spatial extent (exercises center_crop)

    ks = jax.random.split(key, 8)
    x = jax.random.normal(ks[0], (N, in_size, H, W), jnp.float32)
    bridge = jax.random.normal(ks[1], (N, out_size, BH, BW), jnp.float32)

    # Torch parameter layouts:
    #   ConvTranspose2d.weight: (Cin, Cout, 2, 2);  Conv2d.weight: (Cout, Cin, 3, 3)
    params = {
        "up_w":    0.1 * jax.random.normal(ks[2], (in_size, out_size, 2, 2), jnp.float32),
        "up_b":    0.1 * jax.random.normal(ks[3], (out_size,), jnp.float32),
        "conv1_w": 0.1 * jax.random.normal(ks[4], (out_size, in_size, 3, 3), jnp.float32),
        "conv1_b": 0.1 * jax.random.normal(ks[5], (out_size,), jnp.float32),
        "conv2_w": 0.1 * jax.random.normal(ks[6], (out_size, out_size, 3, 3), jnp.float32),
        "conv2_b": 0.1 * jax.random.normal(ks[7], (out_size,), jnp.float32),
    }

    ref = ref_forward(x, bridge, params)

    # 1) exact-parity run: f32 compute path with a small row_tile so the multi-tile
    #    halo / edge-mask / wrap-mask logic is exercised.
    fwd_f32 = jax.jit(lambda a, b, p: unet_up_block_forward(
        a, b, p, compute_dtype=jnp.float32, row_tile=4))
    out_f32 = jax.block_until_ready(fwd_f32(x, bridge, params))
    assert out_f32.shape == (N, out_size, 2 * H, 2 * W), out_f32.shape
    err_f32 = float(jnp.max(jnp.abs(out_f32 - ref)))
    assert jnp.allclose(out_f32, ref, rtol=1e-3, atol=1e-3), err_f32

    # 2) production path: bf16 activations/weights, f32 accumulation, VMEM-budget tiles.
    fwd_bf16 = jax.jit(lambda a, b, p: unet_up_block_forward(a, b, p))
    out_bf16 = jax.block_until_ready(fwd_bf16(x, bridge, params))
    assert out_bf16.shape == (N, out_size, 2 * H, 2 * W), out_bf16.shape
    err_bf16 = float(jnp.max(jnp.abs(out_bf16 - ref)))
    assert jnp.allclose(out_bf16, ref, rtol=6e-2, atol=6e-2), err_bf16

    print("KERNEL_OK")
</pallas_src>

<mosaic_0001>
module attributes {stable_mosaic.version = 11 : i64} {
  func.func @_upconv2x2_kernel(%arg0: i32, %arg1: i32, %arg2: memref<1x4x8x8xf32, #tpu.memory_space<vmem>>, %arg3: memref<2x8x8xf32, #tpu.memory_space<vmem>>, %arg4: memref<1x8xf32, #tpu.memory_space<vmem>>, %arg5: memref<1x4x2x8x8xf32, #tpu.memory_space<vmem>>) attributes {dimension_semantics = [#tpu.dimension_semantics<parallel>, #tpu.dimension_semantics<parallel>], iteration_bounds = array<i64: 2, 2>, scalar_prefetch = 0 : i64, scratch_operands = 0 : i64, tpu.core_type = #tpu.core_type<tc>, window_params = [{transform_indices = @transform_0, window_bounds = array<i64: 1, 4, 8, 8>}, {pipeline_mode = #tpu.pipeline_mode<synchronous>, transform_indices = @transform_1, window_bounds = array<i64: 2, 8, 8>}, {pipeline_mode = #tpu.pipeline_mode<synchronous>, transform_indices = @transform_2, window_bounds = array<i64: 1, 8>}, {transform_indices = @transform_3, window_bounds = array<i64: 1, 4, 2, 8, 8>}]} {
    %c0 = arith.constant 0 : index
    %c0_0 = arith.constant 0 : index
    %c0_1 = arith.constant 0 : index
    %c0_2 = arith.constant 0 : index
    %0 = vector.load %arg2[%c0, %c0_0, %c0_1, %c0_2] : memref<1x4x8x8xf32, #tpu.memory_space<vmem>>, vector<1x4x8x8xf32>
    %1 = vector.shape_cast %0 : vector<1x4x8x8xf32> to vector<4x8x8xf32>
    %2 = vector.shape_cast %1 : vector<4x8x8xf32> to vector<32x8xf32>
    %c0_3 = arith.constant 0 : index
    %c0_4 = arith.constant 0 : index
    %c0_5 = arith.constant 0 : index
    %3 = vector.load %arg3[%c0_3, %c0_4, %c0_5] : memref<2x8x8xf32, #tpu.memory_space<vmem>>, vector<1x8x8xf32>
    %4 = vector.shape_cast %3 : vector<1x8x8xf32> to vector<8x8xf32>
    %cst = arith.constant dense<0.000000e+00> : vector<32x8xf32>
    %5 = tpu.matmul %2, %4, %cst {dimension_numbers = #tpu.dot_dimension_numbers<[1], [0], [0], [1], [0, 0, 1, 1], [], []>} : vector<32x8xf32>, vector<8x8xf32>, vector<32x8xf32> -> vector<32x8xf32>
    %c0_6 = arith.constant 0 : index
    %c0_7 = arith.constant 0 : index
    %6 = vector.load %arg4[%c0_6, %c0_7] : memref<1x8xf32, #tpu.memory_space<vmem>>, vector<1x8xf32>
    %7 = vector.broadcast %6 : vector<1x8xf32> to vector<32x8xf32>
    %8 = arith.addf %5, %7 : vector<32x8xf32>
    %9 = vector.shape_cast %8 : vector<32x8xf32> to vector<4x8x8xf32>
    %c0_8 = arith.constant 0 : index
    %c0_9 = arith.constant 0 : index
    %c0_10 = arith.constant 0 : index
    %c0_11 = arith.constant 0 : index
    %c0_12 = arith.constant 0 : index
    %10 = vector.load %arg5[%c0_8, %c0_9, %c0_10, %c0_11, %c0_12] : memref<1x4x2x8x8xf32, #tpu.memory_space<vmem>>, vector<1x4x1x8x8xf32>
    %11 = vector.shape_cast %10 : vector<1x4x1x8x8xf32> to vector<4x8x8xf32>
    %12 = vector.shape_cast %9 : vector<4x8x8xf32> to vector<1x4x1x8x8xf32>
    tpu.vector_store %arg5[%c0_8, %c0_9, %c0_10, %c0_11, %c0_12], %12 {strides = array<i32>} : memref<1x4x2x8x8xf32, #tpu.memory_space<vmem>>, vector<1x4x1x8x8xf32>,
    %c1 = arith.constant 1 : index
    %c0_13 = arith.constant 0 : index
    %c0_14 = arith.constant 0 : index
    %13 = vector.load %arg3[%c1, %c0_13, %c0_14] : memref<2x8x8xf32, #tpu.memory_space<vmem>>, vector<1x8x8xf32>
    %14 = vector.shape_cast %13 : vector<1x8x8xf32> to vector<8x8xf32>
    %cst_15 = arith.constant dense<0.000000e+00> : vector<32x8xf32>
    %15 = tpu.matmul %2, %14, %cst_15 {dimension_numbers = #tpu.dot_dimension_numbers<[1], [0], [0], [1], [0, 0, 1, 1], [], []>} : vector<32x8xf32>, vector<8x8xf32>, vector<32x8xf32> -> vector<32x8xf32>
    %c0_16 = arith.constant 0 : index
    %c0_17 = arith.constant 0 : index
    %16 = vector.load %arg4[%c0_16, %c0_17] : memref<1x8xf32, #tpu.memory_space<vmem>>, vector<1x8xf32>
    %17 = vector.broadcast %16 : vector<1x8xf32> to vector<32x8xf32>
    %18 = arith.addf %15, %17 : vector<32x8xf32>
    %19 = vector.shape_cast %18 : vector<32x8xf32> to vector<4x8x8xf32>
    %c0_18 = arith.constant 0 : index
    %c0_19 = arith.constant 0 : index
    %c1_20 = arith.constant 1 : index
    %c0_21 = arith.constant 0 : index
    %c0_22 = arith.constant 0 : index
    %20 = vector.load %arg5[%c0_18, %c0_19, %c1_20, %c0_21, %c0_22] : memref<1x4x2x8x8xf32, #tpu.memory_space<vmem>>, vector<1x4x1x8x8xf32>
    %21 = vector.shape_cast %20 : vector<1x4x1x8x8xf32> to vector<4x8x8xf32>
    %22 = vector.shape_cast %19 : vector<4x8x8xf32> to vector<1x4x1x8x8xf32>
    tpu.vector_store %arg5[%c0_18, %c0_19, %c1_20, %c0_21, %c0_22], %22 {strides = array<i32>} : memref<1x4x2x8x8xf32, #tpu.memory_space<vmem>>, vector<1x4x1x8x8xf32>,
    return
  }
  func.func @transform_0(%arg0: i32, %arg1: i32) -> (i32, i32, i32, i32) {
    %c0_i32 = arith.constant 0 : i32
    %c0_i32_0 = arith.constant 0 : i32
    %c0_i32_1 = arith.constant 0 : i32
    return %arg0, %arg1, %c0_i32, %c0_i32_0 : i32, i32, i32, i32
  }
  func.func @transform_1(%arg0: i32, %arg1: i32) -> (i32, i32, i32) {
    %c0_i32 = arith.constant 0 : i32
    %c0_i32_0 = arith.constant 0 : i32
    %c0_i32_1 = arith.constant 0 : i32
    %c0_i32_2 = arith.constant 0 : i32
    return %c0_i32, %c0_i32_0, %c0_i32_1 : i32, i32, i32
  }
  func.func @transform_2(%arg0: i32, %arg1: i32) -> (i32, i32) {
    %c0_i32 = arith.constant 0 : i32
    %c0_i32_0 = arith.constant 0 : i32
    %c0_i32_1 = arith.constant 0 : i32
    return %c0_i32, %c0_i32_0 : i32, i32
  }
  func.func @transform_3(%arg0: i32, %arg1: i32) -> (i32, i32, i32, i32, i32) {
    %c0_i32 = arith.constant 0 : i32
    %c0_i32_0 = arith.constant 0 : i32
    %c0_i32_1 = arith.constant 0 : i32
    %c0_i32_2 = arith.constant 0 : i32
    return %arg0, %arg1, %c0_i32, %c0_i32_0, %c0_i32_1 : i32, i32, i32, i32, i32
  }
}

module attributes {stable_mosaic.version = 11 : i64} {
  func.func @kernel(%arg0: i32, %arg1: i32, %arg2: memref<1x4x16x4xf32, #tpu.memory_space<vmem>>, %arg3: memref<1x1x16x4xf32, #tpu.memory_space<vmem>>, %arg4: memref<1x1x16x4xf32, #tpu.memory_space<vmem>>, %arg5: memref<3x3x4x4xf32, #tpu.memory_space<vmem>>, %arg6: memref<1x4xf32, #tpu.memory_space<vmem>>, %arg7: memref<1x4x16x4xf32, #tpu.memory_space<vmem>>, %arg8: memref<98x4xf32, #tpu.memory_space<vmem>>) attributes {dimension_semantics = [#tpu.dimension_semantics<parallel>, #tpu.dimension_semantics<parallel>], iteration_bounds = array<i64: 2, 4>, scalar_prefetch = 0 : i64, scratch_operands = 1 : i64, tpu.core_type = #tpu.core_type<tc>, window_params = [{transform_indices = @transform_0, window_bounds = array<i64: 1, 4, 16, 4>}, {transform_indices = @transform_1, window_bounds = array<i64: 1, 1, 16, 4>}, {transform_indices = @transform_2, window_bounds = array<i64: 1, 1, 16, 4>}, {pipeline_mode = #tpu.pipeline_mode<synchronous>, transform_indices = @transform_3, window_bounds = array<i64: 3, 3, 4, 4>}, {pipeline_mode = #tpu.pipeline_mode<synchronous>, transform_indices = @transform_4, window_bounds = array<i64: 1, 4>}, {transform_indices = @transform_5, window_bounds = array<i64: 1, 4, 16, 4>}]} {
    %c0_i32 = arith.constant 0 : i32
    %0 = arith.cmpi sgt, %arg1, %c0_i32 : i32
    %1 = arith.extui %0 : i1 to i32
    %2 = arith.sitofp %1 : i32 to f32
    %c3_i32 = arith.constant 3 : i32
    %3 = arith.cmpi slt, %arg1, %c3_i32 : i32
    %4 = arith.extui %3 : i1 to i32
    %5 = arith.sitofp %4 : i32 to f32
    %cst = arith.constant 0.000000e+00 : f32
    %6 = vector.broadcast %cst : f32 to vector<64x4xf32>
    %c0 = arith.constant 0 : index
    %c0_0 = arith.constant 0 : index
    %7 = vector.load %arg6[%c0, %c0_0] : memref<1x4xf32, #tpu.memory_space<vmem>>, vector<1x4xf32>
    %8 = vector.broadcast %7 : vector<1x4xf32> to vector<64x4xf32>
    %9 = arith.addf %6, %8 : vector<64x4xf32>
    %cst_1 = arith.constant 0.000000e+00 : f32
    %10 = vector.broadcast %cst_1 : f32 to vector<64x4xf32>
    %cst_2 = arith.constant 0.000000e+00 : f32
    %11 = vector.broadcast %cst_2 : f32 to vector<64x4xf32>
    %cst_3 = arith.constant 0.000000e+00 : f32
    %12 = vector.broadcast %cst_3 : f32 to vector<1x4xf32>
    %c0_4 = arith.constant 0 : index
    %c0_5 = arith.constant 0 : index
    %13 = vector.load %arg8[%c0_4, %c0_5] : memref<98x4xf32, #tpu.memory_space<vmem>>, vector<1x4xf32>
    tpu.vector_store %arg8[%c0_4, %c0_5], %12 {strides = array<i32>} : memref<98x4xf32, #tpu.memory_space<vmem>>, vector<1x4xf32>,
    %c0_6 = arith.constant 0 : index
    %c0_7 = arith.constant 0 : index
    %c0_8 = arith.constant 0 : index
    %c0_9 = arith.constant 0 : index
    %14 = vector.load %arg3[%c0_6, %c0_7, %c0_8, %c0_9] : memref<1x1x16x4xf32, #tpu.memory_space<vmem>>, vector<1x1x16x4xf32>
    %15 = vector.shape_cast %14 : vector<1x1x16x4xf32> to vector<16x4xf32>
    %16 = vector.broadcast %2 : f32 to vector<16x4xf32>
    %17 = arith.mulf %15, %16 : vector<16x4xf32>
    %c1 = arith.constant 1 : index
    %c0_10 = arith.constant 0 : index
    %18 = vector.load %arg8[%c1, %c0_10] : memref<98x4xf32, #tpu.memory_space<vmem>>, vector<16x4xf32>
    tpu.vector_store %arg8[%c1, %c0_10], %17 {strides = array<i32>} : memref<98x4xf32, #tpu.memory_space<vmem>>, vector<16x4xf32>,
    %c0_11 = arith.constant 0 : index
    %c0_12 = arith.constant 0 : index
    %c0_13 = arith.constant 0 : index
    %c0_14 = arith.constant 0 : index
    %19 = vector.load %arg2[%c0_11, %c0_12, %c0_13, %c0_14] : memref<1x4x16x4xf32, #tpu.memory_space<vmem>>, vector<1x4x16x4xf32>
    %20 = vector.shape_cast %19 : vector<1x4x16x4xf32> to vector<4x16x4xf32>
    %21 = vector.shape_cast %20 : vector<4x16x4xf32> to vector<64x4xf32>
    %c17 = arith.constant 17 : index
    %c0_15 = arith.constant 0 : index
    %22 = vector.load %arg8[%c17, %c0_15] : memref<98x4xf32, #tpu.memory_space<vmem>>, vector<64x4xf32>
    tpu.vector_store %arg8[%c17, %c0_15], %21 {strides = array<i32>} : memref<98x4xf32, #tpu.memory_space<vmem>>, vector<64x4xf32>,
    %c0_16 = arith.constant 0 : index
    %c0_17 = arith.constant 0 : index
    %c0_18 = arith.constant 0 : index
    %c0_19 = arith.constant 0 : index
    %23 = vector.load %arg4[%c0_16, %c0_17, %c0_18, %c0_19] : memref<1x1x16x4xf32, #tpu.memory_space<vmem>>, vector<1x1x16x4xf32>
    %24 = vector.shape_cast %23 : vector<1x1x16x4xf32> to vector<16x4xf32>
    %25 = vector.broadcast %5 : f32 to vector<16x4xf32>
    %26 = arith.mulf %24, %25 : vector<16x4xf32>
    %c81 = arith.constant 81 : index
    %c0_20 = arith.constant 0 : index
    %27 = vector.load %arg8[%c81, %c0_20] : memref<98x4xf32, #tpu.memory_space<vmem>>, vector<16x4xf32>
    tpu.vector_store %arg8[%c81, %c0_20], %26 {strides = array<i32>} : memref<98x4xf32, #tpu.memory_space<vmem>>, vector<16x4xf32>,
    %c97 = arith.constant 97 : index
    %c0_21 = arith.constant 0 : index
    %28 = vector.load %arg8[%c97, %c0_21] : memref<98x4xf32, #tpu.memory_space<vmem>>, vector<1x4xf32>
    tpu.vector_store %arg8[%c97, %c0_21], %12 {strides = array<i32>} : memref<98x4xf32, #tpu.memory_space<vmem>>, vector<1x4xf32>,
    %c0_22 = arith.constant 0 : index
    %c0_23 = arith.constant 0 : index
    %29 = vector.load %arg8[%c0_22, %c0_23] : memref<98x4xf32, #tpu.memory_space<vmem>>, vector<64x4xf32>
    %c0_24 = arith.constant 0 : index
    %c0_25 = arith.constant 0 : index
    %c0_26 = arith.constant 0 : index
    %c0_27 = arith.constant 0 : index
    %30 = vector.load %arg5[%c0_24, %c0_25, %c0_26, %c0_27] : memref<3x3x4x4xf32, #tpu.memory_space<vmem>>, vector<1x1x4x4xf32>
    %31 = vector.shape_cast %30 : vector<1x1x4x4xf32> to vector<4x4xf32>
    %cst_28 = arith.constant dense<0.000000e+00> : vector<64x4xf32>
    %32 = tpu.matmul %29, %31, %cst_28 {dimension_numbers = #tpu.dot_dimension_numbers<[1], [0], [0], [1], [0, 0, 1, 1], [], []>} : vector<64x4xf32>, vector<4x4xf32>, vector<64x4xf32> -> vector<64x4xf32>
    %33 = arith.addf %10, %32 : vector<64x4xf32>
    %c1_29 = arith.constant 1 : index
    %c0_30 = arith.constant 0 : index
    %34 = vector.load %arg8[%c1_29, %c0_30] : memref<98x4xf32, #tpu.memory_space<vmem>>, vector<64x4xf32>
    %c0_31 = arith.constant 0 : index
    %c1_32 = arith.constant 1 : index
    %c0_33 = arith.constant 0 : index
    %c0_34 = arith.constant 0 : index
    %35 = vector.load %arg5[%c0_31, %c1_32, %c0_33, %c0_34] : memref<3x3x4x4xf32, #tpu.memory_space<vmem>>, vector<1x1x4x4xf32>
    %36 = vector.shape_cast %35 : vector<1x1x4x4xf32> to vector<4x4xf32>
    %cst_35 = arith.constant dense<0.000000e+00> : vector<64x4xf32>
    %37 = tpu.matmul %34, %36, %cst_35 {dimension_numbers = #tpu.dot_dimension_numbers<[1], [0], [0], [1], [0, 0, 1, 1], [], []>} : vector<64x4xf32>, vector<4x4xf32>, vector<64x4xf32> -> vector<64x4xf32>
    %38 = arith.addf %9, %37 : vector<64x4xf32>
    %c2 = arith.constant 2 : index
    %c0_36 = arith.constant 0 : index
    %39 = vector.load %arg8[%c2, %c0_36] : memref<98x4xf32, #tpu.memory_space<vmem>>, vector<64x4xf32>
    %c0_37 = arith.constant 0 : index
    %c2_38 = arith.constant 2 : index
    %c0_39 = arith.constant 0 : index
    %c0_40 = arith.constant 0 : index
    %40 = vector.load %arg5[%c0_37, %c2_38, %c0_39, %c0_40] : memref<3x3x4x4xf32, #tpu.memory_space<vmem>>, vector<1x1x4x4xf32>
    %41 = vector.shape_cast %40 : vector<1x1x4x4xf32> to vector<4x4xf32>
    %cst_41 = arith.constant dense<0.000000e+00> : vector<64x4xf32>
    %42 = tpu.matmul %39, %41, %cst_41 {dimension_numbers = #tpu.dot_dimension_numbers<[1], [0], [0], [1], [0, 0, 1, 1], [], []>} : vector<64x4xf32>, vector<4x4xf32>, vector<64x4xf32> -> vector<64x4xf32>
    %43 = arith.addf %11, %42 : vector<64x4xf32>
    %c16 = arith.constant 16 : index
    %c0_42 = arith.constant 0 : index
    %44 = vector.load %arg8[%c16, %c0_42] : memref<98x4xf32, #tpu.memory_space<vmem>>, vector<64x4xf32>
    %c1_43 = arith.constant 1 : index
    %c0_44 = arith.constant 0 : index
    %c0_45 = arith.constant 0 : index
    %c0_46 = arith.constant 0 : index
    %45 = vector.load %arg5[%c1_43, %c0_44, %c0_45, %c0_46] : memref<3x3x4x4xf32, #tpu.memory_space<vmem>>, vector<1x1x4x4xf32>
    %46 = vector.shape_cast %45 : vector<1x1x4x4xf32> to vector<4x4xf32>
    %cst_47 = arith.constant dense<0.000000e+00> : vector<64x4xf32>
    %47 = tpu.matmul %44, %46, %cst_47 {dimension_numbers = #tpu.dot_dimension_numbers<[1], [0], [0], [1], [0, 0, 1, 1], [], []>} : vector<64x4xf32>, vector<4x4xf32>, vector<64x4xf32> -> vector<64x4xf32>
    %48 = arith.addf %33, %47 : vector<64x4xf32>
    %c17_48 = arith.constant 17 : index
    %c0_49 = arith.constant 0 : index
    %49 = vector.load %arg8[%c17_48, %c0_49] : memref<98x4xf32, #tpu.memory_space<vmem>>, vector<64x4xf32>
    %c1_50 = arith.constant 1 : index
    %c1_51 = arith.constant 1 : index
    %c0_52 = arith.constant 0 : index
    %c0_53 = arith.constant 0 : index
    %50 = vector.load %arg5[%c1_50, %c1_51, %c0_52, %c0_53] : memref<3x3x4x4xf32, #tpu.memory_space<vmem>>, vector<1x1x4x4xf32>
    %51 = vector.shape_cast %50 : vector<1x1x4x4xf32> to vector<4x4xf32>
    %cst_54 = arith.constant dense<0.000000e+00> : vector<64x4xf32>
    %52 = tpu.matmul %49, %51, %cst_54 {dimension_numbers = #tpu.dot_dimension_numbers<[1], [0], [0], [1], [0, 0, 1, 1], [], []>} : vector<64x4xf32>, vector<4x4xf32>, vector<64x4xf32> -> vector<64x4xf32>
    %53 = arith.addf %38, %52 : vector<64x4xf32>
    %c18 = arith.constant 18 : index
    %c0_55 = arith.constant 0 : index
    %54 = vector.load %arg8[%c18, %c0_55] : memref<98x4xf32, #tpu.memory_space<vmem>>, vector<64x4xf32>
    %c1_56 = arith.constant 1 : index
    %c2_57 = arith.constant 2 : index
    %c0_58 = arith.constant 0 : index
    %c0_59 = arith.constant 0 : index
    %55 = vector.load %arg5[%c1_56, %c2_57, %c0_58, %c0_59] : memref<3x3x4x4xf32, #tpu.memory_space<vmem>>, vector<1x1x4x4xf32>
    %56 = vector.shape_cast %55 : vector<1x1x4x4xf32> to vector<4x4xf32>
    %cst_60 = arith.constant dense<0.000000e+00> : vector<64x4xf32>
    %57 = tpu.matmul %54, %56, %cst_60 {dimension_numbers = #tpu.dot_dimension_numbers<[1], [0], [0], [1], [0, 0, 1, 1], [], []>} : vector<64x4xf32>, vector<4x4xf32>, vector<64x4xf32> -> vector<64x4xf32>
    %58 = arith.addf %43, %57 : vector<64x4xf32>
    %c32 = arith.constant 32 : index
    %c0_61 = arith.constant 0 : index
    %59 = vector.load %arg8[%c32, %c0_61] : memref<98x4xf32, #tpu.memory_space<vmem>>, vector<64x4xf32>
    %c2_62 = arith.constant 2 : index
    %c0_63 = arith.constant 0 : index
    %c0_64 = arith.constant 0 : index
    %c0_65 = arith.constant 0 : index
    %60 = vector.load %arg5[%c2_62, %c0_63, %c0_64, %c0_65] : memref<3x3x4x4xf32, #tpu.memory_space<vmem>>, vector<1x1x4x4xf32>
    %61 = vector.shape_cast %60 : vector<1x1x4x4xf32> to vector<4x4xf32>
    %cst_66 = arith.constant dense<0.000000e+00> : vector<64x4xf32>
    %62 = tpu.matmul %59, %61, %cst_66 {dimension_numbers = #tpu.dot_dimension_numbers<[1], [0], [0], [1], [0, 0, 1, 1], [], []>} : vector<64x4xf32>, vector<4x4xf32>, vector<64x4xf32> -> vector<64x4xf32>
    %63 = arith.addf %48, %62 : vector<64x4xf32>
    %c33 = arith.constant 33 : index
    %c0_67 = arith.constant 0 : index
    %64 = vector.load %arg8[%c33, %c0_67] : memref<98x4xf32, #tpu.memory_space<vmem>>, vector<64x4xf32>
    %c2_68 = arith.constant 2 : index
    %c1_69 = arith.constant 1 : index
    %c0_70 = arith.constant 0 : index
    %c0_71 = arith.constant 0 : index
    %65 = vector.load %arg5[%c2_68, %c1_69, %c0_70, %c0_71] : memref<3x3x4x4xf32, #tpu.memory_space<vmem>>, vector<1x1x4x4xf32>
    %66 = vector.shape_cast %65 : vector<1x1x4x4xf32> to vector<4x4xf32>
    %cst_72 = arith.constant dense<0.000000e+00> : vector<64x4xf32>
    %67 = tpu.matmul %64, %66, %cst_72 {dimension_numbers = #tpu.dot_dimension_numbers<[1], [0], [0], [1], [0, 0, 1, 1], [], []>} : vector<64x4xf32>, vector<4x4xf32>, vector<64x4xf32> -> vector<64x4xf32>
    %68 = arith.addf %53, %67 : vector<64x4xf32>
    %c34 = arith.constant 34 : index
    %c0_73 = arith.constant 0 : index
    %69 = vector.load %arg8[%c34, %c0_73] : memref<98x4xf32, #tpu.memory_space<vmem>>, vector<64x4xf32>
    %c2_74 = arith.constant 2 : index
    %c2_75 = arith.constant 2 : index
    %c0_76 = arith.constant 0 : index
    %c0_77 = arith.constant 0 : index
    %70 = vector.load %arg5[%c2_74, %c2_75, %c0_76, %c0_77] : memref<3x3x4x4xf32, #tpu.memory_space<vmem>>, vector<1x1x4x4xf32>
    %71 = vector.shape_cast %70 : vector<1x1x4x4xf32> to vector<4x4xf32>
    %cst_78 = arith.constant dense<0.000000e+00> : vector<64x4xf32>
    %72 = tpu.matmul %69, %71, %cst_78 {dimension_numbers = #tpu.dot_dimension_numbers<[1], [0], [0], [1], [0, 0, 1, 1], [], []>} : vector<64x4xf32>, vector<4x4xf32>, vector<64x4xf32> -> vector<64x4xf32>
    %73 = arith.addf %58, %72 : vector<64x4xf32>
    %74 = tpu.iota {dimensions = array<i32: 1>} : vector<4x16x1xi32>
    %c0_i32_79 = arith.constant 0 : i32
    %75 = vector.broadcast %c0_i32_79 : i32 to vector<4x16x1xi32>
    %76 = arith.cmpi sgt, %74, %75 : vector<4x16x1xi32>
    %77 = arith.extui %76 : vector<4x16x1xi1> to vector<4x16x1xi32>
    %78 = arith.sitofp %77 : vector<4x16x1xi32> to vector<4x16x1xf32>
    %c15_i32 = arith.constant 15 : i32
    %79 = vector.broadcast %c15_i32 : i32 to vector<4x16x1xi32>
    %80 = arith.cmpi slt, %74, %79 : vector<4x16x1xi32>
    %81 = arith.extui %80 : vector<4x16x1xi1> to vector<4x16x1xi32>
    %82 = arith.sitofp %81 : vector<4x16x1xi32> to vector<4x16x1xf32>
    %83 = vector.shape_cast %68 : vector<64x4xf32> to vector<4x16x4xf32>
    %84 = vector.shape_cast %63 : vector<64x4xf32> to vector<4x16x4xf32>
    %85 = vector.broadcast %78 : vector<4x16x1xf32> to vector<4x16x4xf32>
    %86 = arith.mulf %84, %85 : vector<4x16x4xf32>
    %87 = arith.addf %83, %86 : vector<4x16x4xf32>
    %88 = vector.shape_cast %73 : vector<64x4xf32> to vector<4x16x4xf32>
    %89 = vector.broadcast %82 : vector<4x16x1xf32> to vector<4x16x4xf32>
    %90 = arith.mulf %88, %89 : vector<4x16x4xf32>
    %91 = arith.addf %87, %90 : vector<4x16x4xf32>
    %cst_80 = arith.constant 0.000000e+00 : f32
    %92 = vector.broadcast %cst_80 : f32 to vector<4x16x4xf32>
    %93 = arith.maximumf %91, %92 : vector<4x16x4xf32>
    %c0_81 = arith.constant 0 : index
    %c0_82 = arith.constant 0 : index
    %c0_83 = arith.constant 0 : index
    %c0_84 = arith.constant 0 : index
    %94 = vector.load %arg7[%c0_81, %c0_82, %c0_83, %c0_84] : memref<1x4x16x4xf32, #tpu.memory_space<vmem>>, vector<1x4x16x4xf32>
    %95 = vector.shape_cast %94 : vector<1x4x16x4xf32> to vector<4x16x4xf32>
    %96 = vector.shape_cast %93 : vector<4x16x4xf32> to vector<1x4x16x4xf32>
    tpu.vector_store %arg7[%c0_81, %c0_82, %c0_83, %c0_84], %96 {strides = array<i32>} : memref<1x4x16x4xf32, #tpu.memory_space<vmem>>, vector<1x4x16x4xf32>,
    return
  }
  func.func @transform_0(%arg0: i32, %arg1: i32) -> (i32, i32, i32, i32) {
    %c0_i32 = arith.constant 0 : i32
    %c0_i32_0 = arith.constant 0 : i32
    %c0_i32_1 = arith.constant 0 : i32
    return %arg0, %arg1, %c0_i32, %c0_i32_0 : i32, i32, i32, i32
  }
  func.func @transform_1(%arg0: i32, %arg1: i32) -> (i32, i32, i32, i32) {
    %c4_i32 = arith.constant 4 : i32
    %0 = arith.muli %arg1, %c4_i32 : i32
    %c1_i32 = arith.constant 1 : i32
    %1 = arith.subi %0, %c1_i32 : i32
    %c0_i32 = arith.constant 0 : i32
    %2 = arith.maxsi %1, %c0_i32 : i32
    %c0_i32_0 = arith.constant 0 : i32
    %c0_i32_1 = arith.constant 0 : i32
    %c0_i32_2 = arith.constant 0 : i32
    return %arg0, %2, %c0_i32_0, %c0_i32_1 : i32, i32, i32, i32
  }
  func.func @transform_2(%arg0: i32, %arg1: i32) -> (i32, i32, i32, i32) {
    %c4_i32 = arith.constant 4 : i32
    %0 = arith.muli %arg1, %c4_i32 : i32
    %c4_i32_0 = arith.constant 4 : i32
    %1 = arith.addi %0, %c4_i32_0 : i32
    %c15_i32 = arith.constant 15 : i32
    %2 = arith.minsi %1, %c15_i32 : i32
    %c0_i32 = arith.constant 0 : i32
    %c0_i32_1 = arith.constant 0 : i32
    %c0_i32_2 = arith.constant 0 : i32
    return %arg0, %2, %c0_i32, %c0_i32_1 : i32, i32, i32, i32
  }
  func.func @transform_3(%arg0: i32, %arg1: i32) -> (i32, i32, i32, i32) {
    %c0_i32 = arith.constant 0 : i32
    %c0_i32_0 = arith.constant 0 : i32
    %c0_i32_1 = arith.constant 0 : i32
    %c0_i32_2 = arith.constant 0 : i32
    %c0_i32_3 = arith.constant 0 : i32
    return %c0_i32, %c0_i32_0, %c0_i32_1, %c0_i32_2 : i32, i32, i32, i32
  }
  func.func @transform_4(%arg0: i32, %arg1: i32) -> (i32, i32) {
    %c0_i32 = arith.constant 0 : i32
    %c0_i32_0 = arith.constant 0 : i32
    %c0_i32_1 = arith.constant 0 : i32
    return %c0_i32, %c0_i32_0 : i32, i32
  }
  func.func @transform_5(%arg0: i32, %arg1: i32) -> (i32, i32, i32, i32) {
    %c0_i32 = arith.constant 0 : i32
    %c0_i32_0 = arith.constant 0 : i32
    %c0_i32_1 = arith.constant 0 : i32
    return %arg0, %arg1, %c0_i32, %c0_i32_0 : i32, i32, i32, i32
  }
}

module attributes {stable_mosaic.version = 11 : i64} {
  func.func @kernel(%arg0: i32, %arg1: i32, %arg2: memref<1x4x16x4xf32, #tpu.memory_space<vmem>>, %arg3: memref<1x1x16x4xf32, #tpu.memory_space<vmem>>, %arg4: memref<1x1x16x4xf32, #tpu.memory_space<vmem>>, %arg5: memref<1x4x16x4xf32, #tpu.memory_space<vmem>>, %arg6: memref<1x1x16x4xf32, #tpu.memory_space<vmem>>, %arg7: memref<1x1x16x4xf32, #tpu.memory_space<vmem>>, %arg8: memref<3x3x4x4xf32, #tpu.memory_space<vmem>>, %arg9: memref<3x3x4x4xf32, #tpu.memory_space<vmem>>, %arg10: memref<1x4xf32, #tpu.memory_space<vmem>>, %arg11: memref<1x4x16x4xf32, #tpu.memory_space<vmem>>, %arg12: memref<98x4xf32, #tpu.memory_space<vmem>>, %arg13: memref<98x4xf32, #tpu.memory_space<vmem>>) attributes {dimension_semantics = [#tpu.dimension_semantics<parallel>, #tpu.dimension_semantics<parallel>], iteration_bounds = array<i64: 2, 4>, scalar_prefetch = 0 : i64, scratch_operands = 2 : i64, tpu.core_type = #tpu.core_type<tc>, window_params = [{transform_indices = @transform_0, window_bounds = array<i64: 1, 4, 16, 4>}, {transform_indices = @transform_1, window_bounds = array<i64: 1, 1, 16, 4>}, {transform_indices = @transform_2, window_bounds = array<i64: 1, 1, 16, 4>}, {transform_indices = @transform_3, window_bounds = array<i64: 1, 4, 16, 4>}, {transform_indices = @transform_4, window_bounds = array<i64: 1, 1, 16, 4>}, {transform_indices = @transform_5, window_bounds = array<i64: 1, 1, 16, 4>}, {pipeline_mode = #tpu.pipeline_mode<synchronous>, transform_indices = @transform_6, window_bounds = array<i64: 3, 3, 4, 4>}, {pipeline_mode = #tpu.pipeline_mode<synchronous>, transform_indices = @transform_7, window_bounds = array<i64: 3, 3, 4, 4>}, {pipeline_mode = #tpu.pipeline_mode<synchronous>, transform_indices = @transform_8, window_bounds = array<i64: 1, 4>}, {transform_indices = @transform_9, window_bounds = array<i64: 1, 4, 16, 4>}]} {
    %c0_i32 = arith.constant 0 : i32
    %0 = arith.cmpi sgt, %arg1, %c0_i32 : i32
    %1 = arith.extui %0 : i1 to i32
    %2 = arith.sitofp %1 : i32 to f32
    %c3_i32 = arith.constant 3 : i32
    %3 = arith.cmpi slt, %arg1, %c3_i32 : i32
    %4 = arith.extui %3 : i1 to i32
    %5 = arith.sitofp %4 : i32 to f32
    %cst = arith.constant 0.000000e+00 : f32
    %6 = vector.broadcast %cst : f32 to vector<64x4xf32>
    %c0 = arith.constant 0 : index
    %c0_0 = arith.constant 0 : index
    %7 = vector.load %arg10[%c0, %c0_0] : memref<1x4xf32, #tpu.memory_space<vmem>>, vector<1x4xf32>
    %8 = vector.broadcast %7 : vector<1x4xf32> to vector<64x4xf32>
    %9 = arith.addf %6, %8 : vector<64x4xf32>
    %cst_1 = arith.constant 0.000000e+00 : f32
    %10 = vector.broadcast %cst_1 : f32 to vector<64x4xf32>
    %cst_2 = arith.constant 0.000000e+00 : f32
    %11 = vector.broadcast %cst_2 : f32 to vector<64x4xf32>
    %cst_3 = arith.constant 0.000000e+00 : f32
    %12 = vector.broadcast %cst_3 : f32 to vector<1x4xf32>
    %c0_4 = arith.constant 0 : index
    %c0_5 = arith.constant 0 : index
    %13 = vector.load %arg12[%c0_4, %c0_5] : memref<98x4xf32, #tpu.memory_space<vmem>>, vector<1x4xf32>
    tpu.vector_store %arg12[%c0_4, %c0_5], %12 {strides = array<i32>} : memref<98x4xf32, #tpu.memory_space<vmem>>, vector<1x4xf32>,
    %c0_6 = arith.constant 0 : index
    %c0_7 = arith.constant 0 : index
    %c0_8 = arith.constant 0 : index
    %c0_9 = arith.constant 0 : index
    %14 = vector.load %arg3[%c0_6, %c0_7, %c0_8, %c0_9] : memref<1x1x16x4xf32, #tpu.memory_space<vmem>>, vector<1x1x16x4xf32>
    %15 = vector.shape_cast %14 : vector<1x1x16x4xf32> to vector<16x4xf32>
    %16 = vector.broadcast %2 : f32 to vector<16x4xf32>
    %17 = arith.mulf %15, %16 : vector<16x4xf32>
    %c1 = arith.constant 1 : index
    %c0_10 = arith.constant 0 : index
    %18 = vector.load %arg12[%c1, %c0_10] : memref<98x4xf32, #tpu.memory_space<vmem>>, vector<16x4xf32>
    tpu.vector_store %arg12[%c1, %c0_10], %17 {strides = array<i32>} : memref<98x4xf32, #tpu.memory_space<vmem>>, vector<16x4xf32>,
    %c0_11 = arith.constant 0 : index
    %c0_12 = arith.constant 0 : index
    %c0_13 = arith.constant 0 : index
    %c0_14 = arith.constant 0 : index
    %19 = vector.load %arg2[%c0_11, %c0_12, %c0_13, %c0_14] : memref<1x4x16x4xf32, #tpu.memory_space<vmem>>, vector<1x4x16x4xf32>
    %20 = vector.shape_cast %19 : vector<1x4x16x4xf32> to vector<4x16x4xf32>
    %21 = vector.shape_cast %20 : vector<4x16x4xf32> to vector<64x4xf32>
    %c17 = arith.constant 17 : index
    %c0_15 = arith.constant 0 : index
    %22 = vector.load %arg12[%c17, %c0_15] : memref<98x4xf32, #tpu.memory_space<vmem>>, vector<64x4xf32>
    tpu.vector_store %arg12[%c17, %c0_15], %21 {strides = array<i32>} : memref<98x4xf32, #tpu.memory_space<vmem>>, vector<64x4xf32>,
    %c0_16 = arith.constant 0 : index
    %c0_17 = arith.constant 0 : index
    %c0_18 = arith.constant 0 : index
    %c0_19 = arith.constant 0 : index
    %23 = vector.load %arg4[%c0_16, %c0_17, %c0_18, %c0_19] : memref<1x1x16x4xf32, #tpu.memory_space<vmem>>, vector<1x1x16x4xf32>
    %24 = vector.shape_cast %23 : vector<1x1x16x4xf32> to vector<16x4xf32>
    %25 = vector.broadcast %5 : f32 to vector<16x4xf32>
    %26 = arith.mulf %24, %25 : vector<16x4xf32>
    %c81 = arith.constant 81 : index
    %c0_20 = arith.constant 0 : index
    %27 = vector.load %arg12[%c81, %c0_20] : memref<98x4xf32, #tpu.memory_space<vmem>>, vector<16x4xf32>
    tpu.vector_store %arg12[%c81, %c0_20], %26 {strides = array<i32>} : memref<98x4xf32, #tpu.memory_space<vmem>>, vector<16x4xf32>,
    %c97 = arith.constant 97 : index
    %c0_21 = arith.constant 0 : index
    %28 = vector.load %arg12[%c97, %c0_21] : memref<98x4xf32, #tpu.memory_space<vmem>>, vector<1x4xf32>
    tpu.vector_store %arg12[%c97, %c0_21], %12 {strides = array<i32>} : memref<98x4xf32, #tpu.memory_space<vmem>>, vector<1x4xf32>,
    %c0_22 = arith.constant 0 : index
    %c0_23 = arith.constant 0 : index
    %29 = vector.load %arg12[%c0_22, %c0_23] : memref<98x4xf32, #tpu.memory_space<vmem>>, vector<64x4xf32>
    %c0_24 = arith.constant 0 : index
    %c0_25 = arith.constant 0 : index
    %c0_26 = arith.constant 0 : index
    %c0_27 = arith.constant 0 : index
    %30 = vector.load %arg8[%c0_24, %c0_25, %c0_26, %c0_27] : memref<3x3x4x4xf32, #tpu.memory_space<vmem>>, vector<1x1x4x4xf32>
    %31 = vector.shape_cast %30 : vector<1x1x4x4xf32> to vector<4x4xf32>
    %cst_28 = arith.constant dense<0.000000e+00> : vector<64x4xf32>
    %32 = tpu.matmul %29, %31, %cst_28 {dimension_numbers = #tpu.dot_dimension_numbers<[1], [0], [0], [1], [0, 0, 1, 1], [], []>} : vector<64x4xf32>, vector<4x4xf32>, vector<64x4xf32> -> vector<64x4xf32>
    %33 = arith.addf %10, %32 : vector<64x4xf32>
    %c1_29 = arith.constant 1 : index
    %c0_30 = arith.constant 0 : index
    %34 = vector.load %arg12[%c1_29, %c0_30] : memref<98x4xf32, #tpu.memory_space<vmem>>, vector<64x4xf32>
    %c0_31 = arith.constant 0 : index
    %c1_32 = arith.constant 1 : index
    %c0_33 = arith.constant 0 : index
    %c0_34 = arith.constant 0 : index
    %35 = vector.load %arg8[%c0_31, %c1_32, %c0_33, %c0_34] : memref<3x3x4x4xf32, #tpu.memory_space<vmem>>, vector<1x1x4x4xf32>
    %36 = vector.shape_cast %35 : vector<1x1x4x4xf32> to vector<4x4xf32>
    %cst_35 = arith.constant dense<0.000000e+00> : vector<64x4xf32>
    %37 = tpu.matmul %34, %36, %cst_35 {dimension_numbers = #tpu.dot_dimension_numbers<[1], [0], [0], [1], [0, 0, 1, 1], [], []>} : vector<64x4xf32>, vector<4x4xf32>, vector<64x4xf32> -> vector<64x4xf32>
    %38 = arith.addf %9, %37 : vector<64x4xf32>
    %c2 = arith.constant 2 : index
    %c0_36 = arith.constant 0 : index
    %39 = vector.load %arg12[%c2, %c0_36] : memref<98x4xf32, #tpu.memory_space<vmem>>, vector<64x4xf32>
    %c0_37 = arith.constant 0 : index
    %c2_38 = arith.constant 2 : index
    %c0_39 = arith.constant 0 : index
    %c0_40 = arith.constant 0 : index
    %40 = vector.load %arg8[%c0_37, %c2_38, %c0_39, %c0_40] : memref<3x3x4x4xf32, #tpu.memory_space<vmem>>, vector<1x1x4x4xf32>
    %41 = vector.shape_cast %40 : vector<1x1x4x4xf32> to vector<4x4xf32>
    %cst_41 = arith.constant dense<0.000000e+00> : vector<64x4xf32>
    %42 = tpu.matmul %39, %41, %cst_41 {dimension_numbers = #tpu.dot_dimension_numbers<[1], [0], [0], [1], [0, 0, 1, 1], [], []>} : vector<64x4xf32>, vector<4x4xf32>, vector<64x4xf32> -> vector<64x4xf32>
    %43 = arith.addf %11, %42 : vector<64x4xf32>
    %c16 = arith.constant 16 : index
    %c0_42 = arith.constant 0 : index
    %44 = vector.load %arg12[%c16, %c0_42] : memref<98x4xf32, #tpu.memory_space<vmem>>, vector<64x4xf32>
    %c1_43 = arith.constant 1 : index
    %c0_44 = arith.constant 0 : index
    %c0_45 = arith.constant 0 : index
    %c0_46 = arith.constant 0 : index
    %45 = vector.load %arg8[%c1_43, %c0_44, %c0_45, %c0_46] : memref<3x3x4x4xf32, #tpu.memory_space<vmem>>, vector<1x1x4x4xf32>
    %46 = vector.shape_cast %45 : vector<1x1x4x4xf32> to vector<4x4xf32>
    %cst_47 = arith.constant dense<0.000000e+00> : vector<64x4xf32>
    %47 = tpu.matmul %44, %46, %cst_47 {dimension_numbers = #tpu.dot_dimension_numbers<[1], [0], [0], [1], [0, 0, 1, 1], [], []>} : vector<64x4xf32>, vector<4x4xf32>, vector<64x4xf32> -> vector<64x4xf32>
    %48 = arith.addf %33, %47 : vector<64x4xf32>
    %c17_48 = arith.constant 17 : index
    %c0_49 = arith.constant 0 : index
    %49 = vector.load %arg12[%c17_48, %c0_49] : memref<98x4xf32, #tpu.memory_space<vmem>>, vector<64x4xf32>
    %c1_50 = arith.constant 1 : index
    %c1_51 = arith.constant 1 : index
    %c0_52 = arith.constant 0 : index
    %c0_53 = arith.constant 0 : index
    %50 = vector.load %arg8[%c1_50, %c1_51, %c0_52, %c0_53] : memref<3x3x4x4xf32, #tpu.memory_space<vmem>>, vector<1x1x4x4xf32>
    %51 = vector.shape_cast %50 : vector<1x1x4x4xf32> to vector<4x4xf32>
    %cst_54 = arith.constant dense<0.000000e+00> : vector<64x4xf32>
    %52 = tpu.matmul %49, %51, %cst_54 {dimension_numbers = #tpu.dot_dimension_numbers<[1], [0], [0], [1], [0, 0, 1, 1], [], []>} : vector<64x4xf32>, vector<4x4xf32>, vector<64x4xf32> -> vector<64x4xf32>
    %53 = arith.addf %38, %52 : vector<64x4xf32>
    %c18 = arith.constant 18 : index
    %c0_55 = arith.constant 0 : index
    %54 = vector.load %arg12[%c18, %c0_55] : memref<98x4xf32, #tpu.memory_space<vmem>>, vector<64x4xf32>
    %c1_56 = arith.constant 1 : index
    %c2_57 = arith.constant 2 : index
    %c0_58 = arith.constant 0 : index
    %c0_59 = arith.constant 0 : index
    %55 = vector.load %arg8[%c1_56, %c2_57, %c0_58, %c0_59] : memref<3x3x4x4xf32, #tpu.memory_space<vmem>>, vector<1x1x4x4xf32>
    %56 = vector.shape_cast %55 : vector<1x1x4x4xf32> to vector<4x4xf32>
    %cst_60 = arith.constant dense<0.000000e+00> : vector<64x4xf32>
    %57 = tpu.matmul %54, %56, %cst_60 {dimension_numbers = #tpu.dot_dimension_numbers<[1], [0], [0], [1], [0, 0, 1, 1], [], []>} : vector<64x4xf32>, vector<4x4xf32>, vector<64x4xf32> -> vector<64x4xf32>
    %58 = arith.addf %43, %57 : vector<64x4xf32>
    %c32 = arith.constant 32 : index
    %c0_61 = arith.constant 0 : index
    %59 = vector.load %arg12[%c32, %c0_61] : memref<98x4xf32, #tpu.memory_space<vmem>>, vector<64x4xf32>
    %c2_62 = arith.constant 2 : index
    %c0_63 = arith.constant 0 : index
    %c0_64 = arith.constant 0 : index
    %c0_65 = arith.constant 0 : index
    %60 = vector.load %arg8[%c2_62, %c0_63, %c0_64, %c0_65] : memref<3x3x4x4xf32, #tpu.memory_space<vmem>>, vector<1x1x4x4xf32>
    %61 = vector.shape_cast %60 : vector<1x1x4x4xf32> to vector<4x4xf32>
    %cst_66 = arith.constant dense<0.000000e+00> : vector<64x4xf32>
    %62 = tpu.matmul %59, %61, %cst_66 {dimension_numbers = #tpu.dot_dimension_numbers<[1], [0], [0], [1], [0, 0, 1, 1], [], []>} : vector<64x4xf32>, vector<4x4xf32>, vector<64x4xf32> -> vector<64x4xf32>
    %63 = arith.addf %48, %62 : vector<64x4xf32>
    %c33 = arith.constant 33 : index
    %c0_67 = arith.constant 0 : index
    %64 = vector.load %arg12[%c33, %c0_67] : memref<98x4xf32, #tpu.memory_space<vmem>>, vector<64x4xf32>
    %c2_68 = arith.constant 2 : index
    %c1_69 = arith.constant 1 : index
    %c0_70 = arith.constant 0 : index
    %c0_71 = arith.constant 0 : index
    %65 = vector.load %arg8[%c2_68, %c1_69, %c0_70, %c0_71] : memref<3x3x4x4xf32, #tpu.memory_space<vmem>>, vector<1x1x4x4xf32>
    %66 = vector.shape_cast %65 : vector<1x1x4x4xf32> to vector<4x4xf32>
    %cst_72 = arith.constant dense<0.000000e+00> : vector<64x4xf32>
    %67 = tpu.matmul %64, %66, %cst_72 {dimension_numbers = #tpu.dot_dimension_numbers<[1], [0], [0], [1], [0, 0, 1, 1], [], []>} : vector<64x4xf32>, vector<4x4xf32>, vector<64x4xf32> -> vector<64x4xf32>
    %68 = arith.addf %53, %67 : vector<64x4xf32>
    %c34 = arith.constant 34 : index
    %c0_73 = arith.constant 0 : index
    %69 = vector.load %arg12[%c34, %c0_73] : memref<98x4xf32, #tpu.memory_space<vmem>>, vector<64x4xf32>
    %c2_74 = arith.constant 2 : index
    %c2_75 = arith.constant 2 : index
    %c0_76 = arith.constant 0 : index
    %c0_77 = arith.constant 0 : index
    %70 = vector.load %arg8[%c2_74, %c2_75, %c0_76, %c0_77] : memref<3x3x4x4xf32, #tpu.memory_space<vmem>>, vector<1x1x4x4xf32>
    %71 = vector.shape_cast %70 : vector<1x1x4x4xf32> to vector<4x4xf32>
    %cst_78 = arith.constant dense<0.000000e+00> : vector<64x4xf32>
    %72 = tpu.matmul %69, %71, %cst_78 {dimension_numbers = #tpu.dot_dimension_numbers<[1], [0], [0], [1], [0, 0, 1, 1], [], []>} : vector<64x4xf32>, vector<4x4xf32>, vector<64x4xf32> -> vector<64x4xf32>
    %73 = arith.addf %58, %72 : vector<64x4xf32>
    %cst_79 = arith.constant 0.000000e+00 : f32
    %74 = vector.broadcast %cst_79 : f32 to vector<1x4xf32>
    %c0_80 = arith.constant 0 : index
    %c0_81 = arith.constant 0 : index
    %75 = vector.load %arg13[%c0_80, %c0_81] : memref<98x4xf32, #tpu.memory_space<vmem>>, vector<1x4xf32>
    tpu.vector_store %arg13[%c0_80, %c0_81], %74 {strides = array<i32>} : memref<98x4xf32, #tpu.memory_space<vmem>>, vector<1x4xf32>,
    %c0_82 = arith.constant 0 : index
    %c0_83 = arith.constant 0 : index
    %c0_84 = arith.constant 0 : index
    %c0_85 = arith.constant 0 : index
    %76 = vector.load %arg6[%c0_82, %c0_83, %c0_84, %c0_85] : memref<1x1x16x4xf32, #tpu.memory_space<vmem>>, vector<1x1x16x4xf32>
    %77 = vector.shape_cast %76 : vector<1x1x16x4xf32> to vector<16x4xf32>
    %78 = vector.broadcast %2 : f32 to vector<16x4xf32>
    %79 = arith.mulf %77, %78 : vector<16x4xf32>
    %c1_86 = arith.constant 1 : index
    %c0_87 = arith.constant 0 : index
    %80 = vector.load %arg13[%c1_86, %c0_87] : memref<98x4xf32, #tpu.memory_space<vmem>>, vector<16x4xf32>
    tpu.vector_store %arg13[%c1_86, %c0_87], %79 {strides = array<i32>} : memref<98x4xf32, #tpu.memory_space<vmem>>, vector<16x4xf32>,
    %c0_88 = arith.constant 0 : index
    %c0_89 = arith.constant 0 : index
    %c0_90 = arith.constant 0 : index
    %c0_91 = arith.constant 0 : index
    %81 = vector.load %arg5[%c0_88, %c0_89, %c0_90, %c0_91] : memref<1x4x16x4xf32, #tpu.memory_space<vmem>>, vector<1x4x16x4xf32>
    %82 = vector.shape_cast %81 : vector<1x4x16x4xf32> to vector<4x16x4xf32>
    %83 = vector.shape_cast %82 : vector<4x16x4xf32> to vector<64x4xf32>
    %c17_92 = arith.constant 17 : index
    %c0_93 = arith.constant 0 : index
    %84 = vector.load %arg13[%c17_92, %c0_93] : memref<98x4xf32, #tpu.memory_space<vmem>>, vector<64x4xf32>
    tpu.vector_store %arg13[%c17_92, %c0_93], %83 {strides = array<i32>} : memref<98x4xf32, #tpu.memory_space<vmem>>, vector<64x4xf32>,
    %c0_94 = arith.constant 0 : index
    %c0_95 = arith.constant 0 : index
    %c0_96 = arith.constant 0 : index
    %c0_97 = arith.constant 0 : index
    %85 = vector.load %arg7[%c0_94, %c0_95, %c0_96, %c0_97] : memref<1x1x16x4xf32, #tpu.memory_space<vmem>>, vector<1x1x16x4xf32>
    %86 = vector.shape_cast %85 : vector<1x1x16x4xf32> to vector<16x4xf32>
    %87 = vector.broadcast %5 : f32 to vector<16x4xf32>
    %88 = arith.mulf %86, %87 : vector<16x4xf32>
    %c81_98 = arith.constant 81 : index
    %c0_99 = arith.constant 0 : index
    %89 = vector.load %arg13[%c81_98, %c0_99] : memref<98x4xf32, #tpu.memory_space<vmem>>, vector<16x4xf32>
    tpu.vector_store %arg13[%c81_98, %c0_99], %88 {strides = array<i32>} : memref<98x4xf32, #tpu.memory_space<vmem>>, vector<16x4xf32>,
    %c97_100 = arith.constant 97 : index
    %c0_101 = arith.constant 0 : index
    %90 = vector.load %arg13[%c97_100, %c0_101] : memref<98x4xf32, #tpu.memory_space<vmem>>, vector<1x4xf32>
    tpu.vector_store %arg13[%c97_100, %c0_101], %74 {strides = array<i32>} : memref<98x4xf32, #tpu.memory_space<vmem>>, vector<1x4xf32>,
    %c0_102 = arith.constant 0 : index
    %c0_103 = arith.constant 0 : index
    %91 = vector.load %arg13[%c0_102, %c0_103] : memref<98x4xf32, #tpu.memory_space<vmem>>, vector<64x4xf32>
    %c0_104 = arith.constant 0 : index
    %c0_105 = arith.constant 0 : index
    %c0_106 = arith.constant 0 : index
    %c0_107 = arith.constant 0 : index
    %92 = vector.load %arg9[%c0_104, %c0_105, %c0_106, %c0_107] : memref<3x3x4x4xf32, #tpu.memory_space<vmem>>, vector<1x1x4x4xf32>
    %93 = vector.shape_cast %92 : vector<1x1x4x4xf32> to vector<4x4xf32>
    %cst_108 = arith.constant dense<0.000000e+00> : vector<64x4xf32>
    %94 = tpu.matmul %91, %93, %cst_108 {dimension_numbers = #tpu.dot_dimension_numbers<[1], [0], [0], [1], [0, 0, 1, 1], [], []>} : vector<64x4xf32>, vector<4x4xf32>, vector<64x4xf32> -> vector<64x4xf32>
    %95 = arith.addf %63, %94 : vector<64x4xf32>
    %c1_109 = arith.constant 1 : index
    %c0_110 = arith.constant 0 : index
    %96 = vector.load %arg13[%c1_109, %c0_110] : memref<98x4xf32, #tpu.memory_space<vmem>>, vector<64x4xf32>
    %c0_111 = arith.constant 0 : index
    %c1_112 = arith.constant 1 : index
    %c0_113 = arith.constant 0 : index
    %c0_114 = arith.constant 0 : index
    %97 = vector.load %arg9[%c0_111, %c1_112, %c0_113, %c0_114] : memref<3x3x4x4xf32, #tpu.memory_space<vmem>>, vector<1x1x4x4xf32>
    %98 = vector.shape_cast %97 : vector<1x1x4x4xf32> to vector<4x4xf32>
    %cst_115 = arith.constant dense<0.000000e+00> : vector<64x4xf32>
    %99 = tpu.matmul %96, %98, %cst_115 {dimension_numbers = #tpu.dot_dimension_numbers<[1], [0], [0], [1], [0, 0, 1, 1], [], []>} : vector<64x4xf32>, vector<4x4xf32>, vector<64x4xf32> -> vector<64x4xf32>
    %100 = arith.addf %68, %99 : vector<64x4xf32>
    %c2_116 = arith.constant 2 : index
    %c0_117 = arith.constant 0 : index
    %101 = vector.load %arg13[%c2_116, %c0_117] : memref<98x4xf32, #tpu.memory_space<vmem>>, vector<64x4xf32>
    %c0_118 = arith.constant 0 : index
    %c2_119 = arith.constant 2 : index
    %c0_120 = arith.constant 0 : index
    %c0_121 = arith.constant 0 : index
    %102 = vector.load %arg9[%c0_118, %c2_119, %c0_120, %c0_121] : memref<3x3x4x4xf32, #tpu.memory_space<vmem>>, vector<1x1x4x4xf32>
    %103 = vector.shape_cast %102 : vector<1x1x4x4xf32> to vector<4x4xf32>
    %cst_122 = arith.constant dense<0.000000e+00> : vector<64x4xf32>
    %104 = tpu.matmul %101, %103, %cst_122 {dimension_numbers = #tpu.dot_dimension_numbers<[1], [0], [0], [1], [0, 0, 1, 1], [], []>} : vector<64x4xf32>, vector<4x4xf32>, vector<64x4xf32> -> vector<64x4xf32>
    %105 = arith.addf %73, %104 : vector<64x4xf32>
    %c16_123 = arith.constant 16 : index
    %c0_124 = arith.constant 0 : index
    %106 = vector.load %arg13[%c16_123, %c0_124] : memref<98x4xf32, #tpu.memory_space<vmem>>, vector<64x4xf32>
    %c1_125 = arith.constant 1 : index
    %c0_126 = arith.constant 0 : index
    %c0_127 = arith.constant 0 : index
    %c0_128 = arith.constant 0 : index
    %107 = vector.load %arg9[%c1_125, %c0_126, %c0_127, %c0_128] : memref<3x3x4x4xf32, #tpu.memory_space<vmem>>, vector<1x1x4x4xf32>
    %108 = vector.shape_cast %107 : vector<1x1x4x4xf32> to vector<4x4xf32>
    %cst_129 = arith.constant dense<0.000000e+00> : vector<64x4xf32>
    %109 = tpu.matmul %106, %108, %cst_129 {dimension_numbers = #tpu.dot_dimension_numbers<[1], [0], [0], [1], [0, 0, 1, 1], [], []>} : vector<64x4xf32>, vector<4x4xf32>, vector<64x4xf32> -> vector<64x4xf32>
    %110 = arith.addf %95, %109 : vector<64x4xf32>
    %c17_130 = arith.constant 17 : index
    %c0_131 = arith.constant 0 : index
    %111 = vector.load %arg13[%c17_130, %c0_131] : memref<98x4xf32, #tpu.memory_space<vmem>>, vector<64x4xf32>
    %c1_132 = arith.constant 1 : index
    %c1_133 = arith.constant 1 : index
    %c0_134 = arith.constant 0 : index
    %c0_135 = arith.constant 0 : index
    %112 = vector.load %arg9[%c1_132, %c1_133, %c0_134, %c0_135] : memref<3x3x4x4xf32, #tpu.memory_space<vmem>>, vector<1x1x4x4xf32>
    %113 = vector.shape_cast %112 : vector<1x1x4x4xf32> to vector<4x4xf32>
    %cst_136 = arith.constant dense<0.000000e+00> : vector<64x4xf32>
    %114 = tpu.matmul %111, %113, %cst_136 {dimension_numbers = #tpu.dot_dimension_numbers<[1], [0], [0], [1], [0, 0, 1, 1], [], []>} : vector<64x4xf32>, vector<4x4xf32>, vector<64x4xf32> -> vector<64x4xf32>
    %115 = arith.addf %100, %114 : vector<64x4xf32>
    %c18_137 = arith.constant 18 : index
    %c0_138 = arith.constant 0 : index
    %116 = vector.load %arg13[%c18_137, %c0_138] : memref<98x4xf32, #tpu.memory_space<vmem>>, vector<64x4xf32>
    %c1_139 = arith.constant 1 : index
    %c2_140 = arith.constant 2 : index
    %c0_141 = arith.constant 0 : index
    %c0_142 = arith.constant 0 : index
    %117 = vector.load %arg9[%c1_139, %c2_140, %c0_141, %c0_142] : memref<3x3x4x4xf32, #tpu.memory_space<vmem>>, vector<1x1x4x4xf32>
    %118 = vector.shape_cast %117 : vector<1x1x4x4xf32> to vector<4x4xf32>
    %cst_143 = arith.constant dense<0.000000e+00> : vector<64x4xf32>
    %119 = tpu.matmul %116, %118, %cst_143 {dimension_numbers = #tpu.dot_dimension_numbers<[1], [0], [0], [1], [0, 0, 1, 1], [], []>} : vector<64x4xf32>, vector<4x4xf32>, vector<64x4xf32> -> vector<64x4xf32>
    %120 = arith.addf %105, %119 : vector<64x4xf32>
    %c32_144 = arith.constant 32 : index
    %c0_145 = arith.constant 0 : index
    %121 = vector.load %arg13[%c32_144, %c0_145] : memref<98x4xf32, #tpu.memory_space<vmem>>, vector<64x4xf32>
    %c2_146 = arith.constant 2 : index
    %c0_147 = arith.constant 0 : index
    %c0_148 = arith.constant 0 : index
    %c0_149 = arith.constant 0 : index
    %122 = vector.load %arg9[%c2_146, %c0_147, %c0_148, %c0_149] : memref<3x3x4x4xf32, #tpu.memory_space<vmem>>, vector<1x1x4x4xf32>
    %123 = vector.shape_cast %122 : vector<1x1x4x4xf32> to vector<4x4xf32>
    %cst_150 = arith.constant dense<0.000000e+00> : vector<64x4xf32>
    %124 = tpu.matmul %121, %123, %cst_150 {dimension_numbers = #tpu.dot_dimension_numbers<[1], [0], [0], [1], [0, 0, 1, 1], [], []>} : vector<64x4xf32>, vector<4x4xf32>, vector<64x4xf32> -> vector<64x4xf32>
    %125 = arith.addf %110, %124 : vector<64x4xf32>
    %c33_151 = arith.constant 33 : index
    %c0_152 = arith.constant 0 : index
    %126 = vector.load %arg13[%c33_151, %c0_152] : memref<98x4xf32, #tpu.memory_space<vmem>>, vector<64x4xf32>
    %c2_153 = arith.constant 2 : index
    %c1_154 = arith.constant 1 : index
    %c0_155 = arith.constant 0 : index
    %c0_156 = arith.constant 0 : index
    %127 = vector.load %arg9[%c2_153, %c1_154, %c0_155, %c0_156] : memref<3x3x4x4xf32, #tpu.memory_space<vmem>>, vector<1x1x4x4xf32>
    %128 = vector.shape_cast %127 : vector<1x1x4x4xf32> to vector<4x4xf32>
    %cst_157 = arith.constant dense<0.000000e+00> : vector<64x4xf32>
    %129 = tpu.matmul %126, %128, %cst_157 {dimension_numbers = #tpu.dot_dimension_numbers<[1], [0], [0], [1], [0, 0, 1, 1], [], []>} : vector<64x4xf32>, vector<4x4xf32>, vector<64x4xf32> -> vector<64x4xf32>
    %130 = arith.addf %115, %129 : vector<64x4xf32>
    %c34_158 = arith.constant 34 : index
    %c0_159 = arith.constant 0 : index
    %131 = vector.load %arg13[%c34_158, %c0_159] : memref<98x4xf32, #tpu.memory_space<vmem>>, vector<64x4xf32>
    %c2_160 = arith.constant 2 : index
    %c2_161 = arith.constant 2 : index
    %c0_162 = arith.constant 0 : index
    %c0_163 = arith.constant 0 : index
    %132 = vector.load %arg9[%c2_160, %c2_161, %c0_162, %c0_163] : memref<3x3x4x4xf32, #tpu.memory_space<vmem>>, vector<1x1x4x4xf32>
    %133 = vector.shape_cast %132 : vector<1x1x4x4xf32> to vector<4x4xf32>
    %cst_164 = arith.constant dense<0.000000e+00> : vector<64x4xf32>
    %134 = tpu.matmul %131, %133, %cst_164 {dimension_numbers = #tpu.dot_dimension_numbers<[1], [0], [0], [1], [0, 0, 1, 1], [], []>} : vector<64x4xf32>, vector<4x4xf32>, vector<64x4xf32> -> vector<64x4xf32>
    %135 = arith.addf %120, %134 : vector<64x4xf32>
    %136 = tpu.iota {dimensions = array<i32: 1>} : vector<4x16x1xi32>
    %c0_i32_165 = arith.constant 0 : i32
    %137 = vector.broadcast %c0_i32_165 : i32 to vector<4x16x1xi32>
    %138 = arith.cmpi sgt, %136, %137 : vector<4x16x1xi32>
    %139 = arith.extui %138 : vector<4x16x1xi1> to vector<4x16x1xi32>
    %140 = arith.sitofp %139 : vector<4x16x1xi32> to vector<4x16x1xf32>
    %c15_i32 = arith.constant 15 : i32
    %141 = vector.broadcast %c15_i32 : i32 to vector<4x16x1xi32>
    %142 = arith.cmpi slt, %136, %141 : vector<4x16x1xi32>
    %143 = arith.extui %142 : vector<4x16x1xi1> to vector<4x16x1xi32>
    %144 = arith.sitofp %143 : vector<4x16x1xi32> to vector<4x16x1xf32>
    %145 = vector.shape_cast %130 : vector<64x4xf32> to vector<4x16x4xf32>
    %146 = vector.shape_cast %125 : vector<64x4xf32> to vector<4x16x4xf32>
    %147 = vector.broadcast %140 : vector<4x16x1xf32> to vector<4x16x4xf32>
    %148 = arith.mulf %146, %147 : vector<4x16x4xf32>
    %149 = arith.addf %145, %148 : vector<4x16x4xf32>
    %150 = vector.shape_cast %135 : vector<64x4xf32> to vector<4x16x4xf32>
    %151 = vector.broadcast %144 : vector<4x16x1xf32> to vector<4x16x4xf32>
    %152 = arith.mulf %150, %151 : vector<4x16x4xf32>
    %153 = arith.addf %149, %152 : vector<4x16x4xf32>
    %cst_166 = arith.constant 0.000000e+00 : f32
    %154 = vector.broadcast %cst_166 : f32 to vector<4x16x4xf32>
    %155 = arith.maximumf %153, %154 : vector<4x16x4xf32>
    %c0_167 = arith.constant 0 : index
    %c0_168 = arith.constant 0 : index
    %c0_169 = arith.constant 0 : index
    %c0_170 = arith.constant 0 : index
    %156 = vector.load %arg11[%c0_167, %c0_168, %c0_169, %c0_170] : memref<1x4x16x4xf32, #tpu.memory_space<vmem>>, vector<1x4x16x4xf32>
    %157 = vector.shape_cast %156 : vector<1x4x16x4xf32> to vector<4x16x4xf32>
    %158 = vector.shape_cast %155 : vector<4x16x4xf32> to vector<1x4x16x4xf32>
    tpu.vector_store %arg11[%c0_167, %c0_168, %c0_169, %c0_170], %158 {strides = array<i32>} : memref<1x4x16x4xf32, #tpu.memory_space<vmem>>, vector<1x4x16x4xf32>,
    return
  }
  func.func @transform_0(%arg0: i32, %arg1: i32) -> (i32, i32, i32, i32) {
    %c0_i32 = arith.constant 0 : i32
    %c0_i32_0 = arith.constant 0 : i32
    %c0_i32_1 = arith.constant 0 : i32
    return %arg0, %arg1, %c0_i32, %c0_i32_0 : i32, i32, i32, i32
  }
  func.func @transform_1(%arg0: i32, %arg1: i32) -> (i32, i32, i32, i32) {
    %c4_i32 = arith.constant 4 : i32
    %0 = arith.muli %arg1, %c4_i32 : i32
    %c1_i32 = arith.constant 1 : i32
    %1 = arith.subi %0, %c1_i32 : i32
    %c0_i32 = arith.constant 0 : i32
    %2 = arith.maxsi %1, %c0_i32 : i32
    %c0_i32_0 = arith.constant 0 : i32
    %c0_i32_1 = arith.constant 0 : i32
    %c0_i32_2 = arith.constant 0 : i32
    return %arg0, %2, %c0_i32_0, %c0_i32_1 : i32, i32, i32, i32
  }
  func.func @transform_2(%arg0: i32, %arg1: i32) -> (i32, i32, i32, i32) {
    %c4_i32 = arith.constant 4 : i32
    %0 = arith.muli %arg1, %c4_i32 : i32
    %c4_i32_0 = arith.constant 4 : i32
    %1 = arith.addi %0, %c4_i32_0 : i32
    %c15_i32 = arith.constant 15 : i32
    %2 = arith.minsi %1, %c15_i32 : i32
    %c0_i32 = arith.constant 0 : i32
    %c0_i32_1 = arith.constant 0 : i32
    %c0_i32_2 = arith.constant 0 : i32
    return %arg0, %2, %c0_i32, %c0_i32_1 : i32, i32, i32, i32
  }
  func.func @transform_3(%arg0: i32, %arg1: i32) -> (i32, i32, i32, i32) {
    %c0_i32 = arith.constant 0 : i32
    %c0_i32_0 = arith.constant 0 : i32
    %c0_i32_1 = arith.constant 0 : i32
    return %arg0, %arg1, %c0_i32, %c0_i32_0 : i32, i32, i32, i32
  }
  func.func @transform_4(%arg0: i32, %arg1: i32) -> (i32, i32, i32, i32) {
    %c4_i32 = arith.constant 4 : i32
    %0 = arith.muli %arg1, %c4_i32 : i32
    %c1_i32 = arith.constant 1 : i32
    %1 = arith.subi %0, %c1_i32 : i32
    %c0_i32 = arith.constant 0 : i32
    %2 = arith.maxsi %1, %c0_i32 : i32
    %c0_i32_0 = arith.constant 0 : i32
    %c0_i32_1 = arith.constant 0 : i32
    %c0_i32_2 = arith.constant 0 : i32
    return %arg0, %2, %c0_i32_0, %c0_i32_1 : i32, i32, i32, i32
  }
  func.func @transform_5(%arg0: i32, %arg1: i32) -> (i32, i32, i32, i32) {
    %c4_i32 = arith.constant 4 : i32
    %0 = arith.muli %arg1, %c4_i32 : i32
    %c4_i32_0 = arith.constant 4 : i32
    %1 = arith.addi %0, %c4_i32_0 : i32
    %c15_i32 = arith.constant 15 : i32
    %2 = arith.minsi %1, %c15_i32 : i32
    %c0_i32 = arith.constant 0 : i32
    %c0_i32_1 = arith.constant 0 : i32
    %c0_i32_2 = arith.constant 0 : i32
    return %arg0, %2, %c0_i32, %c0_i32_1 : i32, i32, i32, i32
  }
  func.func @transform_6(%arg0: i32, %arg1: i32) -> (i32, i32, i32, i32) {
    %c0_i32 = arith.constant 0 : i32
    %c0_i32_0 = arith.constant 0 : i32
    %c0_i32_1 = arith.constant 0 : i32
    %c0_i32_2 = arith.constant 0 : i32
    %c0_i32_3 = arith.constant 0 : i32
    return %c0_i32, %c0_i32_0, %c0_i32_1, %c0_i32_2 : i32, i32, i32, i32
  }
  func.func @transform_7(%arg0: i32, %arg1: i32) -> (i32, i32, i32, i32) {
    %c0_i32 = arith.constant 0 : i32
    %c0_i32_0 = arith.constant 0 : i32
    %c0_i32_1 = arith.constant 0 : i32
    %c0_i32_2 = arith.constant 0 : i32
    %c0_i32_3 = arith.constant 0 : i32
    return %c0_i32, %c0_i32_0, %c0_i32_1, %c0_i32_2 : i32, i32, i32, i32
  }
  func.func @transform_8(%arg0: i32, %arg1: i32) -> (i32, i32) {
    %c0_i32 = arith.constant 0 : i32
    %c0_i32_0 = arith.constant 0 : i32
    %c0_i32_1 = arith.constant 0 : i32
    return %c0_i32, %c0_i32_0 : i32, i32
  }
  func.func @transform_9(%arg0: i32, %arg1: i32) -> (i32, i32, i32, i32) {
    %c0_i32 = arith.constant 0 : i32
    %c0_i32_0 = arith.constant 0 : i32
    %c0_i32_1 = arith.constant 0 : i32
    return %arg0, %arg1, %c0_i32, %c0_i32_0 : i32, i32, i32, i32
  }
}

</mosaic_0001>

<llo_original>
// kernel: tile.8
$region0: #{tile.8}
  #allocation0 [shape = 's32[1]{0}', space=sflag, size = 0x4, scoped, tag = 'scoped memory for tile.8']
  %s0 = inlined_call_operand.vmem [shape: f32[4], index: 0, kind: input, shape index: {}]
  %s1 = inlined_call_operand.vmem [shape: f32[2,4], index: 1, kind: output, shape index: {}]
  // Predicated region
  $region2: #{tile.8} parent=0 // pred_check
    _
  $region3: #{tile.8} parent=0 // pred_check_branch
    %3 = sbr.rel (0) target = $region5
  $region4: #{tile.8} parent=0 // pred_region
    _
  $region5: #{tile.8} parent=0 // pred_fallthru
    _
  %v4 = vld [vmem:[%s0] ss:$0 sm:$0xff]
  %5 = vst [vmem:[%s1] sm:$0x3] %v4

// kernel: tile.9
$region0: #{tile.9}
  %s0 = inlined_call_operand.vmem [shape: f32[2,4], index: 0, kind: input, shape index: {}]
  %s1 = inlined_call_operand.vmem [shape: f32[1,8], index: 1, kind: output, shape index: {}]
  $region1: #{tile.9} parent=0
    #allocation0 [shape = 'u8[4096]{0}', space=vmem, size = 0x1000, scoped, tag = 'scoped mem for output reshape']
    #allocation1 [shape = 'u8[4096]{0}', space=vmem, size = 0x1000, scoped, tag = 'scoped mem for input reshape']
    %s3 = sshll.u32 1, 2
    %s4 = ssub.s32 %s3, 1
    %v5 = vld [vmem:[%s0] sm:%s4]
    %6 = vst [vmem:[#allocation1] sm:%s4] %v5
    %v7 = vld [vmem:[#allocation1] sm:$0x1]
    %vm8 = vcmask 31744
    %9 = vst.msk [vmem:[#allocation0] sm:$0x1] %vm8, %v7
    %s10 = scalar_lea.vmem [#allocation1], 1
    %v11 = vld [vmem:[%s10] sm:$0x1]
    %12 = vrot.lane.b32.xlu0 %v11, 4
    %v13 = vpop.permute.xlu0 %12
    %vm14 = vcmask 64544
    %15 = vst.msk [vmem:[#allocation0] sm:$0x1] %vm14, %v13
    %s17 = sshll.u32 1, 1
    %s18 = ssub.s32 %s17, 1
    %v20 = vld [vmem:[#allocation0] sm:%s18]
    %s21 = sshll.u32 1, 1
    %s22 = ssub.s32 %s21, 1
    %23 = vst [vmem:[%s1] sm:%s22] %v20

// kernel: _lambda_.3
$region0: #{_lambda_.3}
  #allocation0 [shape = 'u32[]', space=smem, size = 0x4, offset = 0x4, fixed_abs, tag = 'smem constant byte address 0x4 - core index']
  #allocation1 [shape = 'u32[144,128]{1,0:T(1,128)}', space=vmem, size = 0x12000, scoped, tag = 'internal scratch']
  %s0 = inlined_call_operand.vmem [shape: f32[2,8,8,8], index: 0, kind: input, shape index: {}]
  %s1 = inlined_call_operand.vmem [shape: f32[2,8,8], index: 1, kind: input, shape index: {}]
  %s2 = inlined_call_operand.vmem [shape: f32[1,8], index: 2, kind: input, shape index: {}]
  %s3 = inlined_call_operand.vmem [shape: f32[2,8,2,8,8], index: 3, kind: output, shape index: {}]
  %s4 = sld [smem:[#allocation0]]
  $region45: #{_lambda_.3} parent=0
    _
  %s6 = ssub.s32 1, %s4
  %s7 = scalar_select 0, %s6, %s4
  loop: start=0, step=1, limit=6
  $region2: #{_lambda_.3} parent=0 // loop_pre_header
    _
  $region3: #{_lambda_.3} parent=0 // loop_header
    %s9 = sphi 0, %s13
    %p10 = scmp.ge.s32.totalorder %s9, 6
    %s16 = sphi 0, %s28
    %s17 = sphi 0, %s24
    %s18 = sphi 0, %s16
    %s19 = sphi 0, %s17
    %s20 = sphi 0, %s18
    %s21 = sphi 0, %s19
    %s33 = sphi 0, %s35
    %s36 = sphi 0, %s33
    %s37 = sphi 0, %s36
    %s53 = sphi 0, %s37
    %s57 = sphi 0, %s57
    %s59 = sphi 0, %s57
    %s60 = sphi 0, %s59
    %s74 = sphi 0, %s60
    %s78 = sphi 0, %s78
    %s80 = sphi 0, %s78
    %s81 = sphi 0, %s80
    %s95 = sphi 0, %s81
    %s103 = sphi 0, %s105
    %s106 = sphi 0, %s103
    %s107 = sphi 0, %s106
    %s123 = sphi 0, %s107
  $region4: #{_lambda_.3} parent=0 // loop_header_branch
    %12 = sbr.rel (%p10) target = $region8
  $region5: #{_lambda_.3} parent=0 // loop_body
    %s14 = ssub.s32 %s9, 1
    %s15 = ssub.s32 %s9, 2
    %s22 = sadd.s32 1, %s17
    %p23 = scmp.ge.s32.totalorder %s22, 2
    %s24 = scalar_select %p23, 0, %s22
    %s25 = sadd.s32 1, %s16
    %s26 = scalar_select %p23, %s25, %s16
    %p27 = scmp.ge.s32.totalorder %s26, 2
    %s28 = scalar_select %p27, 0, %s26
    %s29 = ssub.s32 %s16, %s28
    %s30 = ssub.s32 %s17, %s24
    %s31 = sor.u32 %s29, %s30
    %p32 = scmp.eq.s32.totalorder %s31, 0
    %s34 = sadd.s32 %s33, 1
    %s35 = scalar_select %p32, %s33, %s34
    %p38 = pneg %p32
    %p39 = scmp.eq.s32.totalorder %s9, 3
    %p40 = por %p38, %p39
    %p41 = scmp.ne.s32.totalorder %s33, %s36
    %p42 = scmp.eq.s32.totalorder %s9, 0
    %p43 = por %p41, %p42
    %p44 = scmp.ne.s32.totalorder %s33, %s36
    %p45 = scmp.eq.s32.totalorder %s14, 3
    %p46 = por %p44, %p45
    %p47 = scmp.ne.s32.totalorder %s36, %s37
    %p48 = scmp.eq.s32.totalorder %s14, 0
    %p49 = por %p47, %p48
    %p50 = scmp.ne.s32.totalorder %s36, %s37
    %p51 = scmp.eq.s32.totalorder %s15, 3
    %p52 = por %p50, %p51
    %p54 = scmp.ne.s32.totalorder %s37, %s53
    %p55 = scmp.eq.s32.totalorder %s15, 0
    %p56 = por %p54, %p55
    %s58 = sadd.s32 %s57, 1
    %p61 = scmp.eq.s32.totalorder %s9, 3
    %p62 = scmp.ne.s32.totalorder %s57, %s59
    %p63 = scmp.eq.s32.totalorder %s9, 0
    %p64 = por %p62, %p63
    %p65 = scmp.ne.s32.totalorder %s57, %s59
    %p66 = scmp.eq.s32.totalorder %s14, 3
    %p67 = por %p65, %p66
    %p68 = scmp.ne.s32.totalorder %s59, %s60
    %p69 = scmp.eq.s32.totalorder %s14, 0
    %p70 = por %p68, %p69
    %p71 = scmp.ne.s32.totalorder %s59, %s60
    %p72 = scmp.eq.s32.totalorder %s15, 3
    %p73 = por %p71, %p72
    %p75 = scmp.ne.s32.totalorder %s60, %s74
    %p76 = scmp.eq.s32.totalorder %s15, 0
    %p77 = por %p75, %p76
    %s79 = sadd.s32 %s78, 1
    %p82 = scmp.eq.s32.totalorder %s9, 3
    %p83 = scmp.ne.s32.totalorder %s78, %s80
    %p84 = scmp.eq.s32.totalorder %s9, 0
    %p85 = por %p83, %p84
    %p86 = scmp.ne.s32.totalorder %s78, %s80
    %p87 = scmp.eq.s32.totalorder %s14, 3
    %p88 = por %p86, %p87
    %p89 = scmp.ne.s32.totalorder %s80, %s81
    %p90 = scmp.eq.s32.totalorder %s14, 0
    %p91 = por %p89, %p90
    %p92 = scmp.ne.s32.totalorder %s80, %s81
    %p93 = scmp.eq.s32.totalorder %s15, 3
    %p94 = por %p92, %p93
    %p96 = scmp.ne.s32.totalorder %s81, %s95
    %p97 = scmp.eq.s32.totalorder %s15, 0
    %p98 = por %p96, %p97
    %s99 = ssub.s32 %s16, %s28
    %s100 = ssub.s32 %s17, %s24
    %s101 = sor.u32 %s99, %s100
    %p102 = scmp.eq.s32.totalorder %s101, 0
    %s104 = sadd.s32 %s103, 1
    %s105 = scalar_select %p102, %s103, %s104
    %p108 = pneg %p102
    %p109 = scmp.eq.s32.totalorder %s9, 3
    %p110 = por %p108, %p109
    %p111 = scmp.ne.s32.totalorder %s103, %s106
    %p112 = scmp.eq.s32.totalorder %s9, 0
    %p113 = por %p111, %p112
    %p114 = scmp.ne.s32.totalorder %s103, %s106
    %p115 = scmp.eq.s32.totalorder %s14, 3
    %p116 = por %p114, %p115
    %p117 = scmp.ne.s32.totalorder %s106, %s107
    %p118 = scmp.eq.s32.totalorder %s14, 0
    %p119 = por %p117, %p118
    %p120 = scmp.ne.s32.totalorder %s106, %s107
    %p121 = scmp.eq.s32.totalorder %s15, 3
    %p122 = por %p120, %p121
    %p124 = scmp.ne.s32.totalorder %s107, %s123
    %p125 = scmp.eq.s32.totalorder %s15, 0
    %p126 = por %p124, %p125
    %p127 = scmp.le.s32.totalorder 1, %s9
    %p128 = scmp.lt.s32.totalorder %s9, 5
    %p129 = pnand %p127, %p128
    %p130 = pneg %p129
    // Predicated region
    $region9: #{_lambda_.3} parent=5 // pred_check
      _
    $region10: #{_lambda_.3} parent=5 // pred_check_branch
      %132 = sbr.rel (%p129) target = $region12
    $region11: #{_lambda_.3} parent=5 // pred_region
      %s133 = ssub.s32 %s9, 1
      // Predicated region
      $region13: #{_lambda_.3} parent=11 // pred_check
        %p134 = pneg %p70
      $region14: #{_lambda_.3} parent=11 // pred_check_branch
        %136 = sbr.rel (%p134) target = $region16
      $region15: #{_lambda_.3} parent=11 // pred_region
        _
      $region16: #{_lambda_.3} parent=11 // pred_fallthru
        _
      // Predicated region
      $region17: #{_lambda_.3} parent=11 // pred_check
        %p137 = pneg %p91
      $region18: #{_lambda_.3} parent=11 // pred_check_branch
        %139 = sbr.rel (%p137) target = $region20
      $region19: #{_lambda_.3} parent=11 // pred_region
        _
      $region20: #{_lambda_.3} parent=11 // pred_fallthru
        _
    $region12: #{_lambda_.3} parent=5 // pred_fallthru
      _
    %p140 = scmp.lt.s32.totalorder %s9, 4
    // Predicated region
    $region21: #{_lambda_.3} parent=5 // pred_check
      %p141 = pneg %p140
    $region22: #{_lambda_.3} parent=5 // pred_check_branch
      %143 = sbr.rel (%p141) target = $region24
    $region23: #{_lambda_.3} parent=5 // pred_region
      // Predicated region
      $region25: #{_lambda_.3} parent=23 // pred_check
        %p144 = pneg %p43
      $region26: #{_lambda_.3} parent=23 // pred_check_branch
        %146 = sbr.rel (%p144) target = $region28
      $region27: #{_lambda_.3} parent=23 // pred_region
        %s147 = smul.u32 4, %s17
        %p148 = scmp.lt.s32.totalorder %s16, 1
        %s149 = scalar_select %p148, %s16, 1
        %p150 = scmp.lt.s32.totalorder %s147, 7
        %s151 = scalar_select %p150, %s147, 7
        %s152 = smul.addr %s149, 8
        %s153 = sadd.s32 %s151, %s152
        %s154 = smul.addr %s153, 8
        %s155 = scalar_lea.vmem %s0, %s154
        %s156 = smul.u32 4, %s17
      $region28: #{_lambda_.3} parent=23 // pred_fallthru
        _
    $region24: #{_lambda_.3} parent=5 // pred_fallthru
      _
    %p157 = scmp.le.s32.totalorder 1, %s9
    %p158 = scmp.lt.s32.totalorder %s9, 5
    %p159 = pnand %p157, %p158
    %p160 = pneg %p159
    // Predicated region
    $region29: #{_lambda_.3} parent=5 // pred_check
      _
    $region30: #{_lambda_.3} parent=5 // pred_check_branch
      %162 = sbr.rel (%p159) target = $region32
    $region31: #{_lambda_.3} parent=5 // pred_region
      %s163 = ssub.s32 %s9, 1
      %s164 = smul.u32 4, %s19
      %p165 = scmp.lt.s32.totalorder %s18, 1
      %s166 = scalar_select %p165, %s18, 1
      %p167 = scmp.lt.s32.totalorder %s164, 7
      %s168 = scalar_select %p167, %s164, 7
      %s169 = smul.addr %s166, 8
      %s170 = sadd.s32 %s168, %s169
      %s171 = smul.addr %s170, 8
      %s172 = scalar_lea.vmem %s0, %s171
      %p173 = pneg %p49
      %p174 = pneg %p46
      %p175 = pneg %p70
      %p176 = pneg %p67
      %p177 = pneg %p91
      %p178 = pneg %p88
      %p179 = pneg %p119
      %p180 = pneg %p116
      %s181 = smul.u32 4, %s19
      %p182 = scmp.lt.s32.totalorder %s18, 1
      %s183 = scalar_select %p182, %s18, 1
      %p184 = scmp.lt.s32.totalorder %s181, 7
      %s185 = scalar_select %p184, %s181, 7
      %s186 = smul.addr %s185, 2
      %s187 = smul.addr %s183, 16
      %s188 = sadd.s32 %s186, %s187
      %s189 = smul.addr %s188, 8
      %s190 = scalar_lea.vmem %s3, %s189
      %s191 = smul.u32 4, %s19
      %p192 = scmp.lt.s32.totalorder %s18, 1
      %s193 = scalar_select %p192, %s18, 1
      %p194 = scmp.lt.s32.totalorder %s191, 7
      %s195 = scalar_select %p194, %s191, 7
      %s196 = smul.addr %s193, 8
      %s197 = sadd.s32 %s195, %s196
      %s198 = smul.addr %s197, 8
      %s199 = scalar_lea.vmem %s0, %s198
      %s200 = smul.u32 4, %s19
      %s201 = smul.u32 4, %s19
      %p202 = scmp.lt.s32.totalorder %s18, 1
      %s203 = scalar_select %p202, %s18, 1
      %p204 = scmp.lt.s32.totalorder %s201, 7
      %s205 = scalar_select %p204, %s201, 7
      %s206 = smul.addr %s205, 2
      %s207 = smul.addr %s203, 16
      %s208 = sadd.s32 %s206, %s207
      %s209 = smul.addr %s208, 8
      %s210 = scalar_lea.vmem %s3, %s209
      %s211 = smul.u32 4, %s19
      %v212 = vld [vmem:[%s199] sm:$0xff]
      %v213 = vld [vmem:[%s199 + $0x8] sm:$0xff]
      %v214 = vld [vmem:[%s199 + $0x10] sm:$0xff]
      %v215 = vld [vmem:[%s199 + $0x18] sm:$0xff]
      %v216 = vld [vmem:[%s1] sm:$0xff]
      %v217 = vld [vmem:[%s2] sm:$0x1]
      %v219 = vlaneseq
      %v220 = vshrl.u32 %v219, 7
      %v221 = vsub.s32 0, %v220
      %v222 = vrot.slane %v217, %v221
      %vm224 = vcmask 64512
      %v226 = vsel %vm224, %v212, 0
      %v229 = vsel %vm224, %v213, 0
      %v232 = vsel %vm224, %v214, 0
      %v235 = vsel %vm224, %v215, 0
      %237 = vmatprep.subr.mxu0 0.0
      %238 = vmatpush1.msra.mxu0 0.0
      %239 = vmatprep.subr.mxu0 0.0
      %240 = vmatpush1.msra.mxu0 0.0
      %241 = vmatprep.subr.mxu0 0.0
      %242 = vmatpush1.msra.mxu0 0.0
      %243 = vmatprep.subr.mxu0 0.0
      %244 = vmatpush1.msra.mxu0 0.0
      %245 = vmatprep.subr.mxu0 0.0
      %246 = vmatpush1.msra.mxu0 0.0
      %247 = vmatprep.subr.mxu0 0.0
      %248 = vmatpush1.msra.mxu0 0.0
      %249 = vmatprep.subr.mxu0 0.0
      %250 = vmatpush1.msra.mxu0 0.0
      %251 = vmatprep.subr.mxu0 0.0
      %252 = vmatpush1.msra.mxu0 0.0
      %253 = vmatprep.subr.mxu0 0.0
      %254 = vmatpush1.msra.mxu0 0.0
      %255 = vmatprep.subr.mxu0 0.0
      %256 = vmatpush1.msra.mxu0 0.0
      %257 = vmatprep.subr.mxu0 0.0
      %258 = vmatpush1.msra.mxu0 0.0
      %259 = vmatprep.subr.mxu0 0.0
      %260 = vmatpush1.msra.mxu0 0.0
      %261 = vmatprep.subr.mxu0 0.0
      %262 = vmatpush1.msra.mxu0 0.0
      %263 = vmatprep.subr.mxu0 0.0
      %264 = vmatpush1.msra.mxu0 0.0
      %265 = vmatprep.subr.mxu0 0.0
      %266 = vmatpush1.msra.mxu0 0.0
      %267 = vmatprep.subr.mxu0 0.0
      %268 = vmatpush1.msra.mxu0 %v216
      %269 = vmatprep.subr.mxu0 0.0
      %270 = vmatpush2.msra.mxu0 0.0
      %271 = vmatprep.subr.mxu0 0.0
      %272 = vmatpush2.msra.mxu0 0.0
      %273 = vmatprep.subr.mxu0 0.0
      %274 = vmatpush2.msra.mxu0 0.0
      %275 = vmatprep.subr.mxu0 0.0
      %276 = vmatpush2.msra.mxu0 0.0
      %277 = vmatprep.subr.mxu0 0.0
      %278 = vmatpush2.msra.mxu0 0.0
      %279 = vmatprep.subr.mxu0 0.0
      %280 = vmatpush2.msra.mxu0 0.0
      %281 = vmatprep.subr.mxu0 0.0
      %282 = vmatpush2.msra.mxu0 0.0
      %283 = vmatprep.subr.mxu0 0.0
      %284 = vmatpush2.msra.mxu0 0.0
      %285 = vmatprep.subr.mxu0 0.0
      %286 = vmatpush2.msra.mxu0 0.0
      %287 = vmatprep.subr.mxu0 0.0
      %288 = vmatpush2.msra.mxu0 0.0
      %289 = vmatprep.subr.mxu0 0.0
      %290 = vmatpush2.msra.mxu0 0.0
      %291 = vmatprep.subr.mxu0 0.0
      %292 = vmatpush2.msra.mxu0 0.0
      %293 = vmatprep.subr.mxu0 0.0
      %294 = vmatpush2.msra.mxu0 0.0
      %295 = vmatprep.subr.mxu0 0.0
      %296 = vmatpush2.msra.mxu0 0.0
      %297 = vmatprep.subr.mxu0 0.0
      %298 = vmatpush2.msra.mxu0 0.0
      %299 = vmatprep.subr.mxu0 0.0
      %300 = vmatpush2.msra.mxu0 0.0
      %301 = vmatprep.mubr.f32.mxu0 0.0
      %302 = vmatmul.mubr.f32.gmra.mxu0 %v226
      %v303 = vpop.f32.mrf.mxu0
      %v304 = vadd.f32 %v222, %v303
      %v305 = vpop.f32.mrf.mxu0
      %306 = vmatprep.mubr.f32.mxu0 0.0
      %307 = vmatmul.mubr.f32.gmra.mxu0 %v229
      %v308 = vpop.f32.mrf.mxu0
      %v309 = vadd.f32 %v222, %v308
      %v310 = vpop.f32.mrf.mxu0
      %311 = vmatprep.mubr.f32.mxu0 0.0
      %312 = vmatmul.mubr.f32.gmra.mxu0 %v232
      %v313 = vpop.f32.mrf.mxu0
      %v314 = vadd.f32 %v222, %v313
      %v315 = vpop.f32.mrf.mxu0
      %316 = vmatprep.mubr.f32.mxu0 0.0
      %317 = vmatmul.mubr.f32.gmra.mxu0 %v235
      %v318 = vpop.f32.mrf.mxu0
      %v319 = vadd.f32 %v222, %v318
      %v320 = vpop.f32.mrf.mxu0
      %321 = vdwg.mxu0
      %322 = vst.msk [vmem:[%s210] sm:$0xff] %vm224, %v304
      %323 = vst.msk [vmem:[%s210 + $0x10] sm:$0xff] %vm224, %v309
      %324 = vst.msk [vmem:[%s210 + $0x20] sm:$0xff] %vm224, %v314
      %325 = vst.msk [vmem:[%s210 + $0x30] sm:$0xff] %vm224, %v319
      %s326 = scalar_lea.vmem %s1, 8
      %v327 = vld [vmem:[%s326] sm:$0xff]
      %v328 = vld [vmem:[%s2] sm:$0x1]
      %v330 = vlaneseq
      %v331 = vshrl.u32 %v330, 7
      %v332 = vsub.s32 0, %v331
      %v333 = vrot.slane %v328, %v332
      %335 = vmatprep.subr.mxu0 0.0
      %336 = vmatpush1.msra.mxu0 0.0
      %337 = vmatprep.subr.mxu0 0.0
      %338 = vmatpush1.msra.mxu0 0.0
      %339 = vmatprep.subr.mxu0 0.0
      %340 = vmatpush1.msra.mxu0 0.0
      %341 = vmatprep.subr.mxu0 0.0
      %342 = vmatpush1.msra.mxu0 0.0
      %343 = vmatprep.subr.mxu0 0.0
      %344 = vmatpush1.msra.mxu0 0.0
      %345 = vmatprep.subr.mxu0 0.0
      %346 = vmatpush1.msra.mxu0 0.0
      %347 = vmatprep.subr.mxu0 0.0
      %348 = vmatpush1.msra.mxu0 0.0
      %349 = vmatprep.subr.mxu0 0.0
      %350 = vmatpush1.msra.mxu0 0.0
      %351 = vmatprep.subr.mxu0 0.0
      %352 = vmatpush1.msra.mxu0 0.0
      %353 = vmatprep.subr.mxu0 0.0
      %354 = vmatpush1.msra.mxu0 0.0
      %355 = vmatprep.subr.mxu0 0.0
      %356 = vmatpush1.msra.mxu0 0.0
      %357 = vmatprep.subr.mxu0 0.0
      %358 = vmatpush1.msra.mxu0 0.0
      %359 = vmatprep.subr.mxu0 0.0
      %360 = vmatpush1.msra.mxu0 0.0
      %361 = vmatprep.subr.mxu0 0.0
      %362 = vmatpush1.msra.mxu0 0.0
      %363 = vmatprep.subr.mxu0 0.0
      %364 = vmatpush1.msra.mxu0 0.0
      %365 = vmatprep.subr.mxu0 0.0
      %366 = vmatpush1.msra.mxu0 %v327
      %367 = vmatprep.subr.mxu0 0.0
      %368 = vmatpush2.msra.mxu0 0.0
      %369 = vmatprep.subr.mxu0 0.0
      %370 = vmatpush2.msra.mxu0 0.0
      %371 = vmatprep.subr.mxu0 0.0
      %372 = vmatpush2.msra.mxu0 0.0
      %373 = vmatprep.subr.mxu0 0.0
      %374 = vmatpush2.msra.mxu0 0.0
      %375 = vmatprep.subr.mxu0 0.0
      %376 = vmatpush2.msra.mxu0 0.0
      %377 = vmatprep.subr.mxu0 0.0
      %378 = vmatpush2.msra.mxu0 0.0
      %379 = vmatprep.subr.mxu0 0.0
      %380 = vmatpush2.msra.mxu0 0.0
      %381 = vmatprep.subr.mxu0 0.0
      %382 = vmatpush2.msra.mxu0 0.0
      %383 = vmatprep.subr.mxu0 0.0
      %384 = vmatpush2.msra.mxu0 0.0
      %385 = vmatprep.subr.mxu0 0.0
      %386 = vmatpush2.msra.mxu0 0.0
      %387 = vmatprep.subr.mxu0 0.0
      %388 = vmatpush2.msra.mxu0 0.0
      %389 = vmatprep.subr.mxu0 0.0
      %390 = vmatpush2.msra.mxu0 0.0
      %391 = vmatprep.subr.mxu0 0.0
      %392 = vmatpush2.msra.mxu0 0.0
      %393 = vmatprep.subr.mxu0 0.0
      %394 = vmatpush2.msra.mxu0 0.0
      %395 = vmatprep.subr.mxu0 0.0
      %396 = vmatpush2.msra.mxu0 0.0
      %397 = vmatprep.subr.mxu0 0.0
      %398 = vmatpush2.msra.mxu0 0.0
      %399 = vmatprep.mubr.f32.mxu0 0.0
      %400 = vmatmul.mubr.f32.gmra.mxu0 %v226
      %v401 = vpop.f32.mrf.mxu0
      %v402 = vadd.f32 %v333, %v401
      %v403 = vpop.f32.mrf.mxu0
      %404 = vmatprep.mubr.f32.mxu0 0.0
      %405 = vmatmul.mubr.f32.gmra.mxu0 %v229
      %v406 = vpop.f32.mrf.mxu0
      %v407 = vadd.f32 %v333, %v406
      %v408 = vpop.f32.mrf.mxu0
      %409 = vmatprep.mubr.f32.mxu0 0.0
      %410 = vmatmul.mubr.f32.gmra.mxu0 %v232
      %v411 = vpop.f32.mrf.mxu0
      %v412 = vadd.f32 %v333, %v411
      %v413 = vpop.f32.mrf.mxu0
      %414 = vmatprep.mubr.f32.mxu0 0.0
      %415 = vmatmul.mubr.f32.gmra.mxu0 %v235
      %v416 = vpop.f32.mrf.mxu0
      %v417 = vadd.f32 %v333, %v416
      %v418 = vpop.f32.mrf.mxu0
      %419 = vdwg.mxu0
      %s420 = scalar_lea.vmem %s210, 8
      %421 = vst.msk [vmem:[%s420] sm:$0xff] %vm224, %v402
      %422 = vst.msk [vmem:[%s420 + $0x10] sm:$0xff] %vm224, %v407
      %423 = vst.msk [vmem:[%s420 + $0x20] sm:$0xff] %vm224, %v412
      %424 = vst.msk [vmem:[%s420 + $0x30] sm:$0xff] %vm224, %v417
      %s425 = smul.u32 4, %s19
      %p426 = scmp.lt.s32.totalorder %s18, 1
      %s427 = scalar_select %p426, %s18, 1
      %p428 = scmp.lt.s32.totalorder %s425, 7
      %s429 = scalar_select %p428, %s425, 7
      %s430 = smul.addr %s429, 2
      %s431 = smul.addr %s427, 16
      %s432 = sadd.s32 %s430, %s431
      %s433 = smul.addr %s432, 8
      %s434 = scalar_lea.vmem %s3, %s433
      // Predicated region
      $region33: #{_lambda_.3} parent=31 // pred_check
        %p435 = pneg %p116
      $region34: #{_lambda_.3} parent=31 // pred_check_branch
        %437 = sbr.rel (%p435) target = $region36
      $region35: #{_lambda_.3} parent=31 // pred_region
        %s438 = smul.u32 4, %s19
      $region36: #{_lambda_.3} parent=31 // pred_fallthru
        _
    $region32: #{_lambda_.3} parent=5 // pred_fallthru
      _
    %p439 = scmp.le.s32.totalorder 2, %s9
    // Predicated region
    $region37: #{_lambda_.3} parent=5 // pred_check
      %p440 = pneg %p439
    $region38: #{_lambda_.3} parent=5 // pred_check_branch
      %442 = sbr.rel (%p440) target = $region40
    $region39: #{_lambda_.3} parent=5 // pred_region
      %s443 = ssub.s32 %s9, 2
      // Predicated region
      $region41: #{_lambda_.3} parent=39 // pred_check
        %p444 = pneg %p122
      $region42: #{_lambda_.3} parent=39 // pred_check_branch
        %446 = sbr.rel (%p444) target = $region44
      $region43: #{_lambda_.3} parent=39 // pred_region
        %s447 = smul.u32 4, %s21
        %p448 = scmp.lt.s32.totalorder %s20, 1
        %s449 = scalar_select %p448, %s20, 1
        %p450 = scmp.lt.s32.totalorder %s447, 7
        %s451 = scalar_select %p450, %s447, 7
        %s452 = smul.addr %s451, 2
        %s453 = smul.addr %s449, 16
        %s454 = sadd.s32 %s452, %s453
        %s455 = smul.addr %s454, 8
        %s456 = scalar_lea.vmem %s3, %s455
      $region44: #{_lambda_.3} parent=39 // pred_fallthru
        _
    $region40: #{_lambda_.3} parent=5 // pred_fallthru
      _
  $region6: #{_lambda_.3} parent=0 // loop_footer
    %s13 = sadd.s32 1, %s9
  $region7: #{_lambda_.3} parent=0 // loop_footer_branch
    %8 = sbr.rel target = $region3
  $region8: #{_lambda_.3} parent=0 // loop_exit
    _

// kernel: _lambda_.5
$region0: #{_lambda_.5}
  #allocation0 [shape = 'u32[]', space=smem, size = 0x4, offset = 0x4, fixed_abs, tag = 'smem constant byte address 0x4 - core index']
  #allocation1 [shape = 'u32[144,128]{1,0:T(1,128)}', space=vmem, size = 0x12000, scoped, tag = 'internal scratch']
  #allocation2 [shape = 'f32[98,4]{1,0:T(8,128)}', space=vmem, size = 0xd000, scoped, tag = 'scratch operand']
  %s0 = inlined_call_operand.vmem [shape: f32[2,16,16,4], index: 0, kind: input, shape index: {}, may-alias: {0,1,2}]
  %s1 = inlined_call_operand.vmem [shape: f32[2,16,16,4], index: 1, kind: input, shape index: {}, may-alias: {0,1,2}]
  %s2 = inlined_call_operand.vmem [shape: f32[2,16,16,4], index: 2, kind: input, shape index: {}, may-alias: {0,1,2}]
  %s3 = inlined_call_operand.vmem [shape: f32[3,3,4,4], index: 3, kind: input, shape index: {}]
  %s4 = inlined_call_operand.vmem [shape: f32[1,4], index: 4, kind: input, shape index: {}]
  %s5 = inlined_call_operand.vmem [shape: f32[2,16,16,4], index: 5, kind: output, shape index: {}]
  %s6 = sld [smem:[#allocation0]]
  $region53: #{_lambda_.5} parent=0
    _
  %s8 = ssub.s32 1, %s6
  %s9 = scalar_select 0, %s8, %s6
  loop: start=0, step=1, limit=10
  $region2: #{_lambda_.5} parent=0 // loop_pre_header
    _
  $region3: #{_lambda_.5} parent=0 // loop_header
    %s11 = sphi 0, %s15
    %p12 = scmp.ge.s32.totalorder %s11, 10
    %s18 = sphi 0, %s30
    %s19 = sphi 0, %s26
    %s20 = sphi 0, %s18
    %s21 = sphi 0, %s19
    %s22 = sphi 0, %s20
    %s23 = sphi 0, %s21
    %s35 = sphi 0, %s37
    %s38 = sphi 0, %s35
    %s39 = sphi 0, %s38
    %s55 = sphi 0, %s39
    %s71 = sphi 0, %s73
    %s74 = sphi 0, %s71
    %s75 = sphi 0, %s74
    %s91 = sphi 0, %s75
    %s107 = sphi 0, %s109
    %s110 = sphi 0, %s107
    %s111 = sphi 0, %s110
    %s127 = sphi 0, %s111
    %s131 = sphi 0, %s131
    %s133 = sphi 0, %s131
    %s134 = sphi 0, %s133
    %s148 = sphi 0, %s134
    %s152 = sphi 0, %s152
    %s154 = sphi 0, %s152
    %s155 = sphi 0, %s154
    %s169 = sphi 0, %s155
    %s177 = sphi 0, %s179
    %s180 = sphi 0, %s177
    %s181 = sphi 0, %s180
    %s197 = sphi 0, %s181
  $region4: #{_lambda_.5} parent=0 // loop_header_branch
    %14 = sbr.rel (%p12) target = $region8
  $region5: #{_lambda_.5} parent=0 // loop_body
    %s16 = ssub.s32 %s11, 1
    %s17 = ssub.s32 %s11, 2
    %s24 = sadd.s32 1, %s19
    %p25 = scmp.ge.s32.totalorder %s24, 4
    %s26 = scalar_select %p25, 0, %s24
    %s27 = sadd.s32 1, %s18
    %s28 = scalar_select %p25, %s27, %s18
    %p29 = scmp.ge.s32.totalorder %s28, 2
    %s30 = scalar_select %p29, 0, %s28
    %s31 = ssub.s32 %s18, %s30
    %s32 = ssub.s32 %s19, %s26
    %s33 = sor.u32 %s31, %s32
    %p34 = scmp.eq.s32.totalorder %s33, 0
    %s36 = sadd.s32 %s35, 1
    %s37 = scalar_select %p34, %s35, %s36
    %p40 = pneg %p34
    %p41 = scmp.eq.s32.totalorder %s11, 7
    %p42 = por %p40, %p41
    %p43 = scmp.ne.s32.totalorder %s35, %s38
    %p44 = scmp.eq.s32.totalorder %s11, 0
    %p45 = por %p43, %p44
    %p46 = scmp.ne.s32.totalorder %s35, %s38
    %p47 = scmp.eq.s32.totalorder %s16, 7
    %p48 = por %p46, %p47
    %p49 = scmp.ne.s32.totalorder %s38, %s39
    %p50 = scmp.eq.s32.totalorder %s16, 0
    %p51 = por %p49, %p50
    %p52 = scmp.ne.s32.totalorder %s38, %s39
    %p53 = scmp.eq.s32.totalorder %s17, 7
    %p54 = por %p52, %p53
    %p56 = scmp.ne.s32.totalorder %s39, %s55
    %p57 = scmp.eq.s32.totalorder %s17, 0
    %p58 = por %p56, %p57
    %s59 = smul.u32 %s19, 4
    %s60 = ssub.s32 %s59, 1
    %p61 = scmp.gt.s32.totalorder %s60, 0
    %s62 = scalar_select %p61, %s60, 0
    %s63 = smul.u32 %s26, 4
    %s64 = ssub.s32 %s63, 1
    %p65 = scmp.gt.s32.totalorder %s64, 0
    %s66 = scalar_select %p65, %s64, 0
    %s67 = ssub.s32 %s18, %s30
    %s68 = ssub.s32 %s62, %s66
    %s69 = sor.u32 %s67, %s68
    %p70 = scmp.eq.s32.totalorder %s69, 0
    %s72 = sadd.s32 %s71, 1
    %s73 = scalar_select %p70, %s71, %s72
    %p76 = pneg %p70
    %p77 = scmp.eq.s32.totalorder %s11, 7
    %p78 = por %p76, %p77
    %p79 = scmp.ne.s32.totalorder %s71, %s74
    %p80 = scmp.eq.s32.totalorder %s11, 0
    %p81 = por %p79, %p80
    %p82 = scmp.ne.s32.totalorder %s71, %s74
    %p83 = scmp.eq.s32.totalorder %s16, 7
    %p84 = por %p82, %p83
    %p85 = scmp.ne.s32.totalorder %s74, %s75
    %p86 = scmp.eq.s32.totalorder %s16, 0
    %p87 = por %p85, %p86
    %p88 = scmp.ne.s32.totalorder %s74, %s75
    %p89 = scmp.eq.s32.totalorder %s17, 7
    %p90 = por %p88, %p89
    %p92 = scmp.ne.s32.totalorder %s75, %s91
    %p93 = scmp.eq.s32.totalorder %s17, 0
    %p94 = por %p92, %p93
    %s95 = smul.u32 %s19, 4
    %s96 = sadd.s32 %s95, 4
    %p97 = scmp.lt.s32.totalorder %s96, 15
    %s98 = scalar_select %p97, %s96, 15
    %s99 = smul.u32 %s26, 4
    %s100 = sadd.s32 %s99, 4
    %p101 = scmp.lt.s32.totalorder %s100, 15
    %s102 = scalar_select %p101, %s100, 15
    %s103 = ssub.s32 %s18, %s30
    %s104 = ssub.s32 %s98, %s102
    %s105 = sor.u32 %s103, %s104
    %p106 = scmp.eq.s32.totalorder %s105, 0
    %s108 = sadd.s32 %s107, 1
    %s109 = scalar_select %p106, %s107, %s108
    %p112 = pneg %p106
    %p113 = scmp.eq.s32.totalorder %s11, 7
    %p114 = por %p112, %p113
    %p115 = scmp.ne.s32.totalorder %s107, %s110
    %p116 = scmp.eq.s32.totalorder %s11, 0
    %p117 = por %p115, %p116
    %p118 = scmp.ne.s32.totalorder %s107, %s110
    %p119 = scmp.eq.s32.totalorder %s16, 7
    %p120 = por %p118, %p119
    %p121 = scmp.ne.s32.totalorder %s110, %s111
    %p122 = scmp.eq.s32.totalorder %s16, 0
    %p123 = por %p121, %p122
    %p124 = scmp.ne.s32.totalorder %s110, %s111
    %p125 = scmp.eq.s32.totalorder %s17, 7
    %p126 = por %p124, %p125
    %p128 = scmp.ne.s32.totalorder %s111, %s127
    %p129 = scmp.eq.s32.totalorder %s17, 0
    %p130 = por %p128, %p129
    %s132 = sadd.s32 %s131, 1
    %p135 = scmp.eq.s32.totalorder %s11, 7
    %p136 = scmp.ne.s32.totalorder %s131, %s133
    %p137 = scmp.eq.s32.totalorder %s11, 0
    %p138 = por %p136, %p137
    %p139 = scmp.ne.s32.totalorder %s131, %s133
    %p140 = scmp.eq.s32.totalorder %s16, 7
    %p141 = por %p139, %p140
    %p142 = scmp.ne.s32.totalorder %s133, %s134
    %p143 = scmp.eq.s32.totalorder %s16, 0
    %p144 = por %p142, %p143
    %p145 = scmp.ne.s32.totalorder %s133, %s134
    %p146 = scmp.eq.s32.totalorder %s17, 7
    %p147 = por %p145, %p146
    %p149 = scmp.ne.s32.totalorder %s134, %s148
    %p150 = scmp.eq.s32.totalorder %s17, 0
    %p151 = por %p149, %p150
    %s153 = sadd.s32 %s152, 1
    %p156 = scmp.eq.s32.totalorder %s11, 7
    %p157 = scmp.ne.s32.totalorder %s152, %s154
    %p158 = scmp.eq.s32.totalorder %s11, 0
    %p159 = por %p157, %p158
    %p160 = scmp.ne.s32.totalorder %s152, %s154
    %p161 = scmp.eq.s32.totalorder %s16, 7
    %p162 = por %p160, %p161
    %p163 = scmp.ne.s32.totalorder %s154, %s155
    %p164 = scmp.eq.s32.totalorder %s16, 0
    %p165 = por %p163, %p164
    %p166 = scmp.ne.s32.totalorder %s154, %s155
    %p167 = scmp.eq.s32.totalorder %s17, 7
    %p168 = por %p166, %p167
    %p170 = scmp.ne.s32.totalorder %s155, %s169
    %p171 = scmp.eq.s32.totalorder %s17, 0
    %p172 = por %p170, %p171
    %s173 = ssub.s32 %s18, %s30
    %s174 = ssub.s32 %s19, %s26
    %s175 = sor.u32 %s173, %s174
    %p176 = scmp.eq.s32.totalorder %s175, 0
    %s178 = sadd.s32 %s177, 1
    %s179 = scalar_select %p176, %s177, %s178
    %p182 = pneg %p176
    %p183 = scmp.eq.s32.totalorder %s11, 7
    %p184 = por %p182, %p183
    %p185 = scmp.ne.s32.totalorder %s177, %s180
    %p186 = scmp.eq.s32.totalorder %s11, 0
    %p187 = por %p185, %p186
    %p188 = scmp.ne.s32.totalorder %s177, %s180
    %p189 = scmp.eq.s32.totalorder %s16, 7
    %p190 = por %p188, %p189
    %p191 = scmp.ne.s32.totalorder %s180, %s181
    %p192 = scmp.eq.s32.totalorder %s16, 0
    %p193 = por %p191, %p192
    %p194 = scmp.ne.s32.totalorder %s180, %s181
    %p195 = scmp.eq.s32.totalorder %s17, 7
    %p196 = por %p194, %p195
    %p198 = scmp.ne.s32.totalorder %s181, %s197
    %p199 = scmp.eq.s32.totalorder %s17, 0
    %p200 = por %p198, %p199
    %p201 = scmp.le.s32.totalorder 1, %s11
    %p202 = scmp.lt.s32.totalorder %s11, 9
    %p203 = pnand %p201, %p202
    %p204 = pneg %p203
    // Predicated region
    $region9: #{_lambda_.5} parent=5 // pred_check
      _
    $region10: #{_lambda_.5} parent=5 // pred_check_branch
      %206 = sbr.rel (%p203) target = $region12
    $region11: #{_lambda_.5} parent=5 // pred_region
      %s207 = ssub.s32 %s11, 1
      // Predicated region
      $region13: #{_lambda_.5} parent=11 // pred_check
        %p208 = pneg %p144
      $region14: #{_lambda_.5} parent=11 // pred_check_branch
        %210 = sbr.rel (%p208) target = $region16
      $region15: #{_lambda_.5} parent=11 // pred_region
        _
      $region16: #{_lambda_.5} parent=11 // pred_fallthru
        _
      // Predicated region
      $region17: #{_lambda_.5} parent=11 // pred_check
        %p211 = pneg %p165
      $region18: #{_lambda_.5} parent=11 // pred_check_branch
        %213 = sbr.rel (%p211) target = $region20
      $region19: #{_lambda_.5} parent=11 // pred_region
        _
      $region20: #{_lambda_.5} parent=11 // pred_fallthru
        _
    $region12: #{_lambda_.5} parent=5 // pred_fallthru
      _
    %p214 = scmp.lt.s32.totalorder %s11, 8
    // Predicated region
    $region21: #{_lambda_.5} parent=5 // pred_check
      %p215 = pneg %p214
    $region22: #{_lambda_.5} parent=5 // pred_check_branch
      %217 = sbr.rel (%p215) target = $region24
    $region23: #{_lambda_.5} parent=5 // pred_region
      // Predicated region
      $region25: #{_lambda_.5} parent=23 // pred_check
        %p218 = pneg %p45
      $region26: #{_lambda_.5} parent=23 // pred_check_branch
        %220 = sbr.rel (%p218) target = $region28
      $region27: #{_lambda_.5} parent=23 // pred_region
        %s221 = smul.u32 4, %s19
        %p222 = scmp.lt.s32.totalorder %s18, 1
        %s223 = scalar_select %p222, %s18, 1
        %p224 = scmp.lt.s32.totalorder %s221, 15
        %s225 = scalar_select %p224, %s221, 15
        %s226 = smul.addr %s225, 2
        %s227 = smul.addr %s223, 32
        %s228 = sadd.s32 %s226, %s227
        %s229 = smul.addr %s228, 8
        %s230 = scalar_lea.vmem %s0, %s229
        %s231 = smul.u32 4, %s19
      $region28: #{_lambda_.5} parent=23 // pred_fallthru
        _
      // Predicated region
      $region29: #{_lambda_.5} parent=23 // pred_check
        %p232 = pneg %p81
      $region30: #{_lambda_.5} parent=23 // pred_check_branch
        %234 = sbr.rel (%p232) target = $region32
      $region31: #{_lambda_.5} parent=23 // pred_region
        %s235 = smul.u32 %s19, 4
        %s236 = ssub.s32 %s235, 1
        %p237 = scmp.gt.s32.totalorder %s236, 0
        %s238 = scalar_select %p237, %s236, 0
        %p239 = scmp.lt.s32.totalorder %s18, 1
        %s240 = scalar_select %p239, %s18, 1
        %p241 = scmp.lt.s32.totalorder %s238, 15
        %s242 = scalar_select %p241, %s238, 15
        %s243 = smul.addr %s242, 2
        %s244 = smul.addr %s240, 32
        %s245 = sadd.s32 %s243, %s244
        %s246 = smul.addr %s245, 8
        %s247 = scalar_lea.vmem %s1, %s246
        %s248 = smul.u32 %s19, 4
        %s249 = ssub.s32 %s248, 1
        %p250 = scmp.gt.s32.totalorder %s249, 0
        %s251 = scalar_select %p250, %s249, 0
      $region32: #{_lambda_.5} parent=23 // pred_fallthru
        _
      // Predicated region
      $region33: #{_lambda_.5} parent=23 // pred_check
        %p252 = pneg %p117
      $region34: #{_lambda_.5} parent=23 // pred_check_branch
        %254 = sbr.rel (%p252) target = $region36
      $region35: #{_lambda_.5} parent=23 // pred_region
        %s255 = smul.u32 %s19, 4
        %s256 = sadd.s32 %s255, 4
        %p257 = scmp.lt.s32.totalorder %s256, 15
        %s258 = scalar_select %p257, %s256, 15
        %p259 = scmp.lt.s32.totalorder %s18, 1
        %s260 = scalar_select %p259, %s18, 1
        %p261 = scmp.lt.s32.totalorder %s258, 15
        %s262 = scalar_select %p261, %s258, 15
        %s263 = smul.addr %s262, 2
        %s264 = smul.addr %s260, 32
        %s265 = sadd.s32 %s263, %s264
        %s266 = smul.addr %s265, 8
        %s267 = scalar_lea.vmem %s2, %s266
        %s268 = smul.u32 %s19, 4
        %s269 = sadd.s32 %s268, 4
        %p270 = scmp.lt.s32.totalorder %s269, 15
        %s271 = scalar_select %p270, %s269, 15
      $region36: #{_lambda_.5} parent=23 // pred_fallthru
        _
    $region24: #{_lambda_.5} parent=5 // pred_fallthru
      _
    %p272 = scmp.le.s32.totalorder 1, %s11
    %p273 = scmp.lt.s32.totalorder %s11, 9
    %p274 = pnand %p272, %p273
    %p275 = pneg %p274
    // Predicated region
    $region37: #{_lambda_.5} parent=5 // pred_check
      _
    $region38: #{_lambda_.5} parent=5 // pred_check_branch
      %277 = sbr.rel (%p274) target = $region40
    $region39: #{_lambda_.5} parent=5 // pred_region
      %s278 = ssub.s32 %s11, 1
      %s279 = smul.u32 4, %s21
      %p280 = scmp.lt.s32.totalorder %s20, 1
      %s281 = scalar_select %p280, %s20, 1
      %p282 = scmp.lt.s32.totalorder %s279, 15
      %s283 = scalar_select %p282, %s279, 15
      %s284 = smul.addr %s283, 2
      %s285 = smul.addr %s281, 32
      %s286 = sadd.s32 %s284, %s285
      %s287 = smul.addr %s286, 8
      %s288 = scalar_lea.vmem %s0, %s287
      %p289 = pneg %p51
      %p290 = pneg %p48
      %s291 = smul.u32 %s21, 4
      %s292 = ssub.s32 %s291, 1
      %p293 = scmp.gt.s32.totalorder %s292, 0
      %s294 = scalar_select %p293, %s292, 0
      %p295 = scmp.lt.s32.totalorder %s20, 1
      %s296 = scalar_select %p295, %s20, 1
      %p297 = scmp.lt.s32.totalorder %s294, 15
      %s298 = scalar_select %p297, %s294, 15
      %s299 = smul.addr %s298, 2
      %s300 = smul.addr %s296, 32
      %s301 = sadd.s32 %s299, %s300
      %s302 = smul.addr %s301, 8
      %s303 = scalar_lea.vmem %s1, %s302
      %p304 = pneg %p87
      %p305 = pneg %p84
      %s306 = smul.u32 %s21, 4
      %s307 = sadd.s32 %s306, 4
      %p308 = scmp.lt.s32.totalorder %s307, 15
      %s309 = scalar_select %p308, %s307, 15
      %p310 = scmp.lt.s32.totalorder %s20, 1
      %s311 = scalar_select %p310, %s20, 1
      %p312 = scmp.lt.s32.totalorder %s309, 15
      %s313 = scalar_select %p312, %s309, 15
      %s314 = smul.addr %s313, 2
      %s315 = smul.addr %s311, 32
      %s316 = sadd.s32 %s314, %s315
      %s317 = smul.addr %s316, 8
      %s318 = scalar_lea.vmem %s2, %s317
      %p319 = pneg %p123
      %p320 = pneg %p120
      %p321 = pneg %p144
      %p322 = pneg %p141
      %p323 = pneg %p165
      %p324 = pneg %p162
      %p325 = pneg %p193
      %p326 = pneg %p190
      %s327 = smul.u32 4, %s21
      %p328 = scmp.lt.s32.totalorder %s20, 1
      %s329 = scalar_select %p328, %s20, 1
      %p330 = scmp.lt.s32.totalorder %s327, 15
      %s331 = scalar_select %p330, %s327, 15
      %s332 = smul.addr %s331, 2
      %s333 = smul.addr %s329, 32
      %s334 = sadd.s32 %s332, %s333
      %s335 = smul.addr %s334, 8
      %s336 = scalar_lea.vmem %s5, %s335
      %s337 = smul.u32 4, %s21
      %p338 = scmp.lt.s32.totalorder %s20, 1
      %s339 = scalar_select %p338, %s20, 1
      %p340 = scmp.lt.s32.totalorder %s337, 15
      %s341 = scalar_select %p340, %s337, 15
      %s342 = smul.addr %s341, 2
      %s343 = smul.addr %s339, 32
      %s344 = sadd.s32 %s342, %s343
      %s345 = smul.addr %s344, 8
      %s346 = scalar_lea.vmem %s0, %s345
      %s347 = smul.u32 4, %s21
      %s348 = smul.u32 %s21, 4
      %s349 = ssub.s32 %s348, 1
      %p350 = scmp.gt.s32.totalorder %s349, 0
      %s351 = scalar_select %p350, %s349, 0
      %p352 = scmp.lt.s32.totalorder %s20, 1
      %s353 = scalar_select %p352, %s20, 1
      %p354 = scmp.lt.s32.totalorder %s351, 15
      %s355 = scalar_select %p354, %s351, 15
      %s356 = smul.addr %s355, 2
      %s357 = smul.addr %s353, 32
      %s358 = sadd.s32 %s356, %s357
      %s359 = smul.addr %s358, 8
      %s360 = scalar_lea.vmem %s1, %s359
      %s361 = smul.u32 %s21, 4
      %s362 = ssub.s32 %s361, 1
      %p363 = scmp.gt.s32.totalorder %s362, 0
      %s364 = scalar_select %p363, %s362, 0
      %s365 = smul.u32 %s21, 4
      %s366 = sadd.s32 %s365, 4
      %p367 = scmp.lt.s32.totalorder %s366, 15
      %s368 = scalar_select %p367, %s366, 15
      %p369 = scmp.lt.s32.totalorder %s20, 1
      %s370 = scalar_select %p369, %s20, 1
      %p371 = scmp.lt.s32.totalorder %s368, 15
      %s372 = scalar_select %p371, %s368, 15
      %s373 = smul.addr %s372, 2
      %s374 = smul.addr %s370, 32
      %s375 = sadd.s32 %s373, %s374
      %s376 = smul.addr %s375, 8
      %s377 = scalar_lea.vmem %s2, %s376
      %s378 = smul.u32 %s21, 4
      %s379 = sadd.s32 %s378, 4
      %p380 = scmp.lt.s32.totalorder %s379, 15
      %s381 = scalar_select %p380, %s379, 15
      %s382 = smul.u32 4, %s21
      %p383 = scmp.lt.s32.totalorder %s20, 1
      %s384 = scalar_select %p383, %s20, 1
      %p385 = scmp.lt.s32.totalorder %s382, 15
      %s386 = scalar_select %p385, %s382, 15
      %s387 = smul.addr %s386, 2
      %s388 = smul.addr %s384, 32
      %s389 = sadd.s32 %s387, %s388
      %s390 = smul.addr %s389, 8
      %s391 = scalar_lea.vmem %s5, %s390
      %s392 = smul.u32 4, %s21
      %p393 = scmp.gt.s32.totalorder %s21, 0
      %s394 = scalar_select %p393, 1, 0
      %s395 = scvt.s32.f32 %s394
      %p396 = scmp.lt.s32.totalorder %s21, 3
      %s397 = scalar_select %p396, 1, 0
      %s398 = scvt.s32.f32 %s397
      %v399 = vld [vmem:[%s4] sm:$0x1]
      %v401 = vlaneseq
      %v402 = vshrl.u32 %v401, 7
      %v403 = vsub.s32 0, %v402
      %v404 = vrot.slane %v399, %v403
      %v406 = vadd.f32 %v404, 0.0
      %vm407 = vcmask 24576
      %408 = vst.msk [vmem:[#allocation2] sm:$0x1] %vm407, 0.0
      %v409 = vld [vmem:[%s360] sm:$0xff]
      %v410 = vld [vmem:[%s360 + $0x8] sm:$0xff]
      %v411 = vstv %s395
      %v412 = vmul.f32 %v409, %v411
      %v413 = vmul.f32 %v410, %v411
      %vm414 = vcmask 31744
      %415 = vst.msk [vmem:[#allocation2 + $0x1] sm:$0xff] %vm414, %v412
      %416 = vst.msk [vmem:[#allocation2 + $0x9] sm:$0xff] %vm414, %v413
      %v417 = vld [vmem:[%s346] sm:$0xff]
      %v418 = vld [vmem:[%s346 + $0x8] sm:$0xff]
      %v419 = vld [vmem:[%s346 + $0x10] sm:$0xff]
      %v420 = vld [vmem:[%s346 + $0x18] sm:$0xff]
      %v421 = vld [vmem:[%s346 + $0x20] sm:$0xff]
      %v422 = vld [vmem:[%s346 + $0x28] sm:$0xff]
      %v423 = vld [vmem:[%s346 + $0x30] sm:$0xff]
      %v424 = vld [vmem:[%s346 + $0x38] sm:$0xff]
      %425 = vst.msk [vmem:[#allocation2 + $0x11] sm:$0xff] %vm414, %v417
      %426 = vst.msk [vmem:[#allocation2 + $0x19] sm:$0xff] %vm414, %v418
      %427 = vst.msk [vmem:[#allocation2 + $0x21] sm:$0xff] %vm414, %v419
      %428 = vst.msk [vmem:[#allocation2 + $0x29] sm:$0xff] %vm414, %v420
      %429 = vst.msk [vmem:[#allocation2 + $0x31] sm:$0xff] %vm414, %v421
      %430 = vst.msk [vmem:[#allocation2 + $0x39] sm:$0xff] %vm414, %v422
      %431 = vst.msk [vmem:[#allocation2 + $0x41] sm:$0xff] %vm414, %v423
      %432 = vst.msk [vmem:[#allocation2 + $0x49] sm:$0xff] %vm414, %v424
      %v433 = vld [vmem:[%s377] sm:$0xff]
      %v434 = vld [vmem:[%s377 + $0x8] sm:$0xff]
      %v435 = vstv %s398
      %v436 = vmul.f32 %v433, %v435
      %v437 = vmul.f32 %v434, %v435
      %438 = vst.msk [vmem:[#allocation2 + $0x51] sm:$0xff] %vm414, %v436
      %439 = vst.msk [vmem:[#allocation2 + $0x59] sm:$0xff] %vm414, %v437
      %440 = vst.msk [vmem:[#allocation2 + $0x61] sm:$0x1] %vm407, 0.0
      %v441 = vld [vmem:[#allocation2] sm:$0xff]
      %v442 = vld [vmem:[#allocation2 + $0x8] sm:$0xff]
      %v443 = vld [vmem:[#allocation2 + $0x10] sm:$0xff]
      %v444 = vld [vmem:[#allocation2 + $0x18] sm:$0xff]
      %v445 = vld [vmem:[#allocation2 + $0x20] sm:$0xff]
      %v446 = vld [vmem:[#allocation2 + $0x28] sm:$0xff]
      %v447 = vld [vmem:[#allocation2 + $0x30] sm:$0xff]
      %v448 = vld [vmem:[#allocation2 + $0x38] sm:$0xff]
      %v449 = vld [vmem:[%s3] sm:$0xf]
      %v450 = vld [vmem:[#allocation2 + $0x1] sm:$0xff]
      %v451 = vld [vmem:[#allocation2 + $0x9] sm:$0xff]
      %v452 = vld [vmem:[#allocation2 + $0x11] sm:$0xff]
      %v453 = vld [vmem:[#allocation2 + $0x19] sm:$0xff]
      %v454 = vld [vmem:[#allocation2 + $0x21] sm:$0xff]
      %v455 = vld [vmem:[#allocation2 + $0x29] sm:$0xff]
      %v456 = vld [vmem:[#allocation2 + $0x31] sm:$0xff]
      %v457 = vld [vmem:[#allocation2 + $0x39] sm:$0xff]
      %s458 = scalar_lea.vmem %s3, 4
      %v459 = vld [vmem:[%s458] sm:$0xf]
      %v461 = vsel %vm414, %v450, 0
      %v464 = vsel %vm414, %v451, 0
      %v467 = vsel %vm414, %v452, 0
      %v470 = vsel %vm414, %v453, 0
      %v473 = vsel %vm414, %v454, 0
      %v476 = vsel %vm414, %v455, 0
      %v479 = vsel %vm414, %v456, 0
      %v482 = vsel %vm414, %v457, 0
      %vm484 = vcmask 1043456
      %v486 = vsel %vm484, %v459, 0
      %488 = vmatprep.subr.mxu0 0.0
      %489 = vmatpush1.msra.mxu0 0.0
      %490 = vmatprep.subr.mxu0 0.0
      %491 = vmatpush1.msra.mxu0 0.0
      %492 = vmatprep.subr.mxu0 0.0
      %493 = vmatpush1.msra.mxu0 0.0
      %494 = vmatprep.subr.mxu0 0.0
      %495 = vmatpush1.msra.mxu0 0.0
      %496 = vmatprep.subr.mxu0 0.0
      %497 = vmatpush1.msra.mxu0 0.0
      %498 = vmatprep.subr.mxu0 0.0
      %499 = vmatpush1.msra.mxu0 0.0
      %500 = vmatprep.subr.mxu0 0.0
      %501 = vmatpush1.msra.mxu0 0.0
      %502 = vmatprep.subr.mxu0 0.0
      %503 = vmatpush1.msra.mxu0 0.0
      %504 = vmatprep.subr.mxu0 0.0
      %505 = vmatpush1.msra.mxu0 0.0
      %506 = vmatprep.subr.mxu0 0.0
      %507 = vmatpush1.msra.mxu0 0.0
      %508 = vmatprep.subr.mxu0 0.0
      %509 = vmatpush1.msra.mxu0 0.0
      %510 = vmatprep.subr.mxu0 0.0
      %511 = vmatpush1.msra.mxu0 0.0
      %512 = vmatprep.subr.mxu0 0.0
      %513 = vmatpush1.msra.mxu0 0.0
      %514 = vmatprep.subr.mxu0 0.0
      %515 = vmatpush1.msra.mxu0 0.0
      %516 = vmatprep.subr.mxu0 0.0
      %517 = vmatpush1.msra.mxu0 0.0
      %518 = vmatprep.subr.mxu0 0.0
      %519 = vmatpush1.msra.mxu0 %v486
      %520 = vmatprep.subr.mxu0 0.0
      %521 = vmatpush2.msra.mxu0 0.0
      %522 = vmatprep.subr.mxu0 0.0
      %523 = vmatpush2.msra.mxu0 0.0
      %524 = vmatprep.subr.mxu0 0.0
      %525 = vmatpush2.msra.mxu0 0.0
      %526 = vmatprep.subr.mxu0 0.0
      %527 = vmatpush2.msra.mxu0 0.0
      %528 = vmatprep.subr.mxu0 0.0
      %529 = vmatpush2.msra.mxu0 0.0
      %530 = vmatprep.subr.mxu0 0.0
      %531 = vmatpush2.msra.mxu0 0.0
      %532 = vmatprep.subr.mxu0 0.0
      %533 = vmatpush2.msra.mxu0 0.0
      %534 = vmatprep.subr.mxu0 0.0
      %535 = vmatpush2.msra.mxu0 0.0
      %536 = vmatprep.subr.mxu0 0.0
      %537 = vmatpush2.msra.mxu0 0.0
      %538 = vmatprep.subr.mxu0 0.0
      %539 = vmatpush2.msra.mxu0 0.0
      %540 = vmatprep.subr.mxu0 0.0
      %541 = vmatpush2.msra.mxu0 0.0
      %542 = vmatprep.subr.mxu0 0.0
      %543 = vmatpush2.msra.mxu0 0.0
      %544 = vmatprep.subr.mxu0 0.0
      %545 = vmatpush2.msra.mxu0 0.0
      %546 = vmatprep.subr.mxu0 0.0
      %547 = vmatpush2.msra.mxu0 0.0
      %548 = vmatprep.subr.mxu0 0.0
      %549 = vmatpush2.msra.mxu0 0.0
      %550 = vmatprep.subr.mxu0 0.0
      %551 = vmatpush2.msra.mxu0 0.0
      %552 = vmatprep.mubr.f32.mxu0 0.0
      %553 = vmatmul.mubr.f32.gmra.mxu0 %v461
      %v554 = vpop.f32.mrf.mxu0
      %v555 = vadd.f32 0.0, %v554
      %v556 = vpop.f32.mrf.mxu0
      %557 = vmatprep.mubr.f32.mxu0 0.0
      %558 = vmatmul.mubr.f32.gmra.mxu0 %v464
      %v559 = vpop.f32.mrf.mxu0
      %v560 = vadd.f32 0.0, %v559
      %v561 = vpop.f32.mrf.mxu0
      %562 = vmatprep.mubr.f32.mxu0 0.0
      %563 = vmatmul.mubr.f32.gmra.mxu0 %v467
      %v564 = vpop.f32.mrf.mxu0
      %v565 = vadd.f32 0.0, %v564
      %v566 = vpop.f32.mrf.mxu0
      %567 = vmatprep.mubr.f32.mxu0 0.0
      %568 = vmatmul.mubr.f32.gmra.mxu0 %v470
      %v569 = vpop.f32.mrf.mxu0
      %v570 = vadd.f32 0.0, %v569
      %v571 = vpop.f32.mrf.mxu0
      %572 = vmatprep.mubr.f32.mxu0 0.0
      %573 = vmatmul.mubr.f32.gmra.mxu0 %v473
      %v574 = vpop.f32.mrf.mxu0
      %v575 = vadd.f32 0.0, %v574
      %v576 = vpop.f32.mrf.mxu0
      %577 = vmatprep.mubr.f32.mxu0 0.0
      %578 = vmatmul.mubr.f32.gmra.mxu0 %v476
      %v579 = vpop.f32.mrf.mxu0
      %v580 = vadd.f32 0.0, %v579
      %v581 = vpop.f32.mrf.mxu0
      %582 = vmatprep.mubr.f32.mxu0 0.0
      %583 = vmatmul.mubr.f32.gmra.mxu0 %v479
      %v584 = vpop.f32.mrf.mxu0
      %v585 = vadd.f32 0.0, %v584
      %v586 = vpop.f32.mrf.mxu0
      %587 = vmatprep.mubr.f32.mxu0 0.0
      %588 = vmatmul.mubr.f32.gmra.mxu0 %v482
      %v589 = vpop.f32.mrf.mxu0
      %v590 = vadd.f32 0.0, %v589
      %v591 = vpop.f32.mrf.mxu0
      %592 = vdwg.mxu0
      %v593 = vadd.f32 %v406, %v555
      %v594 = vadd.f32 %v406, %v560
      %v595 = vadd.f32 %v406, %v565
      %v596 = vadd.f32 %v406, %v570
      %v597 = vadd.f32 %v406, %v575
      %v598 = vadd.f32 %v406, %v580
      %v599 = vadd.f32 %v406, %v585
      %v600 = vadd.f32 %v406, %v590
      %v601 = vld [vmem:[#allocation2 + $0x2] sm:$0xff]
      %v602 = vld [vmem:[#allocation2 + $0xa] sm:$0xff]
      %v603 = vld [vmem:[#allocation2 + $0x12] sm:$0xff]
      %v604 = vld [vmem:[#allocation2 + $0x1a] sm:$0xff]
      %v605 = vld [vmem:[#allocation2 + $0x22] sm:$0xff]
      %v606 = vld [vmem:[#allocation2 + $0x2a] sm:$0xff]
      %v607 = vld [vmem:[#allocation2 + $0x32] sm:$0xff]
      %v608 = vld [vmem:[#allocation2 + $0x3a] sm:$0xff]
      %s609 = scalar_lea.vmem %s3, 8
      %v610 = vld [vmem:[%s609] sm:$0xf]
      %v611 = vld [vmem:[#allocation2 + $0x10] sm:$0xff]
      %v612 = vld [vmem:[#allocation2 + $0x18] sm:$0xff]
      %v613 = vld [vmem:[#allocation2 + $0x20] sm:$0xff]
      %v614 = vld [vmem:[#allocation2 + $0x28] sm:$0xff]
      %v615 = vld [vmem:[#allocation2 + $0x30] sm:$0xff]
      %v616 = vld [vmem:[#allocation2 + $0x38] sm:$0xff]
      %v617 = vld [vmem:[#allocation2 + $0x40] sm:$0xff]
      %v618 = vld [vmem:[#allocation2 + $0x48] sm:$0xff]
      %s619 = scalar_lea.vmem %s3, 12
      %v620 = vld [vmem:[%s619] sm:$0xf]
      %v622 = vsel %vm414, %v611, 0
      %v625 = vsel %vm414, %v612, 0
      %v628 = vsel %vm414, %v613, 0
      %v631 = vsel %vm414, %v614, 0
      %v634 = vsel %vm414, %v615, 0
      %v637 = vsel %vm414, %v616, 0
      %v640 = vsel %vm414, %v617, 0
      %v643 = vsel %vm414, %v618, 0
      %v646 = vsel %vm484, %v620, 0
      %648 = vmatprep.subr.mxu0 0.0
      %649 = vmatpush1.msra.mxu0 0.0
      %650 = vmatprep.subr.mxu0 0.0
      %651 = vmatpush1.msra.mxu0 0.0
      %652 = vmatprep.subr.mxu0 0.0
      %653 = vmatpush1.msra.mxu0 0.0
      %654 = vmatprep.subr.mxu0 0.0
      %655 = vmatpush1.msra.mxu0 0.0
      %656 = vmatprep.subr.mxu0 0.0
      %657 = vmatpush1.msra.mxu0 0.0
      %658 = vmatprep.subr.mxu0 0.0
      %659 = vmatpush1.msra.mxu0 0.0
      %660 = vmatprep.subr.mxu0 0.0
      %661 = vmatpush1.msra.mxu0 0.0
      %662 = vmatprep.subr.mxu0 0.0
      %663 = vmatpush1.msra.mxu0 0.0
      %664 = vmatprep.subr.mxu0 0.0
      %665 = vmatpush1.msra.mxu0 0.0
      %666 = vmatprep.subr.mxu0 0.0
      %667 = vmatpush1.msra.mxu0 0.0
      %668 = vmatprep.subr.mxu0 0.0
      %669 = vmatpush1.msra.mxu0 0.0
      %670 = vmatprep.subr.mxu0 0.0
      %671 = vmatpush1.msra.mxu0 0.0
      %672 = vmatprep.subr.mxu0 0.0
      %673 = vmatpush1.msra.mxu0 0.0
      %674 = vmatprep.subr.mxu0 0.0
      %675 = vmatpush1.msra.mxu0 0.0
      %676 = vmatprep.subr.mxu0 0.0
      %677 = vmatpush1.msra.mxu0 0.0
      %678 = vmatprep.subr.mxu0 0.0
      %679 = vmatpush1.msra.mxu0 %v646
      %680 = vmatprep.subr.mxu0 0.0
      %681 = vmatpush2.msra.mxu0 0.0
      %682 = vmatprep.subr.mxu0 0.0
      %683 = vmatpush2.msra.mxu0 0.0
      %684 = vmatprep.subr.mxu0 0.0
      %685 = vmatpush2.msra.mxu0 0.0
      %686 = vmatprep.subr.mxu0 0.0
      %687 = vmatpush2.msra.mxu0 0.0
      %688 = vmatprep.subr.mxu0 0.0
      %689 = vmatpush2.msra.mxu0 0.0
      %690 = vmatprep.subr.mxu0 0.0
      %691 = vmatpush2.msra.mxu0 0.0
      %692 = vmatprep.subr.mxu0 0.0
      %693 = vmatpush2.msra.mxu0 0.0
      %694 = vmatprep.subr.mxu0 0.0
      %695 = vmatpush2.msra.mxu0 0.0
      %696 = vmatprep.subr.mxu0 0.0
      %697 = vmatpush2.msra.mxu0 0.0
      %698 = vmatprep.subr.mxu0 0.0
      %699 = vmatpush2.msra.mxu0 0.0
      %700 = vmatprep.subr.mxu0 0.0
      %701 = vmatpush2.msra.mxu0 0.0
      %702 = vmatprep.subr.mxu0 0.0
      %703 = vmatpush2.msra.mxu0 0.0
      %704 = vmatprep.subr.mxu0 0.0
      %705 = vmatpush2.msra.mxu0 0.0
      %706 = vmatprep.subr.mxu0 0.0
      %707 = vmatpush2.msra.mxu0 0.0
      %708 = vmatprep.subr.mxu0 0.0
      %709 = vmatpush2.msra.mxu0 0.0
      %710 = vmatprep.subr.mxu0 0.0
      %711 = vmatpush2.msra.mxu0 0.0
      %712 = vmatprep.mubr.f32.mxu0 0.0
      %713 = vmatmul.mubr.f32.gmra.mxu0 %v622
      %v714 = vpop.f32.mrf.mxu0
      %v715 = vadd.f32 0.0, %v714
      %v716 = vpop.f32.mrf.mxu0
      %717 = vmatprep.mubr.f32.mxu0 0.0
      %718 = vmatmul.mubr.f32.gmra.mxu0 %v625
      %v719 = vpop.f32.mrf.mxu0
      %v720 = vadd.f32 0.0, %v719
      %v721 = vpop.f32.mrf.mxu0
      %722 = vmatprep.mubr.f32.mxu0 0.0
      %723 = vmatmul.mubr.f32.gmra.mxu0 %v628
      %v724 = vpop.f32.mrf.mxu0
      %v725 = vadd.f32 0.0, %v724
      %v726 = vpop.f32.mrf.mxu0
      %727 = vmatprep.mubr.f32.mxu0 0.0
      %728 = vmatmul.mubr.f32.gmra.mxu0 %v631
      %v729 = vpop.f32.mrf.mxu0
      %v730 = vadd.f32 0.0, %v729
      %v731 = vpop.f32.mrf.mxu0
      %732 = vmatprep.mubr.f32.mxu0 0.0
      %733 = vmatmul.mubr.f32.gmra.mxu0 %v634
      %v734 = vpop.f32.mrf.mxu0
      %v735 = vadd.f32 0.0, %v734
      %v736 = vpop.f32.mrf.mxu0
      %737 = vmatprep.mubr.f32.mxu0 0.0
      %738 = vmatmul.mubr.f32.gmra.mxu0 %v637
      %v739 = vpop.f32.mrf.mxu0
      %v740 = vadd.f32 0.0, %v739
      %v741 = vpop.f32.mrf.mxu0
      %742 = vmatprep.mubr.f32.mxu0 0.0
      %743 = vmatmul.mubr.f32.gmra.mxu0 %v640
      %v744 = vpop.f32.mrf.mxu0
      %v745 = vadd.f32 0.0, %v744
      %v746 = vpop.f32.mrf.mxu0
      %747 = vmatprep.mubr.f32.mxu0 0.0
      %748 = vmatmul.mubr.f32.gmra.mxu0 %v643
      %v749 = vpop.f32.mrf.mxu0
      %v750 = vadd.f32 0.0, %v749
      %v751 = vpop.f32.mrf.mxu0
      %752 = vdwg.mxu0
      %v754 = vsel %vm414, %v441, 0
      %v757 = vsel %vm414, %v442, 0
      %v760 = vsel %vm414, %v443, 0
      %v763 = vsel %vm414, %v444, 0
      %v766 = vsel %vm414, %v445, 0
      %v769 = vsel %vm414, %v446, 0
      %v772 = vsel %vm414, %v447, 0
      %v775 = vsel %vm414, %v448, 0
      %v778 = vsel %vm484, %v449, 0
      %780 = vmatprep.subr.mxu0 0.0
      %781 = vmatpush1.msra.mxu0 0.0
      %782 = vmatprep.subr.mxu0 0.0
      %783 = vmatpush1.msra.mxu0 0.0
      %784 = vmatprep.subr.mxu0 0.0
      %785 = vmatpush1.msra.mxu0 0.0
      %786 = vmatprep.subr.mxu0 0.0
      %787 = vmatpush1.msra.mxu0 0.0
      %788 = vmatprep.subr.mxu0 0.0
      %789 = vmatpush1.msra.mxu0 0.0
      %790 = vmatprep.subr.mxu0 0.0
      %791 = vmatpush1.msra.mxu0 0.0
      %792 = vmatprep.subr.mxu0 0.0
      %793 = vmatpush1.msra.mxu0 0.0
      %794 = vmatprep.subr.mxu0 0.0
      %795 = vmatpush1.msra.mxu0 0.0
      %796 = vmatprep.subr.mxu0 0.0
      %797 = vmatpush1.msra.mxu0 0.0
      %798 = vmatprep.subr.mxu0 0.0
      %799 = vmatpush1.msra.mxu0 0.0
      %800 = vmatprep.subr.mxu0 0.0
      %801 = vmatpush1.msra.mxu0 0.0
      %802 = vmatprep.subr.mxu0 0.0
      %803 = vmatpush1.msra.mxu0 0.0
      %804 = vmatprep.subr.mxu0 0.0
      %805 = vmatpush1.msra.mxu0 0.0
      %806 = vmatprep.subr.mxu0 0.0
      %807 = vmatpush1.msra.mxu0 0.0
      %808 = vmatprep.subr.mxu0 0.0
      %809 = vmatpush1.msra.mxu0 0.0
      %810 = vmatprep.subr.mxu0 0.0
      %811 = vmatpush1.msra.mxu0 %v778
      %812 = vmatprep.subr.mxu0 0.0
      %813 = vmatpush2.msra.mxu0 0.0
      %814 = vmatprep.subr.mxu0 0.0
      %815 = vmatpush2.msra.mxu0 0.0
      %816 = vmatprep.subr.mxu0 0.0
      %817 = vmatpush2.msra.mxu0 0.0
      %818 = vmatprep.subr.mxu0 0.0
      %819 = vmatpush2.msra.mxu0 0.0
      %820 = vmatprep.subr.mxu0 0.0
      %821 = vmatpush2.msra.mxu0 0.0
      %822 = vmatprep.subr.mxu0 0.0
      %823 = vmatpush2.msra.mxu0 0.0
      %824 = vmatprep.subr.mxu0 0.0
      %825 = vmatpush2.msra.mxu0 0.0
      %826 = vmatprep.subr.mxu0 0.0
      %827 = vmatpush2.msra.mxu0 0.0
      %828 = vmatprep.subr.mxu0 0.0
      %829 = vmatpush2.msra.mxu0 0.0
      %830 = vmatprep.subr.mxu0 0.0
      %831 = vmatpush2.msra.mxu0 0.0
      %832 = vmatprep.subr.mxu0 0.0
      %833 = vmatpush2.msra.mxu0 0.0
      %834 = vmatprep.subr.mxu0 0.0
      %835 = vmatpush2.msra.mxu0 0.0
      %836 = vmatprep.subr.mxu0 0.0
      %837 = vmatpush2.msra.mxu0 0.0
      %838 = vmatprep.subr.mxu0 0.0
      %839 = vmatpush2.msra.mxu0 0.0
      %840 = vmatprep.subr.mxu0 0.0
      %841 = vmatpush2.msra.mxu0 0.0
      %842 = vmatprep.subr.mxu0 0.0
      %843 = vmatpush2.msra.mxu0 0.0
      %844 = vmatprep.mubr.f32.mxu0 0.0
      %845 = vmatmul.mubr.f32.gmra.mxu0 %v754
      %v846 = vpop.f32.mrf.mxu0
      %v847 = vadd.f32 %v715, %v846
      %v848 = vpop.f32.mrf.mxu0
      %849 = vmatprep.mubr.f32.mxu0 0.0
      %850 = vmatmul.mubr.f32.gmra.mxu0 %v757
      %v851 = vpop.f32.mrf.mxu0
      %v852 = vadd.f32 %v720, %v851
      %v853 = vpop.f32.mrf.mxu0
      %854 = vmatprep.mubr.f32.mxu0 0.0
      %855 = vmatmul.mubr.f32.gmra.mxu0 %v760
      %v856 = vpop.f32.mrf.mxu0
      %v857 = vadd.f32 %v725, %v856
      %v858 = vpop.f32.mrf.mxu0
      %859 = vmatprep.mubr.f32.mxu0 0.0
      %860 = vmatmul.mubr.f32.gmra.mxu0 %v763
      %v861 = vpop.f32.mrf.mxu0
      %v862 = vadd.f32 %v730, %v861
      %v863 = vpop.f32.mrf.mxu0
      %864 = vmatprep.mubr.f32.mxu0 0.0
      %865 = vmatmul.mubr.f32.gmra.mxu0 %v766
      %v866 = vpop.f32.mrf.mxu0
      %v867 = vadd.f32 %v735, %v866
      %v868 = vpop.f32.mrf.mxu0
      %869 = vmatprep.mubr.f32.mxu0 0.0
      %870 = vmatmul.mubr.f32.gmra.mxu0 %v769
      %v871 = vpop.f32.mrf.mxu0
      %v872 = vadd.f32 %v740, %v871
      %v873 = vpop.f32.mrf.mxu0
      %874 = vmatprep.mubr.f32.mxu0 0.0
      %875 = vmatmul.mubr.f32.gmra.mxu0 %v772
      %v876 = vpop.f32.mrf.mxu0
      %v877 = vadd.f32 %v745, %v876
      %v878 = vpop.f32.mrf.mxu0
      %879 = vmatprep.mubr.f32.mxu0 0.0
      %880 = vmatmul.mubr.f32.gmra.mxu0 %v775
      %v881 = vpop.f32.mrf.mxu0
      %v882 = vadd.f32 %v750, %v881
      %v883 = vpop.f32.mrf.mxu0
      %884 = vdwg.mxu0
      %v885 = vld [vmem:[#allocation2 + $0x11] sm:$0xff]
      %v886 = vld [vmem:[#allocation2 + $0x19] sm:$0xff]
      %v887 = vld [vmem:[#allocation2 + $0x21] sm:$0xff]
      %v888 = vld [vmem:[#allocation2 + $0x29] sm:$0xff]
      %v889 = vld [vmem:[#allocation2 + $0x31] sm:$0xff]
      %v890 = vld [vmem:[#allocation2 + $0x39] sm:$0xff]
      %v891 = vld [vmem:[#allocation2 + $0x41] sm:$0xff]
      %v892 = vld [vmem:[#allocation2 + $0x49] sm:$0xff]
      %s893 = scalar_lea.vmem %s3, 16
      %v894 = vld [vmem:[%s893] sm:$0xf]
      %v896 = vsel %vm414, %v885, 0
      %v899 = vsel %vm414, %v886, 0
      %v902 = vsel %vm414, %v887, 0
      %v905 = vsel %vm414, %v888, 0
      %v908 = vsel %vm414, %v889, 0
      %v911 = vsel %vm414, %v890, 0
      %v914 = vsel %vm414, %v891, 0
      %v917 = vsel %vm414, %v892, 0
      %v920 = vsel %vm484, %v894, 0
      %922 = vmatprep.subr.mxu0 0.0
      %923 = vmatpush1.msra.mxu0 0.0
      %924 = vmatprep.subr.mxu0 0.0
      %925 = vmatpush1.msra.mxu0 0.0
      %926 = vmatprep.subr.mxu0 0.0
      %927 = vmatpush1.msra.mxu0 0.0
      %928 = vmatprep.subr.mxu0 0.0
      %929 = vmatpush1.msra.mxu0 0.0
      %930 = vmatprep.subr.mxu0 0.0
      %931 = vmatpush1.msra.mxu0 0.0
      %932 = vmatprep.subr.mxu0 0.0
      %933 = vmatpush1.msra.mxu0 0.0
      %934 = vmatprep.subr.mxu0 0.0
      %935 = vmatpush1.msra.mxu0 0.0
      %936 = vmatprep.subr.mxu0 0.0
      %937 = vmatpush1.msra.mxu0 0.0
      %938 = vmatprep.subr.mxu0 0.0
      %939 = vmatpush1.msra.mxu0 0.0
      %940 = vmatprep.subr.mxu0 0.0
      %941 = vmatpush1.msra.mxu0 0.0
      %942 = vmatprep.subr.mxu0 0.0
      %943 = vmatpush1.msra.mxu0 0.0
      %944 = vmatprep.subr.mxu0 0.0
      %945 = vmatpush1.msra.mxu0 0.0
      %946 = vmatprep.subr.mxu0 0.0
      %947 = vmatpush1.msra.mxu0 0.0
      %948 = vmatprep.subr.mxu0 0.0
      %949 = vmatpush1.msra.mxu0 0.0
      %950 = vmatprep.subr.mxu0 0.0
      %951 = vmatpush1.msra.mxu0 0.0
      %952 = vmatprep.subr.mxu0 0.0
      %953 = vmatpush1.msra.mxu0 %v920
      %954 = vmatprep.subr.mxu0 0.0
      %955 = vmatpush2.msra.mxu0 0.0
      %956 = vmatprep.subr.mxu0 0.0
      %957 = vmatpush2.msra.mxu0 0.0
      %958 = vmatprep.subr.mxu0 0.0
      %959 = vmatpush2.msra.mxu0 0.0
      %960 = vmatprep.subr.mxu0 0.0
      %961 = vmatpush2.msra.mxu0 0.0
      %962 = vmatprep.subr.mxu0 0.0
      %963 = vmatpush2.msra.mxu0 0.0
      %964 = vmatprep.subr.mxu0 0.0
      %965 = vmatpush2.msra.mxu0 0.0
      %966 = vmatprep.subr.mxu0 0.0
      %967 = vmatpush2.msra.mxu0 0.0
      %968 = vmatprep.subr.mxu0 0.0
      %969 = vmatpush2.msra.mxu0 0.0
      %970 = vmatprep.subr.mxu0 0.0
      %971 = vmatpush2.msra.mxu0 0.0
      %972 = vmatprep.subr.mxu0 0.0
      %973 = vmatpush2.msra.mxu0 0.0
      %974 = vmatprep.subr.mxu0 0.0
      %975 = vmatpush2.msra.mxu0 0.0
      %976 = vmatprep.subr.mxu0 0.0
      %977 = vmatpush2.msra.mxu0 0.0
      %978 = vmatprep.subr.mxu0 0.0
      %979 = vmatpush2.msra.mxu0 0.0
      %980 = vmatprep.subr.mxu0 0.0
      %981 = vmatpush2.msra.mxu0 0.0
      %982 = vmatprep.subr.mxu0 0.0
      %983 = vmatpush2.msra.mxu0 0.0
      %984 = vmatprep.subr.mxu0 0.0
      %985 = vmatpush2.msra.mxu0 0.0
      %986 = vmatprep.mubr.f32.mxu0 0.0
      %987 = vmatmul.mubr.f32.gmra.mxu0 %v896
      %v988 = vpop.f32.mrf.mxu0
      %v989 = vadd.f32 0.0, %v988
      %v990 = vpop.f32.mrf.mxu0
      %991 = vmatprep.mubr.f32.mxu0 0.0
      %992 = vmatmul.mubr.f32.gmra.mxu0 %v899
      %v993 = vpop.f32.mrf.mxu0
      %v994 = vadd.f32 0.0, %v993
      %v995 = vpop.f32.mrf.mxu0
      %996 = vmatprep.mubr.f32.mxu0 0.0
      %997 = vmatmul.mubr.f32.gmra.mxu0 %v902
      %v998 = vpop.f32.mrf.mxu0
      %v999 = vadd.f32 0.0, %v998
      %v1000 = vpop.f32.mrf.mxu0
      %1001 = vmatprep.mubr.f32.mxu0 0.0
      %1002 = vmatmul.mubr.f32.gmra.mxu0 %v905
      %v1003 = vpop.f32.mrf.mxu0
      %v1004 = vadd.f32 0.0, %v1003
      %v1005 = vpop.f32.mrf.mxu0
      %1006 = vmatprep.mubr.f32.mxu0 0.0
      %1007 = vmatmul.mubr.f32.gmra.mxu0 %v908
      %v1008 = vpop.f32.mrf.mxu0
      %v1009 = vadd.f32 0.0, %v1008
      %v1010 = vpop.f32.mrf.mxu0
      %1011 = vmatprep.mubr.f32.mxu0 0.0
      %1012 = vmatmul.mubr.f32.gmra.mxu0 %v911
      %v1013 = vpop.f32.mrf.mxu0
      %v1014 = vadd.f32 0.0, %v1013
      %v1015 = vpop.f32.mrf.mxu0
      %1016 = vmatprep.mubr.f32.mxu0 0.0
      %1017 = vmatmul.mubr.f32.gmra.mxu0 %v914
      %v1018 = vpop.f32.mrf.mxu0
      %v1019 = vadd.f32 0.0, %v1018
      %v1020 = vpop.f32.mrf.mxu0
      %1021 = vmatprep.mubr.f32.mxu0 0.0
      %1022 = vmatmul.mubr.f32.gmra.mxu0 %v917
      %v1023 = vpop.f32.mrf.mxu0
      %v1024 = vadd.f32 0.0, %v1023
      %v1025 = vpop.f32.mrf.mxu0
      %1026 = vdwg.mxu0
      %v1027 = vadd.f32 %v593, %v989
      %v1028 = vadd.f32 %v594, %v994
      %v1029 = vadd.f32 %v595, %v999
      %v1030 = vadd.f32 %v596, %v1004
      %v1031 = vadd.f32 %v597, %v1009
      %v1032 = vadd.f32 %v598, %v1014
      %v1033 = vadd.f32 %v599, %v1019
      %v1034 = vadd.f32 %v600, %v1024
      %v1035 = vld [vmem:[#allocation2 + $0x12] sm:$0xff]
      %v1036 = vld [vmem:[#allocation2 + $0x1a] sm:$0xff]
      %v1037 = vld [vmem:[#allocation2 + $0x22] sm:$0xff]
      %v1038 = vld [vmem:[#allocation2 + $0x2a] sm:$0xff]
      %v1039 = vld [vmem:[#allocation2 + $0x32] sm:$0xff]
      %v1040 = vld [vmem:[#allocation2 + $0x3a] sm:$0xff]
      %v1041 = vld [vmem:[#allocation2 + $0x42] sm:$0xff]
      %v1042 = vld [vmem:[#allocation2 + $0x4a] sm:$0xff]
      %s1043 = scalar_lea.vmem %s3, 20
      %v1044 = vld [vmem:[%s1043] sm:$0xf]
      %v1046 = vsel %vm414, %v1035, 0
      %v1049 = vsel %vm414, %v1036, 0
      %v1052 = vsel %vm414, %v1037, 0
      %v1055 = vsel %vm414, %v1038, 0
      %v1058 = vsel %vm414, %v1039, 0
      %v1061 = vsel %vm414, %v1040, 0
      %v1064 = vsel %vm414, %v1041, 0
      %v1067 = vsel %vm414, %v1042, 0
      %v1070 = vsel %vm484, %v1044, 0
      %1072 = vmatprep.subr.mxu0 0.0
      %1073 = vmatpush1.msra.mxu0 0.0
      %1074 = vmatprep.subr.mxu0 0.0
      %1075 = vmatpush1.msra.mxu0 0.0
      %1076 = vmatprep.subr.mxu0 0.0
      %1077 = vmatpush1.msra.mxu0 0.0
      %1078 = vmatprep.subr.mxu0 0.0
      %1079 = vmatpush1.msra.mxu0 0.0
      %1080 = vmatprep.subr.mxu0 0.0
      %1081 = vmatpush1.msra.mxu0 0.0
      %1082 = vmatprep.subr.mxu0 0.0
      %1083 = vmatpush1.msra.mxu0 0.0
      %1084 = vmatprep.subr.mxu0 0.0
      %1085 = vmatpush1.msra.mxu0 0.0
      %1086 = vmatprep.subr.mxu0 0.0
      %1087 = vmatpush1.msra.mxu0 0.0
      %1088 = vmatprep.subr.mxu0 0.0
      %1089 = vmatpush1.msra.mxu0 0.0
      %1090 = vmatprep.subr.mxu0 0.0
      %1091 = vmatpush1.msra.mxu0 0.0
      %1092 = vmatprep.subr.mxu0 0.0
      %1093 = vmatpush1.msra.mxu0 0.0
      %1094 = vmatprep.subr.mxu0 0.0
      %1095 = vmatpush1.msra.mxu0 0.0
      %1096 = vmatprep.subr.mxu0 0.0
      %1097 = vmatpush1.msra.mxu0 0.0
      %1098 = vmatprep.subr.mxu0 0.0
      %1099 = vmatpush1.msra.mxu0 0.0
      %1100 = vmatprep.subr.mxu0 0.0
      %1101 = vmatpush1.msra.mxu0 0.0
      %1102 = vmatprep.subr.mxu0 0.0
      %1103 = vmatpush1.msra.mxu0 %v1070
      %1104 = vmatprep.subr.mxu0 0.0
      %1105 = vmatpush2.msra.mxu0 0.0
      %1106 = vmatprep.subr.mxu0 0.0
      %1107 = vmatpush2.msra.mxu0 0.0
      %1108 = vmatprep.subr.mxu0 0.0
      %1109 = vmatpush2.msra.mxu0 0.0
      %1110 = vmatprep.subr.mxu0 0.0
      %1111 = vmatpush2.msra.mxu0 0.0
      %1112 = vmatprep.subr.mxu0 0.0
      %1113 = vmatpush2.msra.mxu0 0.0
      %1114 = vmatprep.subr.mxu0 0.0
      %1115 = vmatpush2.msra.mxu0 0.0
      %1116 = vmatprep.subr.mxu0 0.0
      %1117 = vmatpush2.msra.mxu0 0.0
      %1118 = vmatprep.subr.mxu0 0.0
      %1119 = vmatpush2.msra.mxu0 0.0
      %1120 = vmatprep.subr.mxu0 0.0
      %1121 = vmatpush2.msra.mxu0 0.0
      %1122 = vmatprep.subr.mxu0 0.0
      %1123 = vmatpush2.msra.mxu0 0.0
      %1124 = vmatprep.subr.mxu0 0.0
      %1125 = vmatpush2.msra.mxu0 0.0
      %1126 = vmatprep.subr.mxu0 0.0
      %1127 = vmatpush2.msra.mxu0 0.0
      %1128 = vmatprep.subr.mxu0 0.0
      %1129 = vmatpush2.msra.mxu0 0.0
      %1130 = vmatprep.subr.mxu0 0.0
      %1131 = vmatpush2.msra.mxu0 0.0
      %1132 = vmatprep.subr.mxu0 0.0
      %1133 = vmatpush2.msra.mxu0 0.0
      %1134 = vmatprep.subr.mxu0 0.0
      %1135 = vmatpush2.msra.mxu0 0.0
      %1136 = vmatprep.mubr.f32.mxu0 0.0
      %1137 = vmatmul.mubr.f32.gmra.mxu0 %v1046
      %v1138 = vpop.f32.mrf.mxu0
      %v1139 = vadd.f32 0.0, %v1138
      %v1140 = vpop.f32.mrf.mxu0
      %1141 = vmatprep.mubr.f32.mxu0 0.0
      %1142 = vmatmul.mubr.f32.gmra.mxu0 %v1049
      %v1143 = vpop.f32.mrf.mxu0
      %v1144 = vadd.f32 0.0, %v1143
      %v1145 = vpop.f32.mrf.mxu0
      %1146 = vmatprep.mubr.f32.mxu0 0.0
      %1147 = vmatmul.mubr.f32.gmra.mxu0 %v1052
      %v1148 = vpop.f32.mrf.mxu0
      %v1149 = vadd.f32 0.0, %v1148
      %v1150 = vpop.f32.mrf.mxu0
      %1151 = vmatprep.mubr.f32.mxu0 0.0
      %1152 = vmatmul.mubr.f32.gmra.mxu0 %v1055
      %v1153 = vpop.f32.mrf.mxu0
      %v1154 = vadd.f32 0.0, %v1153
      %v1155 = vpop.f32.mrf.mxu0
      %1156 = vmatprep.mubr.f32.mxu0 0.0
      %1157 = vmatmul.mubr.f32.gmra.mxu0 %v1058
      %v1158 = vpop.f32.mrf.mxu0
      %v1159 = vadd.f32 0.0, %v1158
      %v1160 = vpop.f32.mrf.mxu0
      %1161 = vmatprep.mubr.f32.mxu0 0.0
      %1162 = vmatmul.mubr.f32.gmra.mxu0 %v1061
      %v1163 = vpop.f32.mrf.mxu0
      %v1164 = vadd.f32 0.0, %v1163
      %v1165 = vpop.f32.mrf.mxu0
      %1166 = vmatprep.mubr.f32.mxu0 0.0
      %1167 = vmatmul.mubr.f32.gmra.mxu0 %v1064
      %v1168 = vpop.f32.mrf.mxu0
      %v1169 = vadd.f32 0.0, %v1168
      %v1170 = vpop.f32.mrf.mxu0
      %1171 = vmatprep.mubr.f32.mxu0 0.0
      %1172 = vmatmul.mubr.f32.gmra.mxu0 %v1067
      %v1173 = vpop.f32.mrf.mxu0
      %v1174 = vadd.f32 0.0, %v1173
      %v1175 = vpop.f32.mrf.mxu0
      %1176 = vdwg.mxu0
      %v1178 = vsel %vm414, %v601, 0
      %v1181 = vsel %vm414, %v602, 0
      %v1184 = vsel %vm414, %v603, 0
      %v1187 = vsel %vm414, %v604, 0
      %v1190 = vsel %vm414, %v605, 0
      %v1193 = vsel %vm414, %v606, 0
      %v1196 = vsel %vm414, %v607, 0
      %v1199 = vsel %vm414, %v608, 0
      %v1202 = vsel %vm484, %v610, 0
      %1204 = vmatprep.subr.mxu0 0.0
      %1205 = vmatpush1.msra.mxu0 0.0
      %1206 = vmatprep.subr.mxu0 0.0
      %1207 = vmatpush1.msra.mxu0 0.0
      %1208 = vmatprep.subr.mxu0 0.0
      %1209 = vmatpush1.msra.mxu0 0.0
      %1210 = vmatprep.subr.mxu0 0.0
      %1211 = vmatpush1.msra.mxu0 0.0
      %1212 = vmatprep.subr.mxu0 0.0
      %1213 = vmatpush1.msra.mxu0 0.0
      %1214 = vmatprep.subr.mxu0 0.0
      %1215 = vmatpush1.msra.mxu0 0.0
      %1216 = vmatprep.subr.mxu0 0.0
      %1217 = vmatpush1.msra.mxu0 0.0
      %1218 = vmatprep.subr.mxu0 0.0
      %1219 = vmatpush1.msra.mxu0 0.0
      %1220 = vmatprep.subr.mxu0 0.0
      %1221 = vmatpush1.msra.mxu0 0.0
      %1222 = vmatprep.subr.mxu0 0.0
      %1223 = vmatpush1.msra.mxu0 0.0
      %1224 = vmatprep.subr.mxu0 0.0
      %1225 = vmatpush1.msra.mxu0 0.0
      %1226 = vmatprep.subr.mxu0 0.0
      %1227 = vmatpush1.msra.mxu0 0.0
      %1228 = vmatprep.subr.mxu0 0.0
      %1229 = vmatpush1.msra.mxu0 0.0
      %1230 = vmatprep.subr.mxu0 0.0
      %1231 = vmatpush1.msra.mxu0 0.0
      %1232 = vmatprep.subr.mxu0 0.0
      %1233 = vmatpush1.msra.mxu0 0.0
      %1234 = vmatprep.subr.mxu0 0.0
      %1235 = vmatpush1.msra.mxu0 %v1202
      %1236 = vmatprep.subr.mxu0 0.0
      %1237 = vmatpush2.msra.mxu0 0.0
      %1238 = vmatprep.subr.mxu0 0.0
      %1239 = vmatpush2.msra.mxu0 0.0
      %1240 = vmatprep.subr.mxu0 0.0
      %1241 = vmatpush2.msra.mxu0 0.0
      %1242 = vmatprep.subr.mxu0 0.0
      %1243 = vmatpush2.msra.mxu0 0.0
      %1244 = vmatprep.subr.mxu0 0.0
      %1245 = vmatpush2.msra.mxu0 0.0
      %1246 = vmatprep.subr.mxu0 0.0
      %1247 = vmatpush2.msra.mxu0 0.0
      %1248 = vmatprep.subr.mxu0 0.0
      %1249 = vmatpush2.msra.mxu0 0.0
      %1250 = vmatprep.subr.mxu0 0.0
      %1251 = vmatpush2.msra.mxu0 0.0
      %1252 = vmatprep.subr.mxu0 0.0
      %1253 = vmatpush2.msra.mxu0 0.0
      %1254 = vmatprep.subr.mxu0 0.0
      %1255 = vmatpush2.msra.mxu0 0.0
      %1256 = vmatprep.subr.mxu0 0.0
      %1257 = vmatpush2.msra.mxu0 0.0
      %1258 = vmatprep.subr.mxu0 0.0
      %1259 = vmatpush2.msra.mxu0 0.0
      %1260 = vmatprep.subr.mxu0 0.0
      %1261 = vmatpush2.msra.mxu0 0.0
      %1262 = vmatprep.subr.mxu0 0.0
      %1263 = vmatpush2.msra.mxu0 0.0
      %1264 = vmatprep.subr.mxu0 0.0
      %1265 = vmatpush2.msra.mxu0 0.0
      %1266 = vmatprep.subr.mxu0 0.0
      %1267 = vmatpush2.msra.mxu0 0.0
      %1268 = vmatprep.mubr.f32.mxu0 0.0
      %1269 = vmatmul.mubr.f32.gmra.mxu0 %v1178
      %v1270 = vpop.f32.mrf.mxu0
      %v1271 = vadd.f32 %v1139, %v1270
      %v1272 = vpop.f32.mrf.mxu0
      %1273 = vmatprep.mubr.f32.mxu0 0.0
      %1274 = vmatmul.mubr.f32.gmra.mxu0 %v1181
      %v1275 = vpop.f32.mrf.mxu0
      %v1276 = vadd.f32 %v1144, %v1275
      %v1277 = vpop.f32.mrf.mxu0
      %1278 = vmatprep.mubr.f32.mxu0 0.0
      %1279 = vmatmul.mubr.f32.gmra.mxu0 %v1184
      %v1280 = vpop.f32.mrf.mxu0
      %v1281 = vadd.f32 %v1149, %v1280
      %v1282 = vpop.f32.mrf.mxu0
      %1283 = vmatprep.mubr.f32.mxu0 0.0
      %1284 = vmatmul.mubr.f32.gmra.mxu0 %v1187
      %v1285 = vpop.f32.mrf.mxu0
      %v1286 = vadd.f32 %v1154, %v1285
      %v1287 = vpop.f32.mrf.mxu0
      %1288 = vmatprep.mubr.f32.mxu0 0.0
      %1289 = vmatmul.mubr.f32.gmra.mxu0 %v1190
      %v1290 = vpop.f32.mrf.mxu0
      %v1291 = vadd.f32 %v1159, %v1290
      %v1292 = vpop.f32.mrf.mxu0
      %1293 = vmatprep.mubr.f32.mxu0 0.0
      %1294 = vmatmul.mubr.f32.gmra.mxu0 %v1193
      %v1295 = vpop.f32.mrf.mxu0
      %v1296 = vadd.f32 %v1164, %v1295
      %v1297 = vpop.f32.mrf.mxu0
      %1298 = vmatprep.mubr.f32.mxu0 0.0
      %1299 = vmatmul.mubr.f32.gmra.mxu0 %v1196
      %v1300 = vpop.f32.mrf.mxu0
      %v1301 = vadd.f32 %v1169, %v1300
      %v1302 = vpop.f32.mrf.mxu0
      %1303 = vmatprep.mubr.f32.mxu0 0.0
      %1304 = vmatmul.mubr.f32.gmra.mxu0 %v1199
      %v1305 = vpop.f32.mrf.mxu0
      %v1306 = vadd.f32 %v1174, %v1305
      %v1307 = vpop.f32.mrf.mxu0
      %1308 = vdwg.mxu0
      %v1309 = vld [vmem:[#allocation2 + $0x20] sm:$0xff]
      %v1310 = vld [vmem:[#allocation2 + $0x28] sm:$0xff]
      %v1311 = vld [vmem:[#allocation2 + $0x30] sm:$0xff]
      %v1312 = vld [vmem:[#allocation2 + $0x38] sm:$0xff]
      %v1313 = vld [vmem:[#allocation2 + $0x40] sm:$0xff]
      %v1314 = vld [vmem:[#allocation2 + $0x48] sm:$0xff]
      %v1315 = vld [vmem:[#allocation2 + $0x50] sm:$0xff]
      %v1316 = vld [vmem:[#allocation2 + $0x58] sm:$0xff]
      %s1317 = scalar_lea.vmem %s3, 24
      %v1318 = vld [vmem:[%s1317] sm:$0xf]
      %v1320 = vsel %vm414, %v1309, 0
      %v1323 = vsel %vm414, %v1310, 0
      %v1326 = vsel %vm414, %v1311, 0
      %v1329 = vsel %vm414, %v1312, 0
      %v1332 = vsel %vm414, %v1313, 0
      %v1335 = vsel %vm414, %v1314, 0
      %v1338 = vsel %vm414, %v1315, 0
      %v1341 = vsel %vm414, %v1316, 0
      %v1344 = vsel %vm484, %v1318, 0
      %1346 = vmatprep.subr.mxu0 0.0
      %1347 = vmatpush1.msra.mxu0 0.0
      %1348 = vmatprep.subr.mxu0 0.0
      %1349 = vmatpush1.msra.mxu0 0.0
      %1350 = vmatprep.subr.mxu0 0.0
      %1351 = vmatpush1.msra.mxu0 0.0
      %1352 = vmatprep.subr.mxu0 0.0
      %1353 = vmatpush1.msra.mxu0 0.0
      %1354 = vmatprep.subr.mxu0 0.0
      %1355 = vmatpush1.msra.mxu0 0.0
      %1356 = vmatprep.subr.mxu0 0.0
      %1357 = vmatpush1.msra.mxu0 0.0
      %1358 = vmatprep.subr.mxu0 0.0
      %1359 = vmatpush1.msra.mxu0 0.0
      %1360 = vmatprep.subr.mxu0 0.0
      %1361 = vmatpush1.msra.mxu0 0.0
      %1362 = vmatprep.subr.mxu0 0.0
      %1363 = vmatpush1.msra.mxu0 0.0
      %1364 = vmatprep.subr.mxu0 0.0
      %1365 = vmatpush1.msra.mxu0 0.0
      %1366 = vmatprep.subr.mxu0 0.0
      %1367 = vmatpush1.msra.mxu0 0.0
      %1368 = vmatprep.subr.mxu0 0.0
      %1369 = vmatpush1.msra.mxu0 0.0
      %1370 = vmatprep.subr.mxu0 0.0
      %1371 = vmatpush1.msra.mxu0 0.0
      %1372 = vmatprep.subr.mxu0 0.0
      %1373 = vmatpush1.msra.mxu0 0.0
      %1374 = vmatprep.subr.mxu0 0.0
      %1375 = vmatpush1.msra.mxu0 0.0
      %1376 = vmatprep.subr.mxu0 0.0
      %1377 = vmatpush1.msra.mxu0 %v1344
      %1378 = vmatprep.subr.mxu0 0.0
      %1379 = vmatpush2.msra.mxu0 0.0
      %1380 = vmatprep.subr.mxu0 0.0
      %1381 = vmatpush2.msra.mxu0 0.0
      %1382 = vmatprep.subr.mxu0 0.0
      %1383 = vmatpush2.msra.mxu0 0.0
      %1384 = vmatprep.subr.mxu0 0.0
      %1385 = vmatpush2.msra.mxu0 0.0
      %1386 = vmatprep.subr.mxu0 0.0
      %1387 = vmatpush2.msra.mxu0 0.0
      %1388 = vmatprep.subr.mxu0 0.0
      %1389 = vmatpush2.msra.mxu0 0.0
      %1390 = vmatprep.subr.mxu0 0.0
      %1391 = vmatpush2.msra.mxu0 0.0
      %1392 = vmatprep.subr.mxu0 0.0
      %1393 = vmatpush2.msra.mxu0 0.0
      %1394 = vmatprep.subr.mxu0 0.0
      %1395 = vmatpush2.msra.mxu0 0.0
      %1396 = vmatprep.subr.mxu0 0.0
      %1397 = vmatpush2.msra.mxu0 0.0
      %1398 = vmatprep.subr.mxu0 0.0
      %1399 = vmatpush2.msra.mxu0 0.0
      %1400 = vmatprep.subr.mxu0 0.0
      %1401 = vmatpush2.msra.mxu0 0.0
      %1402 = vmatprep.subr.mxu0 0.0
      %1403 = vmatpush2.msra.mxu0 0.0
      %1404 = vmatprep.subr.mxu0 0.0
      %1405 = vmatpush2.msra.mxu0 0.0
      %1406 = vmatprep.subr.mxu0 0.0
      %1407 = vmatpush2.msra.mxu0 0.0
      %1408 = vmatprep.subr.mxu0 0.0
      %1409 = vmatpush2.msra.mxu0 0.0
      %1410 = vmatprep.mubr.f32.mxu0 0.0
      %1411 = vmatmul.mubr.f32.gmra.mxu0 %v1320
      %v1412 = vpop.f32.mrf.mxu0
      %v1413 = vadd.f32 0.0, %v1412
      %v1414 = vpop.f32.mrf.mxu0
      %1415 = vmatprep.mubr.f32.mxu0 0.0
      %1416 = vmatmul.mubr.f32.gmra.mxu0 %v1323
      %v1417 = vpop.f32.mrf.mxu0
      %v1418 = vadd.f32 0.0, %v1417
      %v1419 = vpop.f32.mrf.mxu0
      %1420 = vmatprep.mubr.f32.mxu0 0.0
      %1421 = vmatmul.mubr.f32.gmra.mxu0 %v1326
      %v1422 = vpop.f32.mrf.mxu0
      %v1423 = vadd.f32 0.0, %v1422
      %v1424 = vpop.f32.mrf.mxu0
      %1425 = vmatprep.mubr.f32.mxu0 0.0
      %1426 = vmatmul.mubr.f32.gmra.mxu0 %v1329
      %v1427 = vpop.f32.mrf.mxu0
      %v1428 = vadd.f32 0.0, %v1427
      %v1429 = vpop.f32.mrf.mxu0
      %1430 = vmatprep.mubr.f32.mxu0 0.0
      %1431 = vmatmul.mubr.f32.gmra.mxu0 %v1332
      %v1432 = vpop.f32.mrf.mxu0
      %v1433 = vadd.f32 0.0, %v1432
      %v1434 = vpop.f32.mrf.mxu0
      %1435 = vmatprep.mubr.f32.mxu0 0.0
      %1436 = vmatmul.mubr.f32.gmra.mxu0 %v1335
      %v1437 = vpop.f32.mrf.mxu0
      %v1438 = vadd.f32 0.0, %v1437
      %v1439 = vpop.f32.mrf.mxu0
      %1440 = vmatprep.mubr.f32.mxu0 0.0
      %1441 = vmatmul.mubr.f32.gmra.mxu0 %v1338
      %v1442 = vpop.f32.mrf.mxu0
      %v1443 = vadd.f32 0.0, %v1442
      %v1444 = vpop.f32.mrf.mxu0
      %1445 = vmatprep.mubr.f32.mxu0 0.0
      %1446 = vmatmul.mubr.f32.gmra.mxu0 %v1341
      %v1447 = vpop.f32.mrf.mxu0
      %v1448 = vadd.f32 0.0, %v1447
      %v1449 = vpop.f32.mrf.mxu0
      %1450 = vdwg.mxu0
      %v1451 = vadd.f32 %v847, %v1413
      %v1452 = vadd.f32 %v852, %v1418
      %v1453 = vadd.f32 %v857, %v1423
      %v1454 = vadd.f32 %v862, %v1428
      %v1455 = vadd.f32 %v867, %v1433
      %v1456 = vadd.f32 %v872, %v1438
      %v1457 = vadd.f32 %v877, %v1443
      %v1458 = vadd.f32 %v882, %v1448
      %v1459 = vld [vmem:[#allocation2 + $0x21] sm:$0xff]
      %v1460 = vld [vmem:[#allocation2 + $0x29] sm:$0xff]
      %v1461 = vld [vmem:[#allocation2 + $0x31] sm:$0xff]
      %v1462 = vld [vmem:[#allocation2 + $0x39] sm:$0xff]
      %v1463 = vld [vmem:[#allocation2 + $0x41] sm:$0xff]
      %v1464 = vld [vmem:[#allocation2 + $0x49] sm:$0xff]
      %v1465 = vld [vmem:[#allocation2 + $0x51] sm:$0xff]
      %v1466 = vld [vmem:[#allocation2 + $0x59] sm:$0xff]
      %s1467 = scalar_lea.vmem %s3, 28
      %v1468 = vld [vmem:[%s1467] sm:$0xf]
      %v1470 = vsel %vm414, %v1459, 0
      %v1473 = vsel %vm414, %v1460, 0
      %v1476 = vsel %vm414, %v1461, 0
      %v1479 = vsel %vm414, %v1462, 0
      %v1482 = vsel %vm414, %v1463, 0
      %v1485 = vsel %vm414, %v1464, 0
      %v1488 = vsel %vm414, %v1465, 0
      %v1491 = vsel %vm414, %v1466, 0
      %v1494 = vsel %vm484, %v1468, 0
      %1496 = vmatprep.subr.mxu0 0.0
      %1497 = vmatpush1.msra.mxu0 0.0
      %1498 = vmatprep.subr.mxu0 0.0
      %1499 = vmatpush1.msra.mxu0 0.0
      %1500 = vmatprep.subr.mxu0 0.0
      %1501 = vmatpush1.msra.mxu0 0.0
      %1502 = vmatprep.subr.mxu0 0.0
      %1503 = vmatpush1.msra.mxu0 0.0
      %1504 = vmatprep.subr.mxu0 0.0
      %1505 = vmatpush1.msra.mxu0 0.0
      %1506 = vmatprep.subr.mxu0 0.0
      %1507 = vmatpush1.msra.mxu0 0.0
      %1508 = vmatprep.subr.mxu0 0.0
      %1509 = vmatpush1.msra.mxu0 0.0
      %1510 = vmatprep.subr.mxu0 0.0
      %1511 = vmatpush1.msra.mxu0 0.0
      %1512 = vmatprep.subr.mxu0 0.0
      %1513 = vmatpush1.msra.mxu0 0.0
      %1514 = vmatprep.subr.mxu0 0.0
      %1515 = vmatpush1.msra.mxu0 0.0
      %1516 = vmatprep.subr.mxu0 0.0
      %1517 = vmatpush1.msra.mxu0 0.0
      %1518 = vmatprep.subr.mxu0 0.0
      %1519 = vmatpush1.msra.mxu0 0.0
      %1520 = vmatprep.subr.mxu0 0.0
      %1521 = vmatpush1.msra.mxu0 0.0
      %1522 = vmatprep.subr.mxu0 0.0
      %1523 = vmatpush1.msra.mxu0 0.0
      %1524 = vmatprep.subr.mxu0 0.0
      %1525 = vmatpush1.msra.mxu0 0.0
      %1526 = vmatprep.subr.mxu0 0.0
      %1527 = vmatpush1.msra.mxu0 %v1494
      %1528 = vmatprep.subr.mxu0 0.0
      %1529 = vmatpush2.msra.mxu0 0.0
      %1530 = vmatprep.subr.mxu0 0.0
      %1531 = vmatpush2.msra.mxu0 0.0
      %1532 = vmatprep.subr.mxu0 0.0
      %1533 = vmatpush2.msra.mxu0 0.0
      %1534 = vmatprep.subr.mxu0 0.0
      %1535 = vmatpush2.msra.mxu0 0.0
      %1536 = vmatprep.subr.mxu0 0.0
      %1537 = vmatpush2.msra.mxu0 0.0
      %1538 = vmatprep.subr.mxu0 0.0
      %1539 = vmatpush2.msra.mxu0 0.0
      %1540 = vmatprep.subr.mxu0 0.0
      %1541 = vmatpush2.msra.mxu0 0.0
      %1542 = vmatprep.subr.mxu0 0.0
      %1543 = vmatpush2.msra.mxu0 0.0
      %1544 = vmatprep.subr.mxu0 0.0
      %1545 = vmatpush2.msra.mxu0 0.0
      %1546 = vmatprep.subr.mxu0 0.0
      %1547 = vmatpush2.msra.mxu0 0.0
      %1548 = vmatprep.subr.mxu0 0.0
      %1549 = vmatpush2.msra.mxu0 0.0
      %1550 = vmatprep.subr.mxu0 0.0
      %1551 = vmatpush2.msra.mxu0 0.0
      %1552 = vmatprep.subr.mxu0 0.0
      %1553 = vmatpush2.msra.mxu0 0.0
      %1554 = vmatprep.subr.mxu0 0.0
      %1555 = vmatpush2.msra.mxu0 0.0
      %1556 = vmatprep.subr.mxu0 0.0
      %1557 = vmatpush2.msra.mxu0 0.0
      %1558 = vmatprep.subr.mxu0 0.0
      %1559 = vmatpush2.msra.mxu0 0.0
      %1560 = vmatprep.mubr.f32.mxu0 0.0
      %1561 = vmatmul.mubr.f32.gmra.mxu0 %v1470
      %v1562 = vpop.f32.mrf.mxu0
      %v1563 = vadd.f32 0.0, %v1562
      %v1564 = vpop.f32.mrf.mxu0
      %1565 = vmatprep.mubr.f32.mxu0 0.0
      %1566 = vmatmul.mubr.f32.gmra.mxu0 %v1473
      %v1567 = vpop.f32.mrf.mxu0
      %v1568 = vadd.f32 0.0, %v1567
      %v1569 = vpop.f32.mrf.mxu0
      %1570 = vmatprep.mubr.f32.mxu0 0.0
      %1571 = vmatmul.mubr.f32.gmra.mxu0 %v1476
      %v1572 = vpop.f32.mrf.mxu0
      %v1573 = vadd.f32 0.0, %v1572
      %v1574 = vpop.f32.mrf.mxu0
      %1575 = vmatprep.mubr.f32.mxu0 0.0
      %1576 = vmatmul.mubr.f32.gmra.mxu0 %v1479
      %v1577 = vpop.f32.mrf.mxu0
      %v1578 = vadd.f32 0.0, %v1577
      %v1579 = vpop.f32.mrf.mxu0
      %1580 = vmatprep.mubr.f32.mxu0 0.0
      %1581 = vmatmul.mubr.f32.gmra.mxu0 %v1482
      %v1582 = vpop.f32.mrf.mxu0
      %v1583 = vadd.f32 0.0, %v1582
      %v1584 = vpop.f32.mrf.mxu0
      %1585 = vmatprep.mubr.f32.mxu0 0.0
      %1586 = vmatmul.mubr.f32.gmra.mxu0 %v1485
      %v1587 = vpop.f32.mrf.mxu0
      %v1588 = vadd.f32 0.0, %v1587
      %v1589 = vpop.f32.mrf.mxu0
      %1590 = vmatprep.mubr.f32.mxu0 0.0
      %1591 = vmatmul.mubr.f32.gmra.mxu0 %v1488
      %v1592 = vpop.f32.mrf.mxu0
      %v1593 = vadd.f32 0.0, %v1592
      %v1594 = vpop.f32.mrf.mxu0
      %1595 = vmatprep.mubr.f32.mxu0 0.0
      %1596 = vmatmul.mubr.f32.gmra.mxu0 %v1491
      %v1597 = vpop.f32.mrf.mxu0
      %v1598 = vadd.f32 0.0, %v1597
      %v1599 = vpop.f32.mrf.mxu0
      %1600 = vdwg.mxu0
      %v1601 = vadd.f32 %v1027, %v1563
      %v1602 = vadd.f32 %v1028, %v1568
      %v1603 = vadd.f32 %v1029, %v1573
      %v1604 = vadd.f32 %v1030, %v1578
      %v1605 = vadd.f32 %v1031, %v1583
      %v1606 = vadd.f32 %v1032, %v1588
      %v1607 = vadd.f32 %v1033, %v1593
      %v1608 = vadd.f32 %v1034, %v1598
      %v1609 = vld [vmem:[#allocation2 + $0x22] sm:$0xff]
      %v1610 = vld [vmem:[#allocation2 + $0x2a] sm:$0xff]
      %v1611 = vld [vmem:[#allocation2 + $0x32] sm:$0xff]
      %v1612 = vld [vmem:[#allocation2 + $0x3a] sm:$0xff]
      %v1613 = vld [vmem:[#allocation2 + $0x42] sm:$0xff]
      %v1614 = vld [vmem:[#allocation2 + $0x4a] sm:$0xff]
      %v1615 = vld [vmem:[#allocation2 + $0x52] sm:$0xff]
      %v1616 = vld [vmem:[#allocation2 + $0x5a] sm:$0xff]
      %s1617 = scalar_lea.vmem %s3, 32
      %v1618 = vld [vmem:[%s1617] sm:$0xf]
      %v1620 = vsel %vm414, %v1609, 0
      %v1623 = vsel %vm414, %v1610, 0
      %v1626 = vsel %vm414, %v1611, 0
      %v1629 = vsel %vm414, %v1612, 0
      %v1632 = vsel %vm414, %v1613, 0
      %v1635 = vsel %vm414, %v1614, 0
      %v1638 = vsel %vm414, %v1615, 0
      %v1641 = vsel %vm414, %v1616, 0
      %v1644 = vsel %vm484, %v1618, 0
      %1646 = vmatprep.subr.mxu0 0.0
      %1647 = vmatpush1.msra.mxu0 0.0
      %1648 = vmatprep.subr.mxu0 0.0
      %1649 = vmatpush1.msra.mxu0 0.0
      %1650 = vmatprep.subr.mxu0 0.0
      %1651 = vmatpush1.msra.mxu0 0.0
      %1652 = vmatprep.subr.mxu0 0.0
      %1653 = vmatpush1.msra.mxu0 0.0
      %1654 = vmatprep.subr.mxu0 0.0
      %1655 = vmatpush1.msra.mxu0 0.0
      %1656 = vmatprep.subr.mxu0 0.0
      %1657 = vmatpush1.msra.mxu0 0.0
      %1658 = vmatprep.subr.mxu0 0.0
      %1659 = vmatpush1.msra.mxu0 0.0
      %1660 = vmatprep.subr.mxu0 0.0
      %1661 = vmatpush1.msra.mxu0 0.0
      %1662 = vmatprep.subr.mxu0 0.0
      %1663 = vmatpush1.msra.mxu0 0.0
      %1664 = vmatprep.subr.mxu0 0.0
      %1665 = vmatpush1.msra.mxu0 0.0
      %1666 = vmatprep.subr.mxu0 0.0
      %1667 = vmatpush1.msra.mxu0 0.0
      %1668 = vmatprep.subr.mxu0 0.0
      %1669 = vmatpush1.msra.mxu0 0.0
      %1670 = vmatprep.subr.mxu0 0.0
      %1671 = vmatpush1.msra.mxu0 0.0
      %1672 = vmatprep.subr.mxu0 0.0
      %1673 = vmatpush1.msra.mxu0 0.0
      %1674 = vmatprep.subr.mxu0 0.0
      %1675 = vmatpush1.msra.mxu0 0.0
      %1676 = vmatprep.subr.mxu0 0.0
      %1677 = vmatpush1.msra.mxu0 %v1644
      %1678 = vmatprep.subr.mxu0 0.0
      %1679 = vmatpush2.msra.mxu0 0.0
      %1680 = vmatprep.subr.mxu0 0.0
      %1681 = vmatpush2.msra.mxu0 0.0
      %1682 = vmatprep.subr.mxu0 0.0
      %1683 = vmatpush2.msra.mxu0 0.0
      %1684 = vmatprep.subr.mxu0 0.0
      %1685 = vmatpush2.msra.mxu0 0.0
      %1686 = vmatprep.subr.mxu0 0.0
      %1687 = vmatpush2.msra.mxu0 0.0
      %1688 = vmatprep.subr.mxu0 0.0
      %1689 = vmatpush2.msra.mxu0 0.0
      %1690 = vmatprep.subr.mxu0 0.0
      %1691 = vmatpush2.msra.mxu0 0.0
      %1692 = vmatprep.subr.mxu0 0.0
      %1693 = vmatpush2.msra.mxu0 0.0
      %1694 = vmatprep.subr.mxu0 0.0
      %1695 = vmatpush2.msra.mxu0 0.0
      %1696 = vmatprep.subr.mxu0 0.0
      %1697 = vmatpush2.msra.mxu0 0.0
      %1698 = vmatprep.subr.mxu0 0.0
      %1699 = vmatpush2.msra.mxu0 0.0
      %1700 = vmatprep.subr.mxu0 0.0
      %1701 = vmatpush2.msra.mxu0 0.0
      %1702 = vmatprep.subr.mxu0 0.0
      %1703 = vmatpush2.msra.mxu0 0.0
      %1704 = vmatprep.subr.mxu0 0.0
      %1705 = vmatpush2.msra.mxu0 0.0
      %1706 = vmatprep.subr.mxu0 0.0
      %1707 = vmatpush2.msra.mxu0 0.0
      %1708 = vmatprep.subr.mxu0 0.0
      %1709 = vmatpush2.msra.mxu0 0.0
      %1710 = vmatprep.mubr.f32.mxu0 0.0
      %1711 = vmatmul.mubr.f32.gmra.mxu0 %v1620
      %v1712 = vpop.f32.mrf.mxu0
      %v1713 = vadd.f32 0.0, %v1712
      %v1714 = vpop.f32.mrf.mxu0
      %1715 = vmatprep.mubr.f32.mxu0 0.0
      %1716 = vmatmul.mubr.f32.gmra.mxu0 %v1623
      %v1717 = vpop.f32.mrf.mxu0
      %v1718 = vadd.f32 0.0, %v1717
      %v1719 = vpop.f32.mrf.mxu0
      %1720 = vmatprep.mubr.f32.mxu0 0.0
      %1721 = vmatmul.mubr.f32.gmra.mxu0 %v1626
      %v1722 = vpop.f32.mrf.mxu0
      %v1723 = vadd.f32 0.0, %v1722
      %v1724 = vpop.f32.mrf.mxu0
      %1725 = vmatprep.mubr.f32.mxu0 0.0
      %1726 = vmatmul.mubr.f32.gmra.mxu0 %v1629
      %v1727 = vpop.f32.mrf.mxu0
      %v1728 = vadd.f32 0.0, %v1727
      %v1729 = vpop.f32.mrf.mxu0
      %1730 = vmatprep.mubr.f32.mxu0 0.0
      %1731 = vmatmul.mubr.f32.gmra.mxu0 %v1632
      %v1732 = vpop.f32.mrf.mxu0
      %v1733 = vadd.f32 0.0, %v1732
      %v1734 = vpop.f32.mrf.mxu0
      %1735 = vmatprep.mubr.f32.mxu0 0.0
      %1736 = vmatmul.mubr.f32.gmra.mxu0 %v1635
      %v1737 = vpop.f32.mrf.mxu0
      %v1738 = vadd.f32 0.0, %v1737
      %v1739 = vpop.f32.mrf.mxu0
      %1740 = vmatprep.mubr.f32.mxu0 0.0
      %1741 = vmatmul.mubr.f32.gmra.mxu0 %v1638
      %v1742 = vpop.f32.mrf.mxu0
      %v1743 = vadd.f32 0.0, %v1742
      %v1744 = vpop.f32.mrf.mxu0
      %1745 = vmatprep.mubr.f32.mxu0 0.0
      %1746 = vmatmul.mubr.f32.gmra.mxu0 %v1641
      %v1747 = vpop.f32.mrf.mxu0
      %v1748 = vadd.f32 0.0, %v1747
      %v1749 = vpop.f32.mrf.mxu0
      %1750 = vdwg.mxu0
      %v1751 = vadd.f32 %v1271, %v1713
      %v1752 = vadd.f32 %v1276, %v1718
      %v1753 = vadd.f32 %v1281, %v1723
      %v1754 = vadd.f32 %v1286, %v1728
      %v1755 = vadd.f32 %v1291, %v1733
      %v1756 = vadd.f32 %v1296, %v1738
      %v1757 = vadd.f32 %v1301, %v1743
      %v1758 = vadd.f32 %v1306, %v1748
      %v1759 = vlaneseq
      %v1760 = vshrl.u32 %v1759, 7
      %v1761 = vadd.s32 %v1760, 8
      %vm1762 = vcmp.gt.s32.totalorder %v1760, 0
      %vm1763 = vcmp.gt.s32.totalorder %v1761, 0
      %v1764 = vsel %vm1762, 1, 0
      %v1765 = vsel %vm1763, 1, 0
      %v1766 = vcvt.s32.f32 %v1764
      %v1767 = vcvt.s32.f32 %v1765
      %vm1768 = vcmp.lt.s32.totalorder %v1760, 15
      %vm1769 = vcmp.lt.s32.totalorder %v1761, 15
      %v1770 = vsel %vm1768, 1, 0
      %v1771 = vsel %vm1769, 1, 0
      %v1772 = vcvt.s32.f32 %v1770
      %v1773 = vcvt.s32.f32 %v1771
      %v1774 = vmul.f32 %v1451, %v1766
      %v1775 = vmul.f32 %v1452, %v1767
      %v1776 = vmul.f32 %v1453, %v1766
      %v1777 = vmul.f32 %v1454, %v1767
      %v1778 = vmul.f32 %v1455, %v1766
      %v1779 = vmul.f32 %v1456, %v1767
      %v1780 = vmul.f32 %v1457, %v1766
      %v1781 = vmul.f32 %v1458, %v1767
      %v1782 = vadd.f32 %v1601, %v1774
      %v1783 = vadd.f32 %v1602, %v1775
      %v1784 = vadd.f32 %v1603, %v1776
      %v1785 = vadd.f32 %v1604, %v1777
      %v1786 = vadd.f32 %v1605, %v1778
      %v1787 = vadd.f32 %v1606, %v1779
      %v1788 = vadd.f32 %v1607, %v1780
      %v1789 = vadd.f32 %v1608, %v1781
      %v1790 = vmul.f32 %v1751, %v1772
      %v1791 = vmul.f32 %v1752, %v1773
      %v1792 = vmul.f32 %v1753, %v1772
      %v1793 = vmul.f32 %v1754, %v1773
      %v1794 = vmul.f32 %v1755, %v1772
      %v1795 = vmul.f32 %v1756, %v1773
      %v1796 = vmul.f32 %v1757, %v1772
      %v1797 = vmul.f32 %v1758, %v1773
      %v1798 = vadd.f32 %v1782, %v1790
      %v1799 = vadd.f32 %v1783, %v1791
      %v1800 = vadd.f32 %v1784, %v1792
      %v1801 = vadd.f32 %v1785, %v1793
      %v1802 = vadd.f32 %v1786, %v1794
      %v1803 = vadd.f32 %v1787, %v1795
      %v1804 = vadd.f32 %v1788, %v1796
      %v1805 = vadd.f32 %v1789, %v1797
      %v1806 = vmax.f32 %v1798, 0.0
      %v1807 = vmax.f32 %v1799, 0.0
      %v1808 = vmax.f32 %v1800, 0.0
      %v1809 = vmax.f32 %v1801, 0.0
      %v1810 = vmax.f32 %v1802, 0.0
      %v1811 = vmax.f32 %v1803, 0.0
      %v1812 = vmax.f32 %v1804, 0.0
      %v1813 = vmax.f32 %v1805, 0.0
      %1814 = vst.msk [vmem:[%s391] sm:$0xff] %vm414, %v1806
      %1815 = vst.msk [vmem:[%s391 + $0x8] sm:$0xff] %vm414, %v1807
      %1816 = vst.msk [vmem:[%s391 + $0x10] sm:$0xff] %vm414, %v1808
      %1817 = vst.msk [vmem:[%s391 + $0x18] sm:$0xff] %vm414, %v1809
      %1818 = vst.msk [vmem:[%s391 + $0x20] sm:$0xff] %vm414, %v1810
      %1819 = vst.msk [vmem:[%s391 + $0x28] sm:$0xff] %vm414, %v1811
      %1820 = vst.msk [vmem:[%s391 + $0x30] sm:$0xff] %vm414, %v1812
      %1821 = vst.msk [vmem:[%s391 + $0x38] sm:$0xff] %vm414, %v1813
      %s1822 = smul.u32 4, %s21
      %p1823 = scmp.lt.s32.totalorder %s20, 1
      %s1824 = scalar_select %p1823, %s20, 1
      %p1825 = scmp.lt.s32.totalorder %s1822, 15
      %s1826 = scalar_select %p1825, %s1822, 15
      %s1827 = smul.addr %s1826, 2
      %s1828 = smul.addr %s1824, 32
      %s1829 = sadd.s32 %s1827, %s1828
      %s1830 = smul.addr %s1829, 8
      %s1831 = scalar_lea.vmem %s5, %s1830
      // Predicated region
      $region41: #{_lambda_.5} parent=39 // pred_check
        %p1832 = pneg %p190
      $region42: #{_lambda_.5} parent=39 // pred_check_branch
        %1834 = sbr.rel (%p1832) target = $region44
      $region43: #{_lambda_.5} parent=39 // pred_region
        %s1835 = smul.u32 4, %s21
      $region44: #{_lambda_.5} parent=39 // pred_fallthru
        _
    $region40: #{_lambda_.5} parent=5 // pred_fallthru
      _
    %p1836 = scmp.le.s32.totalorder 2, %s11
    // Predicated region
    $region45: #{_lambda_.5} parent=5 // pred_check
      %p1837 = pneg %p1836
    $region46: #{_lambda_.5} parent=5 // pred_check_branch
      %1839 = sbr.rel (%p1837) target = $region48
    $region47: #{_lambda_.5} parent=5 // pred_region
      %s1840 = ssub.s32 %s11, 2
      // Predicated region
      $region49: #{_lambda_.5} parent=47 // pred_check
        %p1841 = pneg %p196
      $region50: #{_lambda_.5} parent=47 // pred_check_branch
        %1843 = sbr.rel (%p1841) target = $region52
      $region51: #{_lambda_.5} parent=47 // pred_region
        %s1844 = smul.u32 4, %s23
        %p1845 = scmp.lt.s32.totalorder %s22, 1
        %s1846 = scalar_select %p1845, %s22, 1
        %p1847 = scmp.lt.s32.totalorder %s1844, 15
        %s1848 = scalar_select %p1847, %s1844, 15
        %s1849 = smul.addr %s1848, 2
        %s1850 = smul.addr %s1846, 32
        %s1851 = sadd.s32 %s1849, %s1850
        %s1852 = smul.addr %s1851, 8
        %s1853 = scalar_lea.vmem %s5, %s1852
      $region52: #{_lambda_.5} parent=47 // pred_fallthru
        _
    $region48: #{_lambda_.5} parent=5 // pred_fallthru
      _
  $region6: #{_lambda_.5} parent=0 // loop_footer
    %s15 = sadd.s32 1, %s11
  $region7: #{_lambda_.5} parent=0 // loop_footer_branch
    %10 = sbr.rel target = $region3
  $region8: #{_lambda_.5} parent=0 // loop_exit
    _

// kernel: _lambda_.4
$region0: #{_lambda_.4}
  #allocation0 [shape = 'u32[]', space=smem, size = 0x4, offset = 0x4, fixed_abs, tag = 'smem constant byte address 0x4 - core index']
  #allocation1 [shape = 'u32[144,128]{1,0:T(1,128)}', space=vmem, size = 0x12000, scoped, tag = 'internal scratch']
  #allocation2 [shape = 'f32[98,4]{1,0:T(8,128)}', space=vmem, size = 0xd000, scoped, tag = 'scratch operand']
  #allocation3 [shape = 'f32[98,4]{1,0:T(8,128)}', space=vmem, size = 0xd000, scoped, tag = 'scratch operand']
  %s0 = inlined_call_operand.vmem [shape: f32[2,16,16,4], index: 0, kind: input, shape index: {}, may-alias: {0,1,2}]
  %s1 = inlined_call_operand.vmem [shape: f32[2,16,16,4], index: 1, kind: input, shape index: {}, may-alias: {0,1,2}]
  %s2 = inlined_call_operand.vmem [shape: f32[2,16,16,4], index: 2, kind: input, shape index: {}, may-alias: {0,1,2}]
  %s3 = inlined_call_operand.vmem [shape: f32[2,16,16,4], index: 3, kind: input, shape index: {}, may-alias: {3,4,5}]
  %s4 = inlined_call_operand.vmem [shape: f32[2,16,16,4], index: 4, kind: input, shape index: {}, may-alias: {3,4,5}]
  %s5 = inlined_call_operand.vmem [shape: f32[2,16,16,4], index: 5, kind: input, shape index: {}, may-alias: {3,4,5}]
  %s6 = inlined_call_operand.vmem [shape: f32[3,3,4,4], index: 6, kind: input, shape index: {}]
  %s7 = inlined_call_operand.vmem [shape: f32[3,3,4,4], index: 7, kind: input, shape index: {}]
  %s8 = inlined_call_operand.vmem [shape: f32[1,4], index: 8, kind: input, shape index: {}]
  %s9 = inlined_call_operand.vmem [shape: f32[2,16,16,4], index: 9, kind: output, shape index: {}]
  %s10 = sld [smem:[#allocation0]]
  $region69: #{_lambda_.4} parent=0
    _
  %s12 = ssub.s32 1, %s10
  %s13 = scalar_select 0, %s12, %s10
  loop: start=0, step=1, limit=10
  $region2: #{_lambda_.4} parent=0 // loop_pre_header
    _
  $region3: #{_lambda_.4} parent=0 // loop_header
    %s15 = sphi 0, %s19
    %p16 = scmp.ge.s32.totalorder %s15, 10
    %s22 = sphi 0, %s34
    %s23 = sphi 0, %s30
    %s24 = sphi 0, %s22
    %s25 = sphi 0, %s23
    %s26 = sphi 0, %s24
    %s27 = sphi 0, %s25
    %s39 = sphi 0, %s41
    %s42 = sphi 0, %s39
    %s43 = sphi 0, %s42
    %s59 = sphi 0, %s43
    %s75 = sphi 0, %s77
    %s78 = sphi 0, %s75
    %s79 = sphi 0, %s78
    %s95 = sphi 0, %s79
    %s111 = sphi 0, %s113
    %s114 = sphi 0, %s111
    %s115 = sphi 0, %s114
    %s131 = sphi 0, %s115
    %s139 = sphi 0, %s141
    %s142 = sphi 0, %s139
    %s143 = sphi 0, %s142
    %s159 = sphi 0, %s143
    %s175 = sphi 0, %s177
    %s178 = sphi 0, %s175
    %s179 = sphi 0, %s178
    %s195 = sphi 0, %s179
    %s211 = sphi 0, %s213
    %s214 = sphi 0, %s211
    %s215 = sphi 0, %s214
    %s231 = sphi 0, %s215
    %s235 = sphi 0, %s235
    %s237 = sphi 0, %s235
    %s238 = sphi 0, %s237
    %s252 = sphi 0, %s238
    %s256 = sphi 0, %s256
    %s258 = sphi 0, %s256
    %s259 = sphi 0, %s258
    %s273 = sphi 0, %s259
    %s277 = sphi 0, %s277
    %s279 = sphi 0, %s277
    %s280 = sphi 0, %s279
    %s294 = sphi 0, %s280
    %s302 = sphi 0, %s304
    %s305 = sphi 0, %s302
    %s306 = sphi 0, %s305
    %s322 = sphi 0, %s306
  $region4: #{_lambda_.4} parent=0 // loop_header_branch
    %18 = sbr.rel (%p16) target = $region8
  $region5: #{_lambda_.4} parent=0 // loop_body
    %s20 = ssub.s32 %s15, 1
    %s21 = ssub.s32 %s15, 2
    %s28 = sadd.s32 1, %s23
    %p29 = scmp.ge.s32.totalorder %s28, 4
    %s30 = scalar_select %p29, 0, %s28
    %s31 = sadd.s32 1, %s22
    %s32 = scalar_select %p29, %s31, %s22
    %p33 = scmp.ge.s32.totalorder %s32, 2
    %s34 = scalar_select %p33, 0, %s32
    %s35 = ssub.s32 %s22, %s34
    %s36 = ssub.s32 %s23, %s30
    %s37 = sor.u32 %s35, %s36
    %p38 = scmp.eq.s32.totalorder %s37, 0
    %s40 = sadd.s32 %s39, 1
    %s41 = scalar_select %p38, %s39, %s40
    %p44 = pneg %p38
    %p45 = scmp.eq.s32.totalorder %s15, 7
    %p46 = por %p44, %p45
    %p47 = scmp.ne.s32.totalorder %s39, %s42
    %p48 = scmp.eq.s32.totalorder %s15, 0
    %p49 = por %p47, %p48
    %p50 = scmp.ne.s32.totalorder %s39, %s42
    %p51 = scmp.eq.s32.totalorder %s20, 7
    %p52 = por %p50, %p51
    %p53 = scmp.ne.s32.totalorder %s42, %s43
    %p54 = scmp.eq.s32.totalorder %s20, 0
    %p55 = por %p53, %p54
    %p56 = scmp.ne.s32.totalorder %s42, %s43
    %p57 = scmp.eq.s32.totalorder %s21, 7
    %p58 = por %p56, %p57
    %p60 = scmp.ne.s32.totalorder %s43, %s59
    %p61 = scmp.eq.s32.totalorder %s21, 0
    %p62 = por %p60, %p61
    %s63 = smul.u32 %s23, 4
    %s64 = ssub.s32 %s63, 1
    %p65 = scmp.gt.s32.totalorder %s64, 0
    %s66 = scalar_select %p65, %s64, 0
    %s67 = smul.u32 %s30, 4
    %s68 = ssub.s32 %s67, 1
    %p69 = scmp.gt.s32.totalorder %s68, 0
    %s70 = scalar_select %p69, %s68, 0
    %s71 = ssub.s32 %s22, %s34
    %s72 = ssub.s32 %s66, %s70
    %s73 = sor.u32 %s71, %s72
    %p74 = scmp.eq.s32.totalorder %s73, 0
    %s76 = sadd.s32 %s75, 1
    %s77 = scalar_select %p74, %s75, %s76
    %p80 = pneg %p74
    %p81 = scmp.eq.s32.totalorder %s15, 7
    %p82 = por %p80, %p81
    %p83 = scmp.ne.s32.totalorder %s75, %s78
    %p84 = scmp.eq.s32.totalorder %s15, 0
    %p85 = por %p83, %p84
    %p86 = scmp.ne.s32.totalorder %s75, %s78
    %p87 = scmp.eq.s32.totalorder %s20, 7
    %p88 = por %p86, %p87
    %p89 = scmp.ne.s32.totalorder %s78, %s79
    %p90 = scmp.eq.s32.totalorder %s20, 0
    %p91 = por %p89, %p90
    %p92 = scmp.ne.s32.totalorder %s78, %s79
    %p93 = scmp.eq.s32.totalorder %s21, 7
    %p94 = por %p92, %p93
    %p96 = scmp.ne.s32.totalorder %s79, %s95
    %p97 = scmp.eq.s32.totalorder %s21, 0
    %p98 = por %p96, %p97
    %s99 = smul.u32 %s23, 4
    %s100 = sadd.s32 %s99, 4
    %p101 = scmp.lt.s32.totalorder %s100, 15
    %s102 = scalar_select %p101, %s100, 15
    %s103 = smul.u32 %s30, 4
    %s104 = sadd.s32 %s103, 4
    %p105 = scmp.lt.s32.totalorder %s104, 15
    %s106 = scalar_select %p105, %s104, 15
    %s107 = ssub.s32 %s22, %s34
    %s108 = ssub.s32 %s102, %s106
    %s109 = sor.u32 %s107, %s108
    %p110 = scmp.eq.s32.totalorder %s109, 0
    %s112 = sadd.s32 %s111, 1
    %s113 = scalar_select %p110, %s111, %s112
    %p116 = pneg %p110
    %p117 = scmp.eq.s32.totalorder %s15, 7
    %p118 = por %p116, %p117
    %p119 = scmp.ne.s32.totalorder %s111, %s114
    %p120 = scmp.eq.s32.totalorder %s15, 0
    %p121 = por %p119, %p120
    %p122 = scmp.ne.s32.totalorder %s111, %s114
    %p123 = scmp.eq.s32.totalorder %s20, 7
    %p124 = por %p122, %p123
    %p125 = scmp.ne.s32.totalorder %s114, %s115
    %p126 = scmp.eq.s32.totalorder %s20, 0
    %p127 = por %p125, %p126
    %p128 = scmp.ne.s32.totalorder %s114, %s115
    %p129 = scmp.eq.s32.totalorder %s21, 7
    %p130 = por %p128, %p129
    %p132 = scmp.ne.s32.totalorder %s115, %s131
    %p133 = scmp.eq.s32.totalorder %s21, 0
    %p134 = por %p132, %p133
    %s135 = ssub.s32 %s22, %s34
    %s136 = ssub.s32 %s23, %s30
    %s137 = sor.u32 %s135, %s136
    %p138 = scmp.eq.s32.totalorder %s137, 0
    %s140 = sadd.s32 %s139, 1
    %s141 = scalar_select %p138, %s139, %s140
    %p144 = pneg %p138
    %p145 = scmp.eq.s32.totalorder %s15, 7
    %p146 = por %p144, %p145
    %p147 = scmp.ne.s32.totalorder %s139, %s142
    %p148 = scmp.eq.s32.totalorder %s15, 0
    %p149 = por %p147, %p148
    %p150 = scmp.ne.s32.totalorder %s139, %s142
    %p151 = scmp.eq.s32.totalorder %s20, 7
    %p152 = por %p150, %p151
    %p153 = scmp.ne.s32.totalorder %s142, %s143
    %p154 = scmp.eq.s32.totalorder %s20, 0
    %p155 = por %p153, %p154
    %p156 = scmp.ne.s32.totalorder %s142, %s143
    %p157 = scmp.eq.s32.totalorder %s21, 7
    %p158 = por %p156, %p157
    %p160 = scmp.ne.s32.totalorder %s143, %s159
    %p161 = scmp.eq.s32.totalorder %s21, 0
    %p162 = por %p160, %p161
    %s163 = smul.u32 %s23, 4
    %s164 = ssub.s32 %s163, 1
    %p165 = scmp.gt.s32.totalorder %s164, 0
    %s166 = scalar_select %p165, %s164, 0
    %s167 = smul.u32 %s30, 4
    %s168 = ssub.s32 %s167, 1
    %p169 = scmp.gt.s32.totalorder %s168, 0
    %s170 = scalar_select %p169, %s168, 0
    %s171 = ssub.s32 %s22, %s34
    %s172 = ssub.s32 %s166, %s170
    %s173 = sor.u32 %s171, %s172
    %p174 = scmp.eq.s32.totalorder %s173, 0
    %s176 = sadd.s32 %s175, 1
    %s177 = scalar_select %p174, %s175, %s176
    %p180 = pneg %p174
    %p181 = scmp.eq.s32.totalorder %s15, 7
    %p182 = por %p180, %p181
    %p183 = scmp.ne.s32.totalorder %s175, %s178
    %p184 = scmp.eq.s32.totalorder %s15, 0
    %p185 = por %p183, %p184
    %p186 = scmp.ne.s32.totalorder %s175, %s178
    %p187 = scmp.eq.s32.totalorder %s20, 7
    %p188 = por %p186, %p187
    %p189 = scmp.ne.s32.totalorder %s178, %s179
    %p190 = scmp.eq.s32.totalorder %s20, 0
    %p191 = por %p189, %p190
    %p192 = scmp.ne.s32.totalorder %s178, %s179
    %p193 = scmp.eq.s32.totalorder %s21, 7
    %p194 = por %p192, %p193
    %p196 = scmp.ne.s32.totalorder %s179, %s195
    %p197 = scmp.eq.s32.totalorder %s21, 0
    %p198 = por %p196, %p197
    %s199 = smul.u32 %s23, 4
    %s200 = sadd.s32 %s199, 4
    %p201 = scmp.lt.s32.totalorder %s200, 15
    %s202 = scalar_select %p201, %s200, 15
    %s203 = smul.u32 %s30, 4
    %s204 = sadd.s32 %s203, 4
    %p205 = scmp.lt.s32.totalorder %s204, 15
    %s206 = scalar_select %p205, %s204, 15
    %s207 = ssub.s32 %s22, %s34
    %s208 = ssub.s32 %s202, %s206
    %s209 = sor.u32 %s207, %s208
    %p210 = scmp.eq.s32.totalorder %s209, 0
    %s212 = sadd.s32 %s211, 1
    %s213 = scalar_select %p210, %s211, %s212
    %p216 = pneg %p210
    %p217 = scmp.eq.s32.totalorder %s15, 7
    %p218 = por %p216, %p217
    %p219 = scmp.ne.s32.totalorder %s211, %s214
    %p220 = scmp.eq.s32.totalorder %s15, 0
    %p221 = por %p219, %p220
    %p222 = scmp.ne.s32.totalorder %s211, %s214
    %p223 = scmp.eq.s32.totalorder %s20, 7
    %p224 = por %p222, %p223
    %p225 = scmp.ne.s32.totalorder %s214, %s215
    %p226 = scmp.eq.s32.totalorder %s20, 0
    %p227 = por %p225, %p226
    %p228 = scmp.ne.s32.totalorder %s214, %s215
    %p229 = scmp.eq.s32.totalorder %s21, 7
    %p230 = por %p228, %p229
    %p232 = scmp.ne.s32.totalorder %s215, %s231
    %p233 = scmp.eq.s32.totalorder %s21, 0
    %p234 = por %p232, %p233
    %s236 = sadd.s32 %s235, 1
    %p239 = scmp.eq.s32.totalorder %s15, 7
    %p240 = scmp.ne.s32.totalorder %s235, %s237
    %p241 = scmp.eq.s32.totalorder %s15, 0
    %p242 = por %p240, %p241
    %p243 = scmp.ne.s32.totalorder %s235, %s237
    %p244 = scmp.eq.s32.totalorder %s20, 7
    %p245 = por %p243, %p244
    %p246 = scmp.ne.s32.totalorder %s237, %s238
    %p247 = scmp.eq.s32.totalorder %s20, 0
    %p248 = por %p246, %p247
    %p249 = scmp.ne.s32.totalorder %s237, %s238
    %p250 = scmp.eq.s32.totalorder %s21, 7
    %p251 = por %p249, %p250
    %p253 = scmp.ne.s32.totalorder %s238, %s252
    %p254 = scmp.eq.s32.totalorder %s21, 0
    %p255 = por %p253, %p254
    %s257 = sadd.s32 %s256, 1
    %p260 = scmp.eq.s32.totalorder %s15, 7
    %p261 = scmp.ne.s32.totalorder %s256, %s258
    %p262 = scmp.eq.s32.totalorder %s15, 0
    %p263 = por %p261, %p262
    %p264 = scmp.ne.s32.totalorder %s256, %s258
    %p265 = scmp.eq.s32.totalorder %s20, 7
    %p266 = por %p264, %p265
    %p267 = scmp.ne.s32.totalorder %s258, %s259
    %p268 = scmp.eq.s32.totalorder %s20, 0
    %p269 = por %p267, %p268
    %p270 = scmp.ne.s32.totalorder %s258, %s259
    %p271 = scmp.eq.s32.totalorder %s21, 7
    %p272 = por %p270, %p271
    %p274 = scmp.ne.s32.totalorder %s259, %s273
    %p275 = scmp.eq.s32.totalorder %s21, 0
    %p276 = por %p274, %p275
    %s278 = sadd.s32 %s277, 1
    %p281 = scmp.eq.s32.totalorder %s15, 7
    %p282 = scmp.ne.s32.totalorder %s277, %s279
    %p283 = scmp.eq.s32.totalorder %s15, 0
    %p284 = por %p282, %p283
    %p285 = scmp.ne.s32.totalorder %s277, %s279
    %p286 = scmp.eq.s32.totalorder %s20, 7
    %p287 = por %p285, %p286
    %p288 = scmp.ne.s32.totalorder %s279, %s280
    %p289 = scmp.eq.s32.totalorder %s20, 0
    %p290 = por %p288, %p289
    %p291 = scmp.ne.s32.totalorder %s279, %s280
    %p292 = scmp.eq.s32.totalorder %s21, 7
    %p293 = por %p291, %p292
    %p295 = scmp.ne.s32.totalorder %s280, %s294
    %p296 = scmp.eq.s32.totalorder %s21, 0
    %p297 = por %p295, %p296
    %s298 = ssub.s32 %s22, %s34
    %s299 = ssub.s32 %s23, %s30
    %s300 = sor.u32 %s298, %s299
    %p301 = scmp.eq.s32.totalorder %s300, 0
    %s303 = sadd.s32 %s302, 1
    %s304 = scalar_select %p301, %s302, %s303
    %p307 = pneg %p301
    %p308 = scmp.eq.s32.totalorder %s15, 7
    %p309 = por %p307, %p308
    %p310 = scmp.ne.s32.totalorder %s302, %s305
    %p311 = scmp.eq.s32.totalorder %s15, 0
    %p312 = por %p310, %p311
    %p313 = scmp.ne.s32.totalorder %s302, %s305
    %p314 = scmp.eq.s32.totalorder %s20, 7
    %p315 = por %p313, %p314
    %p316 = scmp.ne.s32.totalorder %s305, %s306
    %p317 = scmp.eq.s32.totalorder %s20, 0
    %p318 = por %p316, %p317
    %p319 = scmp.ne.s32.totalorder %s305, %s306
    %p320 = scmp.eq.s32.totalorder %s21, 7
    %p321 = por %p319, %p320
    %p323 = scmp.ne.s32.totalorder %s306, %s322
    %p324 = scmp.eq.s32.totalorder %s21, 0
    %p325 = por %p323, %p324
    %p326 = scmp.le.s32.totalorder 1, %s15
    %p327 = scmp.lt.s32.totalorder %s15, 9
    %p328 = pnand %p326, %p327
    %p329 = pneg %p328
    // Predicated region
    $region9: #{_lambda_.4} parent=5 // pred_check
      _
    $region10: #{_lambda_.4} parent=5 // pred_check_branch
      %331 = sbr.rel (%p328) target = $region12
    $region11: #{_lambda_.4} parent=5 // pred_region
      %s332 = ssub.s32 %s15, 1
      // Predicated region
      $region13: #{_lambda_.4} parent=11 // pred_check
        %p333 = pneg %p248
      $region14: #{_lambda_.4} parent=11 // pred_check_branch
        %335 = sbr.rel (%p333) target = $region16
      $region15: #{_lambda_.4} parent=11 // pred_region
        _
      $region16: #{_lambda_.4} parent=11 // pred_fallthru
        _
      // Predicated region
      $region17: #{_lambda_.4} parent=11 // pred_check
        %p336 = pneg %p269
      $region18: #{_lambda_.4} parent=11 // pred_check_branch
        %338 = sbr.rel (%p336) target = $region20
      $region19: #{_lambda_.4} parent=11 // pred_region
        _
      $region20: #{_lambda_.4} parent=11 // pred_fallthru
        _
      // Predicated region
      $region21: #{_lambda_.4} parent=11 // pred_check
        %p339 = pneg %p290
      $region22: #{_lambda_.4} parent=11 // pred_check_branch
        %341 = sbr.rel (%p339) target = $region24
      $region23: #{_lambda_.4} parent=11 // pred_region
        _
      $region24: #{_lambda_.4} parent=11 // pred_fallthru
        _
    $region12: #{_lambda_.4} parent=5 // pred_fallthru
      _
    %p342 = scmp.lt.s32.totalorder %s15, 8
    // Predicated region
    $region25: #{_lambda_.4} parent=5 // pred_check
      %p343 = pneg %p342
    $region26: #{_lambda_.4} parent=5 // pred_check_branch
      %345 = sbr.rel (%p343) target = $region28
    $region27: #{_lambda_.4} parent=5 // pred_region
      // Predicated region
      $region29: #{_lambda_.4} parent=27 // pred_check
        %p346 = pneg %p49
      $region30: #{_lambda_.4} parent=27 // pred_check_branch
        %348 = sbr.rel (%p346) target = $region32
      $region31: #{_lambda_.4} parent=27 // pred_region
        %s349 = smul.u32 4, %s23
        %p350 = scmp.lt.s32.totalorder %s22, 1
        %s351 = scalar_select %p350, %s22, 1
        %p352 = scmp.lt.s32.totalorder %s349, 15
        %s353 = scalar_select %p352, %s349, 15
        %s354 = smul.addr %s353, 2
        %s355 = smul.addr %s351, 32
        %s356 = sadd.s32 %s354, %s355
        %s357 = smul.addr %s356, 8
        %s358 = scalar_lea.vmem %s0, %s357
        %s359 = smul.u32 4, %s23
      $region32: #{_lambda_.4} parent=27 // pred_fallthru
        _
      // Predicated region
      $region33: #{_lambda_.4} parent=27 // pred_check
        %p360 = pneg %p85
      $region34: #{_lambda_.4} parent=27 // pred_check_branch
        %362 = sbr.rel (%p360) target = $region36
      $region35: #{_lambda_.4} parent=27 // pred_region
        %s363 = smul.u32 %s23, 4
        %s364 = ssub.s32 %s363, 1
        %p365 = scmp.gt.s32.totalorder %s364, 0
        %s366 = scalar_select %p365, %s364, 0
        %p367 = scmp.lt.s32.totalorder %s22, 1
        %s368 = scalar_select %p367, %s22, 1
        %p369 = scmp.lt.s32.totalorder %s366, 15
        %s370 = scalar_select %p369, %s366, 15
        %s371 = smul.addr %s370, 2
        %s372 = smul.addr %s368, 32
        %s373 = sadd.s32 %s371, %s372
        %s374 = smul.addr %s373, 8
        %s375 = scalar_lea.vmem %s1, %s374
        %s376 = smul.u32 %s23, 4
        %s377 = ssub.s32 %s376, 1
        %p378 = scmp.gt.s32.totalorder %s377, 0
        %s379 = scalar_select %p378, %s377, 0
      $region36: #{_lambda_.4} parent=27 // pred_fallthru
        _
      // Predicated region
      $region37: #{_lambda_.4} parent=27 // pred_check
        %p380 = pneg %p121
      $region38: #{_lambda_.4} parent=27 // pred_check_branch
        %382 = sbr.rel (%p380) target = $region40
      $region39: #{_lambda_.4} parent=27 // pred_region
        %s383 = smul.u32 %s23, 4
        %s384 = sadd.s32 %s383, 4
        %p385 = scmp.lt.s32.totalorder %s384, 15
        %s386 = scalar_select %p385, %s384, 15
        %p387 = scmp.lt.s32.totalorder %s22, 1
        %s388 = scalar_select %p387, %s22, 1
        %p389 = scmp.lt.s32.totalorder %s386, 15
        %s390 = scalar_select %p389, %s386, 15
        %s391 = smul.addr %s390, 2
        %s392 = smul.addr %s388, 32
        %s393 = sadd.s32 %s391, %s392
        %s394 = smul.addr %s393, 8
        %s395 = scalar_lea.vmem %s2, %s394
        %s396 = smul.u32 %s23, 4
        %s397 = sadd.s32 %s396, 4
        %p398 = scmp.lt.s32.totalorder %s397, 15
        %s399 = scalar_select %p398, %s397, 15
      $region40: #{_lambda_.4} parent=27 // pred_fallthru
        _
      // Predicated region
      $region41: #{_lambda_.4} parent=27 // pred_check
        %p400 = pneg %p149
      $region42: #{_lambda_.4} parent=27 // pred_check_branch
        %402 = sbr.rel (%p400) target = $region44
      $region43: #{_lambda_.4} parent=27 // pred_region
        %s403 = smul.u32 4, %s23
        %p404 = scmp.lt.s32.totalorder %s22, 1
        %s405 = scalar_select %p404, %s22, 1
        %p406 = scmp.lt.s32.totalorder %s403, 15
        %s407 = scalar_select %p406, %s403, 15
        %s408 = smul.addr %s407, 2
        %s409 = smul.addr %s405, 32
        %s410 = sadd.s32 %s408, %s409
        %s411 = smul.addr %s410, 8
        %s412 = scalar_lea.vmem %s3, %s411
        %s413 = smul.u32 4, %s23
      $region44: #{_lambda_.4} parent=27 // pred_fallthru
        _
      // Predicated region
      $region45: #{_lambda_.4} parent=27 // pred_check
        %p414 = pneg %p185
      $region46: #{_lambda_.4} parent=27 // pred_check_branch
        %416 = sbr.rel (%p414) target = $region48
      $region47: #{_lambda_.4} parent=27 // pred_region
        %s417 = smul.u32 %s23, 4
        %s418 = ssub.s32 %s417, 1
        %p419 = scmp.gt.s32.totalorder %s418, 0
        %s420 = scalar_select %p419, %s418, 0
        %p421 = scmp.lt.s32.totalorder %s22, 1
        %s422 = scalar_select %p421, %s22, 1
        %p423 = scmp.lt.s32.totalorder %s420, 15
        %s424 = scalar_select %p423, %s420, 15
        %s425 = smul.addr %s424, 2
        %s426 = smul.addr %s422, 32
        %s427 = sadd.s32 %s425, %s426
        %s428 = smul.addr %s427, 8
        %s429 = scalar_lea.vmem %s4, %s428
        %s430 = smul.u32 %s23, 4
        %s431 = ssub.s32 %s430, 1
        %p432 = scmp.gt.s32.totalorder %s431, 0
        %s433 = scalar_select %p432, %s431, 0
      $region48: #{_lambda_.4} parent=27 // pred_fallthru
        _
      // Predicated region
      $region49: #{_lambda_.4} parent=27 // pred_check
        %p434 = pneg %p221
      $region50: #{_lambda_.4} parent=27 // pred_check_branch
        %436 = sbr.rel (%p434) target = $region52
      $region51: #{_lambda_.4} parent=27 // pred_region
        %s437 = smul.u32 %s23, 4
        %s438 = sadd.s32 %s437, 4
        %p439 = scmp.lt.s32.totalorder %s438, 15
        %s440 = scalar_select %p439, %s438, 15
        %p441 = scmp.lt.s32.totalorder %s22, 1
        %s442 = scalar_select %p441, %s22, 1
        %p443 = scmp.lt.s32.totalorder %s440, 15
        %s444 = scalar_select %p443, %s440, 15
        %s445 = smul.addr %s444, 2
        %s446 = smul.addr %s442, 32
        %s447 = sadd.s32 %s445, %s446
        %s448 = smul.addr %s447, 8
        %s449 = scalar_lea.vmem %s5, %s448
        %s450 = smul.u32 %s23, 4
        %s451 = sadd.s32 %s450, 4
        %p452 = scmp.lt.s32.totalorder %s451, 15
        %s453 = scalar_select %p452, %s451, 15
      $region52: #{_lambda_.4} parent=27 // pred_fallthru
        _
    $region28: #{_lambda_.4} parent=5 // pred_fallthru
      _
    %p454 = scmp.le.s32.totalorder 1, %s15
    %p455 = scmp.lt.s32.totalorder %s15, 9
    %p456 = pnand %p454, %p455
    %p457 = pneg %p456
    // Predicated region
    $region53: #{_lambda_.4} parent=5 // pred_check
      _
    $region54: #{_lambda_.4} parent=5 // pred_check_branch
      %459 = sbr.rel (%p456) target = $region56
    $region55: #{_lambda_.4} parent=5 // pred_region
      %s460 = ssub.s32 %s15, 1
      %s461 = smul.u32 4, %s25
      %p462 = scmp.lt.s32.totalorder %s24, 1
      %s463 = scalar_select %p462, %s24, 1
      %p464 = scmp.lt.s32.totalorder %s461, 15
      %s465 = scalar_select %p464, %s461, 15
      %s466 = smul.addr %s465, 2
      %s467 = smul.addr %s463, 32
      %s468 = sadd.s32 %s466, %s467
      %s469 = smul.addr %s468, 8
      %s470 = scalar_lea.vmem %s0, %s469
      %p471 = pneg %p55
      %p472 = pneg %p52
      %s473 = smul.u32 %s25, 4
      %s474 = ssub.s32 %s473, 1
      %p475 = scmp.gt.s32.totalorder %s474, 0
      %s476 = scalar_select %p475, %s474, 0
      %p477 = scmp.lt.s32.totalorder %s24, 1
      %s478 = scalar_select %p477, %s24, 1
      %p479 = scmp.lt.s32.totalorder %s476, 15
      %s480 = scalar_select %p479, %s476, 15
      %s481 = smul.addr %s480, 2
      %s482 = smul.addr %s478, 32
      %s483 = sadd.s32 %s481, %s482
      %s484 = smul.addr %s483, 8
      %s485 = scalar_lea.vmem %s1, %s484
      %p486 = pneg %p91
      %p487 = pneg %p88
      %s488 = smul.u32 %s25, 4
      %s489 = sadd.s32 %s488, 4
      %p490 = scmp.lt.s32.totalorder %s489, 15
      %s491 = scalar_select %p490, %s489, 15
      %p492 = scmp.lt.s32.totalorder %s24, 1
      %s493 = scalar_select %p492, %s24, 1
      %p494 = scmp.lt.s32.totalorder %s491, 15
      %s495 = scalar_select %p494, %s491, 15
      %s496 = smul.addr %s495, 2
      %s497 = smul.addr %s493, 32
      %s498 = sadd.s32 %s496, %s497
      %s499 = smul.addr %s498, 8
      %s500 = scalar_lea.vmem %s2, %s499
      %p501 = pneg %p127
      %p502 = pneg %p124
      %s503 = smul.u32 4, %s25
      %p504 = scmp.lt.s32.totalorder %s24, 1
      %s505 = scalar_select %p504, %s24, 1
      %p506 = scmp.lt.s32.totalorder %s503, 15
      %s507 = scalar_select %p506, %s503, 15
      %s508 = smul.addr %s507, 2
      %s509 = smul.addr %s505, 32
      %s510 = sadd.s32 %s508, %s509
      %s511 = smul.addr %s510, 8
      %s512 = scalar_lea.vmem %s3, %s511
      %p513 = pneg %p155
      %p514 = pneg %p152
      %s515 = smul.u32 %s25, 4
      %s516 = ssub.s32 %s515, 1
      %p517 = scmp.gt.s32.totalorder %s516, 0
      %s518 = scalar_select %p517, %s516, 0
      %p519 = scmp.lt.s32.totalorder %s24, 1
      %s520 = scalar_select %p519, %s24, 1
      %p521 = scmp.lt.s32.totalorder %s518, 15
      %s522 = scalar_select %p521, %s518, 15
      %s523 = smul.addr %s522, 2
      %s524 = smul.addr %s520, 32
      %s525 = sadd.s32 %s523, %s524
      %s526 = smul.addr %s525, 8
      %s527 = scalar_lea.vmem %s4, %s526
      %p528 = pneg %p191
      %p529 = pneg %p188
      %s530 = smul.u32 %s25, 4
      %s531 = sadd.s32 %s530, 4
      %p532 = scmp.lt.s32.totalorder %s531, 15
      %s533 = scalar_select %p532, %s531, 15
      %p534 = scmp.lt.s32.totalorder %s24, 1
      %s535 = scalar_select %p534, %s24, 1
      %p536 = scmp.lt.s32.totalorder %s533, 15
      %s537 = scalar_select %p536, %s533, 15
      %s538 = smul.addr %s537, 2
      %s539 = smul.addr %s535, 32
      %s540 = sadd.s32 %s538, %s539
      %s541 = smul.addr %s540, 8
      %s542 = scalar_lea.vmem %s5, %s541
      %p543 = pneg %p227
      %p544 = pneg %p224
      %p545 = pneg %p248
      %p546 = pneg %p245
      %p547 = pneg %p269
      %p548 = pneg %p266
      %p549 = pneg %p290
      %p550 = pneg %p287
      %p551 = pneg %p318
      %p552 = pneg %p315
      %s553 = smul.u32 4, %s25
      %p554 = scmp.lt.s32.totalorder %s24, 1
      %s555 = scalar_select %p554, %s24, 1
      %p556 = scmp.lt.s32.totalorder %s553, 15
      %s557 = scalar_select %p556, %s553, 15
      %s558 = smul.addr %s557, 2
      %s559 = smul.addr %s555, 32
      %s560 = sadd.s32 %s558, %s559
      %s561 = smul.addr %s560, 8
      %s562 = scalar_lea.vmem %s9, %s561
      %s563 = smul.u32 4, %s25
      %p564 = scmp.lt.s32.totalorder %s24, 1
      %s565 = scalar_select %p564, %s24, 1
      %p566 = scmp.lt.s32.totalorder %s563, 15
      %s567 = scalar_select %p566, %s563, 15
      %s568 = smul.addr %s567, 2
      %s569 = smul.addr %s565, 32
      %s570 = sadd.s32 %s568, %s569
      %s571 = smul.addr %s570, 8
      %s572 = scalar_lea.vmem %s0, %s571
      %s573 = smul.u32 4, %s25
      %s574 = smul.u32 %s25, 4
      %s575 = ssub.s32 %s574, 1
      %p576 = scmp.gt.s32.totalorder %s575, 0
      %s577 = scalar_select %p576, %s575, 0
      %p578 = scmp.lt.s32.totalorder %s24, 1
      %s579 = scalar_select %p578, %s24, 1
      %p580 = scmp.lt.s32.totalorder %s577, 15
      %s581 = scalar_select %p580, %s577, 15
      %s582 = smul.addr %s581, 2
      %s583 = smul.addr %s579, 32
      %s584 = sadd.s32 %s582, %s583
      %s585 = smul.addr %s584, 8
      %s586 = scalar_lea.vmem %s1, %s585
      %s587 = smul.u32 %s25, 4
      %s588 = ssub.s32 %s587, 1
      %p589 = scmp.gt.s32.totalorder %s588, 0
      %s590 = scalar_select %p589, %s588, 0
      %s591 = smul.u32 %s25, 4
      %s592 = sadd.s32 %s591, 4
      %p593 = scmp.lt.s32.totalorder %s592, 15
      %s594 = scalar_select %p593, %s592, 15
      %p595 = scmp.lt.s32.totalorder %s24, 1
      %s596 = scalar_select %p595, %s24, 1
      %p597 = scmp.lt.s32.totalorder %s594, 15
      %s598 = scalar_select %p597, %s594, 15
      %s599 = smul.addr %s598, 2
      %s600 = smul.addr %s596, 32
      %s601 = sadd.s32 %s599, %s600
      %s602 = smul.addr %s601, 8
      %s603 = scalar_lea.vmem %s2, %s602
      %s604 = smul.u32 %s25, 4
      %s605 = sadd.s32 %s604, 4
      %p606 = scmp.lt.s32.totalorder %s605, 15
      %s607 = scalar_select %p606, %s605, 15
      %s608 = smul.u32 4, %s25
      %p609 = scmp.lt.s32.totalorder %s24, 1
      %s610 = scalar_select %p609, %s24, 1
      %p611 = scmp.lt.s32.totalorder %s608, 15
      %s612 = scalar_select %p611, %s608, 15
      %s613 = smul.addr %s612, 2
      %s614 = smul.addr %s610, 32
      %s615 = sadd.s32 %s613, %s614
      %s616 = smul.addr %s615, 8
      %s617 = scalar_lea.vmem %s3, %s616
      %s618 = smul.u32 4, %s25
      %s619 = smul.u32 %s25, 4
      %s620 = ssub.s32 %s619, 1
      %p621 = scmp.gt.s32.totalorder %s620, 0
      %s622 = scalar_select %p621, %s620, 0
      %p623 = scmp.lt.s32.totalorder %s24, 1
      %s624 = scalar_select %p623, %s24, 1
      %p625 = scmp.lt.s32.totalorder %s622, 15
      %s626 = scalar_select %p625, %s622, 15
      %s627 = smul.addr %s626, 2
      %s628 = smul.addr %s624, 32
      %s629 = sadd.s32 %s627, %s628
      %s630 = smul.addr %s629, 8
      %s631 = scalar_lea.vmem %s4, %s630
      %s632 = smul.u32 %s25, 4
      %s633 = ssub.s32 %s632, 1
      %p634 = scmp.gt.s32.totalorder %s633, 0
      %s635 = scalar_select %p634, %s633, 0
      %s636 = smul.u32 %s25, 4
      %s637 = sadd.s32 %s636, 4
      %p638 = scmp.lt.s32.totalorder %s637, 15
      %s639 = scalar_select %p638, %s637, 15
      %p640 = scmp.lt.s32.totalorder %s24, 1
      %s641 = scalar_select %p640, %s24, 1
      %p642 = scmp.lt.s32.totalorder %s639, 15
      %s643 = scalar_select %p642, %s639, 15
      %s644 = smul.addr %s643, 2
      %s645 = smul.addr %s641, 32
      %s646 = sadd.s32 %s644, %s645
      %s647 = smul.addr %s646, 8
      %s648 = scalar_lea.vmem %s5, %s647
      %s649 = smul.u32 %s25, 4
      %s650 = sadd.s32 %s649, 4
      %p651 = scmp.lt.s32.totalorder %s650, 15
      %s652 = scalar_select %p651, %s650, 15
      %s653 = smul.u32 4, %s25
      %p654 = scmp.lt.s32.totalorder %s24, 1
      %s655 = scalar_select %p654, %s24, 1
      %p656 = scmp.lt.s32.totalorder %s653, 15
      %s657 = scalar_select %p656, %s653, 15
      %s658 = smul.addr %s657, 2
      %s659 = smul.addr %s655, 32
      %s660 = sadd.s32 %s658, %s659
      %s661 = smul.addr %s660, 8
      %s662 = scalar_lea.vmem %s9, %s661
      %s663 = smul.u32 4, %s25
      %p664 = scmp.gt.s32.totalorder %s25, 0
      %s665 = scalar_select %p664, 1, 0
      %s666 = scvt.s32.f32 %s665
      %p667 = scmp.lt.s32.totalorder %s25, 3
      %s668 = scalar_select %p667, 1, 0
      %s669 = scvt.s32.f32 %s668
      %v670 = vld [vmem:[%s8] sm:$0x1]
      %v672 = vlaneseq
      %v673 = vshrl.u32 %v672, 7
      %v674 = vsub.s32 0, %v673
      %v675 = vrot.slane %v670, %v674
      %v677 = vadd.f32 %v675, 0.0
      %vm678 = vcmask 24576
      %679 = vst.msk [vmem:[#allocation2] sm:$0x1] %vm678, 0.0
      %v680 = vld [vmem:[%s586] sm:$0xff]
      %v681 = vld [vmem:[%s586 + $0x8] sm:$0xff]
      %v682 = vstv %s666
      %v683 = vmul.f32 %v680, %v682
      %v684 = vmul.f32 %v681, %v682
      %vm685 = vcmask 31744
      %686 = vst.msk [vmem:[#allocation2 + $0x1] sm:$0xff] %vm685, %v683
      %687 = vst.msk [vmem:[#allocation2 + $0x9] sm:$0xff] %vm685, %v684
      %v688 = vld [vmem:[%s572] sm:$0xff]
      %v689 = vld [vmem:[%s572 + $0x8] sm:$0xff]
      %v690 = vld [vmem:[%s572 + $0x10] sm:$0xff]
      %v691 = vld [vmem:[%s572 + $0x18] sm:$0xff]
      %v692 = vld [vmem:[%s572 + $0x20] sm:$0xff]
      %v693 = vld [vmem:[%s572 + $0x28] sm:$0xff]
      %v694 = vld [vmem:[%s572 + $0x30] sm:$0xff]
      %v695 = vld [vmem:[%s572 + $0x38] sm:$0xff]
      %696 = vst.msk [vmem:[#allocation2 + $0x11] sm:$0xff] %vm685, %v688
      %697 = vst.msk [vmem:[#allocation2 + $0x19] sm:$0xff] %vm685, %v689
      %698 = vst.msk [vmem:[#allocation2 + $0x21] sm:$0xff] %vm685, %v690
      %699 = vst.msk [vmem:[#allocation2 + $0x29] sm:$0xff] %vm685, %v691
      %700 = vst.msk [vmem:[#allocation2 + $0x31] sm:$0xff] %vm685, %v692
      %701 = vst.msk [vmem:[#allocation2 + $0x39] sm:$0xff] %vm685, %v693
      %702 = vst.msk [vmem:[#allocation2 + $0x41] sm:$0xff] %vm685, %v694
      %703 = vst.msk [vmem:[#allocation2 + $0x49] sm:$0xff] %vm685, %v695
      %v704 = vld [vmem:[%s603] sm:$0xff]
      %v705 = vld [vmem:[%s603 + $0x8] sm:$0xff]
      %v706 = vstv %s669
      %v707 = vmul.f32 %v704, %v706
      %v708 = vmul.f32 %v705, %v706
      %709 = vst.msk [vmem:[#allocation2 + $0x51] sm:$0xff] %vm685, %v707
      %710 = vst.msk [vmem:[#allocation2 + $0x59] sm:$0xff] %vm685, %v708
      %711 = vst.msk [vmem:[#allocation2 + $0x61] sm:$0x1] %vm678, 0.0
      %v712 = vld [vmem:[#allocation2] sm:$0xff]
      %v713 = vld [vmem:[#allocation2 + $0x8] sm:$0xff]
      %v714 = vld [vmem:[#allocation2 + $0x10] sm:$0xff]
      %v715 = vld [vmem:[#allocation2 + $0x18] sm:$0xff]
      %v716 = vld [vmem:[#allocation2 + $0x20] sm:$0xff]
      %v717 = vld [vmem:[#allocation2 + $0x28] sm:$0xff]
      %v718 = vld [vmem:[#allocation2 + $0x30] sm:$0xff]
      %v719 = vld [vmem:[#allocation2 + $0x38] sm:$0xff]
      %v720 = vld [vmem:[%s6] sm:$0xf]
      %v721 = vld [vmem:[#allocation2 + $0x1] sm:$0xff]
      %v722 = vld [vmem:[#allocation2 + $0x9] sm:$0xff]
      %v723 = vld [vmem:[#allocation2 + $0x11] sm:$0xff]
      %v724 = vld [vmem:[#allocation2 + $0x19] sm:$0xff]
      %v725 = vld [vmem:[#allocation2 + $0x21] sm:$0xff]
      %v726 = vld [vmem:[#allocation2 + $0x29] sm:$0xff]
      %v727 = vld [vmem:[#allocation2 + $0x31] sm:$0xff]
      %v728 = vld [vmem:[#allocation2 + $0x39] sm:$0xff]
      %s729 = scalar_lea.vmem %s6, 4
      %v730 = vld [vmem:[%s729] sm:$0xf]
      %v732 = vsel %vm685, %v721, 0
      %v735 = vsel %vm685, %v722, 0
      %v738 = vsel %vm685, %v723, 0
      %v741 = vsel %vm685, %v724, 0
      %v744 = vsel %vm685, %v725, 0
      %v747 = vsel %vm685, %v726, 0
      %v750 = vsel %vm685, %v727, 0
      %v753 = vsel %vm685, %v728, 0
      %vm755 = vcmask 1043456
      %v757 = vsel %vm755, %v730, 0
      %759 = vmatprep.subr.mxu0 0.0
      %760 = vmatpush1.msra.mxu0 0.0
      %761 = vmatprep.subr.mxu0 0.0
      %762 = vmatpush1.msra.mxu0 0.0
      %763 = vmatprep.subr.mxu0 0.0
      %764 = vmatpush1.msra.mxu0 0.0
      %765 = vmatprep.subr.mxu0 0.0
      %766 = vmatpush1.msra.mxu0 0.0
      %767 = vmatprep.subr.mxu0 0.0
      %768 = vmatpush1.msra.mxu0 0.0
      %769 = vmatprep.subr.mxu0 0.0
      %770 = vmatpush1.msra.mxu0 0.0
      %771 = vmatprep.subr.mxu0 0.0
      %772 = vmatpush1.msra.mxu0 0.0
      %773 = vmatprep.subr.mxu0 0.0
      %774 = vmatpush1.msra.mxu0 0.0
      %775 = vmatprep.subr.mxu0 0.0
      %776 = vmatpush1.msra.mxu0 0.0
      %777 = vmatprep.subr.mxu0 0.0
      %778 = vmatpush1.msra.mxu0 0.0
      %779 = vmatprep.subr.mxu0 0.0
      %780 = vmatpush1.msra.mxu0 0.0
      %781 = vmatprep.subr.mxu0 0.0
      %782 = vmatpush1.msra.mxu0 0.0
      %783 = vmatprep.subr.mxu0 0.0
      %784 = vmatpush1.msra.mxu0 0.0
      %785 = vmatprep.subr.mxu0 0.0
      %786 = vmatpush1.msra.mxu0 0.0
      %787 = vmatprep.subr.mxu0 0.0
      %788 = vmatpush1.msra.mxu0 0.0
      %789 = vmatprep.subr.mxu0 0.0
      %790 = vmatpush1.msra.mxu0 %v757
      %791 = vmatprep.subr.mxu0 0.0
      %792 = vmatpush2.msra.mxu0 0.0
      %793 = vmatprep.subr.mxu0 0.0
      %794 = vmatpush2.msra.mxu0 0.0
      %795 = vmatprep.subr.mxu0 0.0
      %796 = vmatpush2.msra.mxu0 0.0
      %797 = vmatprep.subr.mxu0 0.0
      %798 = vmatpush2.msra.mxu0 0.0
      %799 = vmatprep.subr.mxu0 0.0
      %800 = vmatpush2.msra.mxu0 0.0
      %801 = vmatprep.subr.mxu0 0.0
      %802 = vmatpush2.msra.mxu0 0.0
      %803 = vmatprep.subr.mxu0 0.0
      %804 = vmatpush2.msra.mxu0 0.0
      %805 = vmatprep.subr.mxu0 0.0
      %806 = vmatpush2.msra.mxu0 0.0
      %807 = vmatprep.subr.mxu0 0.0
      %808 = vmatpush2.msra.mxu0 0.0
      %809 = vmatprep.subr.mxu0 0.0
      %810 = vmatpush2.msra.mxu0 0.0
      %811 = vmatprep.subr.mxu0 0.0
      %812 = vmatpush2.msra.mxu0 0.0
      %813 = vmatprep.subr.mxu0 0.0
      %814 = vmatpush2.msra.mxu0 0.0
      %815 = vmatprep.subr.mxu0 0.0
      %816 = vmatpush2.msra.mxu0 0.0
      %817 = vmatprep.subr.mxu0 0.0
      %818 = vmatpush2.msra.mxu0 0.0
      %819 = vmatprep.subr.mxu0 0.0
      %820 = vmatpush2.msra.mxu0 0.0
      %821 = vmatprep.subr.mxu0 0.0
      %822 = vmatpush2.msra.mxu0 0.0
      %823 = vmatprep.mubr.f32.mxu0 0.0
      %824 = vmatmul.mubr.f32.gmra.mxu0 %v732
      %v825 = vpop.f32.mrf.mxu0
      %v826 = vadd.f32 0.0, %v825
      %v827 = vpop.f32.mrf.mxu0
      %828 = vmatprep.mubr.f32.mxu0 0.0
      %829 = vmatmul.mubr.f32.gmra.mxu0 %v735
      %v830 = vpop.f32.mrf.mxu0
      %v831 = vadd.f32 0.0, %v830
      %v832 = vpop.f32.mrf.mxu0
      %833 = vmatprep.mubr.f32.mxu0 0.0
      %834 = vmatmul.mubr.f32.gmra.mxu0 %v738
      %v835 = vpop.f32.mrf.mxu0
      %v836 = vadd.f32 0.0, %v835
      %v837 = vpop.f32.mrf.mxu0
      %838 = vmatprep.mubr.f32.mxu0 0.0
      %839 = vmatmul.mubr.f32.gmra.mxu0 %v741
      %v840 = vpop.f32.mrf.mxu0
      %v841 = vadd.f32 0.0, %v840
      %v842 = vpop.f32.mrf.mxu0
      %843 = vmatprep.mubr.f32.mxu0 0.0
      %844 = vmatmul.mubr.f32.gmra.mxu0 %v744
      %v845 = vpop.f32.mrf.mxu0
      %v846 = vadd.f32 0.0, %v845
      %v847 = vpop.f32.mrf.mxu0
      %848 = vmatprep.mubr.f32.mxu0 0.0
      %849 = vmatmul.mubr.f32.gmra.mxu0 %v747
      %v850 = vpop.f32.mrf.mxu0
      %v851 = vadd.f32 0.0, %v850
      %v852 = vpop.f32.mrf.mxu0
      %853 = vmatprep.mubr.f32.mxu0 0.0
      %854 = vmatmul.mubr.f32.gmra.mxu0 %v750
      %v855 = vpop.f32.mrf.mxu0
      %v856 = vadd.f32 0.0, %v855
      %v857 = vpop.f32.mrf.mxu0
      %858 = vmatprep.mubr.f32.mxu0 0.0
      %859 = vmatmul.mubr.f32.gmra.mxu0 %v753
      %v860 = vpop.f32.mrf.mxu0
      %v861 = vadd.f32 0.0, %v860
      %v862 = vpop.f32.mrf.mxu0
      %863 = vdwg.mxu0
      %v864 = vadd.f32 %v677, %v826
      %v865 = vadd.f32 %v677, %v831
      %v866 = vadd.f32 %v677, %v836
      %v867 = vadd.f32 %v677, %v841
      %v868 = vadd.f32 %v677, %v846
      %v869 = vadd.f32 %v677, %v851
      %v870 = vadd.f32 %v677, %v856
      %v871 = vadd.f32 %v677, %v861
      %v872 = vld [vmem:[#allocation2 + $0x2] sm:$0xff]
      %v873 = vld [vmem:[#allocation2 + $0xa] sm:$0xff]
      %v874 = vld [vmem:[#allocation2 + $0x12] sm:$0xff]
      %v875 = vld [vmem:[#allocation2 + $0x1a] sm:$0xff]
      %v876 = vld [vmem:[#allocation2 + $0x22] sm:$0xff]
      %v877 = vld [vmem:[#allocation2 + $0x2a] sm:$0xff]
      %v878 = vld [vmem:[#allocation2 + $0x32] sm:$0xff]
      %v879 = vld [vmem:[#allocation2 + $0x3a] sm:$0xff]
      %s880 = scalar_lea.vmem %s6, 8
      %v881 = vld [vmem:[%s880] sm:$0xf]
      %v882 = vld [vmem:[#allocation2 + $0x10] sm:$0xff]
      %v883 = vld [vmem:[#allocation2 + $0x18] sm:$0xff]
      %v884 = vld [vmem:[#allocation2 + $0x20] sm:$0xff]
      %v885 = vld [vmem:[#allocation2 + $0x28] sm:$0xff]
      %v886 = vld [vmem:[#allocation2 + $0x30] sm:$0xff]
      %v887 = vld [vmem:[#allocation2 + $0x38] sm:$0xff]
      %v888 = vld [vmem:[#allocation2 + $0x40] sm:$0xff]
      %v889 = vld [vmem:[#allocation2 + $0x48] sm:$0xff]
      %s890 = scalar_lea.vmem %s6, 12
      %v891 = vld [vmem:[%s890] sm:$0xf]
      %v893 = vsel %vm685, %v882, 0
      %v896 = vsel %vm685, %v883, 0
      %v899 = vsel %vm685, %v884, 0
      %v902 = vsel %vm685, %v885, 0
      %v905 = vsel %vm685, %v886, 0
      %v908 = vsel %vm685, %v887, 0
      %v911 = vsel %vm685, %v888, 0
      %v914 = vsel %vm685, %v889, 0
      %v917 = vsel %vm755, %v891, 0
      %919 = vmatprep.subr.mxu0 0.0
      %920 = vmatpush1.msra.mxu0 0.0
      %921 = vmatprep.subr.mxu0 0.0
      %922 = vmatpush1.msra.mxu0 0.0
      %923 = vmatprep.subr.mxu0 0.0
      %924 = vmatpush1.msra.mxu0 0.0
      %925 = vmatprep.subr.mxu0 0.0
      %926 = vmatpush1.msra.mxu0 0.0
      %927 = vmatprep.subr.mxu0 0.0
      %928 = vmatpush1.msra.mxu0 0.0
      %929 = vmatprep.subr.mxu0 0.0
      %930 = vmatpush1.msra.mxu0 0.0
      %931 = vmatprep.subr.mxu0 0.0
      %932 = vmatpush1.msra.mxu0 0.0
      %933 = vmatprep.subr.mxu0 0.0
      %934 = vmatpush1.msra.mxu0 0.0
      %935 = vmatprep.subr.mxu0 0.0
      %936 = vmatpush1.msra.mxu0 0.0
      %937 = vmatprep.subr.mxu0 0.0
      %938 = vmatpush1.msra.mxu0 0.0
      %939 = vmatprep.subr.mxu0 0.0
      %940 = vmatpush1.msra.mxu0 0.0
      %941 = vmatprep.subr.mxu0 0.0
      %942 = vmatpush1.msra.mxu0 0.0
      %943 = vmatprep.subr.mxu0 0.0
      %944 = vmatpush1.msra.mxu0 0.0
      %945 = vmatprep.subr.mxu0 0.0
      %946 = vmatpush1.msra.mxu0 0.0
      %947 = vmatprep.subr.mxu0 0.0
      %948 = vmatpush1.msra.mxu0 0.0
      %949 = vmatprep.subr.mxu0 0.0
      %950 = vmatpush1.msra.mxu0 %v917
      %951 = vmatprep.subr.mxu0 0.0
      %952 = vmatpush2.msra.mxu0 0.0
      %953 = vmatprep.subr.mxu0 0.0
      %954 = vmatpush2.msra.mxu0 0.0
      %955 = vmatprep.subr.mxu0 0.0
      %956 = vmatpush2.msra.mxu0 0.0
      %957 = vmatprep.subr.mxu0 0.0
      %958 = vmatpush2.msra.mxu0 0.0
      %959 = vmatprep.subr.mxu0 0.0
      %960 = vmatpush2.msra.mxu0 0.0
      %961 = vmatprep.subr.mxu0 0.0
      %962 = vmatpush2.msra.mxu0 0.0
      %963 = vmatprep.subr.mxu0 0.0
      %964 = vmatpush2.msra.mxu0 0.0
      %965 = vmatprep.subr.mxu0 0.0
      %966 = vmatpush2.msra.mxu0 0.0
      %967 = vmatprep.subr.mxu0 0.0
      %968 = vmatpush2.msra.mxu0 0.0
      %969 = vmatprep.subr.mxu0 0.0
      %970 = vmatpush2.msra.mxu0 0.0
      %971 = vmatprep.subr.mxu0 0.0
      %972 = vmatpush2.msra.mxu0 0.0
      %973 = vmatprep.subr.mxu0 0.0
      %974 = vmatpush2.msra.mxu0 0.0
      %975 = vmatprep.subr.mxu0 0.0
      %976 = vmatpush2.msra.mxu0 0.0
      %977 = vmatprep.subr.mxu0 0.0
      %978 = vmatpush2.msra.mxu0 0.0
      %979 = vmatprep.subr.mxu0 0.0
      %980 = vmatpush2.msra.mxu0 0.0
      %981 = vmatprep.subr.mxu0 0.0
      %982 = vmatpush2.msra.mxu0 0.0
      %983 = vmatprep.mubr.f32.mxu0 0.0
      %984 = vmatmul.mubr.f32.gmra.mxu0 %v893
      %v985 = vpop.f32.mrf.mxu0
      %v986 = vadd.f32 0.0, %v985
      %v987 = vpop.f32.mrf.mxu0
      %988 = vmatprep.mubr.f32.mxu0 0.0
      %989 = vmatmul.mubr.f32.gmra.mxu0 %v896
      %v990 = vpop.f32.mrf.mxu0
      %v991 = vadd.f32 0.0, %v990
      %v992 = vpop.f32.mrf.mxu0
      %993 = vmatprep.mubr.f32.mxu0 0.0
      %994 = vmatmul.mubr.f32.gmra.mxu0 %v899
      %v995 = vpop.f32.mrf.mxu0
      %v996 = vadd.f32 0.0, %v995
      %v997 = vpop.f32.mrf.mxu0
      %998 = vmatprep.mubr.f32.mxu0 0.0
      %999 = vmatmul.mubr.f32.gmra.mxu0 %v902
      %v1000 = vpop.f32.mrf.mxu0
      %v1001 = vadd.f32 0.0, %v1000
      %v1002 = vpop.f32.mrf.mxu0
      %1003 = vmatprep.mubr.f32.mxu0 0.0
      %1004 = vmatmul.mubr.f32.gmra.mxu0 %v905
      %v1005 = vpop.f32.mrf.mxu0
      %v1006 = vadd.f32 0.0, %v1005
      %v1007 = vpop.f32.mrf.mxu0
      %1008 = vmatprep.mubr.f32.mxu0 0.0
      %1009 = vmatmul.mubr.f32.gmra.mxu0 %v908
      %v1010 = vpop.f32.mrf.mxu0
      %v1011 = vadd.f32 0.0, %v1010
      %v1012 = vpop.f32.mrf.mxu0
      %1013 = vmatprep.mubr.f32.mxu0 0.0
      %1014 = vmatmul.mubr.f32.gmra.mxu0 %v911
      %v1015 = vpop.f32.mrf.mxu0
      %v1016 = vadd.f32 0.0, %v1015
      %v1017 = vpop.f32.mrf.mxu0
      %1018 = vmatprep.mubr.f32.mxu0 0.0
      %1019 = vmatmul.mubr.f32.gmra.mxu0 %v914
      %v1020 = vpop.f32.mrf.mxu0
      %v1021 = vadd.f32 0.0, %v1020
      %v1022 = vpop.f32.mrf.mxu0
      %1023 = vdwg.mxu0
      %v1025 = vsel %vm685, %v712, 0
      %v1028 = vsel %vm685, %v713, 0
      %v1031 = vsel %vm685, %v714, 0
      %v1034 = vsel %vm685, %v715, 0
      %v1037 = vsel %vm685, %v716, 0
      %v1040 = vsel %vm685, %v717, 0
      %v1043 = vsel %vm685, %v718, 0
      %v1046 = vsel %vm685, %v719, 0
      %v1049 = vsel %vm755, %v720, 0
      %1051 = vmatprep.subr.mxu0 0.0
      %1052 = vmatpush1.msra.mxu0 0.0
      %1053 = vmatprep.subr.mxu0 0.0
      %1054 = vmatpush1.msra.mxu0 0.0
      %1055 = vmatprep.subr.mxu0 0.0
      %1056 = vmatpush1.msra.mxu0 0.0
      %1057 = vmatprep.subr.mxu0 0.0
      %1058 = vmatpush1.msra.mxu0 0.0
      %1059 = vmatprep.subr.mxu0 0.0
      %1060 = vmatpush1.msra.mxu0 0.0
      %1061 = vmatprep.subr.mxu0 0.0
      %1062 = vmatpush1.msra.mxu0 0.0
      %1063 = vmatprep.subr.mxu0 0.0
      %1064 = vmatpush1.msra.mxu0 0.0
      %1065 = vmatprep.subr.mxu0 0.0
      %1066 = vmatpush1.msra.mxu0 0.0
      %1067 = vmatprep.subr.mxu0 0.0
      %1068 = vmatpush1.msra.mxu0 0.0
      %1069 = vmatprep.subr.mxu0 0.0
      %1070 = vmatpush1.msra.mxu0 0.0
      %1071 = vmatprep.subr.mxu0 0.0
      %1072 = vmatpush1.msra.mxu0 0.0
      %1073 = vmatprep.subr.mxu0 0.0
      %1074 = vmatpush1.msra.mxu0 0.0
      %1075 = vmatprep.subr.mxu0 0.0
      %1076 = vmatpush1.msra.mxu0 0.0
      %1077 = vmatprep.subr.mxu0 0.0
      %1078 = vmatpush1.msra.mxu0 0.0
      %1079 = vmatprep.subr.mxu0 0.0
      %1080 = vmatpush1.msra.mxu0 0.0
      %1081 = vmatprep.subr.mxu0 0.0
      %1082 = vmatpush1.msra.mxu0 %v1049
      %1083 = vmatprep.subr.mxu0 0.0
      %1084 = vmatpush2.msra.mxu0 0.0
      %1085 = vmatprep.subr.mxu0 0.0
      %1086 = vmatpush2.msra.mxu0 0.0
      %1087 = vmatprep.subr.mxu0 0.0
      %1088 = vmatpush2.msra.mxu0 0.0
      %1089 = vmatprep.subr.mxu0 0.0
      %1090 = vmatpush2.msra.mxu0 0.0
      %1091 = vmatprep.subr.mxu0 0.0
      %1092 = vmatpush2.msra.mxu0 0.0
      %1093 = vmatprep.subr.mxu0 0.0
      %1094 = vmatpush2.msra.mxu0 0.0
      %1095 = vmatprep.subr.mxu0 0.0
      %1096 = vmatpush2.msra.mxu0 0.0
      %1097 = vmatprep.subr.mxu0 0.0
      %1098 = vmatpush2.msra.mxu0 0.0
      %1099 = vmatprep.subr.mxu0 0.0
      %1100 = vmatpush2.msra.mxu0 0.0
      %1101 = vmatprep.subr.mxu0 0.0
      %1102 = vmatpush2.msra.mxu0 0.0
      %1103 = vmatprep.subr.mxu0 0.0
      %1104 = vmatpush2.msra.mxu0 0.0
      %1105 = vmatprep.subr.mxu0 0.0
      %1106 = vmatpush2.msra.mxu0 0.0
      %1107 = vmatprep.subr.mxu0 0.0
      %1108 = vmatpush2.msra.mxu0 0.0
      %1109 = vmatprep.subr.mxu0 0.0
      %1110 = vmatpush2.msra.mxu0 0.0
      %1111 = vmatprep.subr.mxu0 0.0
      %1112 = vmatpush2.msra.mxu0 0.0
      %1113 = vmatprep.subr.mxu0 0.0
      %1114 = vmatpush2.msra.mxu0 0.0
      %1115 = vmatprep.mubr.f32.mxu0 0.0
      %1116 = vmatmul.mubr.f32.gmra.mxu0 %v1025
      %v1117 = vpop.f32.mrf.mxu0
      %v1118 = vadd.f32 %v986, %v1117
      %v1119 = vpop.f32.mrf.mxu0
      %1120 = vmatprep.mubr.f32.mxu0 0.0
      %1121 = vmatmul.mubr.f32.gmra.mxu0 %v1028
      %v1122 = vpop.f32.mrf.mxu0
      %v1123 = vadd.f32 %v991, %v1122
      %v1124 = vpop.f32.mrf.mxu0
      %1125 = vmatprep.mubr.f32.mxu0 0.0
      %1126 = vmatmul.mubr.f32.gmra.mxu0 %v1031
      %v1127 = vpop.f32.mrf.mxu0
      %v1128 = vadd.f32 %v996, %v1127
      %v1129 = vpop.f32.mrf.mxu0
      %1130 = vmatprep.mubr.f32.mxu0 0.0
      %1131 = vmatmul.mubr.f32.gmra.mxu0 %v1034
      %v1132 = vpop.f32.mrf.mxu0
      %v1133 = vadd.f32 %v1001, %v1132
      %v1134 = vpop.f32.mrf.mxu0
      %1135 = vmatprep.mubr.f32.mxu0 0.0
      %1136 = vmatmul.mubr.f32.gmra.mxu0 %v1037
      %v1137 = vpop.f32.mrf.mxu0
      %v1138 = vadd.f32 %v1006, %v1137
      %v1139 = vpop.f32.mrf.mxu0
      %1140 = vmatprep.mubr.f32.mxu0 0.0
      %1141 = vmatmul.mubr.f32.gmra.mxu0 %v1040
      %v1142 = vpop.f32.mrf.mxu0
      %v1143 = vadd.f32 %v1011, %v1142
      %v1144 = vpop.f32.mrf.mxu0
      %1145 = vmatprep.mubr.f32.mxu0 0.0
      %1146 = vmatmul.mubr.f32.gmra.mxu0 %v1043
      %v1147 = vpop.f32.mrf.mxu0
      %v1148 = vadd.f32 %v1016, %v1147
      %v1149 = vpop.f32.mrf.mxu0
      %1150 = vmatprep.mubr.f32.mxu0 0.0
      %1151 = vmatmul.mubr.f32.gmra.mxu0 %v1046
      %v1152 = vpop.f32.mrf.mxu0
      %v1153 = vadd.f32 %v1021, %v1152
      %v1154 = vpop.f32.mrf.mxu0
      %1155 = vdwg.mxu0
      %v1156 = vld [vmem:[#allocation2 + $0x11] sm:$0xff]
      %v1157 = vld [vmem:[#allocation2 + $0x19] sm:$0xff]
      %v1158 = vld [vmem:[#allocation2 + $0x21] sm:$0xff]
      %v1159 = vld [vmem:[#allocation2 + $0x29] sm:$0xff]
      %v1160 = vld [vmem:[#allocation2 + $0x31] sm:$0xff]
      %v1161 = vld [vmem:[#allocation2 + $0x39] sm:$0xff]
      %v1162 = vld [vmem:[#allocation2 + $0x41] sm:$0xff]
      %v1163 = vld [vmem:[#allocation2 + $0x49] sm:$0xff]
      %s1164 = scalar_lea.vmem %s6, 16
      %v1165 = vld [vmem:[%s1164] sm:$0xf]
      %v1167 = vsel %vm685, %v1156, 0
      %v1170 = vsel %vm685, %v1157, 0
      %v1173 = vsel %vm685, %v1158, 0
      %v1176 = vsel %vm685, %v1159, 0
      %v1179 = vsel %vm685, %v1160, 0
      %v1182 = vsel %vm685, %v1161, 0
      %v1185 = vsel %vm685, %v1162, 0
      %v1188 = vsel %vm685, %v1163, 0
      %v1191 = vsel %vm755, %v1165, 0
      %1193 = vmatprep.subr.mxu0 0.0
      %1194 = vmatpush1.msra.mxu0 0.0
      %1195 = vmatprep.subr.mxu0 0.0
      %1196 = vmatpush1.msra.mxu0 0.0
      %1197 = vmatprep.subr.mxu0 0.0
      %1198 = vmatpush1.msra.mxu0 0.0
      %1199 = vmatprep.subr.mxu0 0.0
      %1200 = vmatpush1.msra.mxu0 0.0
      %1201 = vmatprep.subr.mxu0 0.0
      %1202 = vmatpush1.msra.mxu0 0.0
      %1203 = vmatprep.subr.mxu0 0.0
      %1204 = vmatpush1.msra.mxu0 0.0
      %1205 = vmatprep.subr.mxu0 0.0
      %1206 = vmatpush1.msra.mxu0 0.0
      %1207 = vmatprep.subr.mxu0 0.0
      %1208 = vmatpush1.msra.mxu0 0.0
      %1209 = vmatprep.subr.mxu0 0.0
      %1210 = vmatpush1.msra.mxu0 0.0
      %1211 = vmatprep.subr.mxu0 0.0
      %1212 = vmatpush1.msra.mxu0 0.0
      %1213 = vmatprep.subr.mxu0 0.0
      %1214 = vmatpush1.msra.mxu0 0.0
      %1215 = vmatprep.subr.mxu0 0.0
      %1216 = vmatpush1.msra.mxu0 0.0
      %1217 = vmatprep.subr.mxu0 0.0
      %1218 = vmatpush1.msra.mxu0 0.0
      %1219 = vmatprep.subr.mxu0 0.0
      %1220 = vmatpush1.msra.mxu0 0.0
      %1221 = vmatprep.subr.mxu0 0.0
      %1222 = vmatpush1.msra.mxu0 0.0
      %1223 = vmatprep.subr.mxu0 0.0
      %1224 = vmatpush1.msra.mxu0 %v1191
      %1225 = vmatprep.subr.mxu0 0.0
      %1226 = vmatpush2.msra.mxu0 0.0
      %1227 = vmatprep.subr.mxu0 0.0
      %1228 = vmatpush2.msra.mxu0 0.0
      %1229 = vmatprep.subr.mxu0 0.0
      %1230 = vmatpush2.msra.mxu0 0.0
      %1231 = vmatprep.subr.mxu0 0.0
      %1232 = vmatpush2.msra.mxu0 0.0
      %1233 = vmatprep.subr.mxu0 0.0
      %1234 = vmatpush2.msra.mxu0 0.0
      %1235 = vmatprep.subr.mxu0 0.0
      %1236 = vmatpush2.msra.mxu0 0.0
      %1237 = vmatprep.subr.mxu0 0.0
      %1238 = vmatpush2.msra.mxu0 0.0
      %1239 = vmatprep.subr.mxu0 0.0
      %1240 = vmatpush2.msra.mxu0 0.0
      %1241 = vmatprep.subr.mxu0 0.0
      %1242 = vmatpush2.msra.mxu0 0.0
      %1243 = vmatprep.subr.mxu0 0.0
      %1244 = vmatpush2.msra.mxu0 0.0
      %1245 = vmatprep.subr.mxu0 0.0
      %1246 = vmatpush2.msra.mxu0 0.0
      %1247 = vmatprep.subr.mxu0 0.0
      %1248 = vmatpush2.msra.mxu0 0.0
      %1249 = vmatprep.subr.mxu0 0.0
      %1250 = vmatpush2.msra.mxu0 0.0
      %1251 = vmatprep.subr.mxu0 0.0
      %1252 = vmatpush2.msra.mxu0 0.0
      %1253 = vmatprep.subr.mxu0 0.0
      %1254 = vmatpush2.msra.mxu0 0.0
      %1255 = vmatprep.subr.mxu0 0.0
      %1256 = vmatpush2.msra.mxu0 0.0
      %1257 = vmatprep.mubr.f32.mxu0 0.0
      %1258 = vmatmul.mubr.f32.gmra.mxu0 %v1167
      %v1259 = vpop.f32.mrf.mxu0
      %v1260 = vadd.f32 0.0, %v1259
      %v1261 = vpop.f32.mrf.mxu0
      %1262 = vmatprep.mubr.f32.mxu0 0.0
      %1263 = vmatmul.mubr.f32.gmra.mxu0 %v1170
      %v1264 = vpop.f32.mrf.mxu0
      %v1265 = vadd.f32 0.0, %v1264
      %v1266 = vpop.f32.mrf.mxu0
      %1267 = vmatprep.mubr.f32.mxu0 0.0
      %1268 = vmatmul.mubr.f32.gmra.mxu0 %v1173
      %v1269 = vpop.f32.mrf.mxu0
      %v1270 = vadd.f32 0.0, %v1269
      %v1271 = vpop.f32.mrf.mxu0
      %1272 = vmatprep.mubr.f32.mxu0 0.0
      %1273 = vmatmul.mubr.f32.gmra.mxu0 %v1176
      %v1274 = vpop.f32.mrf.mxu0
      %v1275 = vadd.f32 0.0, %v1274
      %v1276 = vpop.f32.mrf.mxu0
      %1277 = vmatprep.mubr.f32.mxu0 0.0
      %1278 = vmatmul.mubr.f32.gmra.mxu0 %v1179
      %v1279 = vpop.f32.mrf.mxu0
      %v1280 = vadd.f32 0.0, %v1279
      %v1281 = vpop.f32.mrf.mxu0
      %1282 = vmatprep.mubr.f32.mxu0 0.0
      %1283 = vmatmul.mubr.f32.gmra.mxu0 %v1182
      %v1284 = vpop.f32.mrf.mxu0
      %v1285 = vadd.f32 0.0, %v1284
      %v1286 = vpop.f32.mrf.mxu0
      %1287 = vmatprep.mubr.f32.mxu0 0.0
      %1288 = vmatmul.mubr.f32.gmra.mxu0 %v1185
      %v1289 = vpop.f32.mrf.mxu0
      %v1290 = vadd.f32 0.0, %v1289
      %v1291 = vpop.f32.mrf.mxu0
      %1292 = vmatprep.mubr.f32.mxu0 0.0
      %1293 = vmatmul.mubr.f32.gmra.mxu0 %v1188
      %v1294 = vpop.f32.mrf.mxu0
      %v1295 = vadd.f32 0.0, %v1294
      %v1296 = vpop.f32.mrf.mxu0
      %1297 = vdwg.mxu0
      %v1298 = vadd.f32 %v864, %v1260
      %v1299 = vadd.f32 %v865, %v1265
      %v1300 = vadd.f32 %v866, %v1270
      %v1301 = vadd.f32 %v867, %v1275
      %v1302 = vadd.f32 %v868, %v1280
      %v1303 = vadd.f32 %v869, %v1285
      %v1304 = vadd.f32 %v870, %v1290
      %v1305 = vadd.f32 %v871, %v1295
      %v1306 = vld [vmem:[#allocation2 + $0x12] sm:$0xff]
      %v1307 = vld [vmem:[#allocation2 + $0x1a] sm:$0xff]
      %v1308 = vld [vmem:[#allocation2 + $0x22] sm:$0xff]
      %v1309 = vld [vmem:[#allocation2 + $0x2a] sm:$0xff]
      %v1310 = vld [vmem:[#allocation2 + $0x32] sm:$0xff]
      %v1311 = vld [vmem:[#allocation2 + $0x3a] sm:$0xff]
      %v1312 = vld [vmem:[#allocation2 + $0x42] sm:$0xff]
      %v1313 = vld [vmem:[#allocation2 + $0x4a] sm:$0xff]
      %s1314 = scalar_lea.vmem %s6, 20
      %v1315 = vld [vmem:[%s1314] sm:$0xf]
      %v1317 = vsel %vm685, %v1306, 0
      %v1320 = vsel %vm685, %v1307, 0
      %v1323 = vsel %vm685, %v1308, 0
      %v1326 = vsel %vm685, %v1309, 0
      %v1329 = vsel %vm685, %v1310, 0
      %v1332 = vsel %vm685, %v1311, 0
      %v1335 = vsel %vm685, %v1312, 0
      %v1338 = vsel %vm685, %v1313, 0
      %v1341 = vsel %vm755, %v1315, 0
      %1343 = vmatprep.subr.mxu0 0.0
      %1344 = vmatpush1.msra.mxu0 0.0
      %1345 = vmatprep.subr.mxu0 0.0
      %1346 = vmatpush1.msra.mxu0 0.0
      %1347 = vmatprep.subr.mxu0 0.0
      %1348 = vmatpush1.msra.mxu0 0.0
      %1349 = vmatprep.subr.mxu0 0.0
      %1350 = vmatpush1.msra.mxu0 0.0
      %1351 = vmatprep.subr.mxu0 0.0
      %1352 = vmatpush1.msra.mxu0 0.0
      %1353 = vmatprep.subr.mxu0 0.0
      %1354 = vmatpush1.msra.mxu0 0.0
      %1355 = vmatprep.subr.mxu0 0.0
      %1356 = vmatpush1.msra.mxu0 0.0
      %1357 = vmatprep.subr.mxu0 0.0
      %1358 = vmatpush1.msra.mxu0 0.0
      %1359 = vmatprep.subr.mxu0 0.0
      %1360 = vmatpush1.msra.mxu0 0.0
      %1361 = vmatprep.subr.mxu0 0.0
      %1362 = vmatpush1.msra.mxu0 0.0
      %1363 = vmatprep.subr.mxu0 0.0
      %1364 = vmatpush1.msra.mxu0 0.0
      %1365 = vmatprep.subr.mxu0 0.0
      %1366 = vmatpush1.msra.mxu0 0.0
      %1367 = vmatprep.subr.mxu0 0.0
      %1368 = vmatpush1.msra.mxu0 0.0
      %1369 = vmatprep.subr.mxu0 0.0
      %1370 = vmatpush1.msra.mxu0 0.0
      %1371 = vmatprep.subr.mxu0 0.0
      %1372 = vmatpush1.msra.mxu0 0.0
      %1373 = vmatprep.subr.mxu0 0.0
      %1374 = vmatpush1.msra.mxu0 %v1341
      %1375 = vmatprep.subr.mxu0 0.0
      %1376 = vmatpush2.msra.mxu0 0.0
      %1377 = vmatprep.subr.mxu0 0.0
      %1378 = vmatpush2.msra.mxu0 0.0
      %1379 = vmatprep.subr.mxu0 0.0
      %1380 = vmatpush2.msra.mxu0 0.0
      %1381 = vmatprep.subr.mxu0 0.0
      %1382 = vmatpush2.msra.mxu0 0.0
      %1383 = vmatprep.subr.mxu0 0.0
      %1384 = vmatpush2.msra.mxu0 0.0
      %1385 = vmatprep.subr.mxu0 0.0
      %1386 = vmatpush2.msra.mxu0 0.0
      %1387 = vmatprep.subr.mxu0 0.0
      %1388 = vmatpush2.msra.mxu0 0.0
      %1389 = vmatprep.subr.mxu0 0.0
      %1390 = vmatpush2.msra.mxu0 0.0
      %1391 = vmatprep.subr.mxu0 0.0
      %1392 = vmatpush2.msra.mxu0 0.0
      %1393 = vmatprep.subr.mxu0 0.0
      %1394 = vmatpush2.msra.mxu0 0.0
      %1395 = vmatprep.subr.mxu0 0.0
      %1396 = vmatpush2.msra.mxu0 0.0
      %1397 = vmatprep.subr.mxu0 0.0
      %1398 = vmatpush2.msra.mxu0 0.0
      %1399 = vmatprep.subr.mxu0 0.0
      %1400 = vmatpush2.msra.mxu0 0.0
      %1401 = vmatprep.subr.mxu0 0.0
      %1402 = vmatpush2.msra.mxu0 0.0
      %1403 = vmatprep.subr.mxu0 0.0
      %1404 = vmatpush2.msra.mxu0 0.0
      %1405 = vmatprep.subr.mxu0 0.0
      %1406 = vmatpush2.msra.mxu0 0.0
      %1407 = vmatprep.mubr.f32.mxu0 0.0
      %1408 = vmatmul.mubr.f32.gmra.mxu0 %v1317
      %v1409 = vpop.f32.mrf.mxu0
      %v1410 = vadd.f32 0.0, %v1409
      %v1411 = vpop.f32.mrf.mxu0
      %1412 = vmatprep.mubr.f32.mxu0 0.0
      %1413 = vmatmul.mubr.f32.gmra.mxu0 %v1320
      %v1414 = vpop.f32.mrf.mxu0
      %v1415 = vadd.f32 0.0, %v1414
      %v1416 = vpop.f32.mrf.mxu0
      %1417 = vmatprep.mubr.f32.mxu0 0.0
      %1418 = vmatmul.mubr.f32.gmra.mxu0 %v1323
      %v1419 = vpop.f32.mrf.mxu0
      %v1420 = vadd.f32 0.0, %v1419
      %v1421 = vpop.f32.mrf.mxu0
      %1422 = vmatprep.mubr.f32.mxu0 0.0
      %1423 = vmatmul.mubr.f32.gmra.mxu0 %v1326
      %v1424 = vpop.f32.mrf.mxu0
      %v1425 = vadd.f32 0.0, %v1424
      %v1426 = vpop.f32.mrf.mxu0
      %1427 = vmatprep.mubr.f32.mxu0 0.0
      %1428 = vmatmul.mubr.f32.gmra.mxu0 %v1329
      %v1429 = vpop.f32.mrf.mxu0
      %v1430 = vadd.f32 0.0, %v1429
      %v1431 = vpop.f32.mrf.mxu0
      %1432 = vmatprep.mubr.f32.mxu0 0.0
      %1433 = vmatmul.mubr.f32.gmra.mxu0 %v1332
      %v1434 = vpop.f32.mrf.mxu0
      %v1435 = vadd.f32 0.0, %v1434
      %v1436 = vpop.f32.mrf.mxu0
      %1437 = vmatprep.mubr.f32.mxu0 0.0
      %1438 = vmatmul.mubr.f32.gmra.mxu0 %v1335
      %v1439 = vpop.f32.mrf.mxu0
      %v1440 = vadd.f32 0.0, %v1439
      %v1441 = vpop.f32.mrf.mxu0
      %1442 = vmatprep.mubr.f32.mxu0 0.0
      %1443 = vmatmul.mubr.f32.gmra.mxu0 %v1338
      %v1444 = vpop.f32.mrf.mxu0
      %v1445 = vadd.f32 0.0, %v1444
      %v1446 = vpop.f32.mrf.mxu0
      %1447 = vdwg.mxu0
      %v1449 = vsel %vm685, %v872, 0
      %v1452 = vsel %vm685, %v873, 0
      %v1455 = vsel %vm685, %v874, 0
      %v1458 = vsel %vm685, %v875, 0
      %v1461 = vsel %vm685, %v876, 0
      %v1464 = vsel %vm685, %v877, 0
      %v1467 = vsel %vm685, %v878, 0
      %v1470 = vsel %vm685, %v879, 0
      %v1473 = vsel %vm755, %v881, 0
      %1475 = vmatprep.subr.mxu0 0.0
      %1476 = vmatpush1.msra.mxu0 0.0
      %1477 = vmatprep.subr.mxu0 0.0
      %1478 = vmatpush1.msra.mxu0 0.0
      %1479 = vmatprep.subr.mxu0 0.0
      %1480 = vmatpush1.msra.mxu0 0.0
      %1481 = vmatprep.subr.mxu0 0.0
      %1482 = vmatpush1.msra.mxu0 0.0
      %1483 = vmatprep.subr.mxu0 0.0
      %1484 = vmatpush1.msra.mxu0 0.0
      %1485 = vmatprep.subr.mxu0 0.0
      %1486 = vmatpush1.msra.mxu0 0.0
      %1487 = vmatprep.subr.mxu0 0.0
      %1488 = vmatpush1.msra.mxu0 0.0
      %1489 = vmatprep.subr.mxu0 0.0
      %1490 = vmatpush1.msra.mxu0 0.0
      %1491 = vmatprep.subr.mxu0 0.0
      %1492 = vmatpush1.msra.mxu0 0.0
      %1493 = vmatprep.subr.mxu0 0.0
      %1494 = vmatpush1.msra.mxu0 0.0
      %1495 = vmatprep.subr.mxu0 0.0
      %1496 = vmatpush1.msra.mxu0 0.0
      %1497 = vmatprep.subr.mxu0 0.0
      %1498 = vmatpush1.msra.mxu0 0.0
      %1499 = vmatprep.subr.mxu0 0.0
      %1500 = vmatpush1.msra.mxu0 0.0
      %1501 = vmatprep.subr.mxu0 0.0
      %1502 = vmatpush1.msra.mxu0 0.0
      %1503 = vmatprep.subr.mxu0 0.0
      %1504 = vmatpush1.msra.mxu0 0.0
      %1505 = vmatprep.subr.mxu0 0.0
      %1506 = vmatpush1.msra.mxu0 %v1473
      %1507 = vmatprep.subr.mxu0 0.0
      %1508 = vmatpush2.msra.mxu0 0.0
      %1509 = vmatprep.subr.mxu0 0.0
      %1510 = vmatpush2.msra.mxu0 0.0
      %1511 = vmatprep.subr.mxu0 0.0
      %1512 = vmatpush2.msra.mxu0 0.0
      %1513 = vmatprep.subr.mxu0 0.0
      %1514 = vmatpush2.msra.mxu0 0.0
      %1515 = vmatprep.subr.mxu0 0.0
      %1516 = vmatpush2.msra.mxu0 0.0
      %1517 = vmatprep.subr.mxu0 0.0
      %1518 = vmatpush2.msra.mxu0 0.0
      %1519 = vmatprep.subr.mxu0 0.0
      %1520 = vmatpush2.msra.mxu0 0.0
      %1521 = vmatprep.subr.mxu0 0.0
      %1522 = vmatpush2.msra.mxu0 0.0
      %1523 = vmatprep.subr.mxu0 0.0
      %1524 = vmatpush2.msra.mxu0 0.0
      %1525 = vmatprep.subr.mxu0 0.0
      %1526 = vmatpush2.msra.mxu0 0.0
      %1527 = vmatprep.subr.mxu0 0.0
      %1528 = vmatpush2.msra.mxu0 0.0
      %1529 = vmatprep.subr.mxu0 0.0
      %1530 = vmatpush2.msra.mxu0 0.0
      %1531 = vmatprep.subr.mxu0 0.0
      %1532 = vmatpush2.msra.mxu0 0.0
      %1533 = vmatprep.subr.mxu0 0.0
      %1534 = vmatpush2.msra.mxu0 0.0
      %1535 = vmatprep.subr.mxu0 0.0
      %1536 = vmatpush2.msra.mxu0 0.0
      %1537 = vmatprep.subr.mxu0 0.0
      %1538 = vmatpush2.msra.mxu0 0.0
      %1539 = vmatprep.mubr.f32.mxu0 0.0
      %1540 = vmatmul.mubr.f32.gmra.mxu0 %v1449
      %v1541 = vpop.f32.mrf.mxu0
      %v1542 = vadd.f32 %v1410, %v1541
      %v1543 = vpop.f32.mrf.mxu0
      %1544 = vmatprep.mubr.f32.mxu0 0.0
      %1545 = vmatmul.mubr.f32.gmra.mxu0 %v1452
      %v1546 = vpop.f32.mrf.mxu0
      %v1547 = vadd.f32 %v1415, %v1546
      %v1548 = vpop.f32.mrf.mxu0
      %1549 = vmatprep.mubr.f32.mxu0 0.0
      %1550 = vmatmul.mubr.f32.gmra.mxu0 %v1455
      %v1551 = vpop.f32.mrf.mxu0
      %v1552 = vadd.f32 %v1420, %v1551
      %v1553 = vpop.f32.mrf.mxu0
      %1554 = vmatprep.mubr.f32.mxu0 0.0
      %1555 = vmatmul.mubr.f32.gmra.mxu0 %v1458
      %v1556 = vpop.f32.mrf.mxu0
      %v1557 = vadd.f32 %v1425, %v1556
      %v1558 = vpop.f32.mrf.mxu0
      %1559 = vmatprep.mubr.f32.mxu0 0.0
      %1560 = vmatmul.mubr.f32.gmra.mxu0 %v1461
      %v1561 = vpop.f32.mrf.mxu0
      %v1562 = vadd.f32 %v1430, %v1561
      %v1563 = vpop.f32.mrf.mxu0
      %1564 = vmatprep.mubr.f32.mxu0 0.0
      %1565 = vmatmul.mubr.f32.gmra.mxu0 %v1464
      %v1566 = vpop.f32.mrf.mxu0
      %v1567 = vadd.f32 %v1435, %v1566
      %v1568 = vpop.f32.mrf.mxu0
      %1569 = vmatprep.mubr.f32.mxu0 0.0
      %1570 = vmatmul.mubr.f32.gmra.mxu0 %v1467
      %v1571 = vpop.f32.mrf.mxu0
      %v1572 = vadd.f32 %v1440, %v1571
      %v1573 = vpop.f32.mrf.mxu0
      %1574 = vmatprep.mubr.f32.mxu0 0.0
      %1575 = vmatmul.mubr.f32.gmra.mxu0 %v1470
      %v1576 = vpop.f32.mrf.mxu0
      %v1577 = vadd.f32 %v1445, %v1576
      %v1578 = vpop.f32.mrf.mxu0
      %1579 = vdwg.mxu0
      %v1580 = vld [vmem:[#allocation2 + $0x20] sm:$0xff]
      %v1581 = vld [vmem:[#allocation2 + $0x28] sm:$0xff]
      %v1582 = vld [vmem:[#allocation2 + $0x30] sm:$0xff]
      %v1583 = vld [vmem:[#allocation2 + $0x38] sm:$0xff]
      %v1584 = vld [vmem:[#allocation2 + $0x40] sm:$0xff]
      %v1585 = vld [vmem:[#allocation2 + $0x48] sm:$0xff]
      %v1586 = vld [vmem:[#allocation2 + $0x50] sm:$0xff]
      %v1587 = vld [vmem:[#allocation2 + $0x58] sm:$0xff]
      %s1588 = scalar_lea.vmem %s6, 24
      %v1589 = vld [vmem:[%s1588] sm:$0xf]
      %v1591 = vsel %vm685, %v1580, 0
      %v1594 = vsel %vm685, %v1581, 0
      %v1597 = vsel %vm685, %v1582, 0
      %v1600 = vsel %vm685, %v1583, 0
      %v1603 = vsel %vm685, %v1584, 0
      %v1606 = vsel %vm685, %v1585, 0
      %v1609 = vsel %vm685, %v1586, 0
      %v1612 = vsel %vm685, %v1587, 0
      %v1615 = vsel %vm755, %v1589, 0
      %1617 = vmatprep.subr.mxu0 0.0
      %1618 = vmatpush1.msra.mxu0 0.0
      %1619 = vmatprep.subr.mxu0 0.0
      %1620 = vmatpush1.msra.mxu0 0.0
      %1621 = vmatprep.subr.mxu0 0.0
      %1622 = vmatpush1.msra.mxu0 0.0
      %1623 = vmatprep.subr.mxu0 0.0
      %1624 = vmatpush1.msra.mxu0 0.0
      %1625 = vmatprep.subr.mxu0 0.0
      %1626 = vmatpush1.msra.mxu0 0.0
      %1627 = vmatprep.subr.mxu0 0.0
      %1628 = vmatpush1.msra.mxu0 0.0
      %1629 = vmatprep.subr.mxu0 0.0
      %1630 = vmatpush1.msra.mxu0 0.0
      %1631 = vmatprep.subr.mxu0 0.0
      %1632 = vmatpush1.msra.mxu0 0.0
      %1633 = vmatprep.subr.mxu0 0.0
      %1634 = vmatpush1.msra.mxu0 0.0
      %1635 = vmatprep.subr.mxu0 0.0
      %1636 = vmatpush1.msra.mxu0 0.0
      %1637 = vmatprep.subr.mxu0 0.0
      %1638 = vmatpush1.msra.mxu0 0.0
      %1639 = vmatprep.subr.mxu0 0.0
      %1640 = vmatpush1.msra.mxu0 0.0
      %1641 = vmatprep.subr.mxu0 0.0
      %1642 = vmatpush1.msra.mxu0 0.0
      %1643 = vmatprep.subr.mxu0 0.0
      %1644 = vmatpush1.msra.mxu0 0.0
      %1645 = vmatprep.subr.mxu0 0.0
      %1646 = vmatpush1.msra.mxu0 0.0
      %1647 = vmatprep.subr.mxu0 0.0
      %1648 = vmatpush1.msra.mxu0 %v1615
      %1649 = vmatprep.subr.mxu0 0.0
      %1650 = vmatpush2.msra.mxu0 0.0
      %1651 = vmatprep.subr.mxu0 0.0
      %1652 = vmatpush2.msra.mxu0 0.0
      %1653 = vmatprep.subr.mxu0 0.0
      %1654 = vmatpush2.msra.mxu0 0.0
      %1655 = vmatprep.subr.mxu0 0.0
      %1656 = vmatpush2.msra.mxu0 0.0
      %1657 = vmatprep.subr.mxu0 0.0
      %1658 = vmatpush2.msra.mxu0 0.0
      %1659 = vmatprep.subr.mxu0 0.0
      %1660 = vmatpush2.msra.mxu0 0.0
      %1661 = vmatprep.subr.mxu0 0.0
      %1662 = vmatpush2.msra.mxu0 0.0
      %1663 = vmatprep.subr.mxu0 0.0
      %1664 = vmatpush2.msra.mxu0 0.0
      %1665 = vmatprep.subr.mxu0 0.0
      %1666 = vmatpush2.msra.mxu0 0.0
      %1667 = vmatprep.subr.mxu0 0.0
      %1668 = vmatpush2.msra.mxu0 0.0
      %1669 = vmatprep.subr.mxu0 0.0
      %1670 = vmatpush2.msra.mxu0 0.0
      %1671 = vmatprep.subr.mxu0 0.0
      %1672 = vmatpush2.msra.mxu0 0.0
      %1673 = vmatprep.subr.mxu0 0.0
      %1674 = vmatpush2.msra.mxu0 0.0
      %1675 = vmatprep.subr.mxu0 0.0
      %1676 = vmatpush2.msra.mxu0 0.0
      %1677 = vmatprep.subr.mxu0 0.0
      %1678 = vmatpush2.msra.mxu0 0.0
      %1679 = vmatprep.subr.mxu0 0.0
      %1680 = vmatpush2.msra.mxu0 0.0
      %1681 = vmatprep.mubr.f32.mxu0 0.0
      %1682 = vmatmul.mubr.f32.gmra.mxu0 %v1591
      %v1683 = vpop.f32.mrf.mxu0
      %v1684 = vadd.f32 0.0, %v1683
      %v1685 = vpop.f32.mrf.mxu0
      %1686 = vmatprep.mubr.f32.mxu0 0.0
      %1687 = vmatmul.mubr.f32.gmra.mxu0 %v1594
      %v1688 = vpop.f32.mrf.mxu0
      %v1689 = vadd.f32 0.0, %v1688
      %v1690 = vpop.f32.mrf.mxu0
      %1691 = vmatprep.mubr.f32.mxu0 0.0
      %1692 = vmatmul.mubr.f32.gmra.mxu0 %v1597
      %v1693 = vpop.f32.mrf.mxu0
      %v1694 = vadd.f32 0.0, %v1693
      %v1695 = vpop.f32.mrf.mxu0
      %1696 = vmatprep.mubr.f32.mxu0 0.0
      %1697 = vmatmul.mubr.f32.gmra.mxu0 %v1600
      %v1698 = vpop.f32.mrf.mxu0
      %v1699 = vadd.f32 0.0, %v1698
      %v1700 = vpop.f32.mrf.mxu0
      %1701 = vmatprep.mubr.f32.mxu0 0.0
      %1702 = vmatmul.mubr.f32.gmra.mxu0 %v1603
      %v1703 = vpop.f32.mrf.mxu0
      %v1704 = vadd.f32 0.0, %v1703
      %v1705 = vpop.f32.mrf.mxu0
      %1706 = vmatprep.mubr.f32.mxu0 0.0
      %1707 = vmatmul.mubr.f32.gmra.mxu0 %v1606
      %v1708 = vpop.f32.mrf.mxu0
      %v1709 = vadd.f32 0.0, %v1708
      %v1710 = vpop.f32.mrf.mxu0
      %1711 = vmatprep.mubr.f32.mxu0 0.0
      %1712 = vmatmul.mubr.f32.gmra.mxu0 %v1609
      %v1713 = vpop.f32.mrf.mxu0
      %v1714 = vadd.f32 0.0, %v1713
      %v1715 = vpop.f32.mrf.mxu0
      %1716 = vmatprep.mubr.f32.mxu0 0.0
      %1717 = vmatmul.mubr.f32.gmra.mxu0 %v1612
      %v1718 = vpop.f32.mrf.mxu0
      %v1719 = vadd.f32 0.0, %v1718
      %v1720 = vpop.f32.mrf.mxu0
      %1721 = vdwg.mxu0
      %v1722 = vadd.f32 %v1118, %v1684
      %v1723 = vadd.f32 %v1123, %v1689
      %v1724 = vadd.f32 %v1128, %v1694
      %v1725 = vadd.f32 %v1133, %v1699
      %v1726 = vadd.f32 %v1138, %v1704
      %v1727 = vadd.f32 %v1143, %v1709
      %v1728 = vadd.f32 %v1148, %v1714
      %v1729 = vadd.f32 %v1153, %v1719
      %v1730 = vld [vmem:[#allocation2 + $0x21] sm:$0xff]
      %v1731 = vld [vmem:[#allocation2 + $0x29] sm:$0xff]
      %v1732 = vld [vmem:[#allocation2 + $0x31] sm:$0xff]
      %v1733 = vld [vmem:[#allocation2 + $0x39] sm:$0xff]
      %v1734 = vld [vmem:[#allocation2 + $0x41] sm:$0xff]
      %v1735 = vld [vmem:[#allocation2 + $0x49] sm:$0xff]
      %v1736 = vld [vmem:[#allocation2 + $0x51] sm:$0xff]
      %v1737 = vld [vmem:[#allocation2 + $0x59] sm:$0xff]
      %s1738 = scalar_lea.vmem %s6, 28
      %v1739 = vld [vmem:[%s1738] sm:$0xf]
      %v1741 = vsel %vm685, %v1730, 0
      %v1744 = vsel %vm685, %v1731, 0
      %v1747 = vsel %vm685, %v1732, 0
      %v1750 = vsel %vm685, %v1733, 0
      %v1753 = vsel %vm685, %v1734, 0
      %v1756 = vsel %vm685, %v1735, 0
      %v1759 = vsel %vm685, %v1736, 0
      %v1762 = vsel %vm685, %v1737, 0
      %v1765 = vsel %vm755, %v1739, 0
      %1767 = vmatprep.subr.mxu0 0.0
      %1768 = vmatpush1.msra.mxu0 0.0
      %1769 = vmatprep.subr.mxu0 0.0
      %1770 = vmatpush1.msra.mxu0 0.0
      %1771 = vmatprep.subr.mxu0 0.0
      %1772 = vmatpush1.msra.mxu0 0.0
      %1773 = vmatprep.subr.mxu0 0.0
      %1774 = vmatpush1.msra.mxu0 0.0
      %1775 = vmatprep.subr.mxu0 0.0
      %1776 = vmatpush1.msra.mxu0 0.0
      %1777 = vmatprep.subr.mxu0 0.0
      %1778 = vmatpush1.msra.mxu0 0.0
      %1779 = vmatprep.subr.mxu0 0.0
      %1780 = vmatpush1.msra.mxu0 0.0
      %1781 = vmatprep.subr.mxu0 0.0
      %1782 = vmatpush1.msra.mxu0 0.0
      %1783 = vmatprep.subr.mxu0 0.0
      %1784 = vmatpush1.msra.mxu0 0.0
      %1785 = vmatprep.subr.mxu0 0.0
      %1786 = vmatpush1.msra.mxu0 0.0
      %1787 = vmatprep.subr.mxu0 0.0
      %1788 = vmatpush1.msra.mxu0 0.0
      %1789 = vmatprep.subr.mxu0 0.0
      %1790 = vmatpush1.msra.mxu0 0.0
      %1791 = vmatprep.subr.mxu0 0.0
      %1792 = vmatpush1.msra.mxu0 0.0
      %1793 = vmatprep.subr.mxu0 0.0
      %1794 = vmatpush1.msra.mxu0 0.0
      %1795 = vmatprep.subr.mxu0 0.0
      %1796 = vmatpush1.msra.mxu0 0.0
      %1797 = vmatprep.subr.mxu0 0.0
      %1798 = vmatpush1.msra.mxu0 %v1765
      %1799 = vmatprep.subr.mxu0 0.0
      %1800 = vmatpush2.msra.mxu0 0.0
      %1801 = vmatprep.subr.mxu0 0.0
      %1802 = vmatpush2.msra.mxu0 0.0
      %1803 = vmatprep.subr.mxu0 0.0
      %1804 = vmatpush2.msra.mxu0 0.0
      %1805 = vmatprep.subr.mxu0 0.0
      %1806 = vmatpush2.msra.mxu0 0.0
      %1807 = vmatprep.subr.mxu0 0.0
      %1808 = vmatpush2.msra.mxu0 0.0
      %1809 = vmatprep.subr.mxu0 0.0
      %1810 = vmatpush2.msra.mxu0 0.0
      %1811 = vmatprep.subr.mxu0 0.0
      %1812 = vmatpush2.msra.mxu0 0.0
      %1813 = vmatprep.subr.mxu0 0.0
      %1814 = vmatpush2.msra.mxu0 0.0
      %1815 = vmatprep.subr.mxu0 0.0
      %1816 = vmatpush2.msra.mxu0 0.0
      %1817 = vmatprep.subr.mxu0 0.0
      %1818 = vmatpush2.msra.mxu0 0.0
      %1819 = vmatprep.subr.mxu0 0.0
      %1820 = vmatpush2.msra.mxu0 0.0
      %1821 = vmatprep.subr.mxu0 0.0
      %1822 = vmatpush2.msra.mxu0 0.0
      %1823 = vmatprep.subr.mxu0 0.0
      %1824 = vmatpush2.msra.mxu0 0.0
      %1825 = vmatprep.subr.mxu0 0.0
      %1826 = vmatpush2.msra.mxu0 0.0
      %1827 = vmatprep.subr.mxu0 0.0
      %1828 = vmatpush2.msra.mxu0 0.0
      %1829 = vmatprep.subr.mxu0 0.0
      %1830 = vmatpush2.msra.mxu0 0.0
      %1831 = vmatprep.mubr.f32.mxu0 0.0
      %1832 = vmatmul.mubr.f32.gmra.mxu0 %v1741
      %v1833 = vpop.f32.mrf.mxu0
      %v1834 = vadd.f32 0.0, %v1833
      %v1835 = vpop.f32.mrf.mxu0
      %1836 = vmatprep.mubr.f32.mxu0 0.0
      %1837 = vmatmul.mubr.f32.gmra.mxu0 %v1744
      %v1838 = vpop.f32.mrf.mxu0
      %v1839 = vadd.f32 0.0, %v1838
      %v1840 = vpop.f32.mrf.mxu0
      %1841 = vmatprep.mubr.f32.mxu0 0.0
      %1842 = vmatmul.mubr.f32.gmra.mxu0 %v1747
      %v1843 = vpop.f32.mrf.mxu0
      %v1844 = vadd.f32 0.0, %v1843
      %v1845 = vpop.f32.mrf.mxu0
      %1846 = vmatprep.mubr.f32.mxu0 0.0
      %1847 = vmatmul.mubr.f32.gmra.mxu0 %v1750
      %v1848 = vpop.f32.mrf.mxu0
      %v1849 = vadd.f32 0.0, %v1848
      %v1850 = vpop.f32.mrf.mxu0
      %1851 = vmatprep.mubr.f32.mxu0 0.0
      %1852 = vmatmul.mubr.f32.gmra.mxu0 %v1753
      %v1853 = vpop.f32.mrf.mxu0
      %v1854 = vadd.f32 0.0, %v1853
      %v1855 = vpop.f32.mrf.mxu0
      %1856 = vmatprep.mubr.f32.mxu0 0.0
      %1857 = vmatmul.mubr.f32.gmra.mxu0 %v1756
      %v1858 = vpop.f32.mrf.mxu0
      %v1859 = vadd.f32 0.0, %v1858
      %v1860 = vpop.f32.mrf.mxu0
      %1861 = vmatprep.mubr.f32.mxu0 0.0
      %1862 = vmatmul.mubr.f32.gmra.mxu0 %v1759
      %v1863 = vpop.f32.mrf.mxu0
      %v1864 = vadd.f32 0.0, %v1863
      %v1865 = vpop.f32.mrf.mxu0
      %1866 = vmatprep.mubr.f32.mxu0 0.0
      %1867 = vmatmul.mubr.f32.gmra.mxu0 %v1762
      %v1868 = vpop.f32.mrf.mxu0
      %v1869 = vadd.f32 0.0, %v1868
      %v1870 = vpop.f32.mrf.mxu0
      %1871 = vdwg.mxu0
      %v1872 = vadd.f32 %v1298, %v1834
      %v1873 = vadd.f32 %v1299, %v1839
      %v1874 = vadd.f32 %v1300, %v1844
      %v1875 = vadd.f32 %v1301, %v1849
      %v1876 = vadd.f32 %v1302, %v1854
      %v1877 = vadd.f32 %v1303, %v1859
      %v1878 = vadd.f32 %v1304, %v1864
      %v1879 = vadd.f32 %v1305, %v1869
      %v1880 = vld [vmem:[#allocation2 + $0x22] sm:$0xff]
      %v1881 = vld [vmem:[#allocation2 + $0x2a] sm:$0xff]
      %v1882 = vld [vmem:[#allocation2 + $0x32] sm:$0xff]
      %v1883 = vld [vmem:[#allocation2 + $0x3a] sm:$0xff]
      %v1884 = vld [vmem:[#allocation2 + $0x42] sm:$0xff]
      %v1885 = vld [vmem:[#allocation2 + $0x4a] sm:$0xff]
      %v1886 = vld [vmem:[#allocation2 + $0x52] sm:$0xff]
      %v1887 = vld [vmem:[#allocation2 + $0x5a] sm:$0xff]
      %s1888 = scalar_lea.vmem %s6, 32
      %v1889 = vld [vmem:[%s1888] sm:$0xf]
      %v1891 = vsel %vm685, %v1880, 0
      %v1894 = vsel %vm685, %v1881, 0
      %v1897 = vsel %vm685, %v1882, 0
      %v1900 = vsel %vm685, %v1883, 0
      %v1903 = vsel %vm685, %v1884, 0
      %v1906 = vsel %vm685, %v1885, 0
      %v1909 = vsel %vm685, %v1886, 0
      %v1912 = vsel %vm685, %v1887, 0
      %v1915 = vsel %vm755, %v1889, 0
      %1917 = vmatprep.subr.mxu0 0.0
      %1918 = vmatpush1.msra.mxu0 0.0
      %1919 = vmatprep.subr.mxu0 0.0
      %1920 = vmatpush1.msra.mxu0 0.0
      %1921 = vmatprep.subr.mxu0 0.0
      %1922 = vmatpush1.msra.mxu0 0.0
      %1923 = vmatprep.subr.mxu0 0.0
      %1924 = vmatpush1.msra.mxu0 0.0
      %1925 = vmatprep.subr.mxu0 0.0
      %1926 = vmatpush1.msra.mxu0 0.0
      %1927 = vmatprep.subr.mxu0 0.0
      %1928 = vmatpush1.msra.mxu0 0.0
      %1929 = vmatprep.subr.mxu0 0.0
      %1930 = vmatpush1.msra.mxu0 0.0
      %1931 = vmatprep.subr.mxu0 0.0
      %1932 = vmatpush1.msra.mxu0 0.0
      %1933 = vmatprep.subr.mxu0 0.0
      %1934 = vmatpush1.msra.mxu0 0.0
      %1935 = vmatprep.subr.mxu0 0.0
      %1936 = vmatpush1.msra.mxu0 0.0
      %1937 = vmatprep.subr.mxu0 0.0
      %1938 = vmatpush1.msra.mxu0 0.0
      %1939 = vmatprep.subr.mxu0 0.0
      %1940 = vmatpush1.msra.mxu0 0.0
      %1941 = vmatprep.subr.mxu0 0.0
      %1942 = vmatpush1.msra.mxu0 0.0
      %1943 = vmatprep.subr.mxu0 0.0
      %1944 = vmatpush1.msra.mxu0 0.0
      %1945 = vmatprep.subr.mxu0 0.0
      %1946 = vmatpush1.msra.mxu0 0.0
      %1947 = vmatprep.subr.mxu0 0.0
      %1948 = vmatpush1.msra.mxu0 %v1915
      %1949 = vmatprep.subr.mxu0 0.0
      %1950 = vmatpush2.msra.mxu0 0.0
      %1951 = vmatprep.subr.mxu0 0.0
      %1952 = vmatpush2.msra.mxu0 0.0
      %1953 = vmatprep.subr.mxu0 0.0
      %1954 = vmatpush2.msra.mxu0 0.0
      %1955 = vmatprep.subr.mxu0 0.0
      %1956 = vmatpush2.msra.mxu0 0.0
      %1957 = vmatprep.subr.mxu0 0.0
      %1958 = vmatpush2.msra.mxu0 0.0
      %1959 = vmatprep.subr.mxu0 0.0
      %1960 = vmatpush2.msra.mxu0 0.0
      %1961 = vmatprep.subr.mxu0 0.0
      %1962 = vmatpush2.msra.mxu0 0.0
      %1963 = vmatprep.subr.mxu0 0.0
      %1964 = vmatpush2.msra.mxu0 0.0
      %1965 = vmatprep.subr.mxu0 0.0
      %1966 = vmatpush2.msra.mxu0 0.0
      %1967 = vmatprep.subr.mxu0 0.0
      %1968 = vmatpush2.msra.mxu0 0.0
      %1969 = vmatprep.subr.mxu0 0.0
      %1970 = vmatpush2.msra.mxu0 0.0
      %1971 = vmatprep.subr.mxu0 0.0
      %1972 = vmatpush2.msra.mxu0 0.0
      %1973 = vmatprep.subr.mxu0 0.0
      %1974 = vmatpush2.msra.mxu0 0.0
      %1975 = vmatprep.subr.mxu0 0.0
      %1976 = vmatpush2.msra.mxu0 0.0
      %1977 = vmatprep.subr.mxu0 0.0
      %1978 = vmatpush2.msra.mxu0 0.0
      %1979 = vmatprep.subr.mxu0 0.0
      %1980 = vmatpush2.msra.mxu0 0.0
      %1981 = vmatprep.mubr.f32.mxu0 0.0
      %1982 = vmatmul.mubr.f32.gmra.mxu0 %v1891
      %v1983 = vpop.f32.mrf.mxu0
      %v1984 = vadd.f32 0.0, %v1983
      %v1985 = vpop.f32.mrf.mxu0
      %1986 = vmatprep.mubr.f32.mxu0 0.0
      %1987 = vmatmul.mubr.f32.gmra.mxu0 %v1894
      %v1988 = vpop.f32.mrf.mxu0
      %v1989 = vadd.f32 0.0, %v1988
      %v1990 = vpop.f32.mrf.mxu0
      %1991 = vmatprep.mubr.f32.mxu0 0.0
      %1992 = vmatmul.mubr.f32.gmra.mxu0 %v1897
      %v1993 = vpop.f32.mrf.mxu0
      %v1994 = vadd.f32 0.0, %v1993
      %v1995 = vpop.f32.mrf.mxu0
      %1996 = vmatprep.mubr.f32.mxu0 0.0
      %1997 = vmatmul.mubr.f32.gmra.mxu0 %v1900
      %v1998 = vpop.f32.mrf.mxu0
      %v1999 = vadd.f32 0.0, %v1998
      %v2000 = vpop.f32.mrf.mxu0
      %2001 = vmatprep.mubr.f32.mxu0 0.0
      %2002 = vmatmul.mubr.f32.gmra.mxu0 %v1903
      %v2003 = vpop.f32.mrf.mxu0
      %v2004 = vadd.f32 0.0, %v2003
      %v2005 = vpop.f32.mrf.mxu0
      %2006 = vmatprep.mubr.f32.mxu0 0.0
      %2007 = vmatmul.mubr.f32.gmra.mxu0 %v1906
      %v2008 = vpop.f32.mrf.mxu0
      %v2009 = vadd.f32 0.0, %v2008
      %v2010 = vpop.f32.mrf.mxu0
      %2011 = vmatprep.mubr.f32.mxu0 0.0
      %2012 = vmatmul.mubr.f32.gmra.mxu0 %v1909
      %v2013 = vpop.f32.mrf.mxu0
      %v2014 = vadd.f32 0.0, %v2013
      %v2015 = vpop.f32.mrf.mxu0
      %2016 = vmatprep.mubr.f32.mxu0 0.0
      %2017 = vmatmul.mubr.f32.gmra.mxu0 %v1912
      %v2018 = vpop.f32.mrf.mxu0
      %v2019 = vadd.f32 0.0, %v2018
      %v2020 = vpop.f32.mrf.mxu0
      %2021 = vdwg.mxu0
      %v2022 = vadd.f32 %v1542, %v1984
      %v2023 = vadd.f32 %v1547, %v1989
      %v2024 = vadd.f32 %v1552, %v1994
      %v2025 = vadd.f32 %v1557, %v1999
      %v2026 = vadd.f32 %v1562, %v2004
      %v2027 = vadd.f32 %v1567, %v2009
      %v2028 = vadd.f32 %v1572, %v2014
      %v2029 = vadd.f32 %v1577, %v2019
      %2030 = vst.msk [vmem:[#allocation3] sm:$0x1] %vm678, 0.0
      %v2031 = vld [vmem:[%s631] sm:$0xff]
      %v2032 = vld [vmem:[%s631 + $0x8] sm:$0xff]
      %v2033 = vmul.f32 %v2031, %v682
      %v2034 = vmul.f32 %v2032, %v682
      %2035 = vst.msk [vmem:[#allocation3 + $0x1] sm:$0xff] %vm685, %v2033
      %2036 = vst.msk [vmem:[#allocation3 + $0x9] sm:$0xff] %vm685, %v2034
      %v2037 = vld [vmem:[%s617] sm:$0xff]
      %v2038 = vld [vmem:[%s617 + $0x8] sm:$0xff]
      %v2039 = vld [vmem:[%s617 + $0x10] sm:$0xff]
      %v2040 = vld [vmem:[%s617 + $0x18] sm:$0xff]
      %v2041 = vld [vmem:[%s617 + $0x20] sm:$0xff]
      %v2042 = vld [vmem:[%s617 + $0x28] sm:$0xff]
      %v2043 = vld [vmem:[%s617 + $0x30] sm:$0xff]
      %v2044 = vld [vmem:[%s617 + $0x38] sm:$0xff]
      %2045 = vst.msk [vmem:[#allocation3 + $0x11] sm:$0xff] %vm685, %v2037
      %2046 = vst.msk [vmem:[#allocation3 + $0x19] sm:$0xff] %vm685, %v2038
      %2047 = vst.msk [vmem:[#allocation3 + $0x21] sm:$0xff] %vm685, %v2039
      %2048 = vst.msk [vmem:[#allocation3 + $0x29] sm:$0xff] %vm685, %v2040
      %2049 = vst.msk [vmem:[#allocation3 + $0x31] sm:$0xff] %vm685, %v2041
      %2050 = vst.msk [vmem:[#allocation3 + $0x39] sm:$0xff] %vm685, %v2042
      %2051 = vst.msk [vmem:[#allocation3 + $0x41] sm:$0xff] %vm685, %v2043
      %2052 = vst.msk [vmem:[#allocation3 + $0x49] sm:$0xff] %vm685, %v2044
      %v2053 = vld [vmem:[%s648] sm:$0xff]
      %v2054 = vld [vmem:[%s648 + $0x8] sm:$0xff]
      %v2055 = vmul.f32 %v2053, %v706
      %v2056 = vmul.f32 %v2054, %v706
      %2057 = vst.msk [vmem:[#allocation3 + $0x51] sm:$0xff] %vm685, %v2055
      %2058 = vst.msk [vmem:[#allocation3 + $0x59] sm:$0xff] %vm685, %v2056
      %2059 = vst.msk [vmem:[#allocation3 + $0x61] sm:$0x1] %vm678, 0.0
      %v2060 = vld [vmem:[#allocation3] sm:$0xff]
      %v2061 = vld [vmem:[#allocation3 + $0x8] sm:$0xff]
      %v2062 = vld [vmem:[#allocation3 + $0x10] sm:$0xff]
      %v2063 = vld [vmem:[#allocation3 + $0x18] sm:$0xff]
      %v2064 = vld [vmem:[#allocation3 + $0x20] sm:$0xff]
      %v2065 = vld [vmem:[#allocation3 + $0x28] sm:$0xff]
      %v2066 = vld [vmem:[#allocation3 + $0x30] sm:$0xff]
      %v2067 = vld [vmem:[#allocation3 + $0x38] sm:$0xff]
      %v2068 = vld [vmem:[%s7] sm:$0xf]
      %v2070 = vsel %vm685, %v2060, 0
      %v2073 = vsel %vm685, %v2061, 0
      %v2076 = vsel %vm685, %v2062, 0
      %v2079 = vsel %vm685, %v2063, 0
      %v2082 = vsel %vm685, %v2064, 0
      %v2085 = vsel %vm685, %v2065, 0
      %v2088 = vsel %vm685, %v2066, 0
      %v2091 = vsel %vm685, %v2067, 0
      %v2094 = vsel %vm755, %v2068, 0
      %2096 = vmatprep.subr.mxu0 0.0
      %2097 = vmatpush1.msra.mxu0 0.0
      %2098 = vmatprep.subr.mxu0 0.0
      %2099 = vmatpush1.msra.mxu0 0.0
      %2100 = vmatprep.subr.mxu0 0.0
      %2101 = vmatpush1.msra.mxu0 0.0
      %2102 = vmatprep.subr.mxu0 0.0
      %2103 = vmatpush1.msra.mxu0 0.0
      %2104 = vmatprep.subr.mxu0 0.0
      %2105 = vmatpush1.msra.mxu0 0.0
      %2106 = vmatprep.subr.mxu0 0.0
      %2107 = vmatpush1.msra.mxu0 0.0
      %2108 = vmatprep.subr.mxu0 0.0
      %2109 = vmatpush1.msra.mxu0 0.0
      %2110 = vmatprep.subr.mxu0 0.0
      %2111 = vmatpush1.msra.mxu0 0.0
      %2112 = vmatprep.subr.mxu0 0.0
      %2113 = vmatpush1.msra.mxu0 0.0
      %2114 = vmatprep.subr.mxu0 0.0
      %2115 = vmatpush1.msra.mxu0 0.0
      %2116 = vmatprep.subr.mxu0 0.0
      %2117 = vmatpush1.msra.mxu0 0.0
      %2118 = vmatprep.subr.mxu0 0.0
      %2119 = vmatpush1.msra.mxu0 0.0
      %2120 = vmatprep.subr.mxu0 0.0
      %2121 = vmatpush1.msra.mxu0 0.0
      %2122 = vmatprep.subr.mxu0 0.0
      %2123 = vmatpush1.msra.mxu0 0.0
      %2124 = vmatprep.subr.mxu0 0.0
      %2125 = vmatpush1.msra.mxu0 0.0
      %2126 = vmatprep.subr.mxu0 0.0
      %2127 = vmatpush1.msra.mxu0 %v2094
      %2128 = vmatprep.subr.mxu0 0.0
      %2129 = vmatpush2.msra.mxu0 0.0
      %2130 = vmatprep.subr.mxu0 0.0
      %2131 = vmatpush2.msra.mxu0 0.0
      %2132 = vmatprep.subr.mxu0 0.0
      %2133 = vmatpush2.msra.mxu0 0.0
      %2134 = vmatprep.subr.mxu0 0.0
      %2135 = vmatpush2.msra.mxu0 0.0
      %2136 = vmatprep.subr.mxu0 0.0
      %2137 = vmatpush2.msra.mxu0 0.0
      %2138 = vmatprep.subr.mxu0 0.0
      %2139 = vmatpush2.msra.mxu0 0.0
      %2140 = vmatprep.subr.mxu0 0.0
      %2141 = vmatpush2.msra.mxu0 0.0
      %2142 = vmatprep.subr.mxu0 0.0
      %2143 = vmatpush2.msra.mxu0 0.0
      %2144 = vmatprep.subr.mxu0 0.0
      %2145 = vmatpush2.msra.mxu0 0.0
      %2146 = vmatprep.subr.mxu0 0.0
      %2147 = vmatpush2.msra.mxu0 0.0
      %2148 = vmatprep.subr.mxu0 0.0
      %2149 = vmatpush2.msra.mxu0 0.0
      %2150 = vmatprep.subr.mxu0 0.0
      %2151 = vmatpush2.msra.mxu0 0.0
      %2152 = vmatprep.subr.mxu0 0.0
      %2153 = vmatpush2.msra.mxu0 0.0
      %2154 = vmatprep.subr.mxu0 0.0
      %2155 = vmatpush2.msra.mxu0 0.0
      %2156 = vmatprep.subr.mxu0 0.0
      %2157 = vmatpush2.msra.mxu0 0.0
      %2158 = vmatprep.subr.mxu0 0.0
      %2159 = vmatpush2.msra.mxu0 0.0
      %2160 = vmatprep.mubr.f32.mxu0 0.0
      %2161 = vmatmul.mubr.f32.gmra.mxu0 %v2070
      %v2162 = vpop.f32.mrf.mxu0
      %v2163 = vadd.f32 0.0, %v2162
      %v2164 = vpop.f32.mrf.mxu0
      %2165 = vmatprep.mubr.f32.mxu0 0.0
      %2166 = vmatmul.mubr.f32.gmra.mxu0 %v2073
      %v2167 = vpop.f32.mrf.mxu0
      %v2168 = vadd.f32 0.0, %v2167
      %v2169 = vpop.f32.mrf.mxu0
      %2170 = vmatprep.mubr.f32.mxu0 0.0
      %2171 = vmatmul.mubr.f32.gmra.mxu0 %v2076
      %v2172 = vpop.f32.mrf.mxu0
      %v2173 = vadd.f32 0.0, %v2172
      %v2174 = vpop.f32.mrf.mxu0
      %2175 = vmatprep.mubr.f32.mxu0 0.0
      %2176 = vmatmul.mubr.f32.gmra.mxu0 %v2079
      %v2177 = vpop.f32.mrf.mxu0
      %v2178 = vadd.f32 0.0, %v2177
      %v2179 = vpop.f32.mrf.mxu0
      %2180 = vmatprep.mubr.f32.mxu0 0.0
      %2181 = vmatmul.mubr.f32.gmra.mxu0 %v2082
      %v2182 = vpop.f32.mrf.mxu0
      %v2183 = vadd.f32 0.0, %v2182
      %v2184 = vpop.f32.mrf.mxu0
      %2185 = vmatprep.mubr.f32.mxu0 0.0
      %2186 = vmatmul.mubr.f32.gmra.mxu0 %v2085
      %v2187 = vpop.f32.mrf.mxu0
      %v2188 = vadd.f32 0.0, %v2187
      %v2189 = vpop.f32.mrf.mxu0
      %2190 = vmatprep.mubr.f32.mxu0 0.0
      %2191 = vmatmul.mubr.f32.gmra.mxu0 %v2088
      %v2192 = vpop.f32.mrf.mxu0
      %v2193 = vadd.f32 0.0, %v2192
      %v2194 = vpop.f32.mrf.mxu0
      %2195 = vmatprep.mubr.f32.mxu0 0.0
      %2196 = vmatmul.mubr.f32.gmra.mxu0 %v2091
      %v2197 = vpop.f32.mrf.mxu0
      %v2198 = vadd.f32 0.0, %v2197
      %v2199 = vpop.f32.mrf.mxu0
      %2200 = vdwg.mxu0
      %v2201 = vadd.f32 %v1722, %v2163
      %v2202 = vadd.f32 %v1723, %v2168
      %v2203 = vadd.f32 %v1724, %v2173
      %v2204 = vadd.f32 %v1725, %v2178
      %v2205 = vadd.f32 %v1726, %v2183
      %v2206 = vadd.f32 %v1727, %v2188
      %v2207 = vadd.f32 %v1728, %v2193
      %v2208 = vadd.f32 %v1729, %v2198
      %v2209 = vld [vmem:[#allocation3 + $0x1] sm:$0xff]
      %v2210 = vld [vmem:[#allocation3 + $0x9] sm:$0xff]
      %v2211 = vld [vmem:[#allocation3 + $0x11] sm:$0xff]
      %v2212 = vld [vmem:[#allocation3 + $0x19] sm:$0xff]
      %v2213 = vld [vmem:[#allocation3 + $0x21] sm:$0xff]
      %v2214 = vld [vmem:[#allocation3 + $0x29] sm:$0xff]
      %v2215 = vld [vmem:[#allocation3 + $0x31] sm:$0xff]
      %v2216 = vld [vmem:[#allocation3 + $0x39] sm:$0xff]
      %s2217 = scalar_lea.vmem %s7, 4
      %v2218 = vld [vmem:[%s2217] sm:$0xf]
      %v2220 = vsel %vm685, %v2209, 0
      %v2223 = vsel %vm685, %v2210, 0
      %v2226 = vsel %vm685, %v2211, 0
      %v2229 = vsel %vm685, %v2212, 0
      %v2232 = vsel %vm685, %v2213, 0
      %v2235 = vsel %vm685, %v2214, 0
      %v2238 = vsel %vm685, %v2215, 0
      %v2241 = vsel %vm685, %v2216, 0
      %v2244 = vsel %vm755, %v2218, 0
      %2246 = vmatprep.subr.mxu0 0.0
      %2247 = vmatpush1.msra.mxu0 0.0
      %2248 = vmatprep.subr.mxu0 0.0
      %2249 = vmatpush1.msra.mxu0 0.0
      %2250 = vmatprep.subr.mxu0 0.0
      %2251 = vmatpush1.msra.mxu0 0.0
      %2252 = vmatprep.subr.mxu0 0.0
      %2253 = vmatpush1.msra.mxu0 0.0
      %2254 = vmatprep.subr.mxu0 0.0
      %2255 = vmatpush1.msra.mxu0 0.0
      %2256 = vmatprep.subr.mxu0 0.0
      %2257 = vmatpush1.msra.mxu0 0.0
      %2258 = vmatprep.subr.mxu0 0.0
      %2259 = vmatpush1.msra.mxu0 0.0
      %2260 = vmatprep.subr.mxu0 0.0
      %2261 = vmatpush1.msra.mxu0 0.0
      %2262 = vmatprep.subr.mxu0 0.0
      %2263 = vmatpush1.msra.mxu0 0.0
      %2264 = vmatprep.subr.mxu0 0.0
      %2265 = vmatpush1.msra.mxu0 0.0
      %2266 = vmatprep.subr.mxu0 0.0
      %2267 = vmatpush1.msra.mxu0 0.0
      %2268 = vmatprep.subr.mxu0 0.0
      %2269 = vmatpush1.msra.mxu0 0.0
      %2270 = vmatprep.subr.mxu0 0.0
      %2271 = vmatpush1.msra.mxu0 0.0
      %2272 = vmatprep.subr.mxu0 0.0
      %2273 = vmatpush1.msra.mxu0 0.0
      %2274 = vmatprep.subr.mxu0 0.0
      %2275 = vmatpush1.msra.mxu0 0.0
      %2276 = vmatprep.subr.mxu0 0.0
      %2277 = vmatpush1.msra.mxu0 %v2244
      %2278 = vmatprep.subr.mxu0 0.0
      %2279 = vmatpush2.msra.mxu0 0.0
      %2280 = vmatprep.subr.mxu0 0.0
      %2281 = vmatpush2.msra.mxu0 0.0
      %2282 = vmatprep.subr.mxu0 0.0
      %2283 = vmatpush2.msra.mxu0 0.0
      %2284 = vmatprep.subr.mxu0 0.0
      %2285 = vmatpush2.msra.mxu0 0.0
      %2286 = vmatprep.subr.mxu0 0.0
      %2287 = vmatpush2.msra.mxu0 0.0
      %2288 = vmatprep.subr.mxu0 0.0
      %2289 = vmatpush2.msra.mxu0 0.0
      %2290 = vmatprep.subr.mxu0 0.0
      %2291 = vmatpush2.msra.mxu0 0.0
      %2292 = vmatprep.subr.mxu0 0.0
      %2293 = vmatpush2.msra.mxu0 0.0
      %2294 = vmatprep.subr.mxu0 0.0
      %2295 = vmatpush2.msra.mxu0 0.0
      %2296 = vmatprep.subr.mxu0 0.0
      %2297 = vmatpush2.msra.mxu0 0.0
      %2298 = vmatprep.subr.mxu0 0.0
      %2299 = vmatpush2.msra.mxu0 0.0
      %2300 = vmatprep.subr.mxu0 0.0
      %2301 = vmatpush2.msra.mxu0 0.0
      %2302 = vmatprep.subr.mxu0 0.0
      %2303 = vmatpush2.msra.mxu0 0.0
      %2304 = vmatprep.subr.mxu0 0.0
      %2305 = vmatpush2.msra.mxu0 0.0
      %2306 = vmatprep.subr.mxu0 0.0
      %2307 = vmatpush2.msra.mxu0 0.0
      %2308 = vmatprep.subr.mxu0 0.0
      %2309 = vmatpush2.msra.mxu0 0.0
      %2310 = vmatprep.mubr.f32.mxu0 0.0
      %2311 = vmatmul.mubr.f32.gmra.mxu0 %v2220
      %v2312 = vpop.f32.mrf.mxu0
      %v2313 = vadd.f32 0.0, %v2312
      %v2314 = vpop.f32.mrf.mxu0
      %2315 = vmatprep.mubr.f32.mxu0 0.0
      %2316 = vmatmul.mubr.f32.gmra.mxu0 %v2223
      %v2317 = vpop.f32.mrf.mxu0
      %v2318 = vadd.f32 0.0, %v2317
      %v2319 = vpop.f32.mrf.mxu0
      %2320 = vmatprep.mubr.f32.mxu0 0.0
      %2321 = vmatmul.mubr.f32.gmra.mxu0 %v2226
      %v2322 = vpop.f32.mrf.mxu0
      %v2323 = vadd.f32 0.0, %v2322
      %v2324 = vpop.f32.mrf.mxu0
      %2325 = vmatprep.mubr.f32.mxu0 0.0
      %2326 = vmatmul.mubr.f32.gmra.mxu0 %v2229
      %v2327 = vpop.f32.mrf.mxu0
      %v2328 = vadd.f32 0.0, %v2327
      %v2329 = vpop.f32.mrf.mxu0
      %2330 = vmatprep.mubr.f32.mxu0 0.0
      %2331 = vmatmul.mubr.f32.gmra.mxu0 %v2232
      %v2332 = vpop.f32.mrf.mxu0
      %v2333 = vadd.f32 0.0, %v2332
      %v2334 = vpop.f32.mrf.mxu0
      %2335 = vmatprep.mubr.f32.mxu0 0.0
      %2336 = vmatmul.mubr.f32.gmra.mxu0 %v2235
      %v2337 = vpop.f32.mrf.mxu0
      %v2338 = vadd.f32 0.0, %v2337
      %v2339 = vpop.f32.mrf.mxu0
      %2340 = vmatprep.mubr.f32.mxu0 0.0
      %2341 = vmatmul.mubr.f32.gmra.mxu0 %v2238
      %v2342 = vpop.f32.mrf.mxu0
      %v2343 = vadd.f32 0.0, %v2342
      %v2344 = vpop.f32.mrf.mxu0
      %2345 = vmatprep.mubr.f32.mxu0 0.0
      %2346 = vmatmul.mubr.f32.gmra.mxu0 %v2241
      %v2347 = vpop.f32.mrf.mxu0
      %v2348 = vadd.f32 0.0, %v2347
      %v2349 = vpop.f32.mrf.mxu0
      %2350 = vdwg.mxu0
      %v2351 = vadd.f32 %v1872, %v2313
      %v2352 = vadd.f32 %v1873, %v2318
      %v2353 = vadd.f32 %v1874, %v2323
      %v2354 = vadd.f32 %v1875, %v2328
      %v2355 = vadd.f32 %v1876, %v2333
      %v2356 = vadd.f32 %v1877, %v2338
      %v2357 = vadd.f32 %v1878, %v2343
      %v2358 = vadd.f32 %v1879, %v2348
      %v2359 = vld [vmem:[#allocation3 + $0x2] sm:$0xff]
      %v2360 = vld [vmem:[#allocation3 + $0xa] sm:$0xff]
      %v2361 = vld [vmem:[#allocation3 + $0x12] sm:$0xff]
      %v2362 = vld [vmem:[#allocation3 + $0x1a] sm:$0xff]
      %v2363 = vld [vmem:[#allocation3 + $0x22] sm:$0xff]
      %v2364 = vld [vmem:[#allocation3 + $0x2a] sm:$0xff]
      %v2365 = vld [vmem:[#allocation3 + $0x32] sm:$0xff]
      %v2366 = vld [vmem:[#allocation3 + $0x3a] sm:$0xff]
      %s2367 = scalar_lea.vmem %s7, 8
      %v2368 = vld [vmem:[%s2367] sm:$0xf]
      %v2370 = vsel %vm685, %v2359, 0
      %v2373 = vsel %vm685, %v2360, 0
      %v2376 = vsel %vm685, %v2361, 0
      %v2379 = vsel %vm685, %v2362, 0
      %v2382 = vsel %vm685, %v2363, 0
      %v2385 = vsel %vm685, %v2364, 0
      %v2388 = vsel %vm685, %v2365, 0
      %v2391 = vsel %vm685, %v2366, 0
      %v2394 = vsel %vm755, %v2368, 0
      %2396 = vmatprep.subr.mxu0 0.0
      %2397 = vmatpush1.msra.mxu0 0.0
      %2398 = vmatprep.subr.mxu0 0.0
      %2399 = vmatpush1.msra.mxu0 0.0
      %2400 = vmatprep.subr.mxu0 0.0
      %2401 = vmatpush1.msra.mxu0 0.0
      %2402 = vmatprep.subr.mxu0 0.0
      %2403 = vmatpush1.msra.mxu0 0.0
      %2404 = vmatprep.subr.mxu0 0.0
      %2405 = vmatpush1.msra.mxu0 0.0
      %2406 = vmatprep.subr.mxu0 0.0
      %2407 = vmatpush1.msra.mxu0 0.0
      %2408 = vmatprep.subr.mxu0 0.0
      %2409 = vmatpush1.msra.mxu0 0.0
      %2410 = vmatprep.subr.mxu0 0.0
      %2411 = vmatpush1.msra.mxu0 0.0
      %2412 = vmatprep.subr.mxu0 0.0
      %2413 = vmatpush1.msra.mxu0 0.0
      %2414 = vmatprep.subr.mxu0 0.0
      %2415 = vmatpush1.msra.mxu0 0.0
      %2416 = vmatprep.subr.mxu0 0.0
      %2417 = vmatpush1.msra.mxu0 0.0
      %2418 = vmatprep.subr.mxu0 0.0
      %2419 = vmatpush1.msra.mxu0 0.0
      %2420 = vmatprep.subr.mxu0 0.0
      %2421 = vmatpush1.msra.mxu0 0.0
      %2422 = vmatprep.subr.mxu0 0.0
      %2423 = vmatpush1.msra.mxu0 0.0
      %2424 = vmatprep.subr.mxu0 0.0
      %2425 = vmatpush1.msra.mxu0 0.0
      %2426 = vmatprep.subr.mxu0 0.0
      %2427 = vmatpush1.msra.mxu0 %v2394
      %2428 = vmatprep.subr.mxu0 0.0
      %2429 = vmatpush2.msra.mxu0 0.0
      %2430 = vmatprep.subr.mxu0 0.0
      %2431 = vmatpush2.msra.mxu0 0.0
      %2432 = vmatprep.subr.mxu0 0.0
      %2433 = vmatpush2.msra.mxu0 0.0
      %2434 = vmatprep.subr.mxu0 0.0
      %2435 = vmatpush2.msra.mxu0 0.0
      %2436 = vmatprep.subr.mxu0 0.0
      %2437 = vmatpush2.msra.mxu0 0.0
      %2438 = vmatprep.subr.mxu0 0.0
      %2439 = vmatpush2.msra.mxu0 0.0
      %2440 = vmatprep.subr.mxu0 0.0
      %2441 = vmatpush2.msra.mxu0 0.0
      %2442 = vmatprep.subr.mxu0 0.0
      %2443 = vmatpush2.msra.mxu0 0.0
      %2444 = vmatprep.subr.mxu0 0.0
      %2445 = vmatpush2.msra.mxu0 0.0
      %2446 = vmatprep.subr.mxu0 0.0
      %2447 = vmatpush2.msra.mxu0 0.0
      %2448 = vmatprep.subr.mxu0 0.0
      %2449 = vmatpush2.msra.mxu0 0.0
      %2450 = vmatprep.subr.mxu0 0.0
      %2451 = vmatpush2.msra.mxu0 0.0
      %2452 = vmatprep.subr.mxu0 0.0
      %2453 = vmatpush2.msra.mxu0 0.0
      %2454 = vmatprep.subr.mxu0 0.0
      %2455 = vmatpush2.msra.mxu0 0.0
      %2456 = vmatprep.subr.mxu0 0.0
      %2457 = vmatpush2.msra.mxu0 0.0
      %2458 = vmatprep.subr.mxu0 0.0
      %2459 = vmatpush2.msra.mxu0 0.0
      %2460 = vmatprep.mubr.f32.mxu0 0.0
      %2461 = vmatmul.mubr.f32.gmra.mxu0 %v2370
      %v2462 = vpop.f32.mrf.mxu0
      %v2463 = vadd.f32 0.0, %v2462
      %v2464 = vpop.f32.mrf.mxu0
      %2465 = vmatprep.mubr.f32.mxu0 0.0
      %2466 = vmatmul.mubr.f32.gmra.mxu0 %v2373
      %v2467 = vpop.f32.mrf.mxu0
      %v2468 = vadd.f32 0.0, %v2467
      %v2469 = vpop.f32.mrf.mxu0
      %2470 = vmatprep.mubr.f32.mxu0 0.0
      %2471 = vmatmul.mubr.f32.gmra.mxu0 %v2376
      %v2472 = vpop.f32.mrf.mxu0
      %v2473 = vadd.f32 0.0, %v2472
      %v2474 = vpop.f32.mrf.mxu0
      %2475 = vmatprep.mubr.f32.mxu0 0.0
      %2476 = vmatmul.mubr.f32.gmra.mxu0 %v2379
      %v2477 = vpop.f32.mrf.mxu0
      %v2478 = vadd.f32 0.0, %v2477
      %v2479 = vpop.f32.mrf.mxu0
      %2480 = vmatprep.mubr.f32.mxu0 0.0
      %2481 = vmatmul.mubr.f32.gmra.mxu0 %v2382
      %v2482 = vpop.f32.mrf.mxu0
      %v2483 = vadd.f32 0.0, %v2482
      %v2484 = vpop.f32.mrf.mxu0
      %2485 = vmatprep.mubr.f32.mxu0 0.0
      %2486 = vmatmul.mubr.f32.gmra.mxu0 %v2385
      %v2487 = vpop.f32.mrf.mxu0
      %v2488 = vadd.f32 0.0, %v2487
      %v2489 = vpop.f32.mrf.mxu0
      %2490 = vmatprep.mubr.f32.mxu0 0.0
      %2491 = vmatmul.mubr.f32.gmra.mxu0 %v2388
      %v2492 = vpop.f32.mrf.mxu0
      %v2493 = vadd.f32 0.0, %v2492
      %v2494 = vpop.f32.mrf.mxu0
      %2495 = vmatprep.mubr.f32.mxu0 0.0
      %2496 = vmatmul.mubr.f32.gmra.mxu0 %v2391
      %v2497 = vpop.f32.mrf.mxu0
      %v2498 = vadd.f32 0.0, %v2497
      %v2499 = vpop.f32.mrf.mxu0
      %2500 = vdwg.mxu0
      %v2501 = vadd.f32 %v2022, %v2463
      %v2502 = vadd.f32 %v2023, %v2468
      %v2503 = vadd.f32 %v2024, %v2473
      %v2504 = vadd.f32 %v2025, %v2478
      %v2505 = vadd.f32 %v2026, %v2483
      %v2506 = vadd.f32 %v2027, %v2488
      %v2507 = vadd.f32 %v2028, %v2493
      %v2508 = vadd.f32 %v2029, %v2498
      %v2509 = vld [vmem:[#allocation3 + $0x10] sm:$0xff]
      %v2510 = vld [vmem:[#allocation3 + $0x18] sm:$0xff]
      %v2511 = vld [vmem:[#allocation3 + $0x20] sm:$0xff]
      %v2512 = vld [vmem:[#allocation3 + $0x28] sm:$0xff]
      %v2513 = vld [vmem:[#allocation3 + $0x30] sm:$0xff]
      %v2514 = vld [vmem:[#allocation3 + $0x38] sm:$0xff]
      %v2515 = vld [vmem:[#allocation3 + $0x40] sm:$0xff]
      %v2516 = vld [vmem:[#allocation3 + $0x48] sm:$0xff]
      %s2517 = scalar_lea.vmem %s7, 12
      %v2518 = vld [vmem:[%s2517] sm:$0xf]
      %v2520 = vsel %vm685, %v2509, 0
      %v2523 = vsel %vm685, %v2510, 0
      %v2526 = vsel %vm685, %v2511, 0
      %v2529 = vsel %vm685, %v2512, 0
      %v2532 = vsel %vm685, %v2513, 0
      %v2535 = vsel %vm685, %v2514, 0
      %v2538 = vsel %vm685, %v2515, 0
      %v2541 = vsel %vm685, %v2516, 0
      %v2544 = vsel %vm755, %v2518, 0
      %2546 = vmatprep.subr.mxu0 0.0
      %2547 = vmatpush1.msra.mxu0 0.0
      %2548 = vmatprep.subr.mxu0 0.0
      %2549 = vmatpush1.msra.mxu0 0.0
      %2550 = vmatprep.subr.mxu0 0.0
      %2551 = vmatpush1.msra.mxu0 0.0
      %2552 = vmatprep.subr.mxu0 0.0
      %2553 = vmatpush1.msra.mxu0 0.0
      %2554 = vmatprep.subr.mxu0 0.0
      %2555 = vmatpush1.msra.mxu0 0.0
      %2556 = vmatprep.subr.mxu0 0.0
      %2557 = vmatpush1.msra.mxu0 0.0
      %2558 = vmatprep.subr.mxu0 0.0
      %2559 = vmatpush1.msra.mxu0 0.0
      %2560 = vmatprep.subr.mxu0 0.0
      %2561 = vmatpush1.msra.mxu0 0.0
      %2562 = vmatprep.subr.mxu0 0.0
      %2563 = vmatpush1.msra.mxu0 0.0
      %2564 = vmatprep.subr.mxu0 0.0
      %2565 = vmatpush1.msra.mxu0 0.0
      %2566 = vmatprep.subr.mxu0 0.0
      %2567 = vmatpush1.msra.mxu0 0.0
      %2568 = vmatprep.subr.mxu0 0.0
      %2569 = vmatpush1.msra.mxu0 0.0
      %2570 = vmatprep.subr.mxu0 0.0
      %2571 = vmatpush1.msra.mxu0 0.0
      %2572 = vmatprep.subr.mxu0 0.0
      %2573 = vmatpush1.msra.mxu0 0.0
      %2574 = vmatprep.subr.mxu0 0.0
      %2575 = vmatpush1.msra.mxu0 0.0
      %2576 = vmatprep.subr.mxu0 0.0
      %2577 = vmatpush1.msra.mxu0 %v2544
      %2578 = vmatprep.subr.mxu0 0.0
      %2579 = vmatpush2.msra.mxu0 0.0
      %2580 = vmatprep.subr.mxu0 0.0
      %2581 = vmatpush2.msra.mxu0 0.0
      %2582 = vmatprep.subr.mxu0 0.0
      %2583 = vmatpush2.msra.mxu0 0.0
      %2584 = vmatprep.subr.mxu0 0.0
      %2585 = vmatpush2.msra.mxu0 0.0
      %2586 = vmatprep.subr.mxu0 0.0
      %2587 = vmatpush2.msra.mxu0 0.0
      %2588 = vmatprep.subr.mxu0 0.0
      %2589 = vmatpush2.msra.mxu0 0.0
      %2590 = vmatprep.subr.mxu0 0.0
      %2591 = vmatpush2.msra.mxu0 0.0
      %2592 = vmatprep.subr.mxu0 0.0
      %2593 = vmatpush2.msra.mxu0 0.0
      %2594 = vmatprep.subr.mxu0 0.0
      %2595 = vmatpush2.msra.mxu0 0.0
      %2596 = vmatprep.subr.mxu0 0.0
      %2597 = vmatpush2.msra.mxu0 0.0
      %2598 = vmatprep.subr.mxu0 0.0
      %2599 = vmatpush2.msra.mxu0 0.0
      %2600 = vmatprep.subr.mxu0 0.0
      %2601 = vmatpush2.msra.mxu0 0.0
      %2602 = vmatprep.subr.mxu0 0.0
      %2603 = vmatpush2.msra.mxu0 0.0
      %2604 = vmatprep.subr.mxu0 0.0
      %2605 = vmatpush2.msra.mxu0 0.0
      %2606 = vmatprep.subr.mxu0 0.0
      %2607 = vmatpush2.msra.mxu0 0.0
      %2608 = vmatprep.subr.mxu0 0.0
      %2609 = vmatpush2.msra.mxu0 0.0
      %2610 = vmatprep.mubr.f32.mxu0 0.0
      %2611 = vmatmul.mubr.f32.gmra.mxu0 %v2520
      %v2612 = vpop.f32.mrf.mxu0
      %v2613 = vadd.f32 0.0, %v2612
      %v2614 = vpop.f32.mrf.mxu0
      %2615 = vmatprep.mubr.f32.mxu0 0.0
      %2616 = vmatmul.mubr.f32.gmra.mxu0 %v2523
      %v2617 = vpop.f32.mrf.mxu0
      %v2618 = vadd.f32 0.0, %v2617
      %v2619 = vpop.f32.mrf.mxu0
      %2620 = vmatprep.mubr.f32.mxu0 0.0
      %2621 = vmatmul.mubr.f32.gmra.mxu0 %v2526
      %v2622 = vpop.f32.mrf.mxu0
      %v2623 = vadd.f32 0.0, %v2622
      %v2624 = vpop.f32.mrf.mxu0
      %2625 = vmatprep.mubr.f32.mxu0 0.0
      %2626 = vmatmul.mubr.f32.gmra.mxu0 %v2529
      %v2627 = vpop.f32.mrf.mxu0
      %v2628 = vadd.f32 0.0, %v2627
      %v2629 = vpop.f32.mrf.mxu0
      %2630 = vmatprep.mubr.f32.mxu0 0.0
      %2631 = vmatmul.mubr.f32.gmra.mxu0 %v2532
      %v2632 = vpop.f32.mrf.mxu0
      %v2633 = vadd.f32 0.0, %v2632
      %v2634 = vpop.f32.mrf.mxu0
      %2635 = vmatprep.mubr.f32.mxu0 0.0
      %2636 = vmatmul.mubr.f32.gmra.mxu0 %v2535
      %v2637 = vpop.f32.mrf.mxu0
      %v2638 = vadd.f32 0.0, %v2637
      %v2639 = vpop.f32.mrf.mxu0
      %2640 = vmatprep.mubr.f32.mxu0 0.0
      %2641 = vmatmul.mubr.f32.gmra.mxu0 %v2538
      %v2642 = vpop.f32.mrf.mxu0
      %v2643 = vadd.f32 0.0, %v2642
      %v2644 = vpop.f32.mrf.mxu0
      %2645 = vmatprep.mubr.f32.mxu0 0.0
      %2646 = vmatmul.mubr.f32.gmra.mxu0 %v2541
      %v2647 = vpop.f32.mrf.mxu0
      %v2648 = vadd.f32 0.0, %v2647
      %v2649 = vpop.f32.mrf.mxu0
      %2650 = vdwg.mxu0
      %v2651 = vadd.f32 %v2201, %v2613
      %v2652 = vadd.f32 %v2202, %v2618
      %v2653 = vadd.f32 %v2203, %v2623
      %v2654 = vadd.f32 %v2204, %v2628
      %v2655 = vadd.f32 %v2205, %v2633
      %v2656 = vadd.f32 %v2206, %v2638
      %v2657 = vadd.f32 %v2207, %v2643
      %v2658 = vadd.f32 %v2208, %v2648
      %v2659 = vld [vmem:[#allocation3 + $0x11] sm:$0xff]
      %v2660 = vld [vmem:[#allocation3 + $0x19] sm:$0xff]
      %v2661 = vld [vmem:[#allocation3 + $0x21] sm:$0xff]
      %v2662 = vld [vmem:[#allocation3 + $0x29] sm:$0xff]
      %v2663 = vld [vmem:[#allocation3 + $0x31] sm:$0xff]
      %v2664 = vld [vmem:[#allocation3 + $0x39] sm:$0xff]
      %v2665 = vld [vmem:[#allocation3 + $0x41] sm:$0xff]
      %v2666 = vld [vmem:[#allocation3 + $0x49] sm:$0xff]
      %s2667 = scalar_lea.vmem %s7, 16
      %v2668 = vld [vmem:[%s2667] sm:$0xf]
      %v2670 = vsel %vm685, %v2659, 0
      %v2673 = vsel %vm685, %v2660, 0
      %v2676 = vsel %vm685, %v2661, 0
      %v2679 = vsel %vm685, %v2662, 0
      %v2682 = vsel %vm685, %v2663, 0
      %v2685 = vsel %vm685, %v2664, 0
      %v2688 = vsel %vm685, %v2665, 0
      %v2691 = vsel %vm685, %v2666, 0
      %v2694 = vsel %vm755, %v2668, 0
      %2696 = vmatprep.subr.mxu0 0.0
      %2697 = vmatpush1.msra.mxu0 0.0
      %2698 = vmatprep.subr.mxu0 0.0
      %2699 = vmatpush1.msra.mxu0 0.0
      %2700 = vmatprep.subr.mxu0 0.0
      %2701 = vmatpush1.msra.mxu0 0.0
      %2702 = vmatprep.subr.mxu0 0.0
      %2703 = vmatpush1.msra.mxu0 0.0
      %2704 = vmatprep.subr.mxu0 0.0
      %2705 = vmatpush1.msra.mxu0 0.0
      %2706 = vmatprep.subr.mxu0 0.0
      %2707 = vmatpush1.msra.mxu0 0.0
      %2708 = vmatprep.subr.mxu0 0.0
      %2709 = vmatpush1.msra.mxu0 0.0
      %2710 = vmatprep.subr.mxu0 0.0
      %2711 = vmatpush1.msra.mxu0 0.0
      %2712 = vmatprep.subr.mxu0 0.0
      %2713 = vmatpush1.msra.mxu0 0.0
      %2714 = vmatprep.subr.mxu0 0.0
      %2715 = vmatpush1.msra.mxu0 0.0
      %2716 = vmatprep.subr.mxu0 0.0
      %2717 = vmatpush1.msra.mxu0 0.0
      %2718 = vmatprep.subr.mxu0 0.0
      %2719 = vmatpush1.msra.mxu0 0.0
      %2720 = vmatprep.subr.mxu0 0.0
      %2721 = vmatpush1.msra.mxu0 0.0
      %2722 = vmatprep.subr.mxu0 0.0
      %2723 = vmatpush1.msra.mxu0 0.0
      %2724 = vmatprep.subr.mxu0 0.0
      %2725 = vmatpush1.msra.mxu0 0.0
      %2726 = vmatprep.subr.mxu0 0.0
      %2727 = vmatpush1.msra.mxu0 %v2694
      %2728 = vmatprep.subr.mxu0 0.0
      %2729 = vmatpush2.msra.mxu0 0.0
      %2730 = vmatprep.subr.mxu0 0.0
      %2731 = vmatpush2.msra.mxu0 0.0
      %2732 = vmatprep.subr.mxu0 0.0
      %2733 = vmatpush2.msra.mxu0 0.0
      %2734 = vmatprep.subr.mxu0 0.0
      %2735 = vmatpush2.msra.mxu0 0.0
      %2736 = vmatprep.subr.mxu0 0.0
      %2737 = vmatpush2.msra.mxu0 0.0
      %2738 = vmatprep.subr.mxu0 0.0
      %2739 = vmatpush2.msra.mxu0 0.0
      %2740 = vmatprep.subr.mxu0 0.0
      %2741 = vmatpush2.msra.mxu0 0.0
      %2742 = vmatprep.subr.mxu0 0.0
      %2743 = vmatpush2.msra.mxu0 0.0
      %2744 = vmatprep.subr.mxu0 0.0
      %2745 = vmatpush2.msra.mxu0 0.0
      %2746 = vmatprep.subr.mxu0 0.0
      %2747 = vmatpush2.msra.mxu0 0.0
      %2748 = vmatprep.subr.mxu0 0.0
      %2749 = vmatpush2.msra.mxu0 0.0
      %2750 = vmatprep.subr.mxu0 0.0
      %2751 = vmatpush2.msra.mxu0 0.0
      %2752 = vmatprep.subr.mxu0 0.0
      %2753 = vmatpush2.msra.mxu0 0.0
      %2754 = vmatprep.subr.mxu0 0.0
      %2755 = vmatpush2.msra.mxu0 0.0
      %2756 = vmatprep.subr.mxu0 0.0
      %2757 = vmatpush2.msra.mxu0 0.0
      %2758 = vmatprep.subr.mxu0 0.0
      %2759 = vmatpush2.msra.mxu0 0.0
      %2760 = vmatprep.mubr.f32.mxu0 0.0
      %2761 = vmatmul.mubr.f32.gmra.mxu0 %v2670
      %v2762 = vpop.f32.mrf.mxu0
      %v2763 = vadd.f32 0.0, %v2762
      %v2764 = vpop.f32.mrf.mxu0
      %2765 = vmatprep.mubr.f32.mxu0 0.0
      %2766 = vmatmul.mubr.f32.gmra.mxu0 %v2673
      %v2767 = vpop.f32.mrf.mxu0
      %v2768 = vadd.f32 0.0, %v2767
      %v2769 = vpop.f32.mrf.mxu0
      %2770 = vmatprep.mubr.f32.mxu0 0.0
      %2771 = vmatmul.mubr.f32.gmra.mxu0 %v2676
      %v2772 = vpop.f32.mrf.mxu0
      %v2773 = vadd.f32 0.0, %v2772
      %v2774 = vpop.f32.mrf.mxu0
      %2775 = vmatprep.mubr.f32.mxu0 0.0
      %2776 = vmatmul.mubr.f32.gmra.mxu0 %v2679
      %v2777 = vpop.f32.mrf.mxu0
      %v2778 = vadd.f32 0.0, %v2777
      %v2779 = vpop.f32.mrf.mxu0
      %2780 = vmatprep.mubr.f32.mxu0 0.0
      %2781 = vmatmul.mubr.f32.gmra.mxu0 %v2682
      %v2782 = vpop.f32.mrf.mxu0
      %v2783 = vadd.f32 0.0, %v2782
      %v2784 = vpop.f32.mrf.mxu0
      %2785 = vmatprep.mubr.f32.mxu0 0.0
      %2786 = vmatmul.mubr.f32.gmra.mxu0 %v2685
      %v2787 = vpop.f32.mrf.mxu0
      %v2788 = vadd.f32 0.0, %v2787
      %v2789 = vpop.f32.mrf.mxu0
      %2790 = vmatprep.mubr.f32.mxu0 0.0
      %2791 = vmatmul.mubr.f32.gmra.mxu0 %v2688
      %v2792 = vpop.f32.mrf.mxu0
      %v2793 = vadd.f32 0.0, %v2792
      %v2794 = vpop.f32.mrf.mxu0
      %2795 = vmatprep.mubr.f32.mxu0 0.0
      %2796 = vmatmul.mubr.f32.gmra.mxu0 %v2691
      %v2797 = vpop.f32.mrf.mxu0
      %v2798 = vadd.f32 0.0, %v2797
      %v2799 = vpop.f32.mrf.mxu0
      %2800 = vdwg.mxu0
      %v2801 = vadd.f32 %v2351, %v2763
      %v2802 = vadd.f32 %v2352, %v2768
      %v2803 = vadd.f32 %v2353, %v2773
      %v2804 = vadd.f32 %v2354, %v2778
      %v2805 = vadd.f32 %v2355, %v2783
      %v2806 = vadd.f32 %v2356, %v2788
      %v2807 = vadd.f32 %v2357, %v2793
      %v2808 = vadd.f32 %v2358, %v2798
      %v2809 = vld [vmem:[#allocation3 + $0x12] sm:$0xff]
      %v2810 = vld [vmem:[#allocation3 + $0x1a] sm:$0xff]
      %v2811 = vld [vmem:[#allocation3 + $0x22] sm:$0xff]
      %v2812 = vld [vmem:[#allocation3 + $0x2a] sm:$0xff]
      %v2813 = vld [vmem:[#allocation3 + $0x32] sm:$0xff]
      %v2814 = vld [vmem:[#allocation3 + $0x3a] sm:$0xff]
      %v2815 = vld [vmem:[#allocation3 + $0x42] sm:$0xff]
      %v2816 = vld [vmem:[#allocation3 + $0x4a] sm:$0xff]
      %s2817 = scalar_lea.vmem %s7, 20
      %v2818 = vld [vmem:[%s2817] sm:$0xf]
      %v2820 = vsel %vm685, %v2809, 0
      %v2823 = vsel %vm685, %v2810, 0
      %v2826 = vsel %vm685, %v2811, 0
      %v2829 = vsel %vm685, %v2812, 0
      %v2832 = vsel %vm685, %v2813, 0
      %v2835 = vsel %vm685, %v2814, 0
      %v2838 = vsel %vm685, %v2815, 0
      %v2841 = vsel %vm685, %v2816, 0
      %v2844 = vsel %vm755, %v2818, 0
      %2846 = vmatprep.subr.mxu0 0.0
      %2847 = vmatpush1.msra.mxu0 0.0
      %2848 = vmatprep.subr.mxu0 0.0
      %2849 = vmatpush1.msra.mxu0 0.0
      %2850 = vmatprep.subr.mxu0 0.0
      %2851 = vmatpush1.msra.mxu0 0.0
      %2852 = vmatprep.subr.mxu0 0.0
      %2853 = vmatpush1.msra.mxu0 0.0
      %2854 = vmatprep.subr.mxu0 0.0
      %2855 = vmatpush1.msra.mxu0 0.0
      %2856 = vmatprep.subr.mxu0 0.0
      %2857 = vmatpush1.msra.mxu0 0.0
      %2858 = vmatprep.subr.mxu0 0.0
      %2859 = vmatpush1.msra.mxu0 0.0
      %2860 = vmatprep.subr.mxu0 0.0
      %2861 = vmatpush1.msra.mxu0 0.0
      %2862 = vmatprep.subr.mxu0 0.0
      %2863 = vmatpush1.msra.mxu0 0.0
      %2864 = vmatprep.subr.mxu0 0.0
      %2865 = vmatpush1.msra.mxu0 0.0
      %2866 = vmatprep.subr.mxu0 0.0
      %2867 = vmatpush1.msra.mxu0 0.0
      %2868 = vmatprep.subr.mxu0 0.0
      %2869 = vmatpush1.msra.mxu0 0.0
      %2870 = vmatprep.subr.mxu0 0.0
      %2871 = vmatpush1.msra.mxu0 0.0
      %2872 = vmatprep.subr.mxu0 0.0
      %2873 = vmatpush1.msra.mxu0 0.0
      %2874 = vmatprep.subr.mxu0 0.0
      %2875 = vmatpush1.msra.mxu0 0.0
      %2876 = vmatprep.subr.mxu0 0.0
      %2877 = vmatpush1.msra.mxu0 %v2844
      %2878 = vmatprep.subr.mxu0 0.0
      %2879 = vmatpush2.msra.mxu0 0.0
      %2880 = vmatprep.subr.mxu0 0.0
      %2881 = vmatpush2.msra.mxu0 0.0
      %2882 = vmatprep.subr.mxu0 0.0
      %2883 = vmatpush2.msra.mxu0 0.0
      %2884 = vmatprep.subr.mxu0 0.0
      %2885 = vmatpush2.msra.mxu0 0.0
      %2886 = vmatprep.subr.mxu0 0.0
      %2887 = vmatpush2.msra.mxu0 0.0
      %2888 = vmatprep.subr.mxu0 0.0
      %2889 = vmatpush2.msra.mxu0 0.0
      %2890 = vmatprep.subr.mxu0 0.0
      %2891 = vmatpush2.msra.mxu0 0.0
      %2892 = vmatprep.subr.mxu0 0.0
      %2893 = vmatpush2.msra.mxu0 0.0
      %2894 = vmatprep.subr.mxu0 0.0
      %2895 = vmatpush2.msra.mxu0 0.0
      %2896 = vmatprep.subr.mxu0 0.0
      %2897 = vmatpush2.msra.mxu0 0.0
      %2898 = vmatprep.subr.mxu0 0.0
      %2899 = vmatpush2.msra.mxu0 0.0
      %2900 = vmatprep.subr.mxu0 0.0
      %2901 = vmatpush2.msra.mxu0 0.0
      %2902 = vmatprep.subr.mxu0 0.0
      %2903 = vmatpush2.msra.mxu0 0.0
      %2904 = vmatprep.subr.mxu0 0.0
      %2905 = vmatpush2.msra.mxu0 0.0
      %2906 = vmatprep.subr.mxu0 0.0
      %2907 = vmatpush2.msra.mxu0 0.0
      %2908 = vmatprep.subr.mxu0 0.0
      %2909 = vmatpush2.msra.mxu0 0.0
      %2910 = vmatprep.mubr.f32.mxu0 0.0
      %2911 = vmatmul.mubr.f32.gmra.mxu0 %v2820
      %v2912 = vpop.f32.mrf.mxu0
      %v2913 = vadd.f32 0.0, %v2912
      %v2914 = vpop.f32.mrf.mxu0
      %2915 = vmatprep.mubr.f32.mxu0 0.0
      %2916 = vmatmul.mubr.f32.gmra.mxu0 %v2823
      %v2917 = vpop.f32.mrf.mxu0
      %v2918 = vadd.f32 0.0, %v2917
      %v2919 = vpop.f32.mrf.mxu0
      %2920 = vmatprep.mubr.f32.mxu0 0.0
      %2921 = vmatmul.mubr.f32.gmra.mxu0 %v2826
      %v2922 = vpop.f32.mrf.mxu0
      %v2923 = vadd.f32 0.0, %v2922
      %v2924 = vpop.f32.mrf.mxu0
      %2925 = vmatprep.mubr.f32.mxu0 0.0
      %2926 = vmatmul.mubr.f32.gmra.mxu0 %v2829
      %v2927 = vpop.f32.mrf.mxu0
      %v2928 = vadd.f32 0.0, %v2927
      %v2929 = vpop.f32.mrf.mxu0
      %2930 = vmatprep.mubr.f32.mxu0 0.0
      %2931 = vmatmul.mubr.f32.gmra.mxu0 %v2832
      %v2932 = vpop.f32.mrf.mxu0
      %v2933 = vadd.f32 0.0, %v2932
      %v2934 = vpop.f32.mrf.mxu0
      %2935 = vmatprep.mubr.f32.mxu0 0.0
      %2936 = vmatmul.mubr.f32.gmra.mxu0 %v2835
      %v2937 = vpop.f32.mrf.mxu0
      %v2938 = vadd.f32 0.0, %v2937
      %v2939 = vpop.f32.mrf.mxu0
      %2940 = vmatprep.mubr.f32.mxu0 0.0
      %2941 = vmatmul.mubr.f32.gmra.mxu0 %v2838
      %v2942 = vpop.f32.mrf.mxu0
      %v2943 = vadd.f32 0.0, %v2942
      %v2944 = vpop.f32.mrf.mxu0
      %2945 = vmatprep.mubr.f32.mxu0 0.0
      %2946 = vmatmul.mubr.f32.gmra.mxu0 %v2841
      %v2947 = vpop.f32.mrf.mxu0
      %v2948 = vadd.f32 0.0, %v2947
      %v2949 = vpop.f32.mrf.mxu0
      %2950 = vdwg.mxu0
      %v2951 = vadd.f32 %v2501, %v2913
      %v2952 = vadd.f32 %v2502, %v2918
      %v2953 = vadd.f32 %v2503, %v2923
      %v2954 = vadd.f32 %v2504, %v2928
      %v2955 = vadd.f32 %v2505, %v2933
      %v2956 = vadd.f32 %v2506, %v2938
      %v2957 = vadd.f32 %v2507, %v2943
      %v2958 = vadd.f32 %v2508, %v2948
      %v2959 = vld [vmem:[#allocation3 + $0x20] sm:$0xff]
      %v2960 = vld [vmem:[#allocation3 + $0x28] sm:$0xff]
      %v2961 = vld [vmem:[#allocation3 + $0x30] sm:$0xff]
      %v2962 = vld [vmem:[#allocation3 + $0x38] sm:$0xff]
      %v2963 = vld [vmem:[#allocation3 + $0x40] sm:$0xff]
      %v2964 = vld [vmem:[#allocation3 + $0x48] sm:$0xff]
      %v2965 = vld [vmem:[#allocation3 + $0x50] sm:$0xff]
      %v2966 = vld [vmem:[#allocation3 + $0x58] sm:$0xff]
      %s2967 = scalar_lea.vmem %s7, 24
      %v2968 = vld [vmem:[%s2967] sm:$0xf]
      %v2970 = vsel %vm685, %v2959, 0
      %v2973 = vsel %vm685, %v2960, 0
      %v2976 = vsel %vm685, %v2961, 0
      %v2979 = vsel %vm685, %v2962, 0
      %v2982 = vsel %vm685, %v2963, 0
      %v2985 = vsel %vm685, %v2964, 0
      %v2988 = vsel %vm685, %v2965, 0
      %v2991 = vsel %vm685, %v2966, 0
      %v2994 = vsel %vm755, %v2968, 0
      %2996 = vmatprep.subr.mxu0 0.0
      %2997 = vmatpush1.msra.mxu0 0.0
      %2998 = vmatprep.subr.mxu0 0.0
      %2999 = vmatpush1.msra.mxu0 0.0
      %3000 = vmatprep.subr.mxu0 0.0
      %3001 = vmatpush1.msra.mxu0 0.0
      %3002 = vmatprep.subr.mxu0 0.0
      %3003 = vmatpush1.msra.mxu0 0.0
      %3004 = vmatprep.subr.mxu0 0.0
      %3005 = vmatpush1.msra.mxu0 0.0
      %3006 = vmatprep.subr.mxu0 0.0
      %3007 = vmatpush1.msra.mxu0 0.0
      %3008 = vmatprep.subr.mxu0 0.0
      %3009 = vmatpush1.msra.mxu0 0.0
      %3010 = vmatprep.subr.mxu0 0.0
      %3011 = vmatpush1.msra.mxu0 0.0
      %3012 = vmatprep.subr.mxu0 0.0
      %3013 = vmatpush1.msra.mxu0 0.0
      %3014 = vmatprep.subr.mxu0 0.0
      %3015 = vmatpush1.msra.mxu0 0.0
      %3016 = vmatprep.subr.mxu0 0.0
      %3017 = vmatpush1.msra.mxu0 0.0
      %3018 = vmatprep.subr.mxu0 0.0
      %3019 = vmatpush1.msra.mxu0 0.0
      %3020 = vmatprep.subr.mxu0 0.0
      %3021 = vmatpush1.msra.mxu0 0.0
      %3022 = vmatprep.subr.mxu0 0.0
      %3023 = vmatpush1.msra.mxu0 0.0
      %3024 = vmatprep.subr.mxu0 0.0
      %3025 = vmatpush1.msra.mxu0 0.0
      %3026 = vmatprep.subr.mxu0 0.0
      %3027 = vmatpush1.msra.mxu0 %v2994
      %3028 = vmatprep.subr.mxu0 0.0
      %3029 = vmatpush2.msra.mxu0 0.0
      %3030 = vmatprep.subr.mxu0 0.0
      %3031 = vmatpush2.msra.mxu0 0.0
      %3032 = vmatprep.subr.mxu0 0.0
      %3033 = vmatpush2.msra.mxu0 0.0
      %3034 = vmatprep.subr.mxu0 0.0
      %3035 = vmatpush2.msra.mxu0 0.0
      %3036 = vmatprep.subr.mxu0 0.0
      %3037 = vmatpush2.msra.mxu0 0.0
      %3038 = vmatprep.subr.mxu0 0.0
      %3039 = vmatpush2.msra.mxu0 0.0
      %3040 = vmatprep.subr.mxu0 0.0
      %3041 = vmatpush2.msra.mxu0 0.0
      %3042 = vmatprep.subr.mxu0 0.0
      %3043 = vmatpush2.msra.mxu0 0.0
      %3044 = vmatprep.subr.mxu0 0.0
      %3045 = vmatpush2.msra.mxu0 0.0
      %3046 = vmatprep.subr.mxu0 0.0
      %3047 = vmatpush2.msra.mxu0 0.0
      %3048 = vmatprep.subr.mxu0 0.0
      %3049 = vmatpush2.msra.mxu0 0.0
      %3050 = vmatprep.subr.mxu0 0.0
      %3051 = vmatpush2.msra.mxu0 0.0
      %3052 = vmatprep.subr.mxu0 0.0
      %3053 = vmatpush2.msra.mxu0 0.0
      %3054 = vmatprep.subr.mxu0 0.0
      %3055 = vmatpush2.msra.mxu0 0.0
      %3056 = vmatprep.subr.mxu0 0.0
      %3057 = vmatpush2.msra.mxu0 0.0
      %3058 = vmatprep.subr.mxu0 0.0
      %3059 = vmatpush2.msra.mxu0 0.0
      %3060 = vmatprep.mubr.f32.mxu0 0.0
      %3061 = vmatmul.mubr.f32.gmra.mxu0 %v2970
      %v3062 = vpop.f32.mrf.mxu0
      %v3063 = vadd.f32 0.0, %v3062
      %v3064 = vpop.f32.mrf.mxu0
      %3065 = vmatprep.mubr.f32.mxu0 0.0
      %3066 = vmatmul.mubr.f32.gmra.mxu0 %v2973
      %v3067 = vpop.f32.mrf.mxu0
      %v3068 = vadd.f32 0.0, %v3067
      %v3069 = vpop.f32.mrf.mxu0
      %3070 = vmatprep.mubr.f32.mxu0 0.0
      %3071 = vmatmul.mubr.f32.gmra.mxu0 %v2976
      %v3072 = vpop.f32.mrf.mxu0
      %v3073 = vadd.f32 0.0, %v3072
      %v3074 = vpop.f32.mrf.mxu0
      %3075 = vmatprep.mubr.f32.mxu0 0.0
      %3076 = vmatmul.mubr.f32.gmra.mxu0 %v2979
      %v3077 = vpop.f32.mrf.mxu0
      %v3078 = vadd.f32 0.0, %v3077
      %v3079 = vpop.f32.mrf.mxu0
      %3080 = vmatprep.mubr.f32.mxu0 0.0
      %3081 = vmatmul.mubr.f32.gmra.mxu0 %v2982
      %v3082 = vpop.f32.mrf.mxu0
      %v3083 = vadd.f32 0.0, %v3082
      %v3084 = vpop.f32.mrf.mxu0
      %3085 = vmatprep.mubr.f32.mxu0 0.0
      %3086 = vmatmul.mubr.f32.gmra.mxu0 %v2985
      %v3087 = vpop.f32.mrf.mxu0
      %v3088 = vadd.f32 0.0, %v3087
      %v3089 = vpop.f32.mrf.mxu0
      %3090 = vmatprep.mubr.f32.mxu0 0.0
      %3091 = vmatmul.mubr.f32.gmra.mxu0 %v2988
      %v3092 = vpop.f32.mrf.mxu0
      %v3093 = vadd.f32 0.0, %v3092
      %v3094 = vpop.f32.mrf.mxu0
      %3095 = vmatprep.mubr.f32.mxu0 0.0
      %3096 = vmatmul.mubr.f32.gmra.mxu0 %v2991
      %v3097 = vpop.f32.mrf.mxu0
      %v3098 = vadd.f32 0.0, %v3097
      %v3099 = vpop.f32.mrf.mxu0
      %3100 = vdwg.mxu0
      %v3101 = vadd.f32 %v2651, %v3063
      %v3102 = vadd.f32 %v2652, %v3068
      %v3103 = vadd.f32 %v2653, %v3073
      %v3104 = vadd.f32 %v2654, %v3078
      %v3105 = vadd.f32 %v2655, %v3083
      %v3106 = vadd.f32 %v2656, %v3088
      %v3107 = vadd.f32 %v2657, %v3093
      %v3108 = vadd.f32 %v2658, %v3098
      %v3109 = vld [vmem:[#allocation3 + $0x21] sm:$0xff]
      %v3110 = vld [vmem:[#allocation3 + $0x29] sm:$0xff]
      %v3111 = vld [vmem:[#allocation3 + $0x31] sm:$0xff]
      %v3112 = vld [vmem:[#allocation3 + $0x39] sm:$0xff]
      %v3113 = vld [vmem:[#allocation3 + $0x41] sm:$0xff]
      %v3114 = vld [vmem:[#allocation3 + $0x49] sm:$0xff]
      %v3115 = vld [vmem:[#allocation3 + $0x51] sm:$0xff]
      %v3116 = vld [vmem:[#allocation3 + $0x59] sm:$0xff]
      %s3117 = scalar_lea.vmem %s7, 28
      %v3118 = vld [vmem:[%s3117] sm:$0xf]
      %v3120 = vsel %vm685, %v3109, 0
      %v3123 = vsel %vm685, %v3110, 0
      %v3126 = vsel %vm685, %v3111, 0
      %v3129 = vsel %vm685, %v3112, 0
      %v3132 = vsel %vm685, %v3113, 0
      %v3135 = vsel %vm685, %v3114, 0
      %v3138 = vsel %vm685, %v3115, 0
      %v3141 = vsel %vm685, %v3116, 0
      %v3144 = vsel %vm755, %v3118, 0
      %3146 = vmatprep.subr.mxu0 0.0
      %3147 = vmatpush1.msra.mxu0 0.0
      %3148 = vmatprep.subr.mxu0 0.0
      %3149 = vmatpush1.msra.mxu0 0.0
      %3150 = vmatprep.subr.mxu0 0.0
      %3151 = vmatpush1.msra.mxu0 0.0
      %3152 = vmatprep.subr.mxu0 0.0
      %3153 = vmatpush1.msra.mxu0 0.0
      %3154 = vmatprep.subr.mxu0 0.0
      %3155 = vmatpush1.msra.mxu0 0.0
      %3156 = vmatprep.subr.mxu0 0.0
      %3157 = vmatpush1.msra.mxu0 0.0
      %3158 = vmatprep.subr.mxu0 0.0
      %3159 = vmatpush1.msra.mxu0 0.0
      %3160 = vmatprep.subr.mxu0 0.0
      %3161 = vmatpush1.msra.mxu0 0.0
      %3162 = vmatprep.subr.mxu0 0.0
      %3163 = vmatpush1.msra.mxu0 0.0
      %3164 = vmatprep.subr.mxu0 0.0
      %3165 = vmatpush1.msra.mxu0 0.0
      %3166 = vmatprep.subr.mxu0 0.0
      %3167 = vmatpush1.msra.mxu0 0.0
      %3168 = vmatprep.subr.mxu0 0.0
      %3169 = vmatpush1.msra.mxu0 0.0
      %3170 = vmatprep.subr.mxu0 0.0
      %3171 = vmatpush1.msra.mxu0 0.0
      %3172 = vmatprep.subr.mxu0 0.0
      %3173 = vmatpush1.msra.mxu0 0.0
      %3174 = vmatprep.subr.mxu0 0.0
      %3175 = vmatpush1.msra.mxu0 0.0
      %3176 = vmatprep.subr.mxu0 0.0
      %3177 = vmatpush1.msra.mxu0 %v3144
      %3178 = vmatprep.subr.mxu0 0.0
      %3179 = vmatpush2.msra.mxu0 0.0
      %3180 = vmatprep.subr.mxu0 0.0
      %3181 = vmatpush2.msra.mxu0 0.0
      %3182 = vmatprep.subr.mxu0 0.0
      %3183 = vmatpush2.msra.mxu0 0.0
      %3184 = vmatprep.subr.mxu0 0.0
      %3185 = vmatpush2.msra.mxu0 0.0
      %3186 = vmatprep.subr.mxu0 0.0
      %3187 = vmatpush2.msra.mxu0 0.0
      %3188 = vmatprep.subr.mxu0 0.0
      %3189 = vmatpush2.msra.mxu0 0.0
      %3190 = vmatprep.subr.mxu0 0.0
      %3191 = vmatpush2.msra.mxu0 0.0
      %3192 = vmatprep.subr.mxu0 0.0
      %3193 = vmatpush2.msra.mxu0 0.0
      %3194 = vmatprep.subr.mxu0 0.0
      %3195 = vmatpush2.msra.mxu0 0.0
      %3196 = vmatprep.subr.mxu0 0.0
      %3197 = vmatpush2.msra.mxu0 0.0
      %3198 = vmatprep.subr.mxu0 0.0
      %3199 = vmatpush2.msra.mxu0 0.0
      %3200 = vmatprep.subr.mxu0 0.0
      %3201 = vmatpush2.msra.mxu0 0.0
      %3202 = vmatprep.subr.mxu0 0.0
      %3203 = vmatpush2.msra.mxu0 0.0
      %3204 = vmatprep.subr.mxu0 0.0
      %3205 = vmatpush2.msra.mxu0 0.0
      %3206 = vmatprep.subr.mxu0 0.0
      %3207 = vmatpush2.msra.mxu0 0.0
      %3208 = vmatprep.subr.mxu0 0.0
      %3209 = vmatpush2.msra.mxu0 0.0
      %3210 = vmatprep.mubr.f32.mxu0 0.0
      %3211 = vmatmul.mubr.f32.gmra.mxu0 %v3120
      %v3212 = vpop.f32.mrf.mxu0
      %v3213 = vadd.f32 0.0, %v3212
      %v3214 = vpop.f32.mrf.mxu0
      %3215 = vmatprep.mubr.f32.mxu0 0.0
      %3216 = vmatmul.mubr.f32.gmra.mxu0 %v3123
      %v3217 = vpop.f32.mrf.mxu0
      %v3218 = vadd.f32 0.0, %v3217
      %v3219 = vpop.f32.mrf.mxu0
      %3220 = vmatprep.mubr.f32.mxu0 0.0
      %3221 = vmatmul.mubr.f32.gmra.mxu0 %v3126
      %v3222 = vpop.f32.mrf.mxu0
      %v3223 = vadd.f32 0.0, %v3222
      %v3224 = vpop.f32.mrf.mxu0
      %3225 = vmatprep.mubr.f32.mxu0 0.0
      %3226 = vmatmul.mubr.f32.gmra.mxu0 %v3129
      %v3227 = vpop.f32.mrf.mxu0
      %v3228 = vadd.f32 0.0, %v3227
      %v3229 = vpop.f32.mrf.mxu0
      %3230 = vmatprep.mubr.f32.mxu0 0.0
      %3231 = vmatmul.mubr.f32.gmra.mxu0 %v3132
      %v3232 = vpop.f32.mrf.mxu0
      %v3233 = vadd.f32 0.0, %v3232
      %v3234 = vpop.f32.mrf.mxu0
      %3235 = vmatprep.mubr.f32.mxu0 0.0
      %3236 = vmatmul.mubr.f32.gmra.mxu0 %v3135
      %v3237 = vpop.f32.mrf.mxu0
      %v3238 = vadd.f32 0.0, %v3237
      %v3239 = vpop.f32.mrf.mxu0
      %3240 = vmatprep.mubr.f32.mxu0 0.0
      %3241 = vmatmul.mubr.f32.gmra.mxu0 %v3138
      %v3242 = vpop.f32.mrf.mxu0
      %v3243 = vadd.f32 0.0, %v3242
      %v3244 = vpop.f32.mrf.mxu0
      %3245 = vmatprep.mubr.f32.mxu0 0.0
      %3246 = vmatmul.mubr.f32.gmra.mxu0 %v3141
      %v3247 = vpop.f32.mrf.mxu0
      %v3248 = vadd.f32 0.0, %v3247
      %v3249 = vpop.f32.mrf.mxu0
      %3250 = vdwg.mxu0
      %v3251 = vadd.f32 %v2801, %v3213
      %v3252 = vadd.f32 %v2802, %v3218
      %v3253 = vadd.f32 %v2803, %v3223
      %v3254 = vadd.f32 %v2804, %v3228
      %v3255 = vadd.f32 %v2805, %v3233
      %v3256 = vadd.f32 %v2806, %v3238
      %v3257 = vadd.f32 %v2807, %v3243
      %v3258 = vadd.f32 %v2808, %v3248
      %v3259 = vld [vmem:[#allocation3 + $0x22] sm:$0xff]
      %v3260 = vld [vmem:[#allocation3 + $0x2a] sm:$0xff]
      %v3261 = vld [vmem:[#allocation3 + $0x32] sm:$0xff]
      %v3262 = vld [vmem:[#allocation3 + $0x3a] sm:$0xff]
      %v3263 = vld [vmem:[#allocation3 + $0x42] sm:$0xff]
      %v3264 = vld [vmem:[#allocation3 + $0x4a] sm:$0xff]
      %v3265 = vld [vmem:[#allocation3 + $0x52] sm:$0xff]
      %v3266 = vld [vmem:[#allocation3 + $0x5a] sm:$0xff]
      %s3267 = scalar_lea.vmem %s7, 32
      %v3268 = vld [vmem:[%s3267] sm:$0xf]
      %v3270 = vsel %vm685, %v3259, 0
      %v3273 = vsel %vm685, %v3260, 0
      %v3276 = vsel %vm685, %v3261, 0
      %v3279 = vsel %vm685, %v3262, 0
      %v3282 = vsel %vm685, %v3263, 0
      %v3285 = vsel %vm685, %v3264, 0
      %v3288 = vsel %vm685, %v3265, 0
      %v3291 = vsel %vm685, %v3266, 0
      %v3294 = vsel %vm755, %v3268, 0
      %3296 = vmatprep.subr.mxu0 0.0
      %3297 = vmatpush1.msra.mxu0 0.0
      %3298 = vmatprep.subr.mxu0 0.0
      %3299 = vmatpush1.msra.mxu0 0.0
      %3300 = vmatprep.subr.mxu0 0.0
      %3301 = vmatpush1.msra.mxu0 0.0
      %3302 = vmatprep.subr.mxu0 0.0
      %3303 = vmatpush1.msra.mxu0 0.0
      %3304 = vmatprep.subr.mxu0 0.0
      %3305 = vmatpush1.msra.mxu0 0.0
      %3306 = vmatprep.subr.mxu0 0.0
      %3307 = vmatpush1.msra.mxu0 0.0
      %3308 = vmatprep.subr.mxu0 0.0
      %3309 = vmatpush1.msra.mxu0 0.0
      %3310 = vmatprep.subr.mxu0 0.0
      %3311 = vmatpush1.msra.mxu0 0.0
      %3312 = vmatprep.subr.mxu0 0.0
      %3313 = vmatpush1.msra.mxu0 0.0
      %3314 = vmatprep.subr.mxu0 0.0
      %3315 = vmatpush1.msra.mxu0 0.0
      %3316 = vmatprep.subr.mxu0 0.0
      %3317 = vmatpush1.msra.mxu0 0.0
      %3318 = vmatprep.subr.mxu0 0.0
      %3319 = vmatpush1.msra.mxu0 0.0
      %3320 = vmatprep.subr.mxu0 0.0
      %3321 = vmatpush1.msra.mxu0 0.0
      %3322 = vmatprep.subr.mxu0 0.0
      %3323 = vmatpush1.msra.mxu0 0.0
      %3324 = vmatprep.subr.mxu0 0.0
      %3325 = vmatpush1.msra.mxu0 0.0
      %3326 = vmatprep.subr.mxu0 0.0
      %3327 = vmatpush1.msra.mxu0 %v3294
      %3328 = vmatprep.subr.mxu0 0.0
      %3329 = vmatpush2.msra.mxu0 0.0
      %3330 = vmatprep.subr.mxu0 0.0
      %3331 = vmatpush2.msra.mxu0 0.0
      %3332 = vmatprep.subr.mxu0 0.0
      %3333 = vmatpush2.msra.mxu0 0.0
      %3334 = vmatprep.subr.mxu0 0.0
      %3335 = vmatpush2.msra.mxu0 0.0
      %3336 = vmatprep.subr.mxu0 0.0
      %3337 = vmatpush2.msra.mxu0 0.0
      %3338 = vmatprep.subr.mxu0 0.0
      %3339 = vmatpush2.msra.mxu0 0.0
      %3340 = vmatprep.subr.mxu0 0.0
      %3341 = vmatpush2.msra.mxu0 0.0
      %3342 = vmatprep.subr.mxu0 0.0
      %3343 = vmatpush2.msra.mxu0 0.0
      %3344 = vmatprep.subr.mxu0 0.0
      %3345 = vmatpush2.msra.mxu0 0.0
      %3346 = vmatprep.subr.mxu0 0.0
      %3347 = vmatpush2.msra.mxu0 0.0
      %3348 = vmatprep.subr.mxu0 0.0
      %3349 = vmatpush2.msra.mxu0 0.0
      %3350 = vmatprep.subr.mxu0 0.0
      %3351 = vmatpush2.msra.mxu0 0.0
      %3352 = vmatprep.subr.mxu0 0.0
      %3353 = vmatpush2.msra.mxu0 0.0
      %3354 = vmatprep.subr.mxu0 0.0
      %3355 = vmatpush2.msra.mxu0 0.0
      %3356 = vmatprep.subr.mxu0 0.0
      %3357 = vmatpush2.msra.mxu0 0.0
      %3358 = vmatprep.subr.mxu0 0.0
      %3359 = vmatpush2.msra.mxu0 0.0
      %3360 = vmatprep.mubr.f32.mxu0 0.0
      %3361 = vmatmul.mubr.f32.gmra.mxu0 %v3270
      %v3362 = vpop.f32.mrf.mxu0
      %v3363 = vadd.f32 0.0, %v3362
      %v3364 = vpop.f32.mrf.mxu0
      %3365 = vmatprep.mubr.f32.mxu0 0.0
      %3366 = vmatmul.mubr.f32.gmra.mxu0 %v3273
      %v3367 = vpop.f32.mrf.mxu0
      %v3368 = vadd.f32 0.0, %v3367
      %v3369 = vpop.f32.mrf.mxu0
      %3370 = vmatprep.mubr.f32.mxu0 0.0
      %3371 = vmatmul.mubr.f32.gmra.mxu0 %v3276
      %v3372 = vpop.f32.mrf.mxu0
      %v3373 = vadd.f32 0.0, %v3372
      %v3374 = vpop.f32.mrf.mxu0
      %3375 = vmatprep.mubr.f32.mxu0 0.0
      %3376 = vmatmul.mubr.f32.gmra.mxu0 %v3279
      %v3377 = vpop.f32.mrf.mxu0
      %v3378 = vadd.f32 0.0, %v3377
      %v3379 = vpop.f32.mrf.mxu0
      %3380 = vmatprep.mubr.f32.mxu0 0.0
      %3381 = vmatmul.mubr.f32.gmra.mxu0 %v3282
      %v3382 = vpop.f32.mrf.mxu0
      %v3383 = vadd.f32 0.0, %v3382
      %v3384 = vpop.f32.mrf.mxu0
      %3385 = vmatprep.mubr.f32.mxu0 0.0
      %3386 = vmatmul.mubr.f32.gmra.mxu0 %v3285
      %v3387 = vpop.f32.mrf.mxu0
      %v3388 = vadd.f32 0.0, %v3387
      %v3389 = vpop.f32.mrf.mxu0
      %3390 = vmatprep.mubr.f32.mxu0 0.0
      %3391 = vmatmul.mubr.f32.gmra.mxu0 %v3288
      %v3392 = vpop.f32.mrf.mxu0
      %v3393 = vadd.f32 0.0, %v3392
      %v3394 = vpop.f32.mrf.mxu0
      %3395 = vmatprep.mubr.f32.mxu0 0.0
      %3396 = vmatmul.mubr.f32.gmra.mxu0 %v3291
      %v3397 = vpop.f32.mrf.mxu0
      %v3398 = vadd.f32 0.0, %v3397
      %v3399 = vpop.f32.mrf.mxu0
      %3400 = vdwg.mxu0
      %v3401 = vadd.f32 %v2951, %v3363
      %v3402 = vadd.f32 %v2952, %v3368
      %v3403 = vadd.f32 %v2953, %v3373
      %v3404 = vadd.f32 %v2954, %v3378
      %v3405 = vadd.f32 %v2955, %v3383
      %v3406 = vadd.f32 %v2956, %v3388
      %v3407 = vadd.f32 %v2957, %v3393
      %v3408 = vadd.f32 %v2958, %v3398
      %v3409 = vlaneseq
      %v3410 = vshrl.u32 %v3409, 7
      %v3411 = vadd.s32 %v3410, 8
      %vm3412 = vcmp.gt.s32.totalorder %v3410, 0
      %vm3413 = vcmp.gt.s32.totalorder %v3411, 0
      %v3414 = vsel %vm3412, 1, 0
      %v3415 = vsel %vm3413, 1, 0
      %v3416 = vcvt.s32.f32 %v3414
      %v3417 = vcvt.s32.f32 %v3415
      %vm3418 = vcmp.lt.s32.totalorder %v3410, 15
      %vm3419 = vcmp.lt.s32.totalorder %v3411, 15
      %v3420 = vsel %vm3418, 1, 0
      %v3421 = vsel %vm3419, 1, 0
      %v3422 = vcvt.s32.f32 %v3420
      %v3423 = vcvt.s32.f32 %v3421
      %v3424 = vmul.f32 %v3101, %v3416
      %v3425 = vmul.f32 %v3102, %v3417
      %v3426 = vmul.f32 %v3103, %v3416
      %v3427 = vmul.f32 %v3104, %v3417
      %v3428 = vmul.f32 %v3105, %v3416
      %v3429 = vmul.f32 %v3106, %v3417
      %v3430 = vmul.f32 %v3107, %v3416
      %v3431 = vmul.f32 %v3108, %v3417
      %v3432 = vadd.f32 %v3251, %v3424
      %v3433 = vadd.f32 %v3252, %v3425
      %v3434 = vadd.f32 %v3253, %v3426
      %v3435 = vadd.f32 %v3254, %v3427
      %v3436 = vadd.f32 %v3255, %v3428
      %v3437 = vadd.f32 %v3256, %v3429
      %v3438 = vadd.f32 %v3257, %v3430
      %v3439 = vadd.f32 %v3258, %v3431
      %v3440 = vmul.f32 %v3401, %v3422
      %v3441 = vmul.f32 %v3402, %v3423
      %v3442 = vmul.f32 %v3403, %v3422
      %v3443 = vmul.f32 %v3404, %v3423
      %v3444 = vmul.f32 %v3405, %v3422
      %v3445 = vmul.f32 %v3406, %v3423
      %v3446 = vmul.f32 %v3407, %v3422
      %v3447 = vmul.f32 %v3408, %v3423
      %v3448 = vadd.f32 %v3432, %v3440
      %v3449 = vadd.f32 %v3433, %v3441
      %v3450 = vadd.f32 %v3434, %v3442
      %v3451 = vadd.f32 %v3435, %v3443
      %v3452 = vadd.f32 %v3436, %v3444
      %v3453 = vadd.f32 %v3437, %v3445
      %v3454 = vadd.f32 %v3438, %v3446
      %v3455 = vadd.f32 %v3439, %v3447
      %v3456 = vmax.f32 %v3448, 0.0
      %v3457 = vmax.f32 %v3449, 0.0
      %v3458 = vmax.f32 %v3450, 0.0
      %v3459 = vmax.f32 %v3451, 0.0
      %v3460 = vmax.f32 %v3452, 0.0
      %v3461 = vmax.f32 %v3453, 0.0
      %v3462 = vmax.f32 %v3454, 0.0
      %v3463 = vmax.f32 %v3455, 0.0
      %3464 = vst.msk [vmem:[%s662] sm:$0xff] %vm685, %v3456
      %3465 = vst.msk [vmem:[%s662 + $0x8] sm:$0xff] %vm685, %v3457
      %3466 = vst.msk [vmem:[%s662 + $0x10] sm:$0xff] %vm685, %v3458
      %3467 = vst.msk [vmem:[%s662 + $0x18] sm:$0xff] %vm685, %v3459
      %3468 = vst.msk [vmem:[%s662 + $0x20] sm:$0xff] %vm685, %v3460
      %3469 = vst.msk [vmem:[%s662 + $0x28] sm:$0xff] %vm685, %v3461
      %3470 = vst.msk [vmem:[%s662 + $0x30] sm:$0xff] %vm685, %v3462
      %3471 = vst.msk [vmem:[%s662 + $0x38] sm:$0xff] %vm685, %v3463
      %s3472 = smul.u32 4, %s25
      %p3473 = scmp.lt.s32.totalorder %s24, 1
      %s3474 = scalar_select %p3473, %s24, 1
      %p3475 = scmp.lt.s32.totalorder %s3472, 15
      %s3476 = scalar_select %p3475, %s3472, 15
      %s3477 = smul.addr %s3476, 2
      %s3478 = smul.addr %s3474, 32
      %s3479 = sadd.s32 %s3477, %s3478
      %s3480 = smul.addr %s3479, 8
      %s3481 = scalar_lea.vmem %s9, %s3480
      // Predicated region
      $region57: #{_lambda_.4} parent=55 // pred_check
        %p3482 = pneg %p315
      $region58: #{_lambda_.4} parent=55 // pred_check_branch
        %3484 = sbr.rel (%p3482) target = $region60
      $region59: #{_lambda_.4} parent=55 // pred_region
        %s3485 = smul.u32 4, %s25
      $region60: #{_lambda_.4} parent=55 // pred_fallthru
        _
    $region56: #{_lambda_.4} parent=5 // pred_fallthru
      _
    %p3486 = scmp.le.s32.totalorder 2, %s15
    // Predicated region
    $region61: #{_lambda_.4} parent=5 // pred_check
      %p3487 = pneg %p3486
    $region62: #{_lambda_.4} parent=5 // pred_check_branch
      %3489 = sbr.rel (%p3487) target = $region64
    $region63: #{_lambda_.4} parent=5 // pred_region
      %s3490 = ssub.s32 %s15, 2
      // Predicated region
      $region65: #{_lambda_.4} parent=63 // pred_check
        %p3491 = pneg %p321
      $region66: #{_lambda_.4} parent=63 // pred_check_branch
        %3493 = sbr.rel (%p3491) target = $region68
      $region67: #{_lambda_.4} parent=63 // pred_region
        %s3494 = smul.u32 4, %s27
        %p3495 = scmp.lt.s32.totalorder %s26, 1
        %s3496 = scalar_select %p3495, %s26, 1
        %p3497 = scmp.lt.s32.totalorder %s3494, 15
        %s3498 = scalar_select %p3497, %s3494, 15
        %s3499 = smul.addr %s3498, 2
        %s3500 = smul.addr %s3496, 32
        %s3501 = sadd.s32 %s3499, %s3500
        %s3502 = smul.addr %s3501, 8
        %s3503 = scalar_lea.vmem %s9, %s3502
      $region68: #{_lambda_.4} parent=63 // pred_fallthru
        _
    $region64: #{_lambda_.4} parent=5 // pred_fallthru
      _
  $region6: #{_lambda_.4} parent=0 // loop_footer
    %s19 = sadd.s32 1, %s15
  $region7: #{_lambda_.4} parent=0 // loop_footer_branch
    %14 = sbr.rel target = $region3
  $region8: #{_lambda_.4} parent=0 // loop_exit
    _

</llo_original>
